<compile_context>
chip_gen: v7x
topology: tpu7x:2x2x1
jax: 0.10.0
libtpu: 0.0.40
codegen_flags: <defaults>
</compile_context>

<pallas_src>
import functools

import jax
import jax.numpy as jnp
from jax.experimental import pallas as pl
from jax.experimental.pallas import tpu as pltpu


# ---------------------------------------------------------------------------
# Pallas kernel: full TransformerEncoderLayer forward, all batches at once
# ---------------------------------------------------------------------------
def _layer_norm(h, g, b, eps):
    mu = jnp.mean(h, axis=-1, keepdims=True)
    var = jnp.mean((h - mu) ** 2, axis=-1, keepdims=True)
    return (h - mu) * jax.lax.rsqrt(var + eps) * g + b


def encoder_layer_kernel(x_ref, wq_ref, wk_ref, wv_ref, wproj_ref, bproj_ref,
                         ln1g_ref, ln1b_ref, ln2g_ref, ln2b_ref,
                         w1_ref, b1_ref, w2_ref, b2_ref,
                         rpk_ref, rpv_ref, mask_ref,
                         out_ref, ctx_sc,
                         *, batch, tokens, scale, eps):
    x = x_ref[...]                                    # (B*N, C) f32
    masks = mask_ref[...]                             # (H, C) f32 one-hot head masks

    # ------------- attention block (pre-norm), flat over all rows -------------
    h1 = _layer_norm(x, ln1g_ref[0], ln1b_ref[0], eps).astype(jnp.bfloat16)
    q = jnp.dot(h1, wq_ref[...], preferred_element_type=jnp.float32) * scale
    k = jnp.dot(h1, wk_ref[...], preferred_element_type=jnp.float32)
    v = jnp.dot(h1, wv_ref[...], preferred_element_type=jnp.float32)

    rpk = rpk_ref[...]                                # (N, N, C) bf16, head-replicated
    rpv = rpv_ref[...]                                # (N, N, C) bf16, head-replicated

    for b in range(batch):                            # static unroll, B is tiny
        lo = b * tokens
        qb = q[lo:lo + tokens, :]                     # (N, C) f32, scale folded in
        kb = k[lo:lo + tokens, :].astype(jnp.bfloat16)
        vb = v[lo:lo + tokens, :].astype(jnp.bfloat16)

        # masked per-head queries, (N, H, C): row h keeps only head-h channels
        qm = (qb[:, None, :] * masks[None, :, :]).astype(jnp.bfloat16)

        # fuse plain K with rel-pos-K:  KR[i, j, c] = k[j, c] + rpk[i, j, c]
        kr = kb[None, :, :] + rpk                     # (N, N, C) bf16
        # logits[i, h, j] = sum_c qm[i,h,c] * KR[i,j,c]   (batched over i, MXU)
        logits = jax.lax.dot_general(
            qm, kr, (((2,), (2,)), ((0,), (0,))),
            preferred_element_type=jnp.float32)       # (N, H, N)

        logits = logits - jnp.max(logits, axis=-1, keepdims=True)
        p = jnp.exp(logits)
        attn = (p * pl.reciprocal(jnp.sum(p, axis=-1, keepdims=True), approx=True)
                ).astype(jnp.bfloat16)                # softmax, (N, H, N)

        # fuse plain V with rel-pos-V:  VR[i, j, c] = v[j, c] + rpv[i, j, c]
        vr = vb[None, :, :] + rpv                     # (N, N, C) bf16
        # ctx[i, h, c] = sum_j attn[i,h,j] * VR[i,j,c]    (batched over i, MXU)
        ctx = jax.lax.dot_general(
            attn, vr, (((2,), (1,)), ((0,), (0,))),
            preferred_element_type=jnp.float32)       # (N, H, C)

        # pick each channel's own head -> concatenated (N, C) context
        ctx_sc[pl.ds(lo, tokens), :] = jnp.sum(ctx * masks[None, :, :], axis=1)

    attn_out = jnp.dot(ctx_sc[...].astype(jnp.bfloat16), wproj_ref[...],
                       preferred_element_type=jnp.float32) + bproj_ref[0]
    x1 = x + attn_out                                 # residual 1 (dropout/drop_path = 0)

    # ------------- feed-forward block (pre-norm), flat over all rows ----------
    h2 = _layer_norm(x1, ln2g_ref[0], ln2b_ref[0], eps).astype(jnp.bfloat16)
    f1 = jnp.dot(h2, w1_ref[...], preferred_element_type=jnp.float32) + b1_ref[0]
    g = 0.5 * f1 * (1.0 + jax.lax.erf(f1 * 0.7071067811865476))   # exact GELU
    f2 = jnp.dot(g.astype(jnp.bfloat16), w2_ref[...],
                 preferred_element_type=jnp.float32) + b2_ref[0]
    out_ref[...] = x1 + f2                            # residual 2


# ---------------------------------------------------------------------------
# Wrapper
# ---------------------------------------------------------------------------
def transformer_encoder_layer(x, wqkv, wproj, bproj, ln1g, ln1b, ln2g, ln2b,
                              w1, b1, w2, b2, rpk, rpv, *, num_heads):
    B, N, C = x.shape
    H = num_heads
    d = C // H
    BN = B * N
    bf16 = jnp.bfloat16

    # ---- free layout plumbing in plain JAX (outside the kernel) ----
    x_flat = x.reshape(BN, C)
    wq = wqkv[:, 0 * C:1 * C].astype(bf16)
    wk = wqkv[:, 1 * C:2 * C].astype(bf16)
    wv = wqkv[:, 2 * C:3 * C].astype(bf16)
    wproj16 = wproj.astype(bf16)
    w1_16 = w1.astype(bf16)
    w2_16 = w2.astype(bf16)
    # head-replicated rel-pos tensors with lane-dense last dim C = H * head_dim
    rpk_rep = jnp.tile(rpk, (1, 1, H)).astype(bf16)          # (N, N, C)
    rpv_rep = jnp.tile(rpv, (1, 1, H)).astype(bf16)          # (N, N, C)
    # one-hot head masks over channels
    masks = (jnp.arange(C)[None, :] // d ==
             jnp.arange(H)[:, None]).astype(jnp.float32)     # (H, C)

    kernel = functools.partial(encoder_layer_kernel, batch=B, tokens=N,
                               scale=d ** -0.5, eps=1e-5)

    def full_spec(a):
        nd = a.ndim
        return pl.BlockSpec(a.shape, lambda i, _nd=nd: (0,) * _nd)

    params = (wq, wk, wv, wproj16, bproj, ln1g, ln1b, ln2g, ln2b,
              w1_16, b1, w2_16, b2, rpk_rep, rpv_rep, masks)
    in_specs = [full_spec(x_flat)] + [full_spec(a) for a in params]

    out_flat = pl.pallas_call(
        kernel,
        out_shape=jax.ShapeDtypeStruct((BN, C), jnp.float32),
        grid_spec=pltpu.PrefetchScalarGridSpec(
            num_scalar_prefetch=0,
            grid=(1,),                       # single invocation: all batches together
            in_specs=in_specs,
            out_specs=pl.BlockSpec((BN, C), lambda i: (0, 0)),
            scratch_shapes=[pltpu.VMEM((BN, C), jnp.float32)]),
        compiler_params=pltpu.CompilerParams(
            dimension_semantics=("arbitrary",)),
    )(x_flat, *params)
    return out_flat.reshape(B, N, C)


# ---------------------------------------------------------------------------
# RelativePosition2D (index/gather glue, done in plain JAX)
# TODO(synk): the index-table construction + embedding gather is a
# data-dependent gather with no clean Pallas equivalent; it is computed in
# plain JAX here and fed to the kernel as dense rel-pos tensors.
# ---------------------------------------------------------------------------
def relative_position_2d(table_v, table_h, N, length):
    lq = N - 1
    s = int(lq ** 0.5)
    rq = jnp.arange(lq)
    rk = jnp.arange(lq)
    dv = rk[None, :] // s - rq[:, None] // s
    dh = rk[None, :] % s - rq[:, None] % s
    fv = jnp.clip(dv, -length, length) + length + 1
    fh = jnp.clip(dh, -length, length) + length + 1
    fv = jnp.pad(fv, ((1, 0), (1, 0)), constant_values=0)
    fh = jnp.pad(fh, ((1, 0), (1, 0)), constant_values=0)
    return table_v[fv] + table_h[fh]            # (N, N, head_dim)


# ---------------------------------------------------------------------------
# Pure-JAX reference (mirrors the PyTorch forward) for a sanity check
# ---------------------------------------------------------------------------
def reference_forward(x, wqkv, wproj, bproj, ln1g, ln1b, ln2g, ln2b,
                      w1, b1, w2, b2, rpk, rpv, num_heads):
    B, N, C = x.shape
    H = num_heads
    d = C // H
    scale = d ** -0.5

    def ln(h, g, b):
        mu = h.mean(-1, keepdims=True)
        var = ((h - mu) ** 2).mean(-1, keepdims=True)
        return (h - mu) / jnp.sqrt(var + 1e-5) * g + b

    residual = x
    h = ln(x, ln1g[0], ln1b[0])
    qkv = (h @ wqkv).reshape(B, N, 3, H, d).transpose(2, 0, 3, 1, 4)
    q, k, v = qkv[0], qkv[1], qkv[2]            # (B, H, N, d)
    attn = jnp.einsum('bhid,bhjd->bhij', q, k) * scale
    attn = attn + jnp.einsum('bhid,ijd->bhij', q, rpk) * scale
    attn = jax.nn.softmax(attn, axis=-1)
    out = jnp.einsum('bhij,bhjd->bhid', attn, v)
    out = out + jnp.einsum('bhij,ijd->bhid', attn, rpv)
    out = out.transpose(0, 2, 1, 3).reshape(B, N, C)
    out = out @ wproj + bproj[0]
    x1 = residual + out
    h2 = ln(x1, ln2g[0], ln2b[0])
    f1 = h2 @ w1 + b1[0]
    g = 0.5 * f1 * (1.0 + jax.lax.erf(f1 * 0.7071067811865476))
    f2 = g @ w2 + b2[0]
    return x1 + f2


# ---------------------------------------------------------------------------
if __name__ == "__main__":
    B, N = 2, 17                       # 4x4 patches + cls token
    embed_dim = 64
    num_heads = 4
    mlp_ratio = 4.0
    rpe_length = 14
    head_dim = embed_dim // num_heads
    hidden = int(embed_dim * mlp_ratio)

    key = jax.random.PRNGKey(0)
    ks = jax.random.split(key, 12)
    x = jax.random.normal(ks[0], (B, N, embed_dim), jnp.float32)

    # deterministic synthetic parameters (matching module __init__ shapes)
    wqkv = 0.02 * jax.random.normal(ks[1], (embed_dim, 3 * embed_dim), jnp.float32)  # qkv_bias=False
    wproj = 0.02 * jax.random.normal(ks[2], (embed_dim, embed_dim), jnp.float32)
    bproj = 0.02 * jax.random.normal(ks[3], (1, embed_dim), jnp.float32)
    ln1g = jnp.ones((1, embed_dim), jnp.float32)
    ln1b = jnp.zeros((1, embed_dim), jnp.float32)
    ln2g = jnp.ones((1, embed_dim), jnp.float32)
    ln2b = jnp.zeros((1, embed_dim), jnp.float32)
    w1 = 0.02 * jax.random.normal(ks[4], (embed_dim, hidden), jnp.float32)
    b1 = 0.02 * jax.random.normal(ks[5], (1, hidden), jnp.float32)
    w2 = 0.02 * jax.random.normal(ks[6], (hidden, embed_dim), jnp.float32)
    b2 = 0.02 * jax.random.normal(ks[7], (1, embed_dim), jnp.float32)
    # RelativePosition2D embedding tables: (2*length + 2, head_embed_dim)
    tk_v = 0.02 * jax.random.normal(ks[8], (2 * rpe_length + 2, head_dim), jnp.float32)
    tk_h = 0.02 * jax.random.normal(ks[9], (2 * rpe_length + 2, head_dim), jnp.float32)
    tv_v = 0.02 * jax.random.normal(ks[10], (2 * rpe_length + 2, head_dim), jnp.float32)
    tv_h = 0.02 * jax.random.normal(ks[11], (2 * rpe_length + 2, head_dim), jnp.float32)

    rpk = relative_position_2d(tk_v, tk_h, N, rpe_length)   # (N, N, head_dim)
    rpv = relative_position_2d(tv_v, tv_h, N, rpe_length)   # (N, N, head_dim)

    out = transformer_encoder_layer(
        x, wqkv, wproj, bproj, ln1g, ln1b, ln2g, ln2b,
        w1, b1, w2, b2, rpk, rpv, num_heads=num_heads)
    out = jax.block_until_ready(out)

    ref = reference_forward(
        x, wqkv, wproj, bproj, ln1g, ln1b, ln2g, ln2b,
        w1, b1, w2, b2, rpk, rpv, num_heads)
    assert out.shape == (B, N, embed_dim)
    assert jnp.allclose(out, ref, atol=5e-2, rtol=5e-2), "mismatch vs reference"

    print("KERNEL_OK")
</pallas_src>

<mosaic_0001>
module attributes {stable_mosaic.version = 11 : i64} {
  func.func @encoder_layer_kernel(%arg0: i32, %arg1: memref<34x64xf32, #tpu.memory_space<vmem>>, %arg2: memref<64x64xbf16, #tpu.memory_space<vmem>>, %arg3: memref<64x64xbf16, #tpu.memory_space<vmem>>, %arg4: memref<64x64xbf16, #tpu.memory_space<vmem>>, %arg5: memref<64x64xbf16, #tpu.memory_space<vmem>>, %arg6: memref<1x64xf32, #tpu.memory_space<vmem>>, %arg7: memref<1x64xf32, #tpu.memory_space<vmem>>, %arg8: memref<1x64xf32, #tpu.memory_space<vmem>>, %arg9: memref<1x64xf32, #tpu.memory_space<vmem>>, %arg10: memref<1x64xf32, #tpu.memory_space<vmem>>, %arg11: memref<64x256xbf16, #tpu.memory_space<vmem>>, %arg12: memref<1x256xf32, #tpu.memory_space<vmem>>, %arg13: memref<256x64xbf16, #tpu.memory_space<vmem>>, %arg14: memref<1x64xf32, #tpu.memory_space<vmem>>, %arg15: memref<17x17x64xbf16, #tpu.memory_space<vmem>>, %arg16: memref<17x17x64xbf16, #tpu.memory_space<vmem>>, %arg17: memref<4x64xf32, #tpu.memory_space<vmem>>, %arg18: memref<34x64xf32, #tpu.memory_space<vmem>>, %arg19: memref<34x64xf32, #tpu.memory_space<vmem>>) attributes {dimension_semantics = [#tpu.dimension_semantics<arbitrary>], iteration_bounds = array<i64: 1>, scalar_prefetch = 0 : i64, scratch_operands = 1 : i64, tpu.core_type = #tpu.core_type<tc>, window_params = [{pipeline_mode = #tpu.pipeline_mode<synchronous>, transform_indices = @transform_0, window_bounds = array<i64: 34, 64>}, {pipeline_mode = #tpu.pipeline_mode<synchronous>, transform_indices = @transform_1, window_bounds = array<i64: 64, 64>}, {pipeline_mode = #tpu.pipeline_mode<synchronous>, transform_indices = @transform_2, window_bounds = array<i64: 64, 64>}, {pipeline_mode = #tpu.pipeline_mode<synchronous>, transform_indices = @transform_3, window_bounds = array<i64: 64, 64>}, {pipeline_mode = #tpu.pipeline_mode<synchronous>, transform_indices = @transform_4, window_bounds = array<i64: 64, 64>}, {pipeline_mode = #tpu.pipeline_mode<synchronous>, transform_indices = @transform_5, window_bounds = array<i64: 1, 64>}, {pipeline_mode = #tpu.pipeline_mode<synchronous>, transform_indices = @transform_6, window_bounds = array<i64: 1, 64>}, {pipeline_mode = #tpu.pipeline_mode<synchronous>, transform_indices = @transform_7, window_bounds = array<i64: 1, 64>}, {pipeline_mode = #tpu.pipeline_mode<synchronous>, transform_indices = @transform_8, window_bounds = array<i64: 1, 64>}, {pipeline_mode = #tpu.pipeline_mode<synchronous>, transform_indices = @transform_9, window_bounds = array<i64: 1, 64>}, {pipeline_mode = #tpu.pipeline_mode<synchronous>, transform_indices = @transform_10, window_bounds = array<i64: 64, 256>}, {pipeline_mode = #tpu.pipeline_mode<synchronous>, transform_indices = @transform_11, window_bounds = array<i64: 1, 256>}, {pipeline_mode = #tpu.pipeline_mode<synchronous>, transform_indices = @transform_12, window_bounds = array<i64: 256, 64>}, {pipeline_mode = #tpu.pipeline_mode<synchronous>, transform_indices = @transform_13, window_bounds = array<i64: 1, 64>}, {pipeline_mode = #tpu.pipeline_mode<synchronous>, transform_indices = @transform_14, window_bounds = array<i64: 17, 17, 64>}, {pipeline_mode = #tpu.pipeline_mode<synchronous>, transform_indices = @transform_15, window_bounds = array<i64: 17, 17, 64>}, {pipeline_mode = #tpu.pipeline_mode<synchronous>, transform_indices = @transform_16, window_bounds = array<i64: 4, 64>}, {pipeline_mode = #tpu.pipeline_mode<synchronous>, transform_indices = @transform_17, window_bounds = array<i64: 34, 64>}]} {
    %c0 = arith.constant 0 : index
    %c0_0 = arith.constant 0 : index
    %0 = vector.load %arg1[%c0, %c0_0] : memref<34x64xf32, #tpu.memory_space<vmem>>, vector<34x64xf32>
    %c0_1 = arith.constant 0 : index
    %c0_2 = arith.constant 0 : index
    %1 = vector.load %arg17[%c0_1, %c0_2] : memref<4x64xf32, #tpu.memory_space<vmem>>, vector<4x64xf32>
    %c0_3 = arith.constant 0 : index
    %c0_4 = arith.constant 0 : index
    %2 = vector.load %arg7[%c0_3, %c0_4] : memref<1x64xf32, #tpu.memory_space<vmem>>, vector<1x64xf32>
    %3 = vector.shape_cast %2 : vector<1x64xf32> to vector<64xf32>
    %c0_5 = arith.constant 0 : index
    %c0_6 = arith.constant 0 : index
    %4 = vector.load %arg8[%c0_5, %c0_6] : memref<1x64xf32, #tpu.memory_space<vmem>>, vector<1x64xf32>
    %5 = vector.shape_cast %4 : vector<1x64xf32> to vector<64xf32>
    %cst = arith.constant dense<0.000000e+00> : vector<34xf32>
    %6 = vector.multi_reduction <add>, %0, %cst [1] : vector<34x64xf32> to vector<34xf32>
    %7 = vector.shape_cast %6 : vector<34xf32> to vector<34x1xf32>
    %cst_7 = arith.constant 6.400000e+01 : f32
    %8 = vector.broadcast %cst_7 : f32 to vector<34x1xf32>
    %9 = arith.divf %7, %8 : vector<34x1xf32>
    %10 = vector.broadcast %9 : vector<34x1xf32> to vector<34x64xf32>
    %11 = arith.subf %0, %10 : vector<34x64xf32>
    %12 = arith.mulf %11, %11 : vector<34x64xf32>
    %cst_8 = arith.constant dense<0.000000e+00> : vector<34xf32>
    %13 = vector.multi_reduction <add>, %12, %cst_8 [1] : vector<34x64xf32> to vector<34xf32>
    %14 = vector.shape_cast %13 : vector<34xf32> to vector<34x1xf32>
    %cst_9 = arith.constant 6.400000e+01 : f32
    %15 = vector.broadcast %cst_9 : f32 to vector<34x1xf32>
    %16 = arith.divf %14, %15 : vector<34x1xf32>
    %17 = vector.broadcast %9 : vector<34x1xf32> to vector<34x64xf32>
    %18 = arith.subf %0, %17 : vector<34x64xf32>
    %cst_10 = arith.constant 9.99999974E-6 : f32
    %19 = vector.broadcast %cst_10 : f32 to vector<34x1xf32>
    %20 = arith.addf %16, %19 : vector<34x1xf32>
    %21 = math.rsqrt %20 : vector<34x1xf32>
    %22 = vector.broadcast %21 : vector<34x1xf32> to vector<34x64xf32>
    %23 = arith.mulf %18, %22 : vector<34x64xf32>
    %24 = vector.shape_cast %3 : vector<64xf32> to vector<1x64xf32>
    %25 = vector.broadcast %24 : vector<1x64xf32> to vector<34x64xf32>
    %26 = arith.mulf %23, %25 : vector<34x64xf32>
    %27 = vector.shape_cast %5 : vector<64xf32> to vector<1x64xf32>
    %28 = vector.broadcast %27 : vector<1x64xf32> to vector<34x64xf32>
    %29 = arith.addf %26, %28 : vector<34x64xf32>
    %30 = arith.truncf %29 : vector<34x64xf32> to vector<34x64xbf16>
    %c0_11 = arith.constant 0 : index
    %c0_12 = arith.constant 0 : index
    %31 = vector.load %arg2[%c0_11, %c0_12] : memref<64x64xbf16, #tpu.memory_space<vmem>>, vector<64x64xbf16>
    %cst_13 = arith.constant dense<0.000000e+00> : vector<34x64xf32>
    %32 = tpu.matmul %30, %31, %cst_13 {dimension_numbers = #tpu.dot_dimension_numbers<[1], [0], [0], [1], [0, 0, 1, 1], [], []>} : vector<34x64xbf16>, vector<64x64xbf16>, vector<34x64xf32> -> vector<34x64xf32>
    %cst_14 = arith.constant 2.500000e-01 : f32
    %33 = vector.broadcast %cst_14 : f32 to vector<34x64xf32>
    %34 = arith.mulf %32, %33 : vector<34x64xf32>
    %c0_15 = arith.constant 0 : index
    %c0_16 = arith.constant 0 : index
    %35 = vector.load %arg3[%c0_15, %c0_16] : memref<64x64xbf16, #tpu.memory_space<vmem>>, vector<64x64xbf16>
    %cst_17 = arith.constant dense<0.000000e+00> : vector<34x64xf32>
    %36 = tpu.matmul %30, %35, %cst_17 {dimension_numbers = #tpu.dot_dimension_numbers<[1], [0], [0], [1], [0, 0, 1, 1], [], []>} : vector<34x64xbf16>, vector<64x64xbf16>, vector<34x64xf32> -> vector<34x64xf32>
    %c0_18 = arith.constant 0 : index
    %c0_19 = arith.constant 0 : index
    %37 = vector.load %arg4[%c0_18, %c0_19] : memref<64x64xbf16, #tpu.memory_space<vmem>>, vector<64x64xbf16>
    %cst_20 = arith.constant dense<0.000000e+00> : vector<34x64xf32>
    %38 = tpu.matmul %30, %37, %cst_20 {dimension_numbers = #tpu.dot_dimension_numbers<[1], [0], [0], [1], [0, 0, 1, 1], [], []>} : vector<34x64xbf16>, vector<64x64xbf16>, vector<34x64xf32> -> vector<34x64xf32>
    %c0_21 = arith.constant 0 : index
    %c0_22 = arith.constant 0 : index
    %c0_23 = arith.constant 0 : index
    %39 = vector.load %arg15[%c0_21, %c0_22, %c0_23] : memref<17x17x64xbf16, #tpu.memory_space<vmem>>, vector<17x17x64xbf16>
    %c0_24 = arith.constant 0 : index
    %c0_25 = arith.constant 0 : index
    %c0_26 = arith.constant 0 : index
    %40 = vector.load %arg16[%c0_24, %c0_25, %c0_26] : memref<17x17x64xbf16, #tpu.memory_space<vmem>>, vector<17x17x64xbf16>
    %41 = vector.extract_strided_slice %34 {offsets = [0, 0], sizes = [17, 64], strides = [1, 1]} : vector<34x64xf32> to vector<17x64xf32>
    %42 = vector.extract_strided_slice %36 {offsets = [0, 0], sizes = [17, 64], strides = [1, 1]} : vector<34x64xf32> to vector<17x64xf32>
    %43 = arith.truncf %42 : vector<17x64xf32> to vector<17x64xbf16>
    %44 = vector.extract_strided_slice %38 {offsets = [0, 0], sizes = [17, 64], strides = [1, 1]} : vector<34x64xf32> to vector<17x64xf32>
    %45 = arith.truncf %44 : vector<17x64xf32> to vector<17x64xbf16>
    %46 = vector.shape_cast %41 : vector<17x64xf32> to vector<17x1x64xf32>
    %47 = vector.shape_cast %1 : vector<4x64xf32> to vector<1x4x64xf32>
    %48 = vector.broadcast %46 : vector<17x1x64xf32> to vector<17x4x64xf32>
    %49 = vector.broadcast %47 : vector<1x4x64xf32> to vector<17x4x64xf32>
    %50 = arith.mulf %48, %49 : vector<17x4x64xf32>
    %51 = arith.truncf %50 : vector<17x4x64xf32> to vector<17x4x64xbf16>
    %52 = vector.shape_cast %43 : vector<17x64xbf16> to vector<1x17x64xbf16>
    %53 = vector.broadcast %52 : vector<1x17x64xbf16> to vector<17x17x64xbf16>
    %54 = arith.addf %53, %39 : vector<17x17x64xbf16>
    %cst_27 = arith.constant dense<0.000000e+00> : vector<17x4x17xf32>
    %55 = tpu.matmul %51, %54, %cst_27 {dimension_numbers = #tpu.dot_dimension_numbers<[2], [2], [1], [1], [0, 0, 0, 1, 1, 1], [0], [0]>} : vector<17x4x64xbf16>, vector<17x17x64xbf16>, vector<17x4x17xf32> -> vector<17x4x17xf32>
    %cst_28 = arith.constant dense<0xFF800000> : vector<17x4xf32>
    %56 = vector.multi_reduction <maximumf>, %55, %cst_28 [2] : vector<17x4x17xf32> to vector<17x4xf32>
    %57 = vector.shape_cast %56 : vector<17x4xf32> to vector<17x4x1xf32>
    %58 = vector.broadcast %57 : vector<17x4x1xf32> to vector<17x4x17xf32>
    %59 = arith.subf %55, %58 : vector<17x4x17xf32>
    %60 = math.exp %59 : vector<17x4x17xf32>
    %cst_29 = arith.constant dense<0.000000e+00> : vector<17x4xf32>
    %61 = vector.multi_reduction <add>, %60, %cst_29 [2] : vector<17x4x17xf32> to vector<17x4xf32>
    %62 = vector.shape_cast %61 : vector<17x4xf32> to vector<17x4x1xf32>
    %63 = tpu.reciprocal %62 {approx = true} : vector<17x4x1xf32> -> vector<17x4x1xf32>
    %64 = vector.broadcast %63 : vector<17x4x1xf32> to vector<17x4x17xf32>
    %65 = arith.mulf %60, %64 : vector<17x4x17xf32>
    %66 = arith.truncf %65 : vector<17x4x17xf32> to vector<17x4x17xbf16>
    %67 = vector.shape_cast %45 : vector<17x64xbf16> to vector<1x17x64xbf16>
    %68 = vector.broadcast %67 : vector<1x17x64xbf16> to vector<17x17x64xbf16>
    %69 = arith.addf %68, %40 : vector<17x17x64xbf16>
    %cst_30 = arith.constant dense<0.000000e+00> : vector<17x4x64xf32>
    %70 = tpu.matmul %66, %69, %cst_30 {dimension_numbers = #tpu.dot_dimension_numbers<[2], [1], [1], [2], [0, 0, 0, 1, 1, 2], [0], [0]>} : vector<17x4x17xbf16>, vector<17x17x64xbf16>, vector<17x4x64xf32> -> vector<17x4x64xf32>
    %71 = vector.shape_cast %1 : vector<4x64xf32> to vector<1x4x64xf32>
    %72 = vector.broadcast %71 : vector<1x4x64xf32> to vector<17x4x64xf32>
    %73 = arith.mulf %70, %72 : vector<17x4x64xf32>
    %cst_31 = arith.constant dense<0.000000e+00> : vector<17x64xf32>
    %74 = vector.multi_reduction <add>, %73, %cst_31 [1] : vector<17x4x64xf32> to vector<17x64xf32>
    %c0_32 = arith.constant 0 : index
    %c0_33 = arith.constant 0 : index
    %75 = vector.load %arg19[%c0_32, %c0_33] : memref<34x64xf32, #tpu.memory_space<vmem>>, vector<17x64xf32>
    tpu.vector_store %arg19[%c0_32, %c0_33], %74 {strides = array<i32>} : memref<34x64xf32, #tpu.memory_space<vmem>>, vector<17x64xf32>,
    %76 = vector.extract_strided_slice %34 {offsets = [17, 0], sizes = [17, 64], strides = [1, 1]} : vector<34x64xf32> to vector<17x64xf32>
    %77 = vector.extract_strided_slice %36 {offsets = [17, 0], sizes = [17, 64], strides = [1, 1]} : vector<34x64xf32> to vector<17x64xf32>
    %78 = arith.truncf %77 : vector<17x64xf32> to vector<17x64xbf16>
    %79 = vector.extract_strided_slice %38 {offsets = [17, 0], sizes = [17, 64], strides = [1, 1]} : vector<34x64xf32> to vector<17x64xf32>
    %80 = arith.truncf %79 : vector<17x64xf32> to vector<17x64xbf16>
    %81 = vector.shape_cast %76 : vector<17x64xf32> to vector<17x1x64xf32>
    %82 = vector.shape_cast %1 : vector<4x64xf32> to vector<1x4x64xf32>
    %83 = vector.broadcast %81 : vector<17x1x64xf32> to vector<17x4x64xf32>
    %84 = vector.broadcast %82 : vector<1x4x64xf32> to vector<17x4x64xf32>
    %85 = arith.mulf %83, %84 : vector<17x4x64xf32>
    %86 = arith.truncf %85 : vector<17x4x64xf32> to vector<17x4x64xbf16>
    %87 = vector.shape_cast %78 : vector<17x64xbf16> to vector<1x17x64xbf16>
    %88 = vector.broadcast %87 : vector<1x17x64xbf16> to vector<17x17x64xbf16>
    %89 = arith.addf %88, %39 : vector<17x17x64xbf16>
    %cst_34 = arith.constant dense<0.000000e+00> : vector<17x4x17xf32>
    %90 = tpu.matmul %86, %89, %cst_34 {dimension_numbers = #tpu.dot_dimension_numbers<[2], [2], [1], [1], [0, 0, 0, 1, 1, 1], [0], [0]>} : vector<17x4x64xbf16>, vector<17x17x64xbf16>, vector<17x4x17xf32> -> vector<17x4x17xf32>
    %cst_35 = arith.constant dense<0xFF800000> : vector<17x4xf32>
    %91 = vector.multi_reduction <maximumf>, %90, %cst_35 [2] : vector<17x4x17xf32> to vector<17x4xf32>
    %92 = vector.shape_cast %91 : vector<17x4xf32> to vector<17x4x1xf32>
    %93 = vector.broadcast %92 : vector<17x4x1xf32> to vector<17x4x17xf32>
    %94 = arith.subf %90, %93 : vector<17x4x17xf32>
    %95 = math.exp %94 : vector<17x4x17xf32>
    %cst_36 = arith.constant dense<0.000000e+00> : vector<17x4xf32>
    %96 = vector.multi_reduction <add>, %95, %cst_36 [2] : vector<17x4x17xf32> to vector<17x4xf32>
    %97 = vector.shape_cast %96 : vector<17x4xf32> to vector<17x4x1xf32>
    %98 = tpu.reciprocal %97 {approx = true} : vector<17x4x1xf32> -> vector<17x4x1xf32>
    %99 = vector.broadcast %98 : vector<17x4x1xf32> to vector<17x4x17xf32>
    %100 = arith.mulf %95, %99 : vector<17x4x17xf32>
    %101 = arith.truncf %100 : vector<17x4x17xf32> to vector<17x4x17xbf16>
    %102 = vector.shape_cast %80 : vector<17x64xbf16> to vector<1x17x64xbf16>
    %103 = vector.broadcast %102 : vector<1x17x64xbf16> to vector<17x17x64xbf16>
    %104 = arith.addf %103, %40 : vector<17x17x64xbf16>
    %cst_37 = arith.constant dense<0.000000e+00> : vector<17x4x64xf32>
    %105 = tpu.matmul %101, %104, %cst_37 {dimension_numbers = #tpu.dot_dimension_numbers<[2], [1], [1], [2], [0, 0, 0, 1, 1, 2], [0], [0]>} : vector<17x4x17xbf16>, vector<17x17x64xbf16>, vector<17x4x64xf32> -> vector<17x4x64xf32>
    %106 = vector.shape_cast %1 : vector<4x64xf32> to vector<1x4x64xf32>
    %107 = vector.broadcast %106 : vector<1x4x64xf32> to vector<17x4x64xf32>
    %108 = arith.mulf %105, %107 : vector<17x4x64xf32>
    %cst_38 = arith.constant dense<0.000000e+00> : vector<17x64xf32>
    %109 = vector.multi_reduction <add>, %108, %cst_38 [1] : vector<17x4x64xf32> to vector<17x64xf32>
    %c17 = arith.constant 17 : index
    %c0_39 = arith.constant 0 : index
    %110 = vector.load %arg19[%c17, %c0_39] : memref<34x64xf32, #tpu.memory_space<vmem>>, vector<17x64xf32>
    tpu.vector_store %arg19[%c17, %c0_39], %109 {strides = array<i32>} : memref<34x64xf32, #tpu.memory_space<vmem>>, vector<17x64xf32>,
    %c0_40 = arith.constant 0 : index
    %c0_41 = arith.constant 0 : index
    %111 = vector.load %arg19[%c0_40, %c0_41] : memref<34x64xf32, #tpu.memory_space<vmem>>, vector<34x64xf32>
    %112 = arith.truncf %111 : vector<34x64xf32> to vector<34x64xbf16>
    %c0_42 = arith.constant 0 : index
    %c0_43 = arith.constant 0 : index
    %113 = vector.load %arg5[%c0_42, %c0_43] : memref<64x64xbf16, #tpu.memory_space<vmem>>, vector<64x64xbf16>
    %cst_44 = arith.constant dense<0.000000e+00> : vector<34x64xf32>
    %114 = tpu.matmul %112, %113, %cst_44 {dimension_numbers = #tpu.dot_dimension_numbers<[1], [0], [0], [1], [0, 0, 1, 1], [], []>} : vector<34x64xbf16>, vector<64x64xbf16>, vector<34x64xf32> -> vector<34x64xf32>
    %c0_45 = arith.constant 0 : index
    %c0_46 = arith.constant 0 : index
    %115 = vector.load %arg6[%c0_45, %c0_46] : memref<1x64xf32, #tpu.memory_space<vmem>>, vector<1x64xf32>
    %116 = vector.shape_cast %115 : vector<1x64xf32> to vector<64xf32>
    %117 = vector.shape_cast %116 : vector<64xf32> to vector<1x64xf32>
    %118 = vector.broadcast %117 : vector<1x64xf32> to vector<34x64xf32>
    %119 = arith.addf %114, %118 : vector<34x64xf32>
    %120 = arith.addf %0, %119 : vector<34x64xf32>
    %c0_47 = arith.constant 0 : index
    %c0_48 = arith.constant 0 : index
    %121 = vector.load %arg9[%c0_47, %c0_48] : memref<1x64xf32, #tpu.memory_space<vmem>>, vector<1x64xf32>
    %122 = vector.shape_cast %121 : vector<1x64xf32> to vector<64xf32>
    %c0_49 = arith.constant 0 : index
    %c0_50 = arith.constant 0 : index
    %123 = vector.load %arg10[%c0_49, %c0_50] : memref<1x64xf32, #tpu.memory_space<vmem>>, vector<1x64xf32>
    %124 = vector.shape_cast %123 : vector<1x64xf32> to vector<64xf32>
    %cst_51 = arith.constant dense<0.000000e+00> : vector<34xf32>
    %125 = vector.multi_reduction <add>, %120, %cst_51 [1] : vector<34x64xf32> to vector<34xf32>
    %126 = vector.shape_cast %125 : vector<34xf32> to vector<34x1xf32>
    %cst_52 = arith.constant 6.400000e+01 : f32
    %127 = vector.broadcast %cst_52 : f32 to vector<34x1xf32>
    %128 = arith.divf %126, %127 : vector<34x1xf32>
    %129 = vector.broadcast %128 : vector<34x1xf32> to vector<34x64xf32>
    %130 = arith.subf %120, %129 : vector<34x64xf32>
    %131 = arith.mulf %130, %130 : vector<34x64xf32>
    %cst_53 = arith.constant dense<0.000000e+00> : vector<34xf32>
    %132 = vector.multi_reduction <add>, %131, %cst_53 [1] : vector<34x64xf32> to vector<34xf32>
    %133 = vector.shape_cast %132 : vector<34xf32> to vector<34x1xf32>
    %cst_54 = arith.constant 6.400000e+01 : f32
    %134 = vector.broadcast %cst_54 : f32 to vector<34x1xf32>
    %135 = arith.divf %133, %134 : vector<34x1xf32>
    %136 = vector.broadcast %128 : vector<34x1xf32> to vector<34x64xf32>
    %137 = arith.subf %120, %136 : vector<34x64xf32>
    %cst_55 = arith.constant 9.99999974E-6 : f32
    %138 = vector.broadcast %cst_55 : f32 to vector<34x1xf32>
    %139 = arith.addf %135, %138 : vector<34x1xf32>
    %140 = math.rsqrt %139 : vector<34x1xf32>
    %141 = vector.broadcast %140 : vector<34x1xf32> to vector<34x64xf32>
    %142 = arith.mulf %137, %141 : vector<34x64xf32>
    %143 = vector.shape_cast %122 : vector<64xf32> to vector<1x64xf32>
    %144 = vector.broadcast %143 : vector<1x64xf32> to vector<34x64xf32>
    %145 = arith.mulf %142, %144 : vector<34x64xf32>
    %146 = vector.shape_cast %124 : vector<64xf32> to vector<1x64xf32>
    %147 = vector.broadcast %146 : vector<1x64xf32> to vector<34x64xf32>
    %148 = arith.addf %145, %147 : vector<34x64xf32>
    %149 = arith.truncf %148 : vector<34x64xf32> to vector<34x64xbf16>
    %c0_56 = arith.constant 0 : index
    %c0_57 = arith.constant 0 : index
    %150 = vector.load %arg11[%c0_56, %c0_57] : memref<64x256xbf16, #tpu.memory_space<vmem>>, vector<64x256xbf16>
    %cst_58 = arith.constant dense<0.000000e+00> : vector<34x256xf32>
    %151 = tpu.matmul %149, %150, %cst_58 {dimension_numbers = #tpu.dot_dimension_numbers<[1], [0], [0], [1], [0, 0, 1, 1], [], []>} : vector<34x64xbf16>, vector<64x256xbf16>, vector<34x256xf32> -> vector<34x256xf32>
    %c0_59 = arith.constant 0 : index
    %c0_60 = arith.constant 0 : index
    %152 = vector.load %arg12[%c0_59, %c0_60] : memref<1x256xf32, #tpu.memory_space<vmem>>, vector<1x256xf32>
    %153 = vector.shape_cast %152 : vector<1x256xf32> to vector<256xf32>
    %154 = vector.shape_cast %153 : vector<256xf32> to vector<1x256xf32>
    %155 = vector.broadcast %154 : vector<1x256xf32> to vector<34x256xf32>
    %156 = arith.addf %151, %155 : vector<34x256xf32>
    %cst_61 = arith.constant 5.000000e-01 : f32
    %157 = vector.broadcast %cst_61 : f32 to vector<34x256xf32>
    %158 = arith.mulf %157, %156 : vector<34x256xf32>
    %cst_62 = arith.constant 0.707106769 : f32
    %159 = vector.broadcast %cst_62 : f32 to vector<34x256xf32>
    %160 = arith.mulf %156, %159 : vector<34x256xf32>
    %161 = math.erf %160 : vector<34x256xf32>
    %cst_63 = arith.constant 1.000000e+00 : f32
    %162 = vector.broadcast %cst_63 : f32 to vector<34x256xf32>
    %163 = arith.addf %162, %161 : vector<34x256xf32>
    %164 = arith.mulf %158, %163 : vector<34x256xf32>
    %165 = arith.truncf %164 : vector<34x256xf32> to vector<34x256xbf16>
    %c0_64 = arith.constant 0 : index
    %c0_65 = arith.constant 0 : index
    %166 = vector.load %arg13[%c0_64, %c0_65] : memref<256x64xbf16, #tpu.memory_space<vmem>>, vector<256x64xbf16>
    %cst_66 = arith.constant dense<0.000000e+00> : vector<34x64xf32>
    %167 = tpu.matmul %165, %166, %cst_66 {dimension_numbers = #tpu.dot_dimension_numbers<[1], [0], [0], [1], [0, 0, 1, 1], [], []>} : vector<34x256xbf16>, vector<256x64xbf16>, vector<34x64xf32> -> vector<34x64xf32>
    %c0_67 = arith.constant 0 : index
    %c0_68 = arith.constant 0 : index
    %168 = vector.load %arg14[%c0_67, %c0_68] : memref<1x64xf32, #tpu.memory_space<vmem>>, vector<1x64xf32>
    %169 = vector.shape_cast %168 : vector<1x64xf32> to vector<64xf32>
    %170 = vector.shape_cast %169 : vector<64xf32> to vector<1x64xf32>
    %171 = vector.broadcast %170 : vector<1x64xf32> to vector<34x64xf32>
    %172 = arith.addf %167, %171 : vector<34x64xf32>
    %173 = arith.addf %120, %172 : vector<34x64xf32>
    %c0_69 = arith.constant 0 : index
    %c0_70 = arith.constant 0 : index
    %174 = vector.load %arg18[%c0_69, %c0_70] : memref<34x64xf32, #tpu.memory_space<vmem>>, vector<34x64xf32>
    tpu.vector_store %arg18[%c0_69, %c0_70], %173 {strides = array<i32>} : memref<34x64xf32, #tpu.memory_space<vmem>>, vector<34x64xf32>,
    return
  }
  func.func @transform_0(%arg0: i32) -> (i32, i32) {
    %c0_i32 = arith.constant 0 : i32
    %c0_i32_0 = arith.constant 0 : i32
    %c0_i32_1 = arith.constant 0 : i32
    return %c0_i32, %c0_i32_0 : i32, i32
  }
  func.func @transform_1(%arg0: i32) -> (i32, i32) {
    %c0_i32 = arith.constant 0 : i32
    %c0_i32_0 = arith.constant 0 : i32
    %c0_i32_1 = arith.constant 0 : i32
    return %c0_i32, %c0_i32_0 : i32, i32
  }
  func.func @transform_2(%arg0: i32) -> (i32, i32) {
    %c0_i32 = arith.constant 0 : i32
    %c0_i32_0 = arith.constant 0 : i32
    %c0_i32_1 = arith.constant 0 : i32
    return %c0_i32, %c0_i32_0 : i32, i32
  }
  func.func @transform_3(%arg0: i32) -> (i32, i32) {
    %c0_i32 = arith.constant 0 : i32
    %c0_i32_0 = arith.constant 0 : i32
    %c0_i32_1 = arith.constant 0 : i32
    return %c0_i32, %c0_i32_0 : i32, i32
  }
  func.func @transform_4(%arg0: i32) -> (i32, i32) {
    %c0_i32 = arith.constant 0 : i32
    %c0_i32_0 = arith.constant 0 : i32
    %c0_i32_1 = arith.constant 0 : i32
    return %c0_i32, %c0_i32_0 : i32, i32
  }
  func.func @transform_5(%arg0: i32) -> (i32, i32) {
    %c0_i32 = arith.constant 0 : i32
    %c0_i32_0 = arith.constant 0 : i32
    %c0_i32_1 = arith.constant 0 : i32
    return %c0_i32, %c0_i32_0 : i32, i32
  }
  func.func @transform_6(%arg0: i32) -> (i32, i32) {
    %c0_i32 = arith.constant 0 : i32
    %c0_i32_0 = arith.constant 0 : i32
    %c0_i32_1 = arith.constant 0 : i32
    return %c0_i32, %c0_i32_0 : i32, i32
  }
  func.func @transform_7(%arg0: i32) -> (i32, i32) {
    %c0_i32 = arith.constant 0 : i32
    %c0_i32_0 = arith.constant 0 : i32
    %c0_i32_1 = arith.constant 0 : i32
    return %c0_i32, %c0_i32_0 : i32, i32
  }
  func.func @transform_8(%arg0: i32) -> (i32, i32) {
    %c0_i32 = arith.constant 0 : i32
    %c0_i32_0 = arith.constant 0 : i32
    %c0_i32_1 = arith.constant 0 : i32
    return %c0_i32, %c0_i32_0 : i32, i32
  }
  func.func @transform_9(%arg0: i32) -> (i32, i32) {
    %c0_i32 = arith.constant 0 : i32
    %c0_i32_0 = arith.constant 0 : i32
    %c0_i32_1 = arith.constant 0 : i32
    return %c0_i32, %c0_i32_0 : i32, i32
  }
  func.func @transform_10(%arg0: i32) -> (i32, i32) {
    %c0_i32 = arith.constant 0 : i32
    %c0_i32_0 = arith.constant 0 : i32
    %c0_i32_1 = arith.constant 0 : i32
    return %c0_i32, %c0_i32_0 : i32, i32
  }
  func.func @transform_11(%arg0: i32) -> (i32, i32) {
    %c0_i32 = arith.constant 0 : i32
    %c0_i32_0 = arith.constant 0 : i32
    %c0_i32_1 = arith.constant 0 : i32
    return %c0_i32, %c0_i32_0 : i32, i32
  }
  func.func @transform_12(%arg0: i32) -> (i32, i32) {
    %c0_i32 = arith.constant 0 : i32
    %c0_i32_0 = arith.constant 0 : i32
    %c0_i32_1 = arith.constant 0 : i32
    return %c0_i32, %c0_i32_0 : i32, i32
  }
  func.func @transform_13(%arg0: i32) -> (i32, i32) {
    %c0_i32 = arith.constant 0 : i32
    %c0_i32_0 = arith.constant 0 : i32
    %c0_i32_1 = arith.constant 0 : i32
    return %c0_i32, %c0_i32_0 : i32, i32
  }
  func.func @transform_14(%arg0: i32) -> (i32, i32, i32) {
    %c0_i32 = arith.constant 0 : i32
    %c0_i32_0 = arith.constant 0 : i32
    %c0_i32_1 = arith.constant 0 : i32
    %c0_i32_2 = arith.constant 0 : i32
    return %c0_i32, %c0_i32_0, %c0_i32_1 : i32, i32, i32
  }
  func.func @transform_15(%arg0: i32) -> (i32, i32, i32) {
    %c0_i32 = arith.constant 0 : i32
    %c0_i32_0 = arith.constant 0 : i32
    %c0_i32_1 = arith.constant 0 : i32
    %c0_i32_2 = arith.constant 0 : i32
    return %c0_i32, %c0_i32_0, %c0_i32_1 : i32, i32, i32
  }
  func.func @transform_16(%arg0: i32) -> (i32, i32) {
    %c0_i32 = arith.constant 0 : i32
    %c0_i32_0 = arith.constant 0 : i32
    %c0_i32_1 = arith.constant 0 : i32
    return %c0_i32, %c0_i32_0 : i32, i32
  }
  func.func @transform_17(%arg0: i32) -> (i32, i32) {
    %c0_i32 = arith.constant 0 : i32
    %c0_i32_0 = arith.constant 0 : i32
    %c0_i32_1 = arith.constant 0 : i32
    return %c0_i32, %c0_i32_0 : i32, i32
  }
}

</mosaic_0001>

<llo_original>
// kernel: tpu_custom_call.1
$region0: #{tpu_custom_call.1}
  #allocation0 [shape = 'u32[]', space=smem, size = 0x4, offset = 0x4, fixed_abs, tag = 'smem constant byte address 0x4 - core index']
  #allocation1 [shape = 'u32[144,128]{1,0:T(1,128)}', space=vmem, size = 0x12000, scoped, tag = 'internal scratch']
  #allocation2 [shape = 'f32[34,64]{1,0:T(8,128)}', space=vmem, size = 0x5000, scoped, tag = 'scratch operand']
  %s0 = inlined_call_operand.vmem [shape: f32[34,64], index: 0, kind: input, shape index: {}]
  %s1 = inlined_call_operand.hbm [shape: bf16[64,64], index: 1, kind: input, shape index: {}]
  %s2 = inlined_call_operand.hbm [shape: bf16[64,64], index: 2, kind: input, shape index: {}]
  %s3 = inlined_call_operand.hbm [shape: bf16[64,64], index: 3, kind: input, shape index: {}]
  %s4 = inlined_call_operand.hbm [shape: bf16[64,64], index: 4, kind: input, shape index: {}]
  %s5 = inlined_call_operand.hbm [shape: f32[1,64], index: 5, kind: input, shape index: {}]
  %s6 = inlined_call_operand.hbm [shape: f32[1,64], index: 6, kind: input, shape index: {}]
  %s7 = inlined_call_operand.hbm [shape: f32[1,64], index: 7, kind: input, shape index: {}]
  %s8 = inlined_call_operand.hbm [shape: f32[1,64], index: 8, kind: input, shape index: {}]
  %s9 = inlined_call_operand.hbm [shape: f32[1,64], index: 9, kind: input, shape index: {}]
  %s10 = inlined_call_operand.hbm [shape: bf16[64,256], index: 10, kind: input, shape index: {}]
  %s11 = inlined_call_operand.hbm [shape: f32[1,256], index: 11, kind: input, shape index: {}]
  %s12 = inlined_call_operand.vmem [shape: bf16[256,64], index: 12, kind: input, shape index: {}]
  %s13 = inlined_call_operand.hbm [shape: f32[1,64], index: 13, kind: input, shape index: {}]
  %s14 = inlined_call_operand.vmem [shape: bf16[17,17,64], index: 14, kind: input, shape index: {}]
  %s15 = inlined_call_operand.hbm [shape: bf16[17,17,64], index: 15, kind: input, shape index: {}]
  %s16 = inlined_call_operand.vmem [shape: f32[4,64], index: 16, kind: input, shape index: {}]
  %s17 = inlined_call_operand.hbm [shape: f32[34,64], index: 17, kind: output, shape index: {}]
  %s18 = sld [smem:[#allocation0]]
  $region130: #{tpu_custom_call.1} parent=0
    _
  %s20 = ssub.s32 1, %s18
  %s21 = scalar_select 0, %s20, %s18
  $region1: #{tpu_custom_call.1} parent=0
    #allocation3 [shape = 'u8[16384]{0}', space=vmem, size = 0x4000, scoped, tag = 'input window, operand 1, single buffered']
    #allocation4 [shape = 's32[1]{0}', space=sflag, size = 0x4, scoped, tag = 'scoped memory for tpu_custom_call.1']
    #allocation5 [shape = 's32[1]{0}', space=sflag, size = 0x4, scoped, tag = 'scoped memory for tpu_custom_call.1']
    #allocation6 [shape = 'u8[16384]{0}', space=vmem, size = 0x4000, scoped, tag = 'input window, operand 2, single buffered']
    #allocation7 [shape = 's32[1]{0}', space=sflag, size = 0x4, scoped, tag = 'scoped memory for tpu_custom_call.1']
    #allocation8 [shape = 'u8[16384]{0}', space=vmem, size = 0x4000, scoped, tag = 'input window, operand 3, single buffered']
    #allocation9 [shape = 'u8[16384]{0}', space=vmem, size = 0x4000, scoped, tag = 'input window, operand 4, single buffered']
    #allocation10 [shape = 's32[1]{0}', space=sflag, size = 0x4, scoped, tag = 'scoped memory for tpu_custom_call.1']
    #allocation11 [shape = 'u8[512]{0}', space=vmem, size = 0x400, scoped, tag = 'input window, operand 5, single buffered']
    #allocation12 [shape = 'u8[512]{0}', space=vmem, size = 0x400, scoped, tag = 'input window, operand 6, single buffered']
    #allocation13 [shape = 's32[1]{0}', space=sflag, size = 0x4, scoped, tag = 'scoped memory for tpu_custom_call.1']
    #allocation14 [shape = 'u8[512]{0}', space=vmem, size = 0x400, scoped, tag = 'input window, operand 7, single buffered']
    #allocation15 [shape = 'u8[512]{0}', space=vmem, size = 0x400, scoped, tag = 'input window, operand 8, single buffered']
    #allocation16 [shape = 's32[1]{0}', space=sflag, size = 0x4, scoped, tag = 'scoped memory for tpu_custom_call.1']
    #allocation17 [shape = 'u8[512]{0}', space=vmem, size = 0x400, scoped, tag = 'input window, operand 9, single buffered']
    #allocation18 [shape = 'u8[32768]{0}', space=vmem, size = 0x8000, scoped, tag = 'input window, operand 10, single buffered']
    #allocation19 [shape = 's32[1]{0}', space=sflag, size = 0x4, scoped, tag = 'scoped memory for tpu_custom_call.1']
    #allocation20 [shape = 'u8[1024]{0}', space=vmem, size = 0x400, scoped, tag = 'input window, operand 11, single buffered']
    #allocation21 [shape = 'u8[512]{0}', space=vmem, size = 0x400, scoped, tag = 'input window, operand 13, single buffered']
    #allocation22 [shape = 's32[1]{0}', space=sflag, size = 0x4, scoped, tag = 'scoped memory for tpu_custom_call.1']
    #allocation23 [shape = 'u8[104448]{0}', space=vmem, size = 0x19800, scoped, tag = 'input window, operand 15, single buffered']
    #allocation24 [shape = 'u8[20480]{0}', space=vmem, size = 0x5000, scoped, tag = 'output window, operand 0, single buffered']
    %22 = vsyncpa [#allocation4], 0
    %23 = vsyncpa [#allocation7], 0
    %24 = vsyncpa [#allocation10], 0
    %25 = vsyncpa [#allocation13], 0
    %26 = vsyncpa [#allocation16], 0
    %27 = vsyncpa [#allocation19], 0
    %28 = vsyncpa [#allocation22], 0
    %29 = vsyncpa [#allocation5], 0
    // Predicated region
    $region2: #{tpu_custom_call.1} parent=1 // pred_check
      _
    $region3: #{tpu_custom_call.1} parent=1 // pred_check_branch
      %31 = sbr.rel (0) target = $region5
    $region4: #{tpu_custom_call.1} parent=1 // pred_region
      _
    $region5: #{tpu_custom_call.1} parent=1 // pred_fallthru
      _
    // Predicated region
    $region6: #{tpu_custom_call.1} parent=1 // pred_check
      _
    $region7: #{tpu_custom_call.1} parent=1 // pred_check_branch
      %33 = sbr.rel (0) target = $region9
    $region8: #{tpu_custom_call.1} parent=1 // pred_region
      %s35 = ssub.s32 512, 512
      %36 = vsyncadd [#allocation4], %s35
      %s37 = sshll.u32 [#allocation3], 4
      %s38 = int_to_ptr.vmem [resolvable:$true] %s37
      %43 = dma.hbm_to_vmem [thread:$0]  %s1, 512, %s38, [#allocation4], 64, 64, 4
    $region9: #{tpu_custom_call.1} parent=1 // pred_fallthru
      _
    // Predicated region
    $region10: #{tpu_custom_call.1} parent=1 // pred_check
      _
    $region11: #{tpu_custom_call.1} parent=1 // pred_check_branch
      %45 = sbr.rel (0) target = $region13
    $region12: #{tpu_custom_call.1} parent=1 // pred_region
      %s47 = ssub.s32 512, 512
      %48 = vsyncadd [#allocation7], %s47
      %s49 = sshll.u32 [#allocation6], 4
      %s50 = int_to_ptr.vmem [resolvable:$true] %s49
      %55 = dma.hbm_to_vmem [thread:$0]  %s2, 512, %s50, [#allocation7], 64, 64, 4
    $region13: #{tpu_custom_call.1} parent=1 // pred_fallthru
      _
    // Predicated region
    $region14: #{tpu_custom_call.1} parent=1 // pred_check
      _
    $region15: #{tpu_custom_call.1} parent=1 // pred_check_branch
      %57 = sbr.rel (0) target = $region17
    $region16: #{tpu_custom_call.1} parent=1 // pred_region
      %s59 = ssub.s32 512, 512
      %60 = vsyncadd [#allocation7], %s59
      %s61 = sshll.u32 [#allocation8], 4
      %s62 = int_to_ptr.vmem [resolvable:$true] %s61
      %67 = dma.hbm_to_vmem [thread:$0]  %s3, 512, %s62, [#allocation7], 64, 64, 4
    $region17: #{tpu_custom_call.1} parent=1 // pred_fallthru
      _
    // Predicated region
    $region18: #{tpu_custom_call.1} parent=1 // pred_check
      _
    $region19: #{tpu_custom_call.1} parent=1 // pred_check_branch
      %69 = sbr.rel (0) target = $region21
    $region20: #{tpu_custom_call.1} parent=1 // pred_region
      %s71 = ssub.s32 512, 512
      %72 = vsyncadd [#allocation10], %s71
      %s73 = sshll.u32 [#allocation9], 4
      %s74 = int_to_ptr.vmem [resolvable:$true] %s73
      %79 = dma.hbm_to_vmem [thread:$0]  %s4, 512, %s74, [#allocation10], 64, 64, 4
    $region21: #{tpu_custom_call.1} parent=1 // pred_fallthru
      _
    // Predicated region
    $region22: #{tpu_custom_call.1} parent=1 // pred_check
      _
    $region23: #{tpu_custom_call.1} parent=1 // pred_check_branch
      %81 = sbr.rel (0) target = $region25
    $region24: #{tpu_custom_call.1} parent=1 // pred_region
      %s83 = ssub.s32 16, 16
      %84 = vsyncadd [#allocation10], %s83
      %s86 = sshll.u32 [#allocation11], 4
      %s87 = int_to_ptr.vmem [resolvable:$true] %s86
      %89 = dma.hbm_to_vmem [thread:$0]  %s5, 16, %s87, [#allocation10]
    $region25: #{tpu_custom_call.1} parent=1 // pred_fallthru
      _
    // Predicated region
    $region26: #{tpu_custom_call.1} parent=1 // pred_check
      _
    $region27: #{tpu_custom_call.1} parent=1 // pred_check_branch
      %91 = sbr.rel (0) target = $region29
    $region28: #{tpu_custom_call.1} parent=1 // pred_region
      %s93 = ssub.s32 16, 16
      %94 = vsyncadd [#allocation13], %s93
      %s96 = sshll.u32 [#allocation12], 4
      %s97 = int_to_ptr.vmem [resolvable:$true] %s96
      %99 = dma.hbm_to_vmem [thread:$0]  %s6, 16, %s97, [#allocation13]
    $region29: #{tpu_custom_call.1} parent=1 // pred_fallthru
      _
    // Predicated region
    $region30: #{tpu_custom_call.1} parent=1 // pred_check
      _
    $region31: #{tpu_custom_call.1} parent=1 // pred_check_branch
      %101 = sbr.rel (0) target = $region33
    $region32: #{tpu_custom_call.1} parent=1 // pred_region
      %s103 = ssub.s32 16, 16
      %104 = vsyncadd [#allocation13], %s103
      %s106 = sshll.u32 [#allocation14], 4
      %s107 = int_to_ptr.vmem [resolvable:$true] %s106
      %109 = dma.hbm_to_vmem [thread:$0]  %s7, 16, %s107, [#allocation13]
    $region33: #{tpu_custom_call.1} parent=1 // pred_fallthru
      _
    // Predicated region
    $region34: #{tpu_custom_call.1} parent=1 // pred_check
      _
    $region35: #{tpu_custom_call.1} parent=1 // pred_check_branch
      %111 = sbr.rel (0) target = $region37
    $region36: #{tpu_custom_call.1} parent=1 // pred_region
      %s113 = ssub.s32 16, 16
      %114 = vsyncadd [#allocation16], %s113
      %s116 = sshll.u32 [#allocation15], 4
      %s117 = int_to_ptr.vmem [resolvable:$true] %s116
      %119 = dma.hbm_to_vmem [thread:$0]  %s8, 16, %s117, [#allocation16]
    $region37: #{tpu_custom_call.1} parent=1 // pred_fallthru
      _
    // Predicated region
    $region38: #{tpu_custom_call.1} parent=1 // pred_check
      _
    $region39: #{tpu_custom_call.1} parent=1 // pred_check_branch
      %121 = sbr.rel (0) target = $region41
    $region40: #{tpu_custom_call.1} parent=1 // pred_region
      %s123 = ssub.s32 16, 16
      %124 = vsyncadd [#allocation16], %s123
      %s126 = sshll.u32 [#allocation17], 4
      %s127 = int_to_ptr.vmem [resolvable:$true] %s126
      %129 = dma.hbm_to_vmem [thread:$0]  %s9, 16, %s127, [#allocation16]
    $region41: #{tpu_custom_call.1} parent=1 // pred_fallthru
      _
    // Predicated region
    $region42: #{tpu_custom_call.1} parent=1 // pred_check
      _
    $region43: #{tpu_custom_call.1} parent=1 // pred_check_branch
      %131 = sbr.rel (0) target = $region45
    $region44: #{tpu_custom_call.1} parent=1 // pred_region
      %s133 = ssub.s32 1024, 1024
      %134 = vsyncadd [#allocation19], %s133
      %s135 = sshll.u32 [#allocation18], 4
      %s136 = int_to_ptr.vmem [resolvable:$true] %s135
      %141 = dma.hbm_to_vmem [thread:$0]  %s10, 1024, %s136, [#allocation19], 128, 128, 8
    $region45: #{tpu_custom_call.1} parent=1 // pred_fallthru
      _
    // Predicated region
    $region46: #{tpu_custom_call.1} parent=1 // pred_check
      _
    $region47: #{tpu_custom_call.1} parent=1 // pred_check_branch
      %143 = sbr.rel (0) target = $region49
    $region48: #{tpu_custom_call.1} parent=1 // pred_region
      %s145 = ssub.s32 32, 32
      %146 = vsyncadd [#allocation19], %s145
      %s148 = sshll.u32 [#allocation20], 4
      %s149 = int_to_ptr.vmem [resolvable:$true] %s148
      %151 = dma.hbm_to_vmem [thread:$0]  %s11, 32, %s149, [#allocation19]
    $region49: #{tpu_custom_call.1} parent=1 // pred_fallthru
      _
    // Predicated region
    $region50: #{tpu_custom_call.1} parent=1 // pred_check
      _
    $region51: #{tpu_custom_call.1} parent=1 // pred_check_branch
      %153 = sbr.rel (0) target = $region53
    $region52: #{tpu_custom_call.1} parent=1 // pred_region
      _
    $region53: #{tpu_custom_call.1} parent=1 // pred_fallthru
      _
    // Predicated region
    $region54: #{tpu_custom_call.1} parent=1 // pred_check
      _
    $region55: #{tpu_custom_call.1} parent=1 // pred_check_branch
      %155 = sbr.rel (0) target = $region57
    $region56: #{tpu_custom_call.1} parent=1 // pred_region
      %s157 = ssub.s32 16, 16
      %158 = vsyncadd [#allocation22], %s157
      %s160 = sshll.u32 [#allocation21], 4
      %s161 = int_to_ptr.vmem [resolvable:$true] %s160
      %163 = dma.hbm_to_vmem [thread:$0]  %s13, 16, %s161, [#allocation22]
    $region57: #{tpu_custom_call.1} parent=1 // pred_fallthru
      _
    // Predicated region
    $region58: #{tpu_custom_call.1} parent=1 // pred_check
      _
    $region59: #{tpu_custom_call.1} parent=1 // pred_check_branch
      %165 = sbr.rel (0) target = $region61
    $region60: #{tpu_custom_call.1} parent=1 // pred_region
      _
    $region61: #{tpu_custom_call.1} parent=1 // pred_fallthru
      _
    // Predicated region
    $region62: #{tpu_custom_call.1} parent=1 // pred_check
      _
    $region63: #{tpu_custom_call.1} parent=1 // pred_check_branch
      %167 = sbr.rel (0) target = $region65
    $region64: #{tpu_custom_call.1} parent=1 // pred_region
      %s169 = ssub.s32 3264, 3264
      %170 = vsyncadd [#allocation22], %s169
      %s171 = sshll.u32 [#allocation23], 4
      %s172 = int_to_ptr.vmem [resolvable:$true] %s171
      %177 = dma.hbm_to_vmem [thread:$0]  %s15, 3264, %s172, [#allocation22], 64, 64, 4
    $region65: #{tpu_custom_call.1} parent=1 // pred_fallthru
      _
    // Predicated region
    $region66: #{tpu_custom_call.1} parent=1 // pred_check
      _
    $region67: #{tpu_custom_call.1} parent=1 // pred_check_branch
      %179 = sbr.rel (0) target = $region69
    $region68: #{tpu_custom_call.1} parent=1 // pred_region
      _
    $region69: #{tpu_custom_call.1} parent=1 // pred_fallthru
      _
    // Predicated region
    $region70: #{tpu_custom_call.1} parent=1 // pred_check
      _
    $region71: #{tpu_custom_call.1} parent=1 // pred_check_branch
      %181 = sbr.rel (0) target = $region73
    $region72: #{tpu_custom_call.1} parent=1 // pred_region
      %182 = dma.done [#allocation4], 512
    $region73: #{tpu_custom_call.1} parent=1 // pred_fallthru
      _
    // Predicated region
    $region74: #{tpu_custom_call.1} parent=1 // pred_check
      _
    $region75: #{tpu_custom_call.1} parent=1 // pred_check_branch
      %184 = sbr.rel (0) target = $region77
    $region76: #{tpu_custom_call.1} parent=1 // pred_region
      %185 = dma.done [#allocation7], 512
    $region77: #{tpu_custom_call.1} parent=1 // pred_fallthru
      _
    // Predicated region
    $region78: #{tpu_custom_call.1} parent=1 // pred_check
      _
    $region79: #{tpu_custom_call.1} parent=1 // pred_check_branch
      %187 = sbr.rel (0) target = $region81
    $region80: #{tpu_custom_call.1} parent=1 // pred_region
      %188 = dma.done [#allocation7], 512
    $region81: #{tpu_custom_call.1} parent=1 // pred_fallthru
      _
    // Predicated region
    $region82: #{tpu_custom_call.1} parent=1 // pred_check
      _
    $region83: #{tpu_custom_call.1} parent=1 // pred_check_branch
      %190 = sbr.rel (0) target = $region85
    $region84: #{tpu_custom_call.1} parent=1 // pred_region
      %191 = dma.done [#allocation10], 512
    $region85: #{tpu_custom_call.1} parent=1 // pred_fallthru
      _
    // Predicated region
    $region86: #{tpu_custom_call.1} parent=1 // pred_check
      _
    $region87: #{tpu_custom_call.1} parent=1 // pred_check_branch
      %193 = sbr.rel (0) target = $region89
    $region88: #{tpu_custom_call.1} parent=1 // pred_region
      %194 = dma.done [#allocation10], 16
    $region89: #{tpu_custom_call.1} parent=1 // pred_fallthru
      _
    // Predicated region
    $region90: #{tpu_custom_call.1} parent=1 // pred_check
      _
    $region91: #{tpu_custom_call.1} parent=1 // pred_check_branch
      %196 = sbr.rel (0) target = $region93
    $region92: #{tpu_custom_call.1} parent=1 // pred_region
      %197 = dma.done [#allocation13], 16
    $region93: #{tpu_custom_call.1} parent=1 // pred_fallthru
      _
    // Predicated region
    $region94: #{tpu_custom_call.1} parent=1 // pred_check
      _
    $region95: #{tpu_custom_call.1} parent=1 // pred_check_branch
      %199 = sbr.rel (0) target = $region97
    $region96: #{tpu_custom_call.1} parent=1 // pred_region
      %200 = dma.done [#allocation13], 16
    $region97: #{tpu_custom_call.1} parent=1 // pred_fallthru
      _
    // Predicated region
    $region98: #{tpu_custom_call.1} parent=1 // pred_check
      _
    $region99: #{tpu_custom_call.1} parent=1 // pred_check_branch
      %202 = sbr.rel (0) target = $region101
    $region100: #{tpu_custom_call.1} parent=1 // pred_region
      %203 = dma.done [#allocation16], 16
    $region101: #{tpu_custom_call.1} parent=1 // pred_fallthru
      _
    // Predicated region
    $region102: #{tpu_custom_call.1} parent=1 // pred_check
      _
    $region103: #{tpu_custom_call.1} parent=1 // pred_check_branch
      %205 = sbr.rel (0) target = $region105
    $region104: #{tpu_custom_call.1} parent=1 // pred_region
      %206 = dma.done [#allocation16], 16
    $region105: #{tpu_custom_call.1} parent=1 // pred_fallthru
      _
    // Predicated region
    $region106: #{tpu_custom_call.1} parent=1 // pred_check
      _
    $region107: #{tpu_custom_call.1} parent=1 // pred_check_branch
      %208 = sbr.rel (0) target = $region109
    $region108: #{tpu_custom_call.1} parent=1 // pred_region
      %209 = dma.done [#allocation19], 1024
    $region109: #{tpu_custom_call.1} parent=1 // pred_fallthru
      _
    // Predicated region
    $region110: #{tpu_custom_call.1} parent=1 // pred_check
      _
    $region111: #{tpu_custom_call.1} parent=1 // pred_check_branch
      %211 = sbr.rel (0) target = $region113
    $region112: #{tpu_custom_call.1} parent=1 // pred_region
      %212 = dma.done [#allocation19], 32
    $region113: #{tpu_custom_call.1} parent=1 // pred_fallthru
      _
    // Predicated region
    $region114: #{tpu_custom_call.1} parent=1 // pred_check
      _
    $region115: #{tpu_custom_call.1} parent=1 // pred_check_branch
      %214 = sbr.rel (0) target = $region117
    $region116: #{tpu_custom_call.1} parent=1 // pred_region
      %215 = dma.done [#allocation22], 16
    $region117: #{tpu_custom_call.1} parent=1 // pred_fallthru
      _
    // Predicated region
    $region118: #{tpu_custom_call.1} parent=1 // pred_check
      _
    $region119: #{tpu_custom_call.1} parent=1 // pred_check_branch
      %217 = sbr.rel (0) target = $region121
    $region120: #{tpu_custom_call.1} parent=1 // pred_region
      %218 = dma.done [#allocation22], 3264
    $region121: #{tpu_custom_call.1} parent=1 // pred_fallthru
      _
    %v220 = vld [vmem:[%s0] sm:$0xff]
    %v221 = vld [vmem:[%s0 + $0x8] sm:$0xff]
    %v222 = vld [vmem:[%s0 + $0x10] sm:$0xff]
    %v223 = vld [vmem:[%s0 + $0x18] sm:$0xff]
    %v224 = vld [vmem:[%s0 + $0x20] sm:$0x3]
    %v225 = vld [vmem:[%s16] sm:$0xf]
    %v226 = vld [vmem:[#allocation12] sm:$0x1]
    %v227 = vld [vmem:[#allocation14] sm:$0x1]
    %vm228 = vcmask 523264
    %v229 = vsel %vm228, %v220, 0.0
    %230 = vadd.xlane.f32.xlu0 %v229
    %v231 = vpop.xlane.xlu0 %230
    %v232 = vsel %vm228, %v221, 0.0
    %233 = vadd.xlane.f32.xlu0 %v232
    %v234 = vpop.xlane.xlu0 %233
    %v235 = vsel %vm228, %v222, 0.0
    %236 = vadd.xlane.f32.xlu0 %v235
    %v237 = vpop.xlane.xlu0 %236
    %v238 = vsel %vm228, %v223, 0.0
    %239 = vadd.xlane.f32.xlu0 %v238
    %v240 = vpop.xlane.xlu0 %239
    %vm241 = vcmask 517120
    %v242 = vsel %vm241, %v224, 0.0
    %243 = vadd.xlane.f32.xlu0 %v242
    %v244 = vpop.xlane.xlu0 %243
    %v245 = vrcp.pop 64.0
    %v246 = vmul.f32 %v231, %v245
    %v247 = vmul.f32 %v234, %v245
    %v248 = vmul.f32 %v237, %v245
    %v249 = vmul.f32 %v240, %v245
    %v250 = vmul.f32 %v244, %v245
    %v251 = vsub.f32 %v220, %v246
    %v252 = vsub.f32 %v221, %v247
    %v253 = vsub.f32 %v222, %v248
    %v254 = vsub.f32 %v223, %v249
    %v255 = vsub.f32 %v224, %v250
    %v256 = vmul.f32 %v251, %v251
    %v257 = vmul.f32 %v252, %v252
    %v258 = vmul.f32 %v253, %v253
    %v259 = vmul.f32 %v254, %v254
    %v260 = vmul.f32 %v255, %v255
    %v261 = vsel %vm228, %v256, 0.0
    %262 = vadd.xlane.f32.xlu0 %v261
    %v263 = vpop.xlane.xlu0 %262
    %v264 = vsel %vm228, %v257, 0.0
    %265 = vadd.xlane.f32.xlu0 %v264
    %v266 = vpop.xlane.xlu0 %265
    %v267 = vsel %vm228, %v258, 0.0
    %268 = vadd.xlane.f32.xlu0 %v267
    %v269 = vpop.xlane.xlu0 %268
    %v270 = vsel %vm228, %v259, 0.0
    %271 = vadd.xlane.f32.xlu0 %v270
    %v272 = vpop.xlane.xlu0 %271
    %v273 = vsel %vm241, %v260, 0.0
    %274 = vadd.xlane.f32.xlu0 %v273
    %v275 = vpop.xlane.xlu0 %274
    %v276 = vmul.f32 %v263, %v245
    %v277 = vmul.f32 %v266, %v245
    %v278 = vmul.f32 %v269, %v245
    %v279 = vmul.f32 %v272, %v245
    %v280 = vmul.f32 %v275, %v245
    %v281 = vadd.f32 %v276, 1e-05
    %v282 = vadd.f32 %v277, 1e-05
    %v283 = vadd.f32 %v278, 1e-05
    %v284 = vadd.f32 %v279, 1e-05
    %v285 = vadd.f32 %v280, 1e-05
    %v286 = vrsqrt.pop %v281
    %v287 = vrsqrt.pop %v282
    %v288 = vrsqrt.pop %v283
    %v289 = vrsqrt.pop %v284
    %v290 = vrsqrt.pop %v285
    %v291 = vmul.f32 %v251, %v286
    %v292 = vmul.f32 %v252, %v287
    %v293 = vmul.f32 %v253, %v288
    %v294 = vmul.f32 %v254, %v289
    %v295 = vmul.f32 %v255, %v290
    %v297 = vlaneseq
    %v298 = vshrl.u32 %v297, 7
    %v299 = vsub.s32 0, %v298
    %v300 = vrot.slane %v226, %v299
    %v302 = vmul.f32 %v291, %v300
    %v303 = vmul.f32 %v292, %v300
    %v304 = vmul.f32 %v293, %v300
    %v305 = vmul.f32 %v294, %v300
    %v306 = vmul.f32 %v295, %v300
    %v308 = vlaneseq
    %v309 = vshrl.u32 %v308, 7
    %v310 = vsub.s32 0, %v309
    %v311 = vrot.slane %v227, %v310
    %v313 = vadd.f32 %v302, %v311
    %v314 = vadd.f32 %v303, %v311
    %v315 = vadd.f32 %v304, %v311
    %v316 = vadd.f32 %v305, %v311
    %v317 = vadd.f32 %v306, %v311
    %v318 = vpack.c.bf16 %v314, %v313
    %v319 = vpack.c.bf16 %v316, %v315
    %v320 = vpack.c.bf16 %v317, %v317
    %v321 = vld [vmem:[#allocation3] sm:$0xf]
    %v322 = vld [vmem:[#allocation3 + $0x4] sm:$0xf]
    %v323 = vld [vmem:[#allocation3 + $0x8] sm:$0xf]
    %v324 = vld [vmem:[#allocation3 + $0xc] sm:$0xf]
    %v325 = vld [vmem:[#allocation3 + $0x10] sm:$0xf]
    %v326 = vld [vmem:[#allocation3 + $0x14] sm:$0xf]
    %v327 = vld [vmem:[#allocation3 + $0x18] sm:$0xf]
    %v328 = vld [vmem:[#allocation3 + $0x1c] sm:$0xf]
    %v337 = vunpack.c.l.b16 %v321
    %v338 = vunpack.c.l.b16 %v322
    %v339 = vunpack.c.l.b16 %v323
    %v340 = vunpack.c.l.b16 %v324
    %v341 = vunpack.c.l.b16 %v325
    %v342 = vunpack.c.l.b16 %v326
    %v343 = vunpack.c.l.b16 %v327
    %v344 = vunpack.c.l.b16 %v328
    %v345 = vpack.c.b16 %v338, %v337
    %v346 = vpack.c.b16 %v340, %v339
    %v347 = vpack.c.b16 %v342, %v341
    %v348 = vpack.c.b16 %v344, %v343
    %v354 = vsel %vm228, %v318, 0
    %v357 = vsel %vm228, %v319, 0
    %v360 = vsel %vm228, %v320, 0
    %362 = vmatprep.subr.bf16.mxu0 0
    %363 = vmatpush1.bf16.msra.mxu0 %v345
    %364 = vmatprep.subr.bf16.mxu0 0
    %365 = vmatpush1.bf16.msra.mxu0 %v346
    %366 = vmatprep.subr.bf16.mxu0 0
    %367 = vmatpush1.bf16.msra.mxu0 %v347
    %368 = vmatprep.subr.bf16.mxu0 0
    %369 = vmatpush1.bf16.msra.mxu0 %v348
    %370 = vmatprep.subr.bf16.mxu0 0
    %371 = vmatpush1.bf16.msra.mxu0 0
    %372 = vmatprep.subr.bf16.mxu0 0
    %373 = vmatpush1.bf16.msra.mxu0 0
    %374 = vmatprep.subr.bf16.mxu0 0
    %375 = vmatpush1.bf16.msra.mxu0 0
    %376 = vmatprep.subr.bf16.mxu0 0
    %377 = vmatpush1.bf16.msra.mxu0 0
    %378 = vmatprep.subr.bf16.mxu0 0
    %379 = vmatpush1.bf16.msra.mxu0 0
    %380 = vmatprep.subr.bf16.mxu0 0
    %381 = vmatpush1.bf16.msra.mxu0 0
    %382 = vmatprep.subr.bf16.mxu0 0
    %383 = vmatpush1.bf16.msra.mxu0 0
    %384 = vmatprep.subr.bf16.mxu0 0
    %385 = vmatpush1.bf16.msra.mxu0 0
    %386 = vmatprep.subr.bf16.mxu0 0
    %387 = vmatpush1.bf16.msra.mxu0 0
    %388 = vmatprep.subr.bf16.mxu0 0
    %389 = vmatpush1.bf16.msra.mxu0 0
    %390 = vmatprep.subr.bf16.mxu0 0
    %391 = vmatpush1.bf16.msra.mxu0 0
    %392 = vmatprep.subr.bf16.mxu0 0
    %393 = vmatpush1.bf16.msra.mxu0 0
    %394 = vmatprep.mubr.bf16.mxu0 0
    %395 = vmatmul.mubr.bf16.gmra.mrb[0].mxu0 %v354
    %v396 = vpop.f32.mrb[0].mxu0
    %v397 = vadd.f32 0.0, %v396
    %v398 = vpop.f32.mrb[0].mxu0
    %v399 = vpop.f32.mrb[0].mxu0
    %v400 = vadd.f32 0.0, %v399
    %v401 = vpop.f32.mrb[0].mxu0
    %402 = vmatprep.mubr.bf16.mxu0 0
    %403 = vmatmul.mubr.bf16.gmra.mrb[0].mxu0 %v357
    %v404 = vpop.f32.mrb[0].mxu0
    %v405 = vadd.f32 0.0, %v404
    %v406 = vpop.f32.mrb[0].mxu0
    %v407 = vpop.f32.mrb[0].mxu0
    %v408 = vadd.f32 0.0, %v407
    %v409 = vpop.f32.mrb[0].mxu0
    %410 = vmatprep.mubr.bf16.mxu0 0
    %411 = vmatmul.mubr.bf16.gmra.mrb[0].mxu0 %v360
    %v412 = vpop.f32.mrb[0].mxu0
    %v413 = vadd.f32 0.0, %v412
    %v414 = vpop.f32.mrb[0].mxu0
    %v415 = vpop.f32.mrb[0].mxu0
    %v416 = vpop.f32.mrb[0].mxu0
    %417 = vdwg.mxu0
    %v418 = vmul.f32 %v397, 0.25
    %v419 = vmul.f32 %v400, 0.25
    %v420 = vmul.f32 %v405, 0.25
    %v421 = vmul.f32 %v408, 0.25
    %v422 = vmul.f32 %v413, 0.25
    %v423 = vld [vmem:[#allocation6] sm:$0xf]
    %v424 = vld [vmem:[#allocation6 + $0x4] sm:$0xf]
    %v425 = vld [vmem:[#allocation6 + $0x8] sm:$0xf]
    %v426 = vld [vmem:[#allocation6 + $0xc] sm:$0xf]
    %v427 = vld [vmem:[#allocation6 + $0x10] sm:$0xf]
    %v428 = vld [vmem:[#allocation6 + $0x14] sm:$0xf]
    %v429 = vld [vmem:[#allocation6 + $0x18] sm:$0xf]
    %v430 = vld [vmem:[#allocation6 + $0x1c] sm:$0xf]
    %v439 = vunpack.c.l.b16 %v423
    %v440 = vunpack.c.l.b16 %v424
    %v441 = vunpack.c.l.b16 %v425
    %v442 = vunpack.c.l.b16 %v426
    %v443 = vunpack.c.l.b16 %v427
    %v444 = vunpack.c.l.b16 %v428
    %v445 = vunpack.c.l.b16 %v429
    %v446 = vunpack.c.l.b16 %v430
    %v447 = vpack.c.b16 %v440, %v439
    %v448 = vpack.c.b16 %v442, %v441
    %v449 = vpack.c.b16 %v444, %v443
    %v450 = vpack.c.b16 %v446, %v445
    %455 = vmatprep.subr.bf16.mxu0 0
    %456 = vmatpush1.bf16.msra.mxu0 %v447
    %457 = vmatprep.subr.bf16.mxu0 0
    %458 = vmatpush1.bf16.msra.mxu0 %v448
    %459 = vmatprep.subr.bf16.mxu0 0
    %460 = vmatpush1.bf16.msra.mxu0 %v449
    %461 = vmatprep.subr.bf16.mxu0 0
    %462 = vmatpush1.bf16.msra.mxu0 %v450
    %463 = vmatprep.subr.bf16.mxu0 0
    %464 = vmatpush1.bf16.msra.mxu0 0
    %465 = vmatprep.subr.bf16.mxu0 0
    %466 = vmatpush1.bf16.msra.mxu0 0
    %467 = vmatprep.subr.bf16.mxu0 0
    %468 = vmatpush1.bf16.msra.mxu0 0
    %469 = vmatprep.subr.bf16.mxu0 0
    %470 = vmatpush1.bf16.msra.mxu0 0
    %471 = vmatprep.subr.bf16.mxu0 0
    %472 = vmatpush1.bf16.msra.mxu0 0
    %473 = vmatprep.subr.bf16.mxu0 0
    %474 = vmatpush1.bf16.msra.mxu0 0
    %475 = vmatprep.subr.bf16.mxu0 0
    %476 = vmatpush1.bf16.msra.mxu0 0
    %477 = vmatprep.subr.bf16.mxu0 0
    %478 = vmatpush1.bf16.msra.mxu0 0
    %479 = vmatprep.subr.bf16.mxu0 0
    %480 = vmatpush1.bf16.msra.mxu0 0
    %481 = vmatprep.subr.bf16.mxu0 0
    %482 = vmatpush1.bf16.msra.mxu0 0
    %483 = vmatprep.subr.bf16.mxu0 0
    %484 = vmatpush1.bf16.msra.mxu0 0
    %485 = vmatprep.subr.bf16.mxu0 0
    %486 = vmatpush1.bf16.msra.mxu0 0
    %487 = vmatprep.mubr.bf16.mxu0 0
    %488 = vmatmul.mubr.bf16.gmra.mrb[0].mxu0 %v354
    %v489 = vpop.f32.mrb[0].mxu0
    %v490 = vadd.f32 0.0, %v489
    %v491 = vpop.f32.mrb[0].mxu0
    %v492 = vpop.f32.mrb[0].mxu0
    %v493 = vadd.f32 0.0, %v492
    %v494 = vpop.f32.mrb[0].mxu0
    %495 = vmatprep.mubr.bf16.mxu0 0
    %496 = vmatmul.mubr.bf16.gmra.mrb[0].mxu0 %v357
    %v497 = vpop.f32.mrb[0].mxu0
    %v498 = vadd.f32 0.0, %v497
    %v499 = vpop.f32.mrb[0].mxu0
    %v500 = vpop.f32.mrb[0].mxu0
    %v501 = vadd.f32 0.0, %v500
    %v502 = vpop.f32.mrb[0].mxu0
    %503 = vmatprep.mubr.bf16.mxu0 0
    %504 = vmatmul.mubr.bf16.gmra.mrb[0].mxu0 %v360
    %v505 = vpop.f32.mrb[0].mxu0
    %v506 = vadd.f32 0.0, %v505
    %v507 = vpop.f32.mrb[0].mxu0
    %v508 = vpop.f32.mrb[0].mxu0
    %v509 = vpop.f32.mrb[0].mxu0
    %510 = vdwg.mxu0
    %v511 = vld [vmem:[#allocation8] sm:$0xf]
    %v512 = vld [vmem:[#allocation8 + $0x4] sm:$0xf]
    %v513 = vld [vmem:[#allocation8 + $0x8] sm:$0xf]
    %v514 = vld [vmem:[#allocation8 + $0xc] sm:$0xf]
    %v515 = vld [vmem:[#allocation8 + $0x10] sm:$0xf]
    %v516 = vld [vmem:[#allocation8 + $0x14] sm:$0xf]
    %v517 = vld [vmem:[#allocation8 + $0x18] sm:$0xf]
    %v518 = vld [vmem:[#allocation8 + $0x1c] sm:$0xf]
    %v527 = vunpack.c.l.b16 %v511
    %v528 = vunpack.c.l.b16 %v512
    %v529 = vunpack.c.l.b16 %v513
    %v530 = vunpack.c.l.b16 %v514
    %v531 = vunpack.c.l.b16 %v515
    %v532 = vunpack.c.l.b16 %v516
    %v533 = vunpack.c.l.b16 %v517
    %v534 = vunpack.c.l.b16 %v518
    %v535 = vpack.c.b16 %v528, %v527
    %v536 = vpack.c.b16 %v530, %v529
    %v537 = vpack.c.b16 %v532, %v531
    %v538 = vpack.c.b16 %v534, %v533
    %543 = vmatprep.subr.bf16.mxu0 0
    %544 = vmatpush1.bf16.msra.mxu0 %v535
    %545 = vmatprep.subr.bf16.mxu0 0
    %546 = vmatpush1.bf16.msra.mxu0 %v536
    %547 = vmatprep.subr.bf16.mxu0 0
    %548 = vmatpush1.bf16.msra.mxu0 %v537
    %549 = vmatprep.subr.bf16.mxu0 0
    %550 = vmatpush1.bf16.msra.mxu0 %v538
    %551 = vmatprep.subr.bf16.mxu0 0
    %552 = vmatpush1.bf16.msra.mxu0 0
    %553 = vmatprep.subr.bf16.mxu0 0
    %554 = vmatpush1.bf16.msra.mxu0 0
    %555 = vmatprep.subr.bf16.mxu0 0
    %556 = vmatpush1.bf16.msra.mxu0 0
    %557 = vmatprep.subr.bf16.mxu0 0
    %558 = vmatpush1.bf16.msra.mxu0 0
    %559 = vmatprep.subr.bf16.mxu0 0
    %560 = vmatpush1.bf16.msra.mxu0 0
    %561 = vmatprep.subr.bf16.mxu0 0
    %562 = vmatpush1.bf16.msra.mxu0 0
    %563 = vmatprep.subr.bf16.mxu0 0
    %564 = vmatpush1.bf16.msra.mxu0 0
    %565 = vmatprep.subr.bf16.mxu0 0
    %566 = vmatpush1.bf16.msra.mxu0 0
    %567 = vmatprep.subr.bf16.mxu0 0
    %568 = vmatpush1.bf16.msra.mxu0 0
    %569 = vmatprep.subr.bf16.mxu0 0
    %570 = vmatpush1.bf16.msra.mxu0 0
    %571 = vmatprep.subr.bf16.mxu0 0
    %572 = vmatpush1.bf16.msra.mxu0 0
    %573 = vmatprep.subr.bf16.mxu0 0
    %574 = vmatpush1.bf16.msra.mxu0 0
    %575 = vmatprep.mubr.bf16.mxu0 0
    %576 = vmatmul.mubr.bf16.gmra.mrb[0].mxu0 %v354
    %v577 = vpop.f32.mrb[0].mxu0
    %v578 = vadd.f32 0.0, %v577
    %v579 = vpop.f32.mrb[0].mxu0
    %v580 = vpop.f32.mrb[0].mxu0
    %v581 = vadd.f32 0.0, %v580
    %v582 = vpop.f32.mrb[0].mxu0
    %583 = vmatprep.mubr.bf16.mxu0 0
    %584 = vmatmul.mubr.bf16.gmra.mrb[0].mxu0 %v357
    %v585 = vpop.f32.mrb[0].mxu0
    %v586 = vadd.f32 0.0, %v585
    %v587 = vpop.f32.mrb[0].mxu0
    %v588 = vpop.f32.mrb[0].mxu0
    %v589 = vadd.f32 0.0, %v588
    %v590 = vpop.f32.mrb[0].mxu0
    %591 = vmatprep.mubr.bf16.mxu0 0
    %592 = vmatmul.mubr.bf16.gmra.mrb[0].mxu0 %v360
    %v593 = vpop.f32.mrb[0].mxu0
    %v594 = vadd.f32 0.0, %v593
    %v595 = vpop.f32.mrb[0].mxu0
    %v596 = vpop.f32.mrb[0].mxu0
    %v597 = vpop.f32.mrb[0].mxu0
    %598 = vdwg.mxu0
    %v599 = vld [vmem:[%s14] sm:$0xf]
    %v600 = vld [vmem:[%s14 + $0x4] sm:$0xf]
    %v601 = vld [vmem:[%s14 + $0x8] sm:$0x1]
    %v602 = vld [vmem:[%s14 + $0xc] sm:$0xf]
    %v603 = vld [vmem:[%s14 + $0x10] sm:$0xf]
    %v604 = vld [vmem:[%s14 + $0x14] sm:$0x1]
    %v605 = vld [vmem:[%s14 + $0x18] sm:$0xf]
    %v606 = vld [vmem:[%s14 + $0x1c] sm:$0xf]
    %v607 = vld [vmem:[%s14 + $0x20] sm:$0x1]
    %v608 = vld [vmem:[%s14 + $0x24] sm:$0xf]
    %v609 = vld [vmem:[%s14 + $0x28] sm:$0xf]
    %v610 = vld [vmem:[%s14 + $0x2c] sm:$0x1]
    %v611 = vld [vmem:[%s14 + $0x30] sm:$0xf]
    %v612 = vld [vmem:[%s14 + $0x34] sm:$0xf]
    %v613 = vld [vmem:[%s14 + $0x38] sm:$0x1]
    %v614 = vld [vmem:[%s14 + $0x3c] sm:$0xf]
    %v615 = vld [vmem:[%s14 + $0x40] sm:$0xf]
    %v616 = vld [vmem:[%s14 + $0x44] sm:$0x1]
    %v617 = vld [vmem:[%s14 + $0x48] sm:$0xf]
    %v618 = vld [vmem:[%s14 + $0x4c] sm:$0xf]
    %v619 = vld [vmem:[%s14 + $0x50] sm:$0x1]
    %v620 = vld [vmem:[%s14 + $0x54] sm:$0xf]
    %v621 = vld [vmem:[%s14 + $0x58] sm:$0xf]
    %v622 = vld [vmem:[%s14 + $0x5c] sm:$0x1]
    %v623 = vld [vmem:[%s14 + $0x60] sm:$0xf]
    %v624 = vld [vmem:[%s14 + $0x64] sm:$0xf]
    %v625 = vld [vmem:[%s14 + $0x68] sm:$0x1]
    %v626 = vld [vmem:[%s14 + $0x6c] sm:$0xf]
    %v627 = vld [vmem:[%s14 + $0x70] sm:$0xf]
    %v628 = vld [vmem:[%s14 + $0x74] sm:$0x1]
    %v629 = vld [vmem:[%s14 + $0x78] sm:$0xf]
    %v630 = vld [vmem:[%s14 + $0x7c] sm:$0xf]
    %v631 = vld [vmem:[%s14 + $0x80] sm:$0x1]
    %v632 = vld [vmem:[%s14 + $0x84] sm:$0xf]
    %v633 = vld [vmem:[%s14 + $0x88] sm:$0xf]
    %v634 = vld [vmem:[%s14 + $0x8c] sm:$0x1]
    %v635 = vld [vmem:[%s14 + $0x90] sm:$0xf]
    %v636 = vld [vmem:[%s14 + $0x94] sm:$0xf]
    %v637 = vld [vmem:[%s14 + $0x98] sm:$0x1]
    %v638 = vld [vmem:[%s14 + $0x9c] sm:$0xf]
    %v639 = vld [vmem:[%s14 + $0xa0] sm:$0xf]
    %v640 = vld [vmem:[%s14 + $0xa4] sm:$0x1]
    %v641 = vld [vmem:[%s14 + $0xa8] sm:$0xf]
    %v642 = vld [vmem:[%s14 + $0xac] sm:$0xf]
    %v643 = vld [vmem:[%s14 + $0xb0] sm:$0x1]
    %v644 = vld [vmem:[%s14 + $0xb4] sm:$0xf]
    %v645 = vld [vmem:[%s14 + $0xb8] sm:$0xf]
    %v646 = vld [vmem:[%s14 + $0xbc] sm:$0x1]
    %v647 = vld [vmem:[%s14 + $0xc0] sm:$0xf]
    %v648 = vld [vmem:[%s14 + $0xc4] sm:$0xf]
    %v649 = vld [vmem:[%s14 + $0xc8] sm:$0x1]
    %v650 = vld [vmem:[#allocation23] sm:$0xf]
    %v651 = vld [vmem:[#allocation23 + $0x4] sm:$0xf]
    %v652 = vld [vmem:[#allocation23 + $0x8] sm:$0x1]
    %v653 = vld [vmem:[#allocation23 + $0xc] sm:$0xf]
    %v654 = vld [vmem:[#allocation23 + $0x10] sm:$0xf]
    %v655 = vld [vmem:[#allocation23 + $0x14] sm:$0x1]
    %v656 = vld [vmem:[#allocation23 + $0x18] sm:$0xf]
    %v657 = vld [vmem:[#allocation23 + $0x1c] sm:$0xf]
    %v658 = vld [vmem:[#allocation23 + $0x20] sm:$0x1]
    %v659 = vld [vmem:[#allocation23 + $0x24] sm:$0xf]
    %v660 = vld [vmem:[#allocation23 + $0x28] sm:$0xf]
    %v661 = vld [vmem:[#allocation23 + $0x2c] sm:$0x1]
    %v662 = vld [vmem:[#allocation23 + $0x30] sm:$0xf]
    %v663 = vld [vmem:[#allocation23 + $0x34] sm:$0xf]
    %v664 = vld [vmem:[#allocation23 + $0x38] sm:$0x1]
    %v665 = vld [vmem:[#allocation23 + $0x3c] sm:$0xf]
    %v666 = vld [vmem:[#allocation23 + $0x40] sm:$0xf]
    %v667 = vld [vmem:[#allocation23 + $0x44] sm:$0x1]
    %v668 = vld [vmem:[#allocation23 + $0x48] sm:$0xf]
    %v669 = vld [vmem:[#allocation23 + $0x4c] sm:$0xf]
    %v670 = vld [vmem:[#allocation23 + $0x50] sm:$0x1]
    %v671 = vld [vmem:[#allocation23 + $0x54] sm:$0xf]
    %v672 = vld [vmem:[#allocation23 + $0x58] sm:$0xf]
    %v673 = vld [vmem:[#allocation23 + $0x5c] sm:$0x1]
    %v674 = vld [vmem:[#allocation23 + $0x60] sm:$0xf]
    %v675 = vld [vmem:[#allocation23 + $0x64] sm:$0xf]
    %v676 = vld [vmem:[#allocation23 + $0x68] sm:$0x1]
    %v677 = vld [vmem:[#allocation23 + $0x6c] sm:$0xf]
    %v678 = vld [vmem:[#allocation23 + $0x70] sm:$0xf]
    %v679 = vld [vmem:[#allocation23 + $0x74] sm:$0x1]
    %v680 = vld [vmem:[#allocation23 + $0x78] sm:$0xf]
    %v681 = vld [vmem:[#allocation23 + $0x7c] sm:$0xf]
    %v682 = vld [vmem:[#allocation23 + $0x80] sm:$0x1]
    %v683 = vld [vmem:[#allocation23 + $0x84] sm:$0xf]
    %v684 = vld [vmem:[#allocation23 + $0x88] sm:$0xf]
    %v685 = vld [vmem:[#allocation23 + $0x8c] sm:$0x1]
    %v686 = vld [vmem:[#allocation23 + $0x90] sm:$0xf]
    %v687 = vld [vmem:[#allocation23 + $0x94] sm:$0xf]
    %v688 = vld [vmem:[#allocation23 + $0x98] sm:$0x1]
    %v689 = vld [vmem:[#allocation23 + $0x9c] sm:$0xf]
    %v690 = vld [vmem:[#allocation23 + $0xa0] sm:$0xf]
    %v691 = vld [vmem:[#allocation23 + $0xa4] sm:$0x1]
    %v692 = vld [vmem:[#allocation23 + $0xa8] sm:$0xf]
    %v693 = vld [vmem:[#allocation23 + $0xac] sm:$0xf]
    %v694 = vld [vmem:[#allocation23 + $0xb0] sm:$0x1]
    %v695 = vld [vmem:[#allocation23 + $0xb4] sm:$0xf]
    %v696 = vld [vmem:[#allocation23 + $0xb8] sm:$0xf]
    %v697 = vld [vmem:[#allocation23 + $0xbc] sm:$0x1]
    %v698 = vld [vmem:[#allocation23 + $0xc0] sm:$0xf]
    %v699 = vld [vmem:[#allocation23 + $0xc4] sm:$0xf]
    %v700 = vld [vmem:[#allocation23 + $0xc8] sm:$0x1]
    %v701 = vpack.c.bf16 %v493, %v490
    %v702 = vpack.c.bf16 %v498, %v498
    %v703 = vpack.c.bf16 %v581, %v578
    %v704 = vpack.c.bf16 %v586, %v586
    %v708 = vcombine.high %v418, %v418
    %v710 = vunpack.c.l.s4 1966171168
    %v711 = vunpack.c.0.s8 %v710
    %v712 = vlaneseq
    %v713 = vshrl.u32 %v712, 7
    %v714 = vsub.s32 %v711, %v713
    %v715 = vrot.slane %v418, %v714
    %v717 = vunpack.c.l.s4 1966171168
    %v718 = vunpack.c.0.s8 %v717
    %v719 = vlaneseq
    %v720 = vshrl.u32 %v719, 7
    %v721 = vsub.s32 %v718, %v720
    %v722 = vrot.slane %v708, %v721
    %v723 = vcombine.high %v715, %v715
    %v724 = vcombine.high %v722, %v722
    %v726 = vunpack.c.l.s4 1966171168
    %v727 = vunpack.c.0.s8 %v726
    %v728 = vlaneseq
    %v729 = vshrl.u32 %v728, 7
    %v730 = vsub.s32 %v727, %v729
    %v731 = vrot.slane %v715, %v730
    %v733 = vunpack.c.l.s4 1966171168
    %v734 = vunpack.c.0.s8 %v733
    %v735 = vlaneseq
    %v736 = vshrl.u32 %v735, 7
    %v737 = vsub.s32 %v734, %v736
    %v738 = vrot.slane %v722, %v737
    %v740 = vunpack.c.l.s4 1966171168
    %v741 = vunpack.c.0.s8 %v740
    %v742 = vlaneseq
    %v743 = vshrl.u32 %v742, 7
    %v744 = vsub.s32 %v741, %v743
    %v745 = vrot.slane %v723, %v744
    %v747 = vunpack.c.l.s4 1966171168
    %v748 = vunpack.c.0.s8 %v747
    %v749 = vlaneseq
    %v750 = vshrl.u32 %v749, 7
    %v751 = vsub.s32 %v748, %v750
    %v752 = vrot.slane %v724, %v751
    %v753 = vcombine.high %v731, %v731
    %v754 = vcombine.high %v738, %v738
    %v755 = vcombine.high %v745, %v745
    %v756 = vcombine.high %v752, %v752
    %v757 = vcombine.high %v419, %v419
    %v759 = vunpack.c.l.s4 1966171168
    %v760 = vunpack.c.0.s8 %v759
    %v761 = vlaneseq
    %v762 = vshrl.u32 %v761, 7
    %v763 = vsub.s32 %v760, %v762
    %v764 = vrot.slane %v419, %v763
    %v766 = vunpack.c.l.s4 1966171168
    %v767 = vunpack.c.0.s8 %v766
    %v768 = vlaneseq
    %v769 = vshrl.u32 %v768, 7
    %v770 = vsub.s32 %v767, %v769
    %v771 = vrot.slane %v757, %v770
    %v772 = vcombine.high %v764, %v764
    %v773 = vcombine.high %v771, %v771
    %v775 = vunpack.c.l.s4 1966171168
    %v776 = vunpack.c.0.s8 %v775
    %v777 = vlaneseq
    %v778 = vshrl.u32 %v777, 7
    %v779 = vsub.s32 %v776, %v778
    %v780 = vrot.slane %v764, %v779
    %v782 = vunpack.c.l.s4 1966171168
    %v783 = vunpack.c.0.s8 %v782
    %v784 = vlaneseq
    %v785 = vshrl.u32 %v784, 7
    %v786 = vsub.s32 %v783, %v785
    %v787 = vrot.slane %v771, %v786
    %v789 = vunpack.c.l.s4 1966171168
    %v790 = vunpack.c.0.s8 %v789
    %v791 = vlaneseq
    %v792 = vshrl.u32 %v791, 7
    %v793 = vsub.s32 %v790, %v792
    %v794 = vrot.slane %v772, %v793
    %v796 = vunpack.c.l.s4 1966171168
    %v797 = vunpack.c.0.s8 %v796
    %v798 = vlaneseq
    %v799 = vshrl.u32 %v798, 7
    %v800 = vsub.s32 %v797, %v799
    %v801 = vrot.slane %v773, %v800
    %v802 = vcombine.high %v780, %v780
    %v803 = vcombine.high %v787, %v787
    %v804 = vcombine.high %v794, %v794
    %v805 = vcombine.high %v801, %v801
    %v807 = vunpack.c.l.s4 1966171168
    %v808 = vunpack.c.0.s8 %v807
    %v809 = vlaneseq
    %v810 = vshrl.u32 %v809, 7
    %v811 = vsub.s32 %v808, %v810
    %v812 = vrot.slane %v420, %v811
    %v814 = vunpack.c.l.s4 1966171168
    %v815 = vunpack.c.0.s8 %v814
    %v816 = vlaneseq
    %v817 = vshrl.u32 %v816, 7
    %v818 = vsub.s32 %v815, %v817
    %v819 = vrot.slane %v812, %v818
    %v820 = vlaneseq
    %v821 = vshrl.u32 %v820, 7
    %v822 = vsub.s32 0, %v821
    %v823 = vrot.slane %v731, %v822
    %v824 = vlaneseq
    %v825 = vshrl.u32 %v824, 7
    %v826 = vsub.s32 0, %v825
    %v827 = vrot.slane %v745, %v826
    %v828 = vlaneseq
    %v829 = vshrl.u32 %v828, 7
    %v830 = vsub.s32 0, %v829
    %v831 = vrot.slane %v753, %v830
    %v832 = vlaneseq
    %v833 = vshrl.u32 %v832, 7
    %v834 = vsub.s32 0, %v833
    %v835 = vrot.slane %v755, %v834
    %v836 = vlaneseq
    %v837 = vshrl.u32 %v836, 7
    %v838 = vsub.s32 0, %v837
    %v839 = vrot.slane %v738, %v838
    %v840 = vlaneseq
    %v841 = vshrl.u32 %v840, 7
    %v842 = vsub.s32 0, %v841
    %v843 = vrot.slane %v752, %v842
    %v844 = vlaneseq
    %v845 = vshrl.u32 %v844, 7
    %v846 = vsub.s32 0, %v845
    %v847 = vrot.slane %v754, %v846
    %v848 = vlaneseq
    %v849 = vshrl.u32 %v848, 7
    %v850 = vsub.s32 0, %v849
    %v851 = vrot.slane %v756, %v850
    %v852 = vlaneseq
    %v853 = vshrl.u32 %v852, 7
    %v854 = vsub.s32 0, %v853
    %v855 = vrot.slane %v780, %v854
    %v856 = vlaneseq
    %v857 = vshrl.u32 %v856, 7
    %v858 = vsub.s32 0, %v857
    %v859 = vrot.slane %v794, %v858
    %v860 = vlaneseq
    %v861 = vshrl.u32 %v860, 7
    %v862 = vsub.s32 0, %v861
    %v863 = vrot.slane %v802, %v862
    %v864 = vlaneseq
    %v865 = vshrl.u32 %v864, 7
    %v866 = vsub.s32 0, %v865
    %v867 = vrot.slane %v804, %v866
    %v868 = vlaneseq
    %v869 = vshrl.u32 %v868, 7
    %v870 = vsub.s32 0, %v869
    %v871 = vrot.slane %v787, %v870
    %v872 = vlaneseq
    %v873 = vshrl.u32 %v872, 7
    %v874 = vsub.s32 0, %v873
    %v875 = vrot.slane %v801, %v874
    %v876 = vlaneseq
    %v877 = vshrl.u32 %v876, 7
    %v878 = vsub.s32 0, %v877
    %v879 = vrot.slane %v803, %v878
    %v880 = vlaneseq
    %v881 = vshrl.u32 %v880, 7
    %v882 = vsub.s32 0, %v881
    %v883 = vrot.slane %v805, %v882
    %v884 = vlaneseq
    %v885 = vshrl.u32 %v884, 7
    %v886 = vsub.s32 0, %v885
    %v887 = vrot.slane %v819, %v886
    %v905 = vmul.f32 %v823, %v225
    %v906 = vmul.f32 %v827, %v225
    %v907 = vmul.f32 %v831, %v225
    %v908 = vmul.f32 %v835, %v225
    %v909 = vmul.f32 %v839, %v225
    %v910 = vmul.f32 %v843, %v225
    %v911 = vmul.f32 %v847, %v225
    %v912 = vmul.f32 %v851, %v225
    %v913 = vmul.f32 %v855, %v225
    %v914 = vmul.f32 %v859, %v225
    %v915 = vmul.f32 %v863, %v225
    %v916 = vmul.f32 %v867, %v225
    %v917 = vmul.f32 %v871, %v225
    %v918 = vmul.f32 %v875, %v225
    %v919 = vmul.f32 %v879, %v225
    %v920 = vmul.f32 %v883, %v225
    %v921 = vmul.f32 %v887, %v225
    %v922 = vpack.c.bf16 %v905, %v905
    %v923 = vpack.c.bf16 %v906, %v906
    %v924 = vpack.c.bf16 %v907, %v907
    %v925 = vpack.c.bf16 %v908, %v908
    %v926 = vpack.c.bf16 %v909, %v909
    %v927 = vpack.c.bf16 %v910, %v910
    %v928 = vpack.c.bf16 %v911, %v911
    %v929 = vpack.c.bf16 %v912, %v912
    %v930 = vpack.c.bf16 %v913, %v913
    %v931 = vpack.c.bf16 %v914, %v914
    %v932 = vpack.c.bf16 %v915, %v915
    %v933 = vpack.c.bf16 %v916, %v916
    %v934 = vpack.c.bf16 %v917, %v917
    %v935 = vpack.c.bf16 %v918, %v918
    %v936 = vpack.c.bf16 %v919, %v919
    %v937 = vpack.c.bf16 %v920, %v920
    %v938 = vpack.c.bf16 %v921, %v921
    %v990 = vunpack.c.l.b16 %v599
    %v991 = vunpack.c.l.b16 %v600
    %v992 = vunpack.c.l.b16 %v601
    %v993 = vunpack.c.l.b16 %v602
    %v994 = vunpack.c.l.b16 %v603
    %v995 = vunpack.c.l.b16 %v604
    %v996 = vunpack.c.l.b16 %v605
    %v997 = vunpack.c.l.b16 %v606
    %v998 = vunpack.c.l.b16 %v607
    %v999 = vunpack.c.l.b16 %v608
    %v1000 = vunpack.c.l.b16 %v609
    %v1001 = vunpack.c.l.b16 %v610
    %v1002 = vunpack.c.l.b16 %v611
    %v1003 = vunpack.c.l.b16 %v612
    %v1004 = vunpack.c.l.b16 %v613
    %v1005 = vunpack.c.l.b16 %v614
    %v1006 = vunpack.c.l.b16 %v615
    %v1007 = vunpack.c.l.b16 %v616
    %v1008 = vunpack.c.l.b16 %v617
    %v1009 = vunpack.c.l.b16 %v618
    %v1010 = vunpack.c.l.b16 %v619
    %v1011 = vunpack.c.l.b16 %v620
    %v1012 = vunpack.c.l.b16 %v621
    %v1013 = vunpack.c.l.b16 %v622
    %v1014 = vunpack.c.l.b16 %v623
    %v1015 = vunpack.c.l.b16 %v624
    %v1016 = vunpack.c.l.b16 %v625
    %v1017 = vunpack.c.l.b16 %v626
    %v1018 = vunpack.c.l.b16 %v627
    %v1019 = vunpack.c.l.b16 %v628
    %v1020 = vunpack.c.l.b16 %v629
    %v1021 = vunpack.c.l.b16 %v630
    %v1022 = vunpack.c.l.b16 %v631
    %v1023 = vunpack.c.l.b16 %v632
    %v1024 = vunpack.c.l.b16 %v633
    %v1025 = vunpack.c.l.b16 %v634
    %v1026 = vunpack.c.l.b16 %v635
    %v1027 = vunpack.c.l.b16 %v636
    %v1028 = vunpack.c.l.b16 %v637
    %v1029 = vunpack.c.l.b16 %v638
    %v1030 = vunpack.c.l.b16 %v639
    %v1031 = vunpack.c.l.b16 %v640
    %v1032 = vunpack.c.l.b16 %v641
    %v1033 = vunpack.c.l.b16 %v642
    %v1034 = vunpack.c.l.b16 %v643
    %v1035 = vunpack.c.l.b16 %v644
    %v1036 = vunpack.c.l.b16 %v645
    %v1037 = vunpack.c.l.b16 %v646
    %v1038 = vunpack.c.l.b16 %v647
    %v1039 = vunpack.c.l.b16 %v648
    %v1040 = vunpack.c.l.b16 %v649
    %v1041 = vpack.c.b16 %v991, %v990
    %v1042 = vpack.c.b16 %v992, %v992
    %v1043 = vpack.c.b16 %v994, %v993
    %v1044 = vpack.c.b16 %v995, %v995
    %v1045 = vpack.c.b16 %v997, %v996
    %v1046 = vpack.c.b16 %v998, %v998
    %v1047 = vpack.c.b16 %v1000, %v999
    %v1048 = vpack.c.b16 %v1001, %v1001
    %v1049 = vpack.c.b16 %v1003, %v1002
    %v1050 = vpack.c.b16 %v1004, %v1004
    %v1051 = vpack.c.b16 %v1006, %v1005
    %v1052 = vpack.c.b16 %v1007, %v1007
    %v1053 = vpack.c.b16 %v1009, %v1008
    %v1054 = vpack.c.b16 %v1010, %v1010
    %v1055 = vpack.c.b16 %v1012, %v1011
    %v1056 = vpack.c.b16 %v1013, %v1013
    %v1057 = vpack.c.b16 %v1015, %v1014
    %v1058 = vpack.c.b16 %v1016, %v1016
    %v1059 = vpack.c.b16 %v1018, %v1017
    %v1060 = vpack.c.b16 %v1019, %v1019
    %v1061 = vpack.c.b16 %v1021, %v1020
    %v1062 = vpack.c.b16 %v1022, %v1022
    %v1063 = vpack.c.b16 %v1024, %v1023
    %v1064 = vpack.c.b16 %v1025, %v1025
    %v1065 = vpack.c.b16 %v1027, %v1026
    %v1066 = vpack.c.b16 %v1028, %v1028
    %v1067 = vpack.c.b16 %v1030, %v1029
    %v1068 = vpack.c.b16 %v1031, %v1031
    %v1069 = vpack.c.b16 %v1033, %v1032
    %v1070 = vpack.c.b16 %v1034, %v1034
    %v1071 = vpack.c.b16 %v1036, %v1035
    %v1072 = vpack.c.b16 %v1037, %v1037
    %v1073 = vpack.c.b16 %v1039, %v1038
    %v1074 = vpack.c.b16 %v1040, %v1040
    %v1109 = vadd.bf16 %v701, %v1041
    %v1110 = vadd.bf16 %v702, %v1042
    %v1111 = vadd.bf16 %v701, %v1043
    %v1112 = vadd.bf16 %v702, %v1044
    %v1113 = vadd.bf16 %v701, %v1045
    %v1114 = vadd.bf16 %v702, %v1046
    %v1115 = vadd.bf16 %v701, %v1047
    %v1116 = vadd.bf16 %v702, %v1048
    %v1117 = vadd.bf16 %v701, %v1049
    %v1118 = vadd.bf16 %v702, %v1050
    %v1119 = vadd.bf16 %v701, %v1051
    %v1120 = vadd.bf16 %v702, %v1052
    %v1121 = vadd.bf16 %v701, %v1053
    %v1122 = vadd.bf16 %v702, %v1054
    %v1123 = vadd.bf16 %v701, %v1055
    %v1124 = vadd.bf16 %v702, %v1056
    %v1125 = vadd.bf16 %v701, %v1057
    %v1126 = vadd.bf16 %v702, %v1058
    %v1127 = vadd.bf16 %v701, %v1059
    %v1128 = vadd.bf16 %v702, %v1060
    %v1129 = vadd.bf16 %v701, %v1061
    %v1130 = vadd.bf16 %v702, %v1062
    %v1131 = vadd.bf16 %v701, %v1063
    %v1132 = vadd.bf16 %v702, %v1064
    %v1133 = vadd.bf16 %v701, %v1065
    %v1134 = vadd.bf16 %v702, %v1066
    %v1135 = vadd.bf16 %v701, %v1067
    %v1136 = vadd.bf16 %v702, %v1068
    %v1137 = vadd.bf16 %v701, %v1069
    %v1138 = vadd.bf16 %v702, %v1070
    %v1139 = vadd.bf16 %v701, %v1071
    %v1140 = vadd.bf16 %v702, %v1072
    %v1141 = vadd.bf16 %v701, %v1073
    %v1142 = vadd.bf16 %v702, %v1074
    %v1144 = vsel %vm228, %v922, 0
    %v1147 = vsel %vm228, %v1109, 0
    %v1150 = vsel %vm228, %v1110, 0
    %1152 = vmatprep.subr.bf16.mxu0 0
    %1153 = vmatpush1.bf16.xpose.msra.mxu0 %v1147
    %1154 = vmatprep.subr.bf16.mxu0 0
    %1155 = vmatpush1.bf16.xpose.msra.mxu0 %v1150
    %1156 = vmatprep.subr.bf16.mxu0 0
    %1157 = vmatpush1.bf16.xpose.msra.mxu0 0
    %1158 = vmatprep.subr.bf16.mxu0 0
    %1159 = vmatpush1.bf16.xpose.msra.mxu0 0
    %1160 = vmatprep.subr.bf16.mxu0 0
    %1161 = vmatpush1.bf16.xpose.msra.mxu0 0
    %1162 = vmatprep.subr.bf16.mxu0 0
    %1163 = vmatpush1.bf16.xpose.msra.mxu0 0
    %1164 = vmatprep.subr.bf16.mxu0 0
    %1165 = vmatpush1.bf16.xpose.msra.mxu0 0
    %1166 = vmatprep.subr.bf16.mxu0 0
    %1167 = vmatpush1.bf16.xpose.msra.mxu0 0
    %1168 = vmatprep.subr.bf16.mxu0 0
    %1169 = vmatpush1.bf16.xpose.msra.mxu0 0
    %1170 = vmatprep.subr.bf16.mxu0 0
    %1171 = vmatpush1.bf16.xpose.msra.mxu0 0
    %1172 = vmatprep.subr.bf16.mxu0 0
    %1173 = vmatpush1.bf16.xpose.msra.mxu0 0
    %1174 = vmatprep.subr.bf16.mxu0 0
    %1175 = vmatpush1.bf16.xpose.msra.mxu0 0
    %1176 = vmatprep.subr.bf16.mxu0 0
    %1177 = vmatpush1.bf16.xpose.msra.mxu0 0
    %1178 = vmatprep.subr.bf16.mxu0 0
    %1179 = vmatpush1.bf16.xpose.msra.mxu0 0
    %1180 = vmatprep.subr.bf16.mxu0 0
    %1181 = vmatpush1.bf16.xpose.msra.mxu0 0
    %1182 = vmatprep.subr.bf16.mxu0 0
    %1183 = vmatpush1.bf16.xpose.msra.mxu0 0
    %1184 = vmatprep.mubr.bf16.mxu0 0
    %1185 = vmatmul.mubr.bf16.gmra.mrb[0].mxu0 %v1144
    %v1186 = vpop.f32.mrb[0].mxu0
    %v1187 = vadd.f32 0.0, %v1186
    %v1188 = vpop.f32.mrb[0].mxu0
    %v1189 = vpop.f32.mrb[0].mxu0
    %v1190 = vpop.f32.mrb[0].mxu0
    %1191 = vdwg.mxu0
    %v1193 = vsel %vm228, %v923, 0
    %v1196 = vsel %vm228, %v1111, 0
    %v1199 = vsel %vm228, %v1112, 0
    %1201 = vmatprep.subr.bf16.mxu0 0
    %1202 = vmatpush1.bf16.xpose.msra.mxu0 %v1196
    %1203 = vmatprep.subr.bf16.mxu0 0
    %1204 = vmatpush1.bf16.xpose.msra.mxu0 %v1199
    %1205 = vmatprep.subr.bf16.mxu0 0
    %1206 = vmatpush1.bf16.xpose.msra.mxu0 0
    %1207 = vmatprep.subr.bf16.mxu0 0
    %1208 = vmatpush1.bf16.xpose.msra.mxu0 0
    %1209 = vmatprep.subr.bf16.mxu0 0
    %1210 = vmatpush1.bf16.xpose.msra.mxu0 0
    %1211 = vmatprep.subr.bf16.mxu0 0
    %1212 = vmatpush1.bf16.xpose.msra.mxu0 0
    %1213 = vmatprep.subr.bf16.mxu0 0
    %1214 = vmatpush1.bf16.xpose.msra.mxu0 0
    %1215 = vmatprep.subr.bf16.mxu0 0
    %1216 = vmatpush1.bf16.xpose.msra.mxu0 0
    %1217 = vmatprep.subr.bf16.mxu0 0
    %1218 = vmatpush1.bf16.xpose.msra.mxu0 0
    %1219 = vmatprep.subr.bf16.mxu0 0
    %1220 = vmatpush1.bf16.xpose.msra.mxu0 0
    %1221 = vmatprep.subr.bf16.mxu0 0
    %1222 = vmatpush1.bf16.xpose.msra.mxu0 0
    %1223 = vmatprep.subr.bf16.mxu0 0
    %1224 = vmatpush1.bf16.xpose.msra.mxu0 0
    %1225 = vmatprep.subr.bf16.mxu0 0
    %1226 = vmatpush1.bf16.xpose.msra.mxu0 0
    %1227 = vmatprep.subr.bf16.mxu0 0
    %1228 = vmatpush1.bf16.xpose.msra.mxu0 0
    %1229 = vmatprep.subr.bf16.mxu0 0
    %1230 = vmatpush1.bf16.xpose.msra.mxu0 0
    %1231 = vmatprep.subr.bf16.mxu0 0
    %1232 = vmatpush1.bf16.xpose.msra.mxu0 0
    %1233 = vmatprep.mubr.bf16.mxu0 0
    %1234 = vmatmul.mubr.bf16.gmra.mrb[0].mxu0 %v1193
    %v1235 = vpop.f32.mrb[0].mxu0
    %v1236 = vadd.f32 0.0, %v1235
    %v1237 = vpop.f32.mrb[0].mxu0
    %v1238 = vpop.f32.mrb[0].mxu0
    %v1239 = vpop.f32.mrb[0].mxu0
    %1240 = vdwg.mxu0
    %v1242 = vsel %vm228, %v924, 0
    %v1245 = vsel %vm228, %v1113, 0
    %v1248 = vsel %vm228, %v1114, 0
    %1250 = vmatprep.subr.bf16.mxu0 0
    %1251 = vmatpush1.bf16.xpose.msra.mxu0 %v1245
    %1252 = vmatprep.subr.bf16.mxu0 0
    %1253 = vmatpush1.bf16.xpose.msra.mxu0 %v1248
    %1254 = vmatprep.subr.bf16.mxu0 0
    %1255 = vmatpush1.bf16.xpose.msra.mxu0 0
    %1256 = vmatprep.subr.bf16.mxu0 0
    %1257 = vmatpush1.bf16.xpose.msra.mxu0 0
    %1258 = vmatprep.subr.bf16.mxu0 0
    %1259 = vmatpush1.bf16.xpose.msra.mxu0 0
    %1260 = vmatprep.subr.bf16.mxu0 0
    %1261 = vmatpush1.bf16.xpose.msra.mxu0 0
    %1262 = vmatprep.subr.bf16.mxu0 0
    %1263 = vmatpush1.bf16.xpose.msra.mxu0 0
    %1264 = vmatprep.subr.bf16.mxu0 0
    %1265 = vmatpush1.bf16.xpose.msra.mxu0 0
    %1266 = vmatprep.subr.bf16.mxu0 0
    %1267 = vmatpush1.bf16.xpose.msra.mxu0 0
    %1268 = vmatprep.subr.bf16.mxu0 0
    %1269 = vmatpush1.bf16.xpose.msra.mxu0 0
    %1270 = vmatprep.subr.bf16.mxu0 0
    %1271 = vmatpush1.bf16.xpose.msra.mxu0 0
    %1272 = vmatprep.subr.bf16.mxu0 0
    %1273 = vmatpush1.bf16.xpose.msra.mxu0 0
    %1274 = vmatprep.subr.bf16.mxu0 0
    %1275 = vmatpush1.bf16.xpose.msra.mxu0 0
    %1276 = vmatprep.subr.bf16.mxu0 0
    %1277 = vmatpush1.bf16.xpose.msra.mxu0 0
    %1278 = vmatprep.subr.bf16.mxu0 0
    %1279 = vmatpush1.bf16.xpose.msra.mxu0 0
    %1280 = vmatprep.subr.bf16.mxu0 0
    %1281 = vmatpush1.bf16.xpose.msra.mxu0 0
    %1282 = vmatprep.mubr.bf16.mxu0 0
    %1283 = vmatmul.mubr.bf16.gmra.mrb[0].mxu0 %v1242
    %v1284 = vpop.f32.mrb[0].mxu0
    %v1285 = vadd.f32 0.0, %v1284
    %v1286 = vpop.f32.mrb[0].mxu0
    %v1287 = vpop.f32.mrb[0].mxu0
    %v1288 = vpop.f32.mrb[0].mxu0
    %1289 = vdwg.mxu0
    %v1291 = vsel %vm228, %v925, 0
    %v1294 = vsel %vm228, %v1115, 0
    %v1297 = vsel %vm228, %v1116, 0
    %1299 = vmatprep.subr.bf16.mxu0 0
    %1300 = vmatpush1.bf16.xpose.msra.mxu0 %v1294
    %1301 = vmatprep.subr.bf16.mxu0 0
    %1302 = vmatpush1.bf16.xpose.msra.mxu0 %v1297
    %1303 = vmatprep.subr.bf16.mxu0 0
    %1304 = vmatpush1.bf16.xpose.msra.mxu0 0
    %1305 = vmatprep.subr.bf16.mxu0 0
    %1306 = vmatpush1.bf16.xpose.msra.mxu0 0
    %1307 = vmatprep.subr.bf16.mxu0 0
    %1308 = vmatpush1.bf16.xpose.msra.mxu0 0
    %1309 = vmatprep.subr.bf16.mxu0 0
    %1310 = vmatpush1.bf16.xpose.msra.mxu0 0
    %1311 = vmatprep.subr.bf16.mxu0 0
    %1312 = vmatpush1.bf16.xpose.msra.mxu0 0
    %1313 = vmatprep.subr.bf16.mxu0 0
    %1314 = vmatpush1.bf16.xpose.msra.mxu0 0
    %1315 = vmatprep.subr.bf16.mxu0 0
    %1316 = vmatpush1.bf16.xpose.msra.mxu0 0
    %1317 = vmatprep.subr.bf16.mxu0 0
    %1318 = vmatpush1.bf16.xpose.msra.mxu0 0
    %1319 = vmatprep.subr.bf16.mxu0 0
    %1320 = vmatpush1.bf16.xpose.msra.mxu0 0
    %1321 = vmatprep.subr.bf16.mxu0 0
    %1322 = vmatpush1.bf16.xpose.msra.mxu0 0
    %1323 = vmatprep.subr.bf16.mxu0 0
    %1324 = vmatpush1.bf16.xpose.msra.mxu0 0
    %1325 = vmatprep.subr.bf16.mxu0 0
    %1326 = vmatpush1.bf16.xpose.msra.mxu0 0
    %1327 = vmatprep.subr.bf16.mxu0 0
    %1328 = vmatpush1.bf16.xpose.msra.mxu0 0
    %1329 = vmatprep.subr.bf16.mxu0 0
    %1330 = vmatpush1.bf16.xpose.msra.mxu0 0
    %1331 = vmatprep.mubr.bf16.mxu0 0
    %1332 = vmatmul.mubr.bf16.gmra.mrb[0].mxu0 %v1291
    %v1333 = vpop.f32.mrb[0].mxu0
    %v1334 = vadd.f32 0.0, %v1333
    %v1335 = vpop.f32.mrb[0].mxu0
    %v1336 = vpop.f32.mrb[0].mxu0
    %v1337 = vpop.f32.mrb[0].mxu0
    %1338 = vdwg.mxu0
    %v1340 = vsel %vm228, %v926, 0
    %v1343 = vsel %vm228, %v1117, 0
    %v1346 = vsel %vm228, %v1118, 0
    %1348 = vmatprep.subr.bf16.mxu0 0
    %1349 = vmatpush1.bf16.xpose.msra.mxu0 %v1343
    %1350 = vmatprep.subr.bf16.mxu0 0
    %1351 = vmatpush1.bf16.xpose.msra.mxu0 %v1346
    %1352 = vmatprep.subr.bf16.mxu0 0
    %1353 = vmatpush1.bf16.xpose.msra.mxu0 0
    %1354 = vmatprep.subr.bf16.mxu0 0
    %1355 = vmatpush1.bf16.xpose.msra.mxu0 0
    %1356 = vmatprep.subr.bf16.mxu0 0
    %1357 = vmatpush1.bf16.xpose.msra.mxu0 0
    %1358 = vmatprep.subr.bf16.mxu0 0
    %1359 = vmatpush1.bf16.xpose.msra.mxu0 0
    %1360 = vmatprep.subr.bf16.mxu0 0
    %1361 = vmatpush1.bf16.xpose.msra.mxu0 0
    %1362 = vmatprep.subr.bf16.mxu0 0
    %1363 = vmatpush1.bf16.xpose.msra.mxu0 0
    %1364 = vmatprep.subr.bf16.mxu0 0
    %1365 = vmatpush1.bf16.xpose.msra.mxu0 0
    %1366 = vmatprep.subr.bf16.mxu0 0
    %1367 = vmatpush1.bf16.xpose.msra.mxu0 0
    %1368 = vmatprep.subr.bf16.mxu0 0
    %1369 = vmatpush1.bf16.xpose.msra.mxu0 0
    %1370 = vmatprep.subr.bf16.mxu0 0
    %1371 = vmatpush1.bf16.xpose.msra.mxu0 0
    %1372 = vmatprep.subr.bf16.mxu0 0
    %1373 = vmatpush1.bf16.xpose.msra.mxu0 0
    %1374 = vmatprep.subr.bf16.mxu0 0
    %1375 = vmatpush1.bf16.xpose.msra.mxu0 0
    %1376 = vmatprep.subr.bf16.mxu0 0
    %1377 = vmatpush1.bf16.xpose.msra.mxu0 0
    %1378 = vmatprep.subr.bf16.mxu0 0
    %1379 = vmatpush1.bf16.xpose.msra.mxu0 0
    %1380 = vmatprep.mubr.bf16.mxu0 0
    %1381 = vmatmul.mubr.bf16.gmra.mrb[0].mxu0 %v1340
    %v1382 = vpop.f32.mrb[0].mxu0
    %v1383 = vadd.f32 0.0, %v1382
    %v1384 = vpop.f32.mrb[0].mxu0
    %v1385 = vpop.f32.mrb[0].mxu0
    %v1386 = vpop.f32.mrb[0].mxu0
    %1387 = vdwg.mxu0
    %v1389 = vsel %vm228, %v927, 0
    %v1392 = vsel %vm228, %v1119, 0
    %v1395 = vsel %vm228, %v1120, 0
    %1397 = vmatprep.subr.bf16.mxu0 0
    %1398 = vmatpush1.bf16.xpose.msra.mxu0 %v1392
    %1399 = vmatprep.subr.bf16.mxu0 0
    %1400 = vmatpush1.bf16.xpose.msra.mxu0 %v1395
    %1401 = vmatprep.subr.bf16.mxu0 0
    %1402 = vmatpush1.bf16.xpose.msra.mxu0 0
    %1403 = vmatprep.subr.bf16.mxu0 0
    %1404 = vmatpush1.bf16.xpose.msra.mxu0 0
    %1405 = vmatprep.subr.bf16.mxu0 0
    %1406 = vmatpush1.bf16.xpose.msra.mxu0 0
    %1407 = vmatprep.subr.bf16.mxu0 0
    %1408 = vmatpush1.bf16.xpose.msra.mxu0 0
    %1409 = vmatprep.subr.bf16.mxu0 0
    %1410 = vmatpush1.bf16.xpose.msra.mxu0 0
    %1411 = vmatprep.subr.bf16.mxu0 0
    %1412 = vmatpush1.bf16.xpose.msra.mxu0 0
    %1413 = vmatprep.subr.bf16.mxu0 0
    %1414 = vmatpush1.bf16.xpose.msra.mxu0 0
    %1415 = vmatprep.subr.bf16.mxu0 0
    %1416 = vmatpush1.bf16.xpose.msra.mxu0 0
    %1417 = vmatprep.subr.bf16.mxu0 0
    %1418 = vmatpush1.bf16.xpose.msra.mxu0 0
    %1419 = vmatprep.subr.bf16.mxu0 0
    %1420 = vmatpush1.bf16.xpose.msra.mxu0 0
    %1421 = vmatprep.subr.bf16.mxu0 0
    %1422 = vmatpush1.bf16.xpose.msra.mxu0 0
    %1423 = vmatprep.subr.bf16.mxu0 0
    %1424 = vmatpush1.bf16.xpose.msra.mxu0 0
    %1425 = vmatprep.subr.bf16.mxu0 0
    %1426 = vmatpush1.bf16.xpose.msra.mxu0 0
    %1427 = vmatprep.subr.bf16.mxu0 0
    %1428 = vmatpush1.bf16.xpose.msra.mxu0 0
    %1429 = vmatprep.mubr.bf16.mxu0 0
    %1430 = vmatmul.mubr.bf16.gmra.mrb[0].mxu0 %v1389
    %v1431 = vpop.f32.mrb[0].mxu0
    %v1432 = vadd.f32 0.0, %v1431
    %v1433 = vpop.f32.mrb[0].mxu0
    %v1434 = vpop.f32.mrb[0].mxu0
    %v1435 = vpop.f32.mrb[0].mxu0
    %1436 = vdwg.mxu0
    %v1438 = vsel %vm228, %v928, 0
    %v1441 = vsel %vm228, %v1121, 0
    %v1444 = vsel %vm228, %v1122, 0
    %1446 = vmatprep.subr.bf16.mxu0 0
    %1447 = vmatpush1.bf16.xpose.msra.mxu0 %v1441
    %1448 = vmatprep.subr.bf16.mxu0 0
    %1449 = vmatpush1.bf16.xpose.msra.mxu0 %v1444
    %1450 = vmatprep.subr.bf16.mxu0 0
    %1451 = vmatpush1.bf16.xpose.msra.mxu0 0
    %1452 = vmatprep.subr.bf16.mxu0 0
    %1453 = vmatpush1.bf16.xpose.msra.mxu0 0
    %1454 = vmatprep.subr.bf16.mxu0 0
    %1455 = vmatpush1.bf16.xpose.msra.mxu0 0
    %1456 = vmatprep.subr.bf16.mxu0 0
    %1457 = vmatpush1.bf16.xpose.msra.mxu0 0
    %1458 = vmatprep.subr.bf16.mxu0 0
    %1459 = vmatpush1.bf16.xpose.msra.mxu0 0
    %1460 = vmatprep.subr.bf16.mxu0 0
    %1461 = vmatpush1.bf16.xpose.msra.mxu0 0
    %1462 = vmatprep.subr.bf16.mxu0 0
    %1463 = vmatpush1.bf16.xpose.msra.mxu0 0
    %1464 = vmatprep.subr.bf16.mxu0 0
    %1465 = vmatpush1.bf16.xpose.msra.mxu0 0
    %1466 = vmatprep.subr.bf16.mxu0 0
    %1467 = vmatpush1.bf16.xpose.msra.mxu0 0
    %1468 = vmatprep.subr.bf16.mxu0 0
    %1469 = vmatpush1.bf16.xpose.msra.mxu0 0
    %1470 = vmatprep.subr.bf16.mxu0 0
    %1471 = vmatpush1.bf16.xpose.msra.mxu0 0
    %1472 = vmatprep.subr.bf16.mxu0 0
    %1473 = vmatpush1.bf16.xpose.msra.mxu0 0
    %1474 = vmatprep.subr.bf16.mxu0 0
    %1475 = vmatpush1.bf16.xpose.msra.mxu0 0
    %1476 = vmatprep.subr.bf16.mxu0 0
    %1477 = vmatpush1.bf16.xpose.msra.mxu0 0
    %1478 = vmatprep.mubr.bf16.mxu0 0
    %1479 = vmatmul.mubr.bf16.gmra.mrb[0].mxu0 %v1438
    %v1480 = vpop.f32.mrb[0].mxu0
    %v1481 = vadd.f32 0.0, %v1480
    %v1482 = vpop.f32.mrb[0].mxu0
    %v1483 = vpop.f32.mrb[0].mxu0
    %v1484 = vpop.f32.mrb[0].mxu0
    %1485 = vdwg.mxu0
    %v1487 = vsel %vm228, %v929, 0
    %v1490 = vsel %vm228, %v1123, 0
    %v1493 = vsel %vm228, %v1124, 0
    %1495 = vmatprep.subr.bf16.mxu0 0
    %1496 = vmatpush1.bf16.xpose.msra.mxu0 %v1490
    %1497 = vmatprep.subr.bf16.mxu0 0
    %1498 = vmatpush1.bf16.xpose.msra.mxu0 %v1493
    %1499 = vmatprep.subr.bf16.mxu0 0
    %1500 = vmatpush1.bf16.xpose.msra.mxu0 0
    %1501 = vmatprep.subr.bf16.mxu0 0
    %1502 = vmatpush1.bf16.xpose.msra.mxu0 0
    %1503 = vmatprep.subr.bf16.mxu0 0
    %1504 = vmatpush1.bf16.xpose.msra.mxu0 0
    %1505 = vmatprep.subr.bf16.mxu0 0
    %1506 = vmatpush1.bf16.xpose.msra.mxu0 0
    %1507 = vmatprep.subr.bf16.mxu0 0
    %1508 = vmatpush1.bf16.xpose.msra.mxu0 0
    %1509 = vmatprep.subr.bf16.mxu0 0
    %1510 = vmatpush1.bf16.xpose.msra.mxu0 0
    %1511 = vmatprep.subr.bf16.mxu0 0
    %1512 = vmatpush1.bf16.xpose.msra.mxu0 0
    %1513 = vmatprep.subr.bf16.mxu0 0
    %1514 = vmatpush1.bf16.xpose.msra.mxu0 0
    %1515 = vmatprep.subr.bf16.mxu0 0
    %1516 = vmatpush1.bf16.xpose.msra.mxu0 0
    %1517 = vmatprep.subr.bf16.mxu0 0
    %1518 = vmatpush1.bf16.xpose.msra.mxu0 0
    %1519 = vmatprep.subr.bf16.mxu0 0
    %1520 = vmatpush1.bf16.xpose.msra.mxu0 0
    %1521 = vmatprep.subr.bf16.mxu0 0
    %1522 = vmatpush1.bf16.xpose.msra.mxu0 0
    %1523 = vmatprep.subr.bf16.mxu0 0
    %1524 = vmatpush1.bf16.xpose.msra.mxu0 0
    %1525 = vmatprep.subr.bf16.mxu0 0
    %1526 = vmatpush1.bf16.xpose.msra.mxu0 0
    %1527 = vmatprep.mubr.bf16.mxu0 0
    %1528 = vmatmul.mubr.bf16.gmra.mrb[0].mxu0 %v1487
    %v1529 = vpop.f32.mrb[0].mxu0
    %v1530 = vadd.f32 0.0, %v1529
    %v1531 = vpop.f32.mrb[0].mxu0
    %v1532 = vpop.f32.mrb[0].mxu0
    %v1533 = vpop.f32.mrb[0].mxu0
    %1534 = vdwg.mxu0
    %v1536 = vsel %vm228, %v930, 0
    %v1539 = vsel %vm228, %v1125, 0
    %v1542 = vsel %vm228, %v1126, 0
    %1544 = vmatprep.subr.bf16.mxu0 0
    %1545 = vmatpush1.bf16.xpose.msra.mxu0 %v1539
    %1546 = vmatprep.subr.bf16.mxu0 0
    %1547 = vmatpush1.bf16.xpose.msra.mxu0 %v1542
    %1548 = vmatprep.subr.bf16.mxu0 0
    %1549 = vmatpush1.bf16.xpose.msra.mxu0 0
    %1550 = vmatprep.subr.bf16.mxu0 0
    %1551 = vmatpush1.bf16.xpose.msra.mxu0 0
    %1552 = vmatprep.subr.bf16.mxu0 0
    %1553 = vmatpush1.bf16.xpose.msra.mxu0 0
    %1554 = vmatprep.subr.bf16.mxu0 0
    %1555 = vmatpush1.bf16.xpose.msra.mxu0 0
    %1556 = vmatprep.subr.bf16.mxu0 0
    %1557 = vmatpush1.bf16.xpose.msra.mxu0 0
    %1558 = vmatprep.subr.bf16.mxu0 0
    %1559 = vmatpush1.bf16.xpose.msra.mxu0 0
    %1560 = vmatprep.subr.bf16.mxu0 0
    %1561 = vmatpush1.bf16.xpose.msra.mxu0 0
    %1562 = vmatprep.subr.bf16.mxu0 0
    %1563 = vmatpush1.bf16.xpose.msra.mxu0 0
    %1564 = vmatprep.subr.bf16.mxu0 0
    %1565 = vmatpush1.bf16.xpose.msra.mxu0 0
    %1566 = vmatprep.subr.bf16.mxu0 0
    %1567 = vmatpush1.bf16.xpose.msra.mxu0 0
    %1568 = vmatprep.subr.bf16.mxu0 0
    %1569 = vmatpush1.bf16.xpose.msra.mxu0 0
    %1570 = vmatprep.subr.bf16.mxu0 0
    %1571 = vmatpush1.bf16.xpose.msra.mxu0 0
    %1572 = vmatprep.subr.bf16.mxu0 0
    %1573 = vmatpush1.bf16.xpose.msra.mxu0 0
    %1574 = vmatprep.subr.bf16.mxu0 0
    %1575 = vmatpush1.bf16.xpose.msra.mxu0 0
    %1576 = vmatprep.mubr.bf16.mxu0 0
    %1577 = vmatmul.mubr.bf16.gmra.mrb[0].mxu0 %v1536
    %v1578 = vpop.f32.mrb[0].mxu0
    %v1579 = vadd.f32 0.0, %v1578
    %v1580 = vpop.f32.mrb[0].mxu0
    %v1581 = vpop.f32.mrb[0].mxu0
    %v1582 = vpop.f32.mrb[0].mxu0
    %1583 = vdwg.mxu0
    %v1585 = vsel %vm228, %v931, 0
    %v1588 = vsel %vm228, %v1127, 0
    %v1591 = vsel %vm228, %v1128, 0
    %1593 = vmatprep.subr.bf16.mxu0 0
    %1594 = vmatpush1.bf16.xpose.msra.mxu0 %v1588
    %1595 = vmatprep.subr.bf16.mxu0 0
    %1596 = vmatpush1.bf16.xpose.msra.mxu0 %v1591
    %1597 = vmatprep.subr.bf16.mxu0 0
    %1598 = vmatpush1.bf16.xpose.msra.mxu0 0
    %1599 = vmatprep.subr.bf16.mxu0 0
    %1600 = vmatpush1.bf16.xpose.msra.mxu0 0
    %1601 = vmatprep.subr.bf16.mxu0 0
    %1602 = vmatpush1.bf16.xpose.msra.mxu0 0
    %1603 = vmatprep.subr.bf16.mxu0 0
    %1604 = vmatpush1.bf16.xpose.msra.mxu0 0
    %1605 = vmatprep.subr.bf16.mxu0 0
    %1606 = vmatpush1.bf16.xpose.msra.mxu0 0
    %1607 = vmatprep.subr.bf16.mxu0 0
    %1608 = vmatpush1.bf16.xpose.msra.mxu0 0
    %1609 = vmatprep.subr.bf16.mxu0 0
    %1610 = vmatpush1.bf16.xpose.msra.mxu0 0
    %1611 = vmatprep.subr.bf16.mxu0 0
    %1612 = vmatpush1.bf16.xpose.msra.mxu0 0
    %1613 = vmatprep.subr.bf16.mxu0 0
    %1614 = vmatpush1.bf16.xpose.msra.mxu0 0
    %1615 = vmatprep.subr.bf16.mxu0 0
    %1616 = vmatpush1.bf16.xpose.msra.mxu0 0
    %1617 = vmatprep.subr.bf16.mxu0 0
    %1618 = vmatpush1.bf16.xpose.msra.mxu0 0
    %1619 = vmatprep.subr.bf16.mxu0 0
    %1620 = vmatpush1.bf16.xpose.msra.mxu0 0
    %1621 = vmatprep.subr.bf16.mxu0 0
    %1622 = vmatpush1.bf16.xpose.msra.mxu0 0
    %1623 = vmatprep.subr.bf16.mxu0 0
    %1624 = vmatpush1.bf16.xpose.msra.mxu0 0
    %1625 = vmatprep.mubr.bf16.mxu0 0
    %1626 = vmatmul.mubr.bf16.gmra.mrb[0].mxu0 %v1585
    %v1627 = vpop.f32.mrb[0].mxu0
    %v1628 = vadd.f32 0.0, %v1627
    %v1629 = vpop.f32.mrb[0].mxu0
    %v1630 = vpop.f32.mrb[0].mxu0
    %v1631 = vpop.f32.mrb[0].mxu0
    %1632 = vdwg.mxu0
    %v1634 = vsel %vm228, %v932, 0
    %v1637 = vsel %vm228, %v1129, 0
    %v1640 = vsel %vm228, %v1130, 0
    %1642 = vmatprep.subr.bf16.mxu0 0
    %1643 = vmatpush1.bf16.xpose.msra.mxu0 %v1637
    %1644 = vmatprep.subr.bf16.mxu0 0
    %1645 = vmatpush1.bf16.xpose.msra.mxu0 %v1640
    %1646 = vmatprep.subr.bf16.mxu0 0
    %1647 = vmatpush1.bf16.xpose.msra.mxu0 0
    %1648 = vmatprep.subr.bf16.mxu0 0
    %1649 = vmatpush1.bf16.xpose.msra.mxu0 0
    %1650 = vmatprep.subr.bf16.mxu0 0
    %1651 = vmatpush1.bf16.xpose.msra.mxu0 0
    %1652 = vmatprep.subr.bf16.mxu0 0
    %1653 = vmatpush1.bf16.xpose.msra.mxu0 0
    %1654 = vmatprep.subr.bf16.mxu0 0
    %1655 = vmatpush1.bf16.xpose.msra.mxu0 0
    %1656 = vmatprep.subr.bf16.mxu0 0
    %1657 = vmatpush1.bf16.xpose.msra.mxu0 0
    %1658 = vmatprep.subr.bf16.mxu0 0
    %1659 = vmatpush1.bf16.xpose.msra.mxu0 0
    %1660 = vmatprep.subr.bf16.mxu0 0
    %1661 = vmatpush1.bf16.xpose.msra.mxu0 0
    %1662 = vmatprep.subr.bf16.mxu0 0
    %1663 = vmatpush1.bf16.xpose.msra.mxu0 0
    %1664 = vmatprep.subr.bf16.mxu0 0
    %1665 = vmatpush1.bf16.xpose.msra.mxu0 0
    %1666 = vmatprep.subr.bf16.mxu0 0
    %1667 = vmatpush1.bf16.xpose.msra.mxu0 0
    %1668 = vmatprep.subr.bf16.mxu0 0
    %1669 = vmatpush1.bf16.xpose.msra.mxu0 0
    %1670 = vmatprep.subr.bf16.mxu0 0
    %1671 = vmatpush1.bf16.xpose.msra.mxu0 0
    %1672 = vmatprep.subr.bf16.mxu0 0
    %1673 = vmatpush1.bf16.xpose.msra.mxu0 0
    %1674 = vmatprep.mubr.bf16.mxu0 0
    %1675 = vmatmul.mubr.bf16.gmra.mrb[0].mxu0 %v1634
    %v1676 = vpop.f32.mrb[0].mxu0
    %v1677 = vadd.f32 0.0, %v1676
    %v1678 = vpop.f32.mrb[0].mxu0
    %v1679 = vpop.f32.mrb[0].mxu0
    %v1680 = vpop.f32.mrb[0].mxu0
    %1681 = vdwg.mxu0
    %v1683 = vsel %vm228, %v933, 0
    %v1686 = vsel %vm228, %v1131, 0
    %v1689 = vsel %vm228, %v1132, 0
    %1691 = vmatprep.subr.bf16.mxu0 0
    %1692 = vmatpush1.bf16.xpose.msra.mxu0 %v1686
    %1693 = vmatprep.subr.bf16.mxu0 0
    %1694 = vmatpush1.bf16.xpose.msra.mxu0 %v1689
    %1695 = vmatprep.subr.bf16.mxu0 0
    %1696 = vmatpush1.bf16.xpose.msra.mxu0 0
    %1697 = vmatprep.subr.bf16.mxu0 0
    %1698 = vmatpush1.bf16.xpose.msra.mxu0 0
    %1699 = vmatprep.subr.bf16.mxu0 0
    %1700 = vmatpush1.bf16.xpose.msra.mxu0 0
    %1701 = vmatprep.subr.bf16.mxu0 0
    %1702 = vmatpush1.bf16.xpose.msra.mxu0 0
    %1703 = vmatprep.subr.bf16.mxu0 0
    %1704 = vmatpush1.bf16.xpose.msra.mxu0 0
    %1705 = vmatprep.subr.bf16.mxu0 0
    %1706 = vmatpush1.bf16.xpose.msra.mxu0 0
    %1707 = vmatprep.subr.bf16.mxu0 0
    %1708 = vmatpush1.bf16.xpose.msra.mxu0 0
    %1709 = vmatprep.subr.bf16.mxu0 0
    %1710 = vmatpush1.bf16.xpose.msra.mxu0 0
    %1711 = vmatprep.subr.bf16.mxu0 0
    %1712 = vmatpush1.bf16.xpose.msra.mxu0 0
    %1713 = vmatprep.subr.bf16.mxu0 0
    %1714 = vmatpush1.bf16.xpose.msra.mxu0 0
    %1715 = vmatprep.subr.bf16.mxu0 0
    %1716 = vmatpush1.bf16.xpose.msra.mxu0 0
    %1717 = vmatprep.subr.bf16.mxu0 0
    %1718 = vmatpush1.bf16.xpose.msra.mxu0 0
    %1719 = vmatprep.subr.bf16.mxu0 0
    %1720 = vmatpush1.bf16.xpose.msra.mxu0 0
    %1721 = vmatprep.subr.bf16.mxu0 0
    %1722 = vmatpush1.bf16.xpose.msra.mxu0 0
    %1723 = vmatprep.mubr.bf16.mxu0 0
    %1724 = vmatmul.mubr.bf16.gmra.mrb[0].mxu0 %v1683
    %v1725 = vpop.f32.mrb[0].mxu0
    %v1726 = vadd.f32 0.0, %v1725
    %v1727 = vpop.f32.mrb[0].mxu0
    %v1728 = vpop.f32.mrb[0].mxu0
    %v1729 = vpop.f32.mrb[0].mxu0
    %1730 = vdwg.mxu0
    %v1732 = vsel %vm228, %v934, 0
    %v1735 = vsel %vm228, %v1133, 0
    %v1738 = vsel %vm228, %v1134, 0
    %1740 = vmatprep.subr.bf16.mxu0 0
    %1741 = vmatpush1.bf16.xpose.msra.mxu0 %v1735
    %1742 = vmatprep.subr.bf16.mxu0 0
    %1743 = vmatpush1.bf16.xpose.msra.mxu0 %v1738
    %1744 = vmatprep.subr.bf16.mxu0 0
    %1745 = vmatpush1.bf16.xpose.msra.mxu0 0
    %1746 = vmatprep.subr.bf16.mxu0 0
    %1747 = vmatpush1.bf16.xpose.msra.mxu0 0
    %1748 = vmatprep.subr.bf16.mxu0 0
    %1749 = vmatpush1.bf16.xpose.msra.mxu0 0
    %1750 = vmatprep.subr.bf16.mxu0 0
    %1751 = vmatpush1.bf16.xpose.msra.mxu0 0
    %1752 = vmatprep.subr.bf16.mxu0 0
    %1753 = vmatpush1.bf16.xpose.msra.mxu0 0
    %1754 = vmatprep.subr.bf16.mxu0 0
    %1755 = vmatpush1.bf16.xpose.msra.mxu0 0
    %1756 = vmatprep.subr.bf16.mxu0 0
    %1757 = vmatpush1.bf16.xpose.msra.mxu0 0
    %1758 = vmatprep.subr.bf16.mxu0 0
    %1759 = vmatpush1.bf16.xpose.msra.mxu0 0
    %1760 = vmatprep.subr.bf16.mxu0 0
    %1761 = vmatpush1.bf16.xpose.msra.mxu0 0
    %1762 = vmatprep.subr.bf16.mxu0 0
    %1763 = vmatpush1.bf16.xpose.msra.mxu0 0
    %1764 = vmatprep.subr.bf16.mxu0 0
    %1765 = vmatpush1.bf16.xpose.msra.mxu0 0
    %1766 = vmatprep.subr.bf16.mxu0 0
    %1767 = vmatpush1.bf16.xpose.msra.mxu0 0
    %1768 = vmatprep.subr.bf16.mxu0 0
    %1769 = vmatpush1.bf16.xpose.msra.mxu0 0
    %1770 = vmatprep.subr.bf16.mxu0 0
    %1771 = vmatpush1.bf16.xpose.msra.mxu0 0
    %1772 = vmatprep.mubr.bf16.mxu0 0
    %1773 = vmatmul.mubr.bf16.gmra.mrb[0].mxu0 %v1732
    %v1774 = vpop.f32.mrb[0].mxu0
    %v1775 = vadd.f32 0.0, %v1774
    %v1776 = vpop.f32.mrb[0].mxu0
    %v1777 = vpop.f32.mrb[0].mxu0
    %v1778 = vpop.f32.mrb[0].mxu0
    %1779 = vdwg.mxu0
    %v1781 = vsel %vm228, %v935, 0
    %v1784 = vsel %vm228, %v1135, 0
    %v1787 = vsel %vm228, %v1136, 0
    %1789 = vmatprep.subr.bf16.mxu0 0
    %1790 = vmatpush1.bf16.xpose.msra.mxu0 %v1784
    %1791 = vmatprep.subr.bf16.mxu0 0
    %1792 = vmatpush1.bf16.xpose.msra.mxu0 %v1787
    %1793 = vmatprep.subr.bf16.mxu0 0
    %1794 = vmatpush1.bf16.xpose.msra.mxu0 0
    %1795 = vmatprep.subr.bf16.mxu0 0
    %1796 = vmatpush1.bf16.xpose.msra.mxu0 0
    %1797 = vmatprep.subr.bf16.mxu0 0
    %1798 = vmatpush1.bf16.xpose.msra.mxu0 0
    %1799 = vmatprep.subr.bf16.mxu0 0
    %1800 = vmatpush1.bf16.xpose.msra.mxu0 0
    %1801 = vmatprep.subr.bf16.mxu0 0
    %1802 = vmatpush1.bf16.xpose.msra.mxu0 0
    %1803 = vmatprep.subr.bf16.mxu0 0
    %1804 = vmatpush1.bf16.xpose.msra.mxu0 0
    %1805 = vmatprep.subr.bf16.mxu0 0
    %1806 = vmatpush1.bf16.xpose.msra.mxu0 0
    %1807 = vmatprep.subr.bf16.mxu0 0
    %1808 = vmatpush1.bf16.xpose.msra.mxu0 0
    %1809 = vmatprep.subr.bf16.mxu0 0
    %1810 = vmatpush1.bf16.xpose.msra.mxu0 0
    %1811 = vmatprep.subr.bf16.mxu0 0
    %1812 = vmatpush1.bf16.xpose.msra.mxu0 0
    %1813 = vmatprep.subr.bf16.mxu0 0
    %1814 = vmatpush1.bf16.xpose.msra.mxu0 0
    %1815 = vmatprep.subr.bf16.mxu0 0
    %1816 = vmatpush1.bf16.xpose.msra.mxu0 0
    %1817 = vmatprep.subr.bf16.mxu0 0
    %1818 = vmatpush1.bf16.xpose.msra.mxu0 0
    %1819 = vmatprep.subr.bf16.mxu0 0
    %1820 = vmatpush1.bf16.xpose.msra.mxu0 0
    %1821 = vmatprep.mubr.bf16.mxu0 0
    %1822 = vmatmul.mubr.bf16.gmra.mrb[0].mxu0 %v1781
    %v1823 = vpop.f32.mrb[0].mxu0
    %v1824 = vadd.f32 0.0, %v1823
    %v1825 = vpop.f32.mrb[0].mxu0
    %v1826 = vpop.f32.mrb[0].mxu0
    %v1827 = vpop.f32.mrb[0].mxu0
    %1828 = vdwg.mxu0
    %v1830 = vsel %vm228, %v936, 0
    %v1833 = vsel %vm228, %v1137, 0
    %v1836 = vsel %vm228, %v1138, 0
    %1838 = vmatprep.subr.bf16.mxu0 0
    %1839 = vmatpush1.bf16.xpose.msra.mxu0 %v1833
    %1840 = vmatprep.subr.bf16.mxu0 0
    %1841 = vmatpush1.bf16.xpose.msra.mxu0 %v1836
    %1842 = vmatprep.subr.bf16.mxu0 0
    %1843 = vmatpush1.bf16.xpose.msra.mxu0 0
    %1844 = vmatprep.subr.bf16.mxu0 0
    %1845 = vmatpush1.bf16.xpose.msra.mxu0 0
    %1846 = vmatprep.subr.bf16.mxu0 0
    %1847 = vmatpush1.bf16.xpose.msra.mxu0 0
    %1848 = vmatprep.subr.bf16.mxu0 0
    %1849 = vmatpush1.bf16.xpose.msra.mxu0 0
    %1850 = vmatprep.subr.bf16.mxu0 0
    %1851 = vmatpush1.bf16.xpose.msra.mxu0 0
    %1852 = vmatprep.subr.bf16.mxu0 0
    %1853 = vmatpush1.bf16.xpose.msra.mxu0 0
    %1854 = vmatprep.subr.bf16.mxu0 0
    %1855 = vmatpush1.bf16.xpose.msra.mxu0 0
    %1856 = vmatprep.subr.bf16.mxu0 0
    %1857 = vmatpush1.bf16.xpose.msra.mxu0 0
    %1858 = vmatprep.subr.bf16.mxu0 0
    %1859 = vmatpush1.bf16.xpose.msra.mxu0 0
    %1860 = vmatprep.subr.bf16.mxu0 0
    %1861 = vmatpush1.bf16.xpose.msra.mxu0 0
    %1862 = vmatprep.subr.bf16.mxu0 0
    %1863 = vmatpush1.bf16.xpose.msra.mxu0 0
    %1864 = vmatprep.subr.bf16.mxu0 0
    %1865 = vmatpush1.bf16.xpose.msra.mxu0 0
    %1866 = vmatprep.subr.bf16.mxu0 0
    %1867 = vmatpush1.bf16.xpose.msra.mxu0 0
    %1868 = vmatprep.subr.bf16.mxu0 0
    %1869 = vmatpush1.bf16.xpose.msra.mxu0 0
    %1870 = vmatprep.mubr.bf16.mxu0 0
    %1871 = vmatmul.mubr.bf16.gmra.mrb[0].mxu0 %v1830
    %v1872 = vpop.f32.mrb[0].mxu0
    %v1873 = vadd.f32 0.0, %v1872
    %v1874 = vpop.f32.mrb[0].mxu0
    %v1875 = vpop.f32.mrb[0].mxu0
    %v1876 = vpop.f32.mrb[0].mxu0
    %1877 = vdwg.mxu0
    %v1879 = vsel %vm228, %v937, 0
    %v1882 = vsel %vm228, %v1139, 0
    %v1885 = vsel %vm228, %v1140, 0
    %1887 = vmatprep.subr.bf16.mxu0 0
    %1888 = vmatpush1.bf16.xpose.msra.mxu0 %v1882
    %1889 = vmatprep.subr.bf16.mxu0 0
    %1890 = vmatpush1.bf16.xpose.msra.mxu0 %v1885
    %1891 = vmatprep.subr.bf16.mxu0 0
    %1892 = vmatpush1.bf16.xpose.msra.mxu0 0
    %1893 = vmatprep.subr.bf16.mxu0 0
    %1894 = vmatpush1.bf16.xpose.msra.mxu0 0
    %1895 = vmatprep.subr.bf16.mxu0 0
    %1896 = vmatpush1.bf16.xpose.msra.mxu0 0
    %1897 = vmatprep.subr.bf16.mxu0 0
    %1898 = vmatpush1.bf16.xpose.msra.mxu0 0
    %1899 = vmatprep.subr.bf16.mxu0 0
    %1900 = vmatpush1.bf16.xpose.msra.mxu0 0
    %1901 = vmatprep.subr.bf16.mxu0 0
    %1902 = vmatpush1.bf16.xpose.msra.mxu0 0
    %1903 = vmatprep.subr.bf16.mxu0 0
    %1904 = vmatpush1.bf16.xpose.msra.mxu0 0
    %1905 = vmatprep.subr.bf16.mxu0 0
    %1906 = vmatpush1.bf16.xpose.msra.mxu0 0
    %1907 = vmatprep.subr.bf16.mxu0 0
    %1908 = vmatpush1.bf16.xpose.msra.mxu0 0
    %1909 = vmatprep.subr.bf16.mxu0 0
    %1910 = vmatpush1.bf16.xpose.msra.mxu0 0
    %1911 = vmatprep.subr.bf16.mxu0 0
    %1912 = vmatpush1.bf16.xpose.msra.mxu0 0
    %1913 = vmatprep.subr.bf16.mxu0 0
    %1914 = vmatpush1.bf16.xpose.msra.mxu0 0
    %1915 = vmatprep.subr.bf16.mxu0 0
    %1916 = vmatpush1.bf16.xpose.msra.mxu0 0
    %1917 = vmatprep.subr.bf16.mxu0 0
    %1918 = vmatpush1.bf16.xpose.msra.mxu0 0
    %1919 = vmatprep.mubr.bf16.mxu0 0
    %1920 = vmatmul.mubr.bf16.gmra.mrb[0].mxu0 %v1879
    %v1921 = vpop.f32.mrb[0].mxu0
    %v1922 = vadd.f32 0.0, %v1921
    %v1923 = vpop.f32.mrb[0].mxu0
    %v1924 = vpop.f32.mrb[0].mxu0
    %v1925 = vpop.f32.mrb[0].mxu0
    %1926 = vdwg.mxu0
    %v1928 = vsel %vm228, %v938, 0
    %v1931 = vsel %vm228, %v1141, 0
    %v1934 = vsel %vm228, %v1142, 0
    %1936 = vmatprep.subr.bf16.mxu0 0
    %1937 = vmatpush1.bf16.xpose.msra.mxu0 %v1931
    %1938 = vmatprep.subr.bf16.mxu0 0
    %1939 = vmatpush1.bf16.xpose.msra.mxu0 %v1934
    %1940 = vmatprep.subr.bf16.mxu0 0
    %1941 = vmatpush1.bf16.xpose.msra.mxu0 0
    %1942 = vmatprep.subr.bf16.mxu0 0
    %1943 = vmatpush1.bf16.xpose.msra.mxu0 0
    %1944 = vmatprep.subr.bf16.mxu0 0
    %1945 = vmatpush1.bf16.xpose.msra.mxu0 0
    %1946 = vmatprep.subr.bf16.mxu0 0
    %1947 = vmatpush1.bf16.xpose.msra.mxu0 0
    %1948 = vmatprep.subr.bf16.mxu0 0
    %1949 = vmatpush1.bf16.xpose.msra.mxu0 0
    %1950 = vmatprep.subr.bf16.mxu0 0
    %1951 = vmatpush1.bf16.xpose.msra.mxu0 0
    %1952 = vmatprep.subr.bf16.mxu0 0
    %1953 = vmatpush1.bf16.xpose.msra.mxu0 0
    %1954 = vmatprep.subr.bf16.mxu0 0
    %1955 = vmatpush1.bf16.xpose.msra.mxu0 0
    %1956 = vmatprep.subr.bf16.mxu0 0
    %1957 = vmatpush1.bf16.xpose.msra.mxu0 0
    %1958 = vmatprep.subr.bf16.mxu0 0
    %1959 = vmatpush1.bf16.xpose.msra.mxu0 0
    %1960 = vmatprep.subr.bf16.mxu0 0
    %1961 = vmatpush1.bf16.xpose.msra.mxu0 0
    %1962 = vmatprep.subr.bf16.mxu0 0
    %1963 = vmatpush1.bf16.xpose.msra.mxu0 0
    %1964 = vmatprep.subr.bf16.mxu0 0
    %1965 = vmatpush1.bf16.xpose.msra.mxu0 0
    %1966 = vmatprep.subr.bf16.mxu0 0
    %1967 = vmatpush1.bf16.xpose.msra.mxu0 0
    %1968 = vmatprep.mubr.bf16.mxu0 0
    %1969 = vmatmul.mubr.bf16.gmra.mrb[0].mxu0 %v1928
    %v1970 = vpop.f32.mrb[0].mxu0
    %v1971 = vadd.f32 0.0, %v1970
    %v1972 = vpop.f32.mrb[0].mxu0
    %v1973 = vpop.f32.mrb[0].mxu0
    %v1974 = vpop.f32.mrb[0].mxu0
    %1975 = vdwg.mxu0
    %vm1976 = vcmask 134144
    %v1977 = vsel %vm1976, %v1187, -inf
    %1978 = vmax.xlane.f32.xlu0 %v1977
    %v1979 = vpop.xlane.xlu0 %1978
    %v1980 = vsel %vm1976, %v1236, -inf
    %1981 = vmax.xlane.f32.xlu0 %v1980
    %v1982 = vpop.xlane.xlu0 %1981
    %v1983 = vsel %vm1976, %v1285, -inf
    %1984 = vmax.xlane.f32.xlu0 %v1983
    %v1985 = vpop.xlane.xlu0 %1984
    %v1986 = vsel %vm1976, %v1334, -inf
    %1987 = vmax.xlane.f32.xlu0 %v1986
    %v1988 = vpop.xlane.xlu0 %1987
    %v1989 = vsel %vm1976, %v1383, -inf
    %1990 = vmax.xlane.f32.xlu0 %v1989
    %v1991 = vpop.xlane.xlu0 %1990
    %v1992 = vsel %vm1976, %v1432, -inf
    %1993 = vmax.xlane.f32.xlu0 %v1992
    %v1994 = vpop.xlane.xlu0 %1993
    %v1995 = vsel %vm1976, %v1481, -inf
    %1996 = vmax.xlane.f32.xlu0 %v1995
    %v1997 = vpop.xlane.xlu0 %1996
    %v1998 = vsel %vm1976, %v1530, -inf
    %1999 = vmax.xlane.f32.xlu0 %v1998
    %v2000 = vpop.xlane.xlu0 %1999
    %v2001 = vsel %vm1976, %v1579, -inf
    %2002 = vmax.xlane.f32.xlu0 %v2001
    %v2003 = vpop.xlane.xlu0 %2002
    %v2004 = vsel %vm1976, %v1628, -inf
    %2005 = vmax.xlane.f32.xlu0 %v2004
    %v2006 = vpop.xlane.xlu0 %2005
    %v2007 = vsel %vm1976, %v1677, -inf
    %2008 = vmax.xlane.f32.xlu0 %v2007
    %v2009 = vpop.xlane.xlu0 %2008
    %v2010 = vsel %vm1976, %v1726, -inf
    %2011 = vmax.xlane.f32.xlu0 %v2010
    %v2012 = vpop.xlane.xlu0 %2011
    %v2013 = vsel %vm1976, %v1775, -inf
    %2014 = vmax.xlane.f32.xlu0 %v2013
    %v2015 = vpop.xlane.xlu0 %2014
    %v2016 = vsel %vm1976, %v1824, -inf
    %2017 = vmax.xlane.f32.xlu0 %v2016
    %v2018 = vpop.xlane.xlu0 %2017
    %v2019 = vsel %vm1976, %v1873, -inf
    %2020 = vmax.xlane.f32.xlu0 %v2019
    %v2021 = vpop.xlane.xlu0 %2020
    %v2022 = vsel %vm1976, %v1922, -inf
    %2023 = vmax.xlane.f32.xlu0 %v2022
    %v2024 = vpop.xlane.xlu0 %2023
    %v2025 = vsel %vm1976, %v1971, -inf
    %2026 = vmax.xlane.f32.xlu0 %v2025
    %v2027 = vpop.xlane.xlu0 %2026
    %v2028 = vsub.f32 %v1187, %v1979
    %v2029 = vsub.f32 %v1236, %v1982
    %v2030 = vsub.f32 %v1285, %v1985
    %v2031 = vsub.f32 %v1334, %v1988
    %v2032 = vsub.f32 %v1383, %v1991
    %v2033 = vsub.f32 %v1432, %v1994
    %v2034 = vsub.f32 %v1481, %v1997
    %v2035 = vsub.f32 %v1530, %v2000
    %v2036 = vsub.f32 %v1579, %v2003
    %v2037 = vsub.f32 %v1628, %v2006
    %v2038 = vsub.f32 %v1677, %v2009
    %v2039 = vsub.f32 %v1726, %v2012
    %v2040 = vsub.f32 %v1775, %v2015
    %v2041 = vsub.f32 %v1824, %v2018
    %v2042 = vsub.f32 %v1873, %v2021
    %v2043 = vsub.f32 %v1922, %v2024
    %v2044 = vsub.f32 %v1971, %v2027
    %v2045 = vmul.f32 %v2028, 1.442695
    %v2046 = vpow.pop %v2045
    %v2047 = vmul.f32 %v2029, 1.442695
    %v2048 = vpow.pop %v2047
    %v2049 = vmul.f32 %v2030, 1.442695
    %v2050 = vpow.pop %v2049
    %v2051 = vmul.f32 %v2031, 1.442695
    %v2052 = vpow.pop %v2051
    %v2053 = vmul.f32 %v2032, 1.442695
    %v2054 = vpow.pop %v2053
    %v2055 = vmul.f32 %v2033, 1.442695
    %v2056 = vpow.pop %v2055
    %v2057 = vmul.f32 %v2034, 1.442695
    %v2058 = vpow.pop %v2057
    %v2059 = vmul.f32 %v2035, 1.442695
    %v2060 = vpow.pop %v2059
    %v2061 = vmul.f32 %v2036, 1.442695
    %v2062 = vpow.pop %v2061
    %v2063 = vmul.f32 %v2037, 1.442695
    %v2064 = vpow.pop %v2063
    %v2065 = vmul.f32 %v2038, 1.442695
    %v2066 = vpow.pop %v2065
    %v2067 = vmul.f32 %v2039, 1.442695
    %v2068 = vpow.pop %v2067
    %v2069 = vmul.f32 %v2040, 1.442695
    %v2070 = vpow.pop %v2069
    %v2071 = vmul.f32 %v2041, 1.442695
    %v2072 = vpow.pop %v2071
    %v2073 = vmul.f32 %v2042, 1.442695
    %v2074 = vpow.pop %v2073
    %v2075 = vmul.f32 %v2043, 1.442695
    %v2076 = vpow.pop %v2075
    %v2077 = vmul.f32 %v2044, 1.442695
    %v2078 = vpow.pop %v2077
    %v2079 = vsel %vm1976, %v2046, 0.0
    %2080 = vadd.xlane.f32.xlu0 %v2079
    %v2081 = vpop.xlane.xlu0 %2080
    %v2082 = vsel %vm1976, %v2048, 0.0
    %2083 = vadd.xlane.f32.xlu0 %v2082
    %v2084 = vpop.xlane.xlu0 %2083
    %v2085 = vsel %vm1976, %v2050, 0.0
    %2086 = vadd.xlane.f32.xlu0 %v2085
    %v2087 = vpop.xlane.xlu0 %2086
    %v2088 = vsel %vm1976, %v2052, 0.0
    %2089 = vadd.xlane.f32.xlu0 %v2088
    %v2090 = vpop.xlane.xlu0 %2089
    %v2091 = vsel %vm1976, %v2054, 0.0
    %2092 = vadd.xlane.f32.xlu0 %v2091
    %v2093 = vpop.xlane.xlu0 %2092
    %v2094 = vsel %vm1976, %v2056, 0.0
    %2095 = vadd.xlane.f32.xlu0 %v2094
    %v2096 = vpop.xlane.xlu0 %2095
    %v2097 = vsel %vm1976, %v2058, 0.0
    %2098 = vadd.xlane.f32.xlu0 %v2097
    %v2099 = vpop.xlane.xlu0 %2098
    %v2100 = vsel %vm1976, %v2060, 0.0
    %2101 = vadd.xlane.f32.xlu0 %v2100
    %v2102 = vpop.xlane.xlu0 %2101
    %v2103 = vsel %vm1976, %v2062, 0.0
    %2104 = vadd.xlane.f32.xlu0 %v2103
    %v2105 = vpop.xlane.xlu0 %2104
    %v2106 = vsel %vm1976, %v2064, 0.0
    %2107 = vadd.xlane.f32.xlu0 %v2106
    %v2108 = vpop.xlane.xlu0 %2107
    %v2109 = vsel %vm1976, %v2066, 0.0
    %2110 = vadd.xlane.f32.xlu0 %v2109
    %v2111 = vpop.xlane.xlu0 %2110
    %v2112 = vsel %vm1976, %v2068, 0.0
    %2113 = vadd.xlane.f32.xlu0 %v2112
    %v2114 = vpop.xlane.xlu0 %2113
    %v2115 = vsel %vm1976, %v2070, 0.0
    %2116 = vadd.xlane.f32.xlu0 %v2115
    %v2117 = vpop.xlane.xlu0 %2116
    %v2118 = vsel %vm1976, %v2072, 0.0
    %2119 = vadd.xlane.f32.xlu0 %v2118
    %v2120 = vpop.xlane.xlu0 %2119
    %v2121 = vsel %vm1976, %v2074, 0.0
    %2122 = vadd.xlane.f32.xlu0 %v2121
    %v2123 = vpop.xlane.xlu0 %2122
    %v2124 = vsel %vm1976, %v2076, 0.0
    %2125 = vadd.xlane.f32.xlu0 %v2124
    %v2126 = vpop.xlane.xlu0 %2125
    %v2127 = vsel %vm1976, %v2078, 0.0
    %2128 = vadd.xlane.f32.xlu0 %v2127
    %v2129 = vpop.xlane.xlu0 %2128
    %v2130 = vrcp.pop %v2081
    %v2131 = vrcp.pop %v2084
    %v2132 = vrcp.pop %v2087
    %v2133 = vrcp.pop %v2090
    %v2134 = vrcp.pop %v2093
    %v2135 = vrcp.pop %v2096
    %v2136 = vrcp.pop %v2099
    %v2137 = vrcp.pop %v2102
    %v2138 = vrcp.pop %v2105
    %v2139 = vrcp.pop %v2108
    %v2140 = vrcp.pop %v2111
    %v2141 = vrcp.pop %v2114
    %v2142 = vrcp.pop %v2117
    %v2143 = vrcp.pop %v2120
    %v2144 = vrcp.pop %v2123
    %v2145 = vrcp.pop %v2126
    %v2146 = vrcp.pop %v2129
    %v2147 = vmul.f32 %v2046, %v2130
    %v2148 = vmul.f32 %v2048, %v2131
    %v2149 = vmul.f32 %v2050, %v2132
    %v2150 = vmul.f32 %v2052, %v2133
    %v2151 = vmul.f32 %v2054, %v2134
    %v2152 = vmul.f32 %v2056, %v2135
    %v2153 = vmul.f32 %v2058, %v2136
    %v2154 = vmul.f32 %v2060, %v2137
    %v2155 = vmul.f32 %v2062, %v2138
    %v2156 = vmul.f32 %v2064, %v2139
    %v2157 = vmul.f32 %v2066, %v2140
    %v2158 = vmul.f32 %v2068, %v2141
    %v2159 = vmul.f32 %v2070, %v2142
    %v2160 = vmul.f32 %v2072, %v2143
    %v2161 = vmul.f32 %v2074, %v2144
    %v2162 = vmul.f32 %v2076, %v2145
    %v2163 = vmul.f32 %v2078, %v2146
    %v2164 = vpack.c.bf16 %v2147, %v2147
    %v2165 = vpack.c.bf16 %v2148, %v2148
    %v2166 = vpack.c.bf16 %v2149, %v2149
    %v2167 = vpack.c.bf16 %v2150, %v2150
    %v2168 = vpack.c.bf16 %v2151, %v2151
    %v2169 = vpack.c.bf16 %v2152, %v2152
    %v2170 = vpack.c.bf16 %v2153, %v2153
    %v2171 = vpack.c.bf16 %v2154, %v2154
    %v2172 = vpack.c.bf16 %v2155, %v2155
    %v2173 = vpack.c.bf16 %v2156, %v2156
    %v2174 = vpack.c.bf16 %v2157, %v2157
    %v2175 = vpack.c.bf16 %v2158, %v2158
    %v2176 = vpack.c.bf16 %v2159, %v2159
    %v2177 = vpack.c.bf16 %v2160, %v2160
    %v2178 = vpack.c.bf16 %v2161, %v2161
    %v2179 = vpack.c.bf16 %v2162, %v2162
    %v2180 = vpack.c.bf16 %v2163, %v2163
    %v2232 = vunpack.c.l.b16 %v650
    %v2233 = vunpack.c.l.b16 %v651
    %v2234 = vunpack.c.l.b16 %v652
    %v2235 = vunpack.c.l.b16 %v653
    %v2236 = vunpack.c.l.b16 %v654
    %v2237 = vunpack.c.l.b16 %v655
    %v2238 = vunpack.c.l.b16 %v656
    %v2239 = vunpack.c.l.b16 %v657
    %v2240 = vunpack.c.l.b16 %v658
    %v2241 = vunpack.c.l.b16 %v659
    %v2242 = vunpack.c.l.b16 %v660
    %v2243 = vunpack.c.l.b16 %v661
    %v2244 = vunpack.c.l.b16 %v662
    %v2245 = vunpack.c.l.b16 %v663
    %v2246 = vunpack.c.l.b16 %v664
    %v2247 = vunpack.c.l.b16 %v665
    %v2248 = vunpack.c.l.b16 %v666
    %v2249 = vunpack.c.l.b16 %v667
    %v2250 = vunpack.c.l.b16 %v668
    %v2251 = vunpack.c.l.b16 %v669
    %v2252 = vunpack.c.l.b16 %v670
    %v2253 = vunpack.c.l.b16 %v671
    %v2254 = vunpack.c.l.b16 %v672
    %v2255 = vunpack.c.l.b16 %v673
    %v2256 = vunpack.c.l.b16 %v674
    %v2257 = vunpack.c.l.b16 %v675
    %v2258 = vunpack.c.l.b16 %v676
    %v2259 = vunpack.c.l.b16 %v677
    %v2260 = vunpack.c.l.b16 %v678
    %v2261 = vunpack.c.l.b16 %v679
    %v2262 = vunpack.c.l.b16 %v680
    %v2263 = vunpack.c.l.b16 %v681
    %v2264 = vunpack.c.l.b16 %v682
    %v2265 = vunpack.c.l.b16 %v683
    %v2266 = vunpack.c.l.b16 %v684
    %v2267 = vunpack.c.l.b16 %v685
    %v2268 = vunpack.c.l.b16 %v686
    %v2269 = vunpack.c.l.b16 %v687
    %v2270 = vunpack.c.l.b16 %v688
    %v2271 = vunpack.c.l.b16 %v689
    %v2272 = vunpack.c.l.b16 %v690
    %v2273 = vunpack.c.l.b16 %v691
    %v2274 = vunpack.c.l.b16 %v692
    %v2275 = vunpack.c.l.b16 %v693
    %v2276 = vunpack.c.l.b16 %v694
    %v2277 = vunpack.c.l.b16 %v695
    %v2278 = vunpack.c.l.b16 %v696
    %v2279 = vunpack.c.l.b16 %v697
    %v2280 = vunpack.c.l.b16 %v698
    %v2281 = vunpack.c.l.b16 %v699
    %v2282 = vunpack.c.l.b16 %v700
    %v2283 = vpack.c.b16 %v2233, %v2232
    %v2284 = vpack.c.b16 %v2234, %v2234
    %v2285 = vpack.c.b16 %v2236, %v2235
    %v2286 = vpack.c.b16 %v2237, %v2237
    %v2287 = vpack.c.b16 %v2239, %v2238
    %v2288 = vpack.c.b16 %v2240, %v2240
    %v2289 = vpack.c.b16 %v2242, %v2241
    %v2290 = vpack.c.b16 %v2243, %v2243
    %v2291 = vpack.c.b16 %v2245, %v2244
    %v2292 = vpack.c.b16 %v2246, %v2246
    %v2293 = vpack.c.b16 %v2248, %v2247
    %v2294 = vpack.c.b16 %v2249, %v2249
    %v2295 = vpack.c.b16 %v2251, %v2250
    %v2296 = vpack.c.b16 %v2252, %v2252
    %v2297 = vpack.c.b16 %v2254, %v2253
    %v2298 = vpack.c.b16 %v2255, %v2255
    %v2299 = vpack.c.b16 %v2257, %v2256
    %v2300 = vpack.c.b16 %v2258, %v2258
    %v2301 = vpack.c.b16 %v2260, %v2259
    %v2302 = vpack.c.b16 %v2261, %v2261
    %v2303 = vpack.c.b16 %v2263, %v2262
    %v2304 = vpack.c.b16 %v2264, %v2264
    %v2305 = vpack.c.b16 %v2266, %v2265
    %v2306 = vpack.c.b16 %v2267, %v2267
    %v2307 = vpack.c.b16 %v2269, %v2268
    %v2308 = vpack.c.b16 %v2270, %v2270
    %v2309 = vpack.c.b16 %v2272, %v2271
    %v2310 = vpack.c.b16 %v2273, %v2273
    %v2311 = vpack.c.b16 %v2275, %v2274
    %v2312 = vpack.c.b16 %v2276, %v2276
    %v2313 = vpack.c.b16 %v2278, %v2277
    %v2314 = vpack.c.b16 %v2279, %v2279
    %v2315 = vpack.c.b16 %v2281, %v2280
    %v2316 = vpack.c.b16 %v2282, %v2282
    %v2351 = vadd.bf16 %v703, %v2283
    %v2352 = vadd.bf16 %v704, %v2284
    %v2353 = vadd.bf16 %v703, %v2285
    %v2354 = vadd.bf16 %v704, %v2286
    %v2355 = vadd.bf16 %v703, %v2287
    %v2356 = vadd.bf16 %v704, %v2288
    %v2357 = vadd.bf16 %v703, %v2289
    %v2358 = vadd.bf16 %v704, %v2290
    %v2359 = vadd.bf16 %v703, %v2291
    %v2360 = vadd.bf16 %v704, %v2292
    %v2361 = vadd.bf16 %v703, %v2293
    %v2362 = vadd.bf16 %v704, %v2294
    %v2363 = vadd.bf16 %v703, %v2295
    %v2364 = vadd.bf16 %v704, %v2296
    %v2365 = vadd.bf16 %v703, %v2297
    %v2366 = vadd.bf16 %v704, %v2298
    %v2367 = vadd.bf16 %v703, %v2299
    %v2368 = vadd.bf16 %v704, %v2300
    %v2369 = vadd.bf16 %v703, %v2301
    %v2370 = vadd.bf16 %v704, %v2302
    %v2371 = vadd.bf16 %v703, %v2303
    %v2372 = vadd.bf16 %v704, %v2304
    %v2373 = vadd.bf16 %v703, %v2305
    %v2374 = vadd.bf16 %v704, %v2306
    %v2375 = vadd.bf16 %v703, %v2307
    %v2376 = vadd.bf16 %v704, %v2308
    %v2377 = vadd.bf16 %v703, %v2309
    %v2378 = vadd.bf16 %v704, %v2310
    %v2379 = vadd.bf16 %v703, %v2311
    %v2380 = vadd.bf16 %v704, %v2312
    %v2381 = vadd.bf16 %v703, %v2313
    %v2382 = vadd.bf16 %v704, %v2314
    %v2383 = vadd.bf16 %v703, %v2315
    %v2384 = vadd.bf16 %v704, %v2316
    %vm2385 = vcmask 138240
    %v2387 = vsel %vm2385, %v2164, 0
    %vm2389 = vcmask 1040384
    %v2390 = vsel 0, 4294967295, 65535
    %v2391 = vsel %vm2389, %v2390, 0
    %v2393 = vand.u32 %v2352, %v2391
    %2395 = vmatprep.subr.bf16.mxu0 0
    %2396 = vmatpush1.bf16.msra.mxu0 %v2351
    %2397 = vmatprep.subr.bf16.mxu0 0
    %2398 = vmatpush1.bf16.msra.mxu0 %v2393
    %2399 = vmatprep.subr.bf16.mxu0 0
    %2400 = vmatpush1.bf16.msra.mxu0 0
    %2401 = vmatprep.subr.bf16.mxu0 0
    %2402 = vmatpush1.bf16.msra.mxu0 0
    %2403 = vmatprep.subr.bf16.mxu0 0
    %2404 = vmatpush1.bf16.msra.mxu0 0
    %2405 = vmatprep.subr.bf16.mxu0 0
    %2406 = vmatpush1.bf16.msra.mxu0 0
    %2407 = vmatprep.subr.bf16.mxu0 0
    %2408 = vmatpush1.bf16.msra.mxu0 0
    %2409 = vmatprep.subr.bf16.mxu0 0
    %2410 = vmatpush1.bf16.msra.mxu0 0
    %2411 = vmatprep.subr.bf16.mxu0 0
    %2412 = vmatpush1.bf16.msra.mxu0 0
    %2413 = vmatprep.subr.bf16.mxu0 0
    %2414 = vmatpush1.bf16.msra.mxu0 0
    %2415 = vmatprep.subr.bf16.mxu0 0
    %2416 = vmatpush1.bf16.msra.mxu0 0
    %2417 = vmatprep.subr.bf16.mxu0 0
    %2418 = vmatpush1.bf16.msra.mxu0 0
    %2419 = vmatprep.subr.bf16.mxu0 0
    %2420 = vmatpush1.bf16.msra.mxu0 0
    %2421 = vmatprep.subr.bf16.mxu0 0
    %2422 = vmatpush1.bf16.msra.mxu0 0
    %2423 = vmatprep.subr.bf16.mxu0 0
    %2424 = vmatpush1.bf16.msra.mxu0 0
    %2425 = vmatprep.subr.bf16.mxu0 0
    %2426 = vmatpush1.bf16.msra.mxu0 0
    %2427 = vmatprep.mubr.bf16.mxu0 0
    %2428 = vmatmul.mubr.bf16.gmra.mrb[0].mxu0 %v2387
    %v2429 = vpop.f32.mrb[0].mxu0
    %v2430 = vadd.f32 0.0, %v2429
    %v2431 = vpop.f32.mrb[0].mxu0
    %v2432 = vpop.f32.mrb[0].mxu0
    %v2433 = vpop.f32.mrb[0].mxu0
    %2434 = vdwg.mxu0
    %v2436 = vsel %vm2385, %v2165, 0
    %v2439 = vand.u32 %v2354, %v2391
    %2441 = vmatprep.subr.bf16.mxu0 0
    %2442 = vmatpush1.bf16.msra.mxu0 %v2353
    %2443 = vmatprep.subr.bf16.mxu0 0
    %2444 = vmatpush1.bf16.msra.mxu0 %v2439
    %2445 = vmatprep.subr.bf16.mxu0 0
    %2446 = vmatpush1.bf16.msra.mxu0 0
    %2447 = vmatprep.subr.bf16.mxu0 0
    %2448 = vmatpush1.bf16.msra.mxu0 0
    %2449 = vmatprep.subr.bf16.mxu0 0
    %2450 = vmatpush1.bf16.msra.mxu0 0
    %2451 = vmatprep.subr.bf16.mxu0 0
    %2452 = vmatpush1.bf16.msra.mxu0 0
    %2453 = vmatprep.subr.bf16.mxu0 0
    %2454 = vmatpush1.bf16.msra.mxu0 0
    %2455 = vmatprep.subr.bf16.mxu0 0
    %2456 = vmatpush1.bf16.msra.mxu0 0
    %2457 = vmatprep.subr.bf16.mxu0 0
    %2458 = vmatpush1.bf16.msra.mxu0 0
    %2459 = vmatprep.subr.bf16.mxu0 0
    %2460 = vmatpush1.bf16.msra.mxu0 0
    %2461 = vmatprep.subr.bf16.mxu0 0
    %2462 = vmatpush1.bf16.msra.mxu0 0
    %2463 = vmatprep.subr.bf16.mxu0 0
    %2464 = vmatpush1.bf16.msra.mxu0 0
    %2465 = vmatprep.subr.bf16.mxu0 0
    %2466 = vmatpush1.bf16.msra.mxu0 0
    %2467 = vmatprep.subr.bf16.mxu0 0
    %2468 = vmatpush1.bf16.msra.mxu0 0
    %2469 = vmatprep.subr.bf16.mxu0 0
    %2470 = vmatpush1.bf16.msra.mxu0 0
    %2471 = vmatprep.subr.bf16.mxu0 0
    %2472 = vmatpush1.bf16.msra.mxu0 0
    %2473 = vmatprep.mubr.bf16.mxu0 0
    %2474 = vmatmul.mubr.bf16.gmra.mrb[0].mxu0 %v2436
    %v2475 = vpop.f32.mrb[0].mxu0
    %v2476 = vadd.f32 0.0, %v2475
    %v2477 = vpop.f32.mrb[0].mxu0
    %v2478 = vpop.f32.mrb[0].mxu0
    %v2479 = vpop.f32.mrb[0].mxu0
    %2480 = vdwg.mxu0
    %v2482 = vsel %vm2385, %v2166, 0
    %v2485 = vand.u32 %v2356, %v2391
    %2487 = vmatprep.subr.bf16.mxu0 0
    %2488 = vmatpush1.bf16.msra.mxu0 %v2355
    %2489 = vmatprep.subr.bf16.mxu0 0
    %2490 = vmatpush1.bf16.msra.mxu0 %v2485
    %2491 = vmatprep.subr.bf16.mxu0 0
    %2492 = vmatpush1.bf16.msra.mxu0 0
    %2493 = vmatprep.subr.bf16.mxu0 0
    %2494 = vmatpush1.bf16.msra.mxu0 0
    %2495 = vmatprep.subr.bf16.mxu0 0
    %2496 = vmatpush1.bf16.msra.mxu0 0
    %2497 = vmatprep.subr.bf16.mxu0 0
    %2498 = vmatpush1.bf16.msra.mxu0 0
    %2499 = vmatprep.subr.bf16.mxu0 0
    %2500 = vmatpush1.bf16.msra.mxu0 0
    %2501 = vmatprep.subr.bf16.mxu0 0
    %2502 = vmatpush1.bf16.msra.mxu0 0
    %2503 = vmatprep.subr.bf16.mxu0 0
    %2504 = vmatpush1.bf16.msra.mxu0 0
    %2505 = vmatprep.subr.bf16.mxu0 0
    %2506 = vmatpush1.bf16.msra.mxu0 0
    %2507 = vmatprep.subr.bf16.mxu0 0
    %2508 = vmatpush1.bf16.msra.mxu0 0
    %2509 = vmatprep.subr.bf16.mxu0 0
    %2510 = vmatpush1.bf16.msra.mxu0 0
    %2511 = vmatprep.subr.bf16.mxu0 0
    %2512 = vmatpush1.bf16.msra.mxu0 0
    %2513 = vmatprep.subr.bf16.mxu0 0
    %2514 = vmatpush1.bf16.msra.mxu0 0
    %2515 = vmatprep.subr.bf16.mxu0 0
    %2516 = vmatpush1.bf16.msra.mxu0 0
    %2517 = vmatprep.subr.bf16.mxu0 0
    %2518 = vmatpush1.bf16.msra.mxu0 0
    %2519 = vmatprep.mubr.bf16.mxu0 0
    %2520 = vmatmul.mubr.bf16.gmra.mrb[0].mxu0 %v2482
    %v2521 = vpop.f32.mrb[0].mxu0
    %v2522 = vadd.f32 0.0, %v2521
    %v2523 = vpop.f32.mrb[0].mxu0
    %v2524 = vpop.f32.mrb[0].mxu0
    %v2525 = vpop.f32.mrb[0].mxu0
    %2526 = vdwg.mxu0
    %v2528 = vsel %vm2385, %v2167, 0
    %v2531 = vand.u32 %v2358, %v2391
    %2533 = vmatprep.subr.bf16.mxu0 0
    %2534 = vmatpush1.bf16.msra.mxu0 %v2357
    %2535 = vmatprep.subr.bf16.mxu0 0
    %2536 = vmatpush1.bf16.msra.mxu0 %v2531
    %2537 = vmatprep.subr.bf16.mxu0 0
    %2538 = vmatpush1.bf16.msra.mxu0 0
    %2539 = vmatprep.subr.bf16.mxu0 0
    %2540 = vmatpush1.bf16.msra.mxu0 0
    %2541 = vmatprep.subr.bf16.mxu0 0
    %2542 = vmatpush1.bf16.msra.mxu0 0
    %2543 = vmatprep.subr.bf16.mxu0 0
    %2544 = vmatpush1.bf16.msra.mxu0 0
    %2545 = vmatprep.subr.bf16.mxu0 0
    %2546 = vmatpush1.bf16.msra.mxu0 0
    %2547 = vmatprep.subr.bf16.mxu0 0
    %2548 = vmatpush1.bf16.msra.mxu0 0
    %2549 = vmatprep.subr.bf16.mxu0 0
    %2550 = vmatpush1.bf16.msra.mxu0 0
    %2551 = vmatprep.subr.bf16.mxu0 0
    %2552 = vmatpush1.bf16.msra.mxu0 0
    %2553 = vmatprep.subr.bf16.mxu0 0
    %2554 = vmatpush1.bf16.msra.mxu0 0
    %2555 = vmatprep.subr.bf16.mxu0 0
    %2556 = vmatpush1.bf16.msra.mxu0 0
    %2557 = vmatprep.subr.bf16.mxu0 0
    %2558 = vmatpush1.bf16.msra.mxu0 0
    %2559 = vmatprep.subr.bf16.mxu0 0
    %2560 = vmatpush1.bf16.msra.mxu0 0
    %2561 = vmatprep.subr.bf16.mxu0 0
    %2562 = vmatpush1.bf16.msra.mxu0 0
    %2563 = vmatprep.subr.bf16.mxu0 0
    %2564 = vmatpush1.bf16.msra.mxu0 0
    %2565 = vmatprep.mubr.bf16.mxu0 0
    %2566 = vmatmul.mubr.bf16.gmra.mrb[0].mxu0 %v2528
    %v2567 = vpop.f32.mrb[0].mxu0
    %v2568 = vadd.f32 0.0, %v2567
    %v2569 = vpop.f32.mrb[0].mxu0
    %v2570 = vpop.f32.mrb[0].mxu0
    %v2571 = vpop.f32.mrb[0].mxu0
    %2572 = vdwg.mxu0
    %v2574 = vsel %vm2385, %v2168, 0
    %v2577 = vand.u32 %v2360, %v2391
    %2579 = vmatprep.subr.bf16.mxu0 0
    %2580 = vmatpush1.bf16.msra.mxu0 %v2359
    %2581 = vmatprep.subr.bf16.mxu0 0
    %2582 = vmatpush1.bf16.msra.mxu0 %v2577
    %2583 = vmatprep.subr.bf16.mxu0 0
    %2584 = vmatpush1.bf16.msra.mxu0 0
    %2585 = vmatprep.subr.bf16.mxu0 0
    %2586 = vmatpush1.bf16.msra.mxu0 0
    %2587 = vmatprep.subr.bf16.mxu0 0
    %2588 = vmatpush1.bf16.msra.mxu0 0
    %2589 = vmatprep.subr.bf16.mxu0 0
    %2590 = vmatpush1.bf16.msra.mxu0 0
    %2591 = vmatprep.subr.bf16.mxu0 0
    %2592 = vmatpush1.bf16.msra.mxu0 0
    %2593 = vmatprep.subr.bf16.mxu0 0
    %2594 = vmatpush1.bf16.msra.mxu0 0
    %2595 = vmatprep.subr.bf16.mxu0 0
    %2596 = vmatpush1.bf16.msra.mxu0 0
    %2597 = vmatprep.subr.bf16.mxu0 0
    %2598 = vmatpush1.bf16.msra.mxu0 0
    %2599 = vmatprep.subr.bf16.mxu0 0
    %2600 = vmatpush1.bf16.msra.mxu0 0
    %2601 = vmatprep.subr.bf16.mxu0 0
    %2602 = vmatpush1.bf16.msra.mxu0 0
    %2603 = vmatprep.subr.bf16.mxu0 0
    %2604 = vmatpush1.bf16.msra.mxu0 0
    %2605 = vmatprep.subr.bf16.mxu0 0
    %2606 = vmatpush1.bf16.msra.mxu0 0
    %2607 = vmatprep.subr.bf16.mxu0 0
    %2608 = vmatpush1.bf16.msra.mxu0 0
    %2609 = vmatprep.subr.bf16.mxu0 0
    %2610 = vmatpush1.bf16.msra.mxu0 0
    %2611 = vmatprep.mubr.bf16.mxu0 0
    %2612 = vmatmul.mubr.bf16.gmra.mrb[0].mxu0 %v2574
    %v2613 = vpop.f32.mrb[0].mxu0
    %v2614 = vadd.f32 0.0, %v2613
    %v2615 = vpop.f32.mrb[0].mxu0
    %v2616 = vpop.f32.mrb[0].mxu0
    %v2617 = vpop.f32.mrb[0].mxu0
    %2618 = vdwg.mxu0
    %v2620 = vsel %vm2385, %v2169, 0
    %v2623 = vand.u32 %v2362, %v2391
    %2625 = vmatprep.subr.bf16.mxu0 0
    %2626 = vmatpush1.bf16.msra.mxu0 %v2361
    %2627 = vmatprep.subr.bf16.mxu0 0
    %2628 = vmatpush1.bf16.msra.mxu0 %v2623
    %2629 = vmatprep.subr.bf16.mxu0 0
    %2630 = vmatpush1.bf16.msra.mxu0 0
    %2631 = vmatprep.subr.bf16.mxu0 0
    %2632 = vmatpush1.bf16.msra.mxu0 0
    %2633 = vmatprep.subr.bf16.mxu0 0
    %2634 = vmatpush1.bf16.msra.mxu0 0
    %2635 = vmatprep.subr.bf16.mxu0 0
    %2636 = vmatpush1.bf16.msra.mxu0 0
    %2637 = vmatprep.subr.bf16.mxu0 0
    %2638 = vmatpush1.bf16.msra.mxu0 0
    %2639 = vmatprep.subr.bf16.mxu0 0
    %2640 = vmatpush1.bf16.msra.mxu0 0
    %2641 = vmatprep.subr.bf16.mxu0 0
    %2642 = vmatpush1.bf16.msra.mxu0 0
    %2643 = vmatprep.subr.bf16.mxu0 0
    %2644 = vmatpush1.bf16.msra.mxu0 0
    %2645 = vmatprep.subr.bf16.mxu0 0
    %2646 = vmatpush1.bf16.msra.mxu0 0
    %2647 = vmatprep.subr.bf16.mxu0 0
    %2648 = vmatpush1.bf16.msra.mxu0 0
    %2649 = vmatprep.subr.bf16.mxu0 0
    %2650 = vmatpush1.bf16.msra.mxu0 0
    %2651 = vmatprep.subr.bf16.mxu0 0
    %2652 = vmatpush1.bf16.msra.mxu0 0
    %2653 = vmatprep.subr.bf16.mxu0 0
    %2654 = vmatpush1.bf16.msra.mxu0 0
    %2655 = vmatprep.subr.bf16.mxu0 0
    %2656 = vmatpush1.bf16.msra.mxu0 0
    %2657 = vmatprep.mubr.bf16.mxu0 0
    %2658 = vmatmul.mubr.bf16.gmra.mrb[0].mxu0 %v2620
    %v2659 = vpop.f32.mrb[0].mxu0
    %v2660 = vadd.f32 0.0, %v2659
    %v2661 = vpop.f32.mrb[0].mxu0
    %v2662 = vpop.f32.mrb[0].mxu0
    %v2663 = vpop.f32.mrb[0].mxu0
    %2664 = vdwg.mxu0
    %v2666 = vsel %vm2385, %v2170, 0
    %v2669 = vand.u32 %v2364, %v2391
    %2671 = vmatprep.subr.bf16.mxu0 0
    %2672 = vmatpush1.bf16.msra.mxu0 %v2363
    %2673 = vmatprep.subr.bf16.mxu0 0
    %2674 = vmatpush1.bf16.msra.mxu0 %v2669
    %2675 = vmatprep.subr.bf16.mxu0 0
    %2676 = vmatpush1.bf16.msra.mxu0 0
    %2677 = vmatprep.subr.bf16.mxu0 0
    %2678 = vmatpush1.bf16.msra.mxu0 0
    %2679 = vmatprep.subr.bf16.mxu0 0
    %2680 = vmatpush1.bf16.msra.mxu0 0
    %2681 = vmatprep.subr.bf16.mxu0 0
    %2682 = vmatpush1.bf16.msra.mxu0 0
    %2683 = vmatprep.subr.bf16.mxu0 0
    %2684 = vmatpush1.bf16.msra.mxu0 0
    %2685 = vmatprep.subr.bf16.mxu0 0
    %2686 = vmatpush1.bf16.msra.mxu0 0
    %2687 = vmatprep.subr.bf16.mxu0 0
    %2688 = vmatpush1.bf16.msra.mxu0 0
    %2689 = vmatprep.subr.bf16.mxu0 0
    %2690 = vmatpush1.bf16.msra.mxu0 0
    %2691 = vmatprep.subr.bf16.mxu0 0
    %2692 = vmatpush1.bf16.msra.mxu0 0
    %2693 = vmatprep.subr.bf16.mxu0 0
    %2694 = vmatpush1.bf16.msra.mxu0 0
    %2695 = vmatprep.subr.bf16.mxu0 0
    %2696 = vmatpush1.bf16.msra.mxu0 0
    %2697 = vmatprep.subr.bf16.mxu0 0
    %2698 = vmatpush1.bf16.msra.mxu0 0
    %2699 = vmatprep.subr.bf16.mxu0 0
    %2700 = vmatpush1.bf16.msra.mxu0 0
    %2701 = vmatprep.subr.bf16.mxu0 0
    %2702 = vmatpush1.bf16.msra.mxu0 0
    %2703 = vmatprep.mubr.bf16.mxu0 0
    %2704 = vmatmul.mubr.bf16.gmra.mrb[0].mxu0 %v2666
    %v2705 = vpop.f32.mrb[0].mxu0
    %v2706 = vadd.f32 0.0, %v2705
    %v2707 = vpop.f32.mrb[0].mxu0
    %v2708 = vpop.f32.mrb[0].mxu0
    %v2709 = vpop.f32.mrb[0].mxu0
    %2710 = vdwg.mxu0
    %v2712 = vsel %vm2385, %v2171, 0
    %v2715 = vand.u32 %v2366, %v2391
    %2717 = vmatprep.subr.bf16.mxu0 0
    %2718 = vmatpush1.bf16.msra.mxu0 %v2365
    %2719 = vmatprep.subr.bf16.mxu0 0
    %2720 = vmatpush1.bf16.msra.mxu0 %v2715
    %2721 = vmatprep.subr.bf16.mxu0 0
    %2722 = vmatpush1.bf16.msra.mxu0 0
    %2723 = vmatprep.subr.bf16.mxu0 0
    %2724 = vmatpush1.bf16.msra.mxu0 0
    %2725 = vmatprep.subr.bf16.mxu0 0
    %2726 = vmatpush1.bf16.msra.mxu0 0
    %2727 = vmatprep.subr.bf16.mxu0 0
    %2728 = vmatpush1.bf16.msra.mxu0 0
    %2729 = vmatprep.subr.bf16.mxu0 0
    %2730 = vmatpush1.bf16.msra.mxu0 0
    %2731 = vmatprep.subr.bf16.mxu0 0
    %2732 = vmatpush1.bf16.msra.mxu0 0
    %2733 = vmatprep.subr.bf16.mxu0 0
    %2734 = vmatpush1.bf16.msra.mxu0 0
    %2735 = vmatprep.subr.bf16.mxu0 0
    %2736 = vmatpush1.bf16.msra.mxu0 0
    %2737 = vmatprep.subr.bf16.mxu0 0
    %2738 = vmatpush1.bf16.msra.mxu0 0
    %2739 = vmatprep.subr.bf16.mxu0 0
    %2740 = vmatpush1.bf16.msra.mxu0 0
    %2741 = vmatprep.subr.bf16.mxu0 0
    %2742 = vmatpush1.bf16.msra.mxu0 0
    %2743 = vmatprep.subr.bf16.mxu0 0
    %2744 = vmatpush1.bf16.msra.mxu0 0
    %2745 = vmatprep.subr.bf16.mxu0 0
    %2746 = vmatpush1.bf16.msra.mxu0 0
    %2747 = vmatprep.subr.bf16.mxu0 0
    %2748 = vmatpush1.bf16.msra.mxu0 0
    %2749 = vmatprep.mubr.bf16.mxu0 0
    %2750 = vmatmul.mubr.bf16.gmra.mrb[0].mxu0 %v2712
    %v2751 = vpop.f32.mrb[0].mxu0
    %v2752 = vadd.f32 0.0, %v2751
    %v2753 = vpop.f32.mrb[0].mxu0
    %v2754 = vpop.f32.mrb[0].mxu0
    %v2755 = vpop.f32.mrb[0].mxu0
    %2756 = vdwg.mxu0
    %v2758 = vsel %vm2385, %v2172, 0
    %v2761 = vand.u32 %v2368, %v2391
    %2763 = vmatprep.subr.bf16.mxu0 0
    %2764 = vmatpush1.bf16.msra.mxu0 %v2367
    %2765 = vmatprep.subr.bf16.mxu0 0
    %2766 = vmatpush1.bf16.msra.mxu0 %v2761
    %2767 = vmatprep.subr.bf16.mxu0 0
    %2768 = vmatpush1.bf16.msra.mxu0 0
    %2769 = vmatprep.subr.bf16.mxu0 0
    %2770 = vmatpush1.bf16.msra.mxu0 0
    %2771 = vmatprep.subr.bf16.mxu0 0
    %2772 = vmatpush1.bf16.msra.mxu0 0
    %2773 = vmatprep.subr.bf16.mxu0 0
    %2774 = vmatpush1.bf16.msra.mxu0 0
    %2775 = vmatprep.subr.bf16.mxu0 0
    %2776 = vmatpush1.bf16.msra.mxu0 0
    %2777 = vmatprep.subr.bf16.mxu0 0
    %2778 = vmatpush1.bf16.msra.mxu0 0
    %2779 = vmatprep.subr.bf16.mxu0 0
    %2780 = vmatpush1.bf16.msra.mxu0 0
    %2781 = vmatprep.subr.bf16.mxu0 0
    %2782 = vmatpush1.bf16.msra.mxu0 0
    %2783 = vmatprep.subr.bf16.mxu0 0
    %2784 = vmatpush1.bf16.msra.mxu0 0
    %2785 = vmatprep.subr.bf16.mxu0 0
    %2786 = vmatpush1.bf16.msra.mxu0 0
    %2787 = vmatprep.subr.bf16.mxu0 0
    %2788 = vmatpush1.bf16.msra.mxu0 0
    %2789 = vmatprep.subr.bf16.mxu0 0
    %2790 = vmatpush1.bf16.msra.mxu0 0
    %2791 = vmatprep.subr.bf16.mxu0 0
    %2792 = vmatpush1.bf16.msra.mxu0 0
    %2793 = vmatprep.subr.bf16.mxu0 0
    %2794 = vmatpush1.bf16.msra.mxu0 0
    %2795 = vmatprep.mubr.bf16.mxu0 0
    %2796 = vmatmul.mubr.bf16.gmra.mrb[0].mxu0 %v2758
    %v2797 = vpop.f32.mrb[0].mxu0
    %v2798 = vadd.f32 0.0, %v2797
    %v2799 = vpop.f32.mrb[0].mxu0
    %v2800 = vpop.f32.mrb[0].mxu0
    %v2801 = vpop.f32.mrb[0].mxu0
    %2802 = vdwg.mxu0
    %v2804 = vsel %vm2385, %v2173, 0
    %v2807 = vand.u32 %v2370, %v2391
    %2809 = vmatprep.subr.bf16.mxu0 0
    %2810 = vmatpush1.bf16.msra.mxu0 %v2369
    %2811 = vmatprep.subr.bf16.mxu0 0
    %2812 = vmatpush1.bf16.msra.mxu0 %v2807
    %2813 = vmatprep.subr.bf16.mxu0 0
    %2814 = vmatpush1.bf16.msra.mxu0 0
    %2815 = vmatprep.subr.bf16.mxu0 0
    %2816 = vmatpush1.bf16.msra.mxu0 0
    %2817 = vmatprep.subr.bf16.mxu0 0
    %2818 = vmatpush1.bf16.msra.mxu0 0
    %2819 = vmatprep.subr.bf16.mxu0 0
    %2820 = vmatpush1.bf16.msra.mxu0 0
    %2821 = vmatprep.subr.bf16.mxu0 0
    %2822 = vmatpush1.bf16.msra.mxu0 0
    %2823 = vmatprep.subr.bf16.mxu0 0
    %2824 = vmatpush1.bf16.msra.mxu0 0
    %2825 = vmatprep.subr.bf16.mxu0 0
    %2826 = vmatpush1.bf16.msra.mxu0 0
    %2827 = vmatprep.subr.bf16.mxu0 0
    %2828 = vmatpush1.bf16.msra.mxu0 0
    %2829 = vmatprep.subr.bf16.mxu0 0
    %2830 = vmatpush1.bf16.msra.mxu0 0
    %2831 = vmatprep.subr.bf16.mxu0 0
    %2832 = vmatpush1.bf16.msra.mxu0 0
    %2833 = vmatprep.subr.bf16.mxu0 0
    %2834 = vmatpush1.bf16.msra.mxu0 0
    %2835 = vmatprep.subr.bf16.mxu0 0
    %2836 = vmatpush1.bf16.msra.mxu0 0
    %2837 = vmatprep.subr.bf16.mxu0 0
    %2838 = vmatpush1.bf16.msra.mxu0 0
    %2839 = vmatprep.subr.bf16.mxu0 0
    %2840 = vmatpush1.bf16.msra.mxu0 0
    %2841 = vmatprep.mubr.bf16.mxu0 0
    %2842 = vmatmul.mubr.bf16.gmra.mrb[0].mxu0 %v2804
    %v2843 = vpop.f32.mrb[0].mxu0
    %v2844 = vadd.f32 0.0, %v2843
    %v2845 = vpop.f32.mrb[0].mxu0
    %v2846 = vpop.f32.mrb[0].mxu0
    %v2847 = vpop.f32.mrb[0].mxu0
    %2848 = vdwg.mxu0
    %v2850 = vsel %vm2385, %v2174, 0
    %v2853 = vand.u32 %v2372, %v2391
    %2855 = vmatprep.subr.bf16.mxu0 0
    %2856 = vmatpush1.bf16.msra.mxu0 %v2371
    %2857 = vmatprep.subr.bf16.mxu0 0
    %2858 = vmatpush1.bf16.msra.mxu0 %v2853
    %2859 = vmatprep.subr.bf16.mxu0 0
    %2860 = vmatpush1.bf16.msra.mxu0 0
    %2861 = vmatprep.subr.bf16.mxu0 0
    %2862 = vmatpush1.bf16.msra.mxu0 0
    %2863 = vmatprep.subr.bf16.mxu0 0
    %2864 = vmatpush1.bf16.msra.mxu0 0
    %2865 = vmatprep.subr.bf16.mxu0 0
    %2866 = vmatpush1.bf16.msra.mxu0 0
    %2867 = vmatprep.subr.bf16.mxu0 0
    %2868 = vmatpush1.bf16.msra.mxu0 0
    %2869 = vmatprep.subr.bf16.mxu0 0
    %2870 = vmatpush1.bf16.msra.mxu0 0
    %2871 = vmatprep.subr.bf16.mxu0 0
    %2872 = vmatpush1.bf16.msra.mxu0 0
    %2873 = vmatprep.subr.bf16.mxu0 0
    %2874 = vmatpush1.bf16.msra.mxu0 0
    %2875 = vmatprep.subr.bf16.mxu0 0
    %2876 = vmatpush1.bf16.msra.mxu0 0
    %2877 = vmatprep.subr.bf16.mxu0 0
    %2878 = vmatpush1.bf16.msra.mxu0 0
    %2879 = vmatprep.subr.bf16.mxu0 0
    %2880 = vmatpush1.bf16.msra.mxu0 0
    %2881 = vmatprep.subr.bf16.mxu0 0
    %2882 = vmatpush1.bf16.msra.mxu0 0
    %2883 = vmatprep.subr.bf16.mxu0 0
    %2884 = vmatpush1.bf16.msra.mxu0 0
    %2885 = vmatprep.subr.bf16.mxu0 0
    %2886 = vmatpush1.bf16.msra.mxu0 0
    %2887 = vmatprep.mubr.bf16.mxu0 0
    %2888 = vmatmul.mubr.bf16.gmra.mrb[0].mxu0 %v2850
    %v2889 = vpop.f32.mrb[0].mxu0
    %v2890 = vadd.f32 0.0, %v2889
    %v2891 = vpop.f32.mrb[0].mxu0
    %v2892 = vpop.f32.mrb[0].mxu0
    %v2893 = vpop.f32.mrb[0].mxu0
    %2894 = vdwg.mxu0
    %v2896 = vsel %vm2385, %v2175, 0
    %v2899 = vand.u32 %v2374, %v2391
    %2901 = vmatprep.subr.bf16.mxu0 0
    %2902 = vmatpush1.bf16.msra.mxu0 %v2373
    %2903 = vmatprep.subr.bf16.mxu0 0
    %2904 = vmatpush1.bf16.msra.mxu0 %v2899
    %2905 = vmatprep.subr.bf16.mxu0 0
    %2906 = vmatpush1.bf16.msra.mxu0 0
    %2907 = vmatprep.subr.bf16.mxu0 0
    %2908 = vmatpush1.bf16.msra.mxu0 0
    %2909 = vmatprep.subr.bf16.mxu0 0
    %2910 = vmatpush1.bf16.msra.mxu0 0
    %2911 = vmatprep.subr.bf16.mxu0 0
    %2912 = vmatpush1.bf16.msra.mxu0 0
    %2913 = vmatprep.subr.bf16.mxu0 0
    %2914 = vmatpush1.bf16.msra.mxu0 0
    %2915 = vmatprep.subr.bf16.mxu0 0
    %2916 = vmatpush1.bf16.msra.mxu0 0
    %2917 = vmatprep.subr.bf16.mxu0 0
    %2918 = vmatpush1.bf16.msra.mxu0 0
    %2919 = vmatprep.subr.bf16.mxu0 0
    %2920 = vmatpush1.bf16.msra.mxu0 0
    %2921 = vmatprep.subr.bf16.mxu0 0
    %2922 = vmatpush1.bf16.msra.mxu0 0
    %2923 = vmatprep.subr.bf16.mxu0 0
    %2924 = vmatpush1.bf16.msra.mxu0 0
    %2925 = vmatprep.subr.bf16.mxu0 0
    %2926 = vmatpush1.bf16.msra.mxu0 0
    %2927 = vmatprep.subr.bf16.mxu0 0
    %2928 = vmatpush1.bf16.msra.mxu0 0
    %2929 = vmatprep.subr.bf16.mxu0 0
    %2930 = vmatpush1.bf16.msra.mxu0 0
    %2931 = vmatprep.subr.bf16.mxu0 0
    %2932 = vmatpush1.bf16.msra.mxu0 0
    %2933 = vmatprep.mubr.bf16.mxu0 0
    %2934 = vmatmul.mubr.bf16.gmra.mrb[0].mxu0 %v2896
    %v2935 = vpop.f32.mrb[0].mxu0
    %v2936 = vadd.f32 0.0, %v2935
    %v2937 = vpop.f32.mrb[0].mxu0
    %v2938 = vpop.f32.mrb[0].mxu0
    %v2939 = vpop.f32.mrb[0].mxu0
    %2940 = vdwg.mxu0
    %v2942 = vsel %vm2385, %v2176, 0
    %v2945 = vand.u32 %v2376, %v2391
    %2947 = vmatprep.subr.bf16.mxu0 0
    %2948 = vmatpush1.bf16.msra.mxu0 %v2375
    %2949 = vmatprep.subr.bf16.mxu0 0
    %2950 = vmatpush1.bf16.msra.mxu0 %v2945
    %2951 = vmatprep.subr.bf16.mxu0 0
    %2952 = vmatpush1.bf16.msra.mxu0 0
    %2953 = vmatprep.subr.bf16.mxu0 0
    %2954 = vmatpush1.bf16.msra.mxu0 0
    %2955 = vmatprep.subr.bf16.mxu0 0
    %2956 = vmatpush1.bf16.msra.mxu0 0
    %2957 = vmatprep.subr.bf16.mxu0 0
    %2958 = vmatpush1.bf16.msra.mxu0 0
    %2959 = vmatprep.subr.bf16.mxu0 0
    %2960 = vmatpush1.bf16.msra.mxu0 0
    %2961 = vmatprep.subr.bf16.mxu0 0
    %2962 = vmatpush1.bf16.msra.mxu0 0
    %2963 = vmatprep.subr.bf16.mxu0 0
    %2964 = vmatpush1.bf16.msra.mxu0 0
    %2965 = vmatprep.subr.bf16.mxu0 0
    %2966 = vmatpush1.bf16.msra.mxu0 0
    %2967 = vmatprep.subr.bf16.mxu0 0
    %2968 = vmatpush1.bf16.msra.mxu0 0
    %2969 = vmatprep.subr.bf16.mxu0 0
    %2970 = vmatpush1.bf16.msra.mxu0 0
    %2971 = vmatprep.subr.bf16.mxu0 0
    %2972 = vmatpush1.bf16.msra.mxu0 0
    %2973 = vmatprep.subr.bf16.mxu0 0
    %2974 = vmatpush1.bf16.msra.mxu0 0
    %2975 = vmatprep.subr.bf16.mxu0 0
    %2976 = vmatpush1.bf16.msra.mxu0 0
    %2977 = vmatprep.subr.bf16.mxu0 0
    %2978 = vmatpush1.bf16.msra.mxu0 0
    %2979 = vmatprep.mubr.bf16.mxu0 0
    %2980 = vmatmul.mubr.bf16.gmra.mrb[0].mxu0 %v2942
    %v2981 = vpop.f32.mrb[0].mxu0
    %v2982 = vadd.f32 0.0, %v2981
    %v2983 = vpop.f32.mrb[0].mxu0
    %v2984 = vpop.f32.mrb[0].mxu0
    %v2985 = vpop.f32.mrb[0].mxu0
    %2986 = vdwg.mxu0
    %v2988 = vsel %vm2385, %v2177, 0
    %v2991 = vand.u32 %v2378, %v2391
    %2993 = vmatprep.subr.bf16.mxu0 0
    %2994 = vmatpush1.bf16.msra.mxu0 %v2377
    %2995 = vmatprep.subr.bf16.mxu0 0
    %2996 = vmatpush1.bf16.msra.mxu0 %v2991
    %2997 = vmatprep.subr.bf16.mxu0 0
    %2998 = vmatpush1.bf16.msra.mxu0 0
    %2999 = vmatprep.subr.bf16.mxu0 0
    %3000 = vmatpush1.bf16.msra.mxu0 0
    %3001 = vmatprep.subr.bf16.mxu0 0
    %3002 = vmatpush1.bf16.msra.mxu0 0
    %3003 = vmatprep.subr.bf16.mxu0 0
    %3004 = vmatpush1.bf16.msra.mxu0 0
    %3005 = vmatprep.subr.bf16.mxu0 0
    %3006 = vmatpush1.bf16.msra.mxu0 0
    %3007 = vmatprep.subr.bf16.mxu0 0
    %3008 = vmatpush1.bf16.msra.mxu0 0
    %3009 = vmatprep.subr.bf16.mxu0 0
    %3010 = vmatpush1.bf16.msra.mxu0 0
    %3011 = vmatprep.subr.bf16.mxu0 0
    %3012 = vmatpush1.bf16.msra.mxu0 0
    %3013 = vmatprep.subr.bf16.mxu0 0
    %3014 = vmatpush1.bf16.msra.mxu0 0
    %3015 = vmatprep.subr.bf16.mxu0 0
    %3016 = vmatpush1.bf16.msra.mxu0 0
    %3017 = vmatprep.subr.bf16.mxu0 0
    %3018 = vmatpush1.bf16.msra.mxu0 0
    %3019 = vmatprep.subr.bf16.mxu0 0
    %3020 = vmatpush1.bf16.msra.mxu0 0
    %3021 = vmatprep.subr.bf16.mxu0 0
    %3022 = vmatpush1.bf16.msra.mxu0 0
    %3023 = vmatprep.subr.bf16.mxu0 0
    %3024 = vmatpush1.bf16.msra.mxu0 0
    %3025 = vmatprep.mubr.bf16.mxu0 0
    %3026 = vmatmul.mubr.bf16.gmra.mrb[0].mxu0 %v2988
    %v3027 = vpop.f32.mrb[0].mxu0
    %v3028 = vadd.f32 0.0, %v3027
    %v3029 = vpop.f32.mrb[0].mxu0
    %v3030 = vpop.f32.mrb[0].mxu0
    %v3031 = vpop.f32.mrb[0].mxu0
    %3032 = vdwg.mxu0
    %v3034 = vsel %vm2385, %v2178, 0
    %v3037 = vand.u32 %v2380, %v2391
    %3039 = vmatprep.subr.bf16.mxu0 0
    %3040 = vmatpush1.bf16.msra.mxu0 %v2379
    %3041 = vmatprep.subr.bf16.mxu0 0
    %3042 = vmatpush1.bf16.msra.mxu0 %v3037
    %3043 = vmatprep.subr.bf16.mxu0 0
    %3044 = vmatpush1.bf16.msra.mxu0 0
    %3045 = vmatprep.subr.bf16.mxu0 0
    %3046 = vmatpush1.bf16.msra.mxu0 0
    %3047 = vmatprep.subr.bf16.mxu0 0
    %3048 = vmatpush1.bf16.msra.mxu0 0
    %3049 = vmatprep.subr.bf16.mxu0 0
    %3050 = vmatpush1.bf16.msra.mxu0 0
    %3051 = vmatprep.subr.bf16.mxu0 0
    %3052 = vmatpush1.bf16.msra.mxu0 0
    %3053 = vmatprep.subr.bf16.mxu0 0
    %3054 = vmatpush1.bf16.msra.mxu0 0
    %3055 = vmatprep.subr.bf16.mxu0 0
    %3056 = vmatpush1.bf16.msra.mxu0 0
    %3057 = vmatprep.subr.bf16.mxu0 0
    %3058 = vmatpush1.bf16.msra.mxu0 0
    %3059 = vmatprep.subr.bf16.mxu0 0
    %3060 = vmatpush1.bf16.msra.mxu0 0
    %3061 = vmatprep.subr.bf16.mxu0 0
    %3062 = vmatpush1.bf16.msra.mxu0 0
    %3063 = vmatprep.subr.bf16.mxu0 0
    %3064 = vmatpush1.bf16.msra.mxu0 0
    %3065 = vmatprep.subr.bf16.mxu0 0
    %3066 = vmatpush1.bf16.msra.mxu0 0
    %3067 = vmatprep.subr.bf16.mxu0 0
    %3068 = vmatpush1.bf16.msra.mxu0 0
    %3069 = vmatprep.subr.bf16.mxu0 0
    %3070 = vmatpush1.bf16.msra.mxu0 0
    %3071 = vmatprep.mubr.bf16.mxu0 0
    %3072 = vmatmul.mubr.bf16.gmra.mrb[0].mxu0 %v3034
    %v3073 = vpop.f32.mrb[0].mxu0
    %v3074 = vadd.f32 0.0, %v3073
    %v3075 = vpop.f32.mrb[0].mxu0
    %v3076 = vpop.f32.mrb[0].mxu0
    %v3077 = vpop.f32.mrb[0].mxu0
    %3078 = vdwg.mxu0
    %v3080 = vsel %vm2385, %v2179, 0
    %v3083 = vand.u32 %v2382, %v2391
    %3085 = vmatprep.subr.bf16.mxu0 0
    %3086 = vmatpush1.bf16.msra.mxu0 %v2381
    %3087 = vmatprep.subr.bf16.mxu0 0
    %3088 = vmatpush1.bf16.msra.mxu0 %v3083
    %3089 = vmatprep.subr.bf16.mxu0 0
    %3090 = vmatpush1.bf16.msra.mxu0 0
    %3091 = vmatprep.subr.bf16.mxu0 0
    %3092 = vmatpush1.bf16.msra.mxu0 0
    %3093 = vmatprep.subr.bf16.mxu0 0
    %3094 = vmatpush1.bf16.msra.mxu0 0
    %3095 = vmatprep.subr.bf16.mxu0 0
    %3096 = vmatpush1.bf16.msra.mxu0 0
    %3097 = vmatprep.subr.bf16.mxu0 0
    %3098 = vmatpush1.bf16.msra.mxu0 0
    %3099 = vmatprep.subr.bf16.mxu0 0
    %3100 = vmatpush1.bf16.msra.mxu0 0
    %3101 = vmatprep.subr.bf16.mxu0 0
    %3102 = vmatpush1.bf16.msra.mxu0 0
    %3103 = vmatprep.subr.bf16.mxu0 0
    %3104 = vmatpush1.bf16.msra.mxu0 0
    %3105 = vmatprep.subr.bf16.mxu0 0
    %3106 = vmatpush1.bf16.msra.mxu0 0
    %3107 = vmatprep.subr.bf16.mxu0 0
    %3108 = vmatpush1.bf16.msra.mxu0 0
    %3109 = vmatprep.subr.bf16.mxu0 0
    %3110 = vmatpush1.bf16.msra.mxu0 0
    %3111 = vmatprep.subr.bf16.mxu0 0
    %3112 = vmatpush1.bf16.msra.mxu0 0
    %3113 = vmatprep.subr.bf16.mxu0 0
    %3114 = vmatpush1.bf16.msra.mxu0 0
    %3115 = vmatprep.subr.bf16.mxu0 0
    %3116 = vmatpush1.bf16.msra.mxu0 0
    %3117 = vmatprep.mubr.bf16.mxu0 0
    %3118 = vmatmul.mubr.bf16.gmra.mrb[0].mxu0 %v3080
    %v3119 = vpop.f32.mrb[0].mxu0
    %v3120 = vadd.f32 0.0, %v3119
    %v3121 = vpop.f32.mrb[0].mxu0
    %v3122 = vpop.f32.mrb[0].mxu0
    %v3123 = vpop.f32.mrb[0].mxu0
    %3124 = vdwg.mxu0
    %v3126 = vsel %vm2385, %v2180, 0
    %v3129 = vand.u32 %v2384, %v2391
    %3131 = vmatprep.subr.bf16.mxu0 0
    %3132 = vmatpush1.bf16.msra.mxu0 %v2383
    %3133 = vmatprep.subr.bf16.mxu0 0
    %3134 = vmatpush1.bf16.msra.mxu0 %v3129
    %3135 = vmatprep.subr.bf16.mxu0 0
    %3136 = vmatpush1.bf16.msra.mxu0 0
    %3137 = vmatprep.subr.bf16.mxu0 0
    %3138 = vmatpush1.bf16.msra.mxu0 0
    %3139 = vmatprep.subr.bf16.mxu0 0
    %3140 = vmatpush1.bf16.msra.mxu0 0
    %3141 = vmatprep.subr.bf16.mxu0 0
    %3142 = vmatpush1.bf16.msra.mxu0 0
    %3143 = vmatprep.subr.bf16.mxu0 0
    %3144 = vmatpush1.bf16.msra.mxu0 0
    %3145 = vmatprep.subr.bf16.mxu0 0
    %3146 = vmatpush1.bf16.msra.mxu0 0
    %3147 = vmatprep.subr.bf16.mxu0 0
    %3148 = vmatpush1.bf16.msra.mxu0 0
    %3149 = vmatprep.subr.bf16.mxu0 0
    %3150 = vmatpush1.bf16.msra.mxu0 0
    %3151 = vmatprep.subr.bf16.mxu0 0
    %3152 = vmatpush1.bf16.msra.mxu0 0
    %3153 = vmatprep.subr.bf16.mxu0 0
    %3154 = vmatpush1.bf16.msra.mxu0 0
    %3155 = vmatprep.subr.bf16.mxu0 0
    %3156 = vmatpush1.bf16.msra.mxu0 0
    %3157 = vmatprep.subr.bf16.mxu0 0
    %3158 = vmatpush1.bf16.msra.mxu0 0
    %3159 = vmatprep.subr.bf16.mxu0 0
    %3160 = vmatpush1.bf16.msra.mxu0 0
    %3161 = vmatprep.subr.bf16.mxu0 0
    %3162 = vmatpush1.bf16.msra.mxu0 0
    %3163 = vmatprep.mubr.bf16.mxu0 0
    %3164 = vmatmul.mubr.bf16.gmra.mrb[0].mxu0 %v3126
    %v3165 = vpop.f32.mrb[0].mxu0
    %v3166 = vadd.f32 0.0, %v3165
    %v3167 = vpop.f32.mrb[0].mxu0
    %v3168 = vpop.f32.mrb[0].mxu0
    %v3169 = vpop.f32.mrb[0].mxu0
    %3170 = vdwg.mxu0
    %v3171 = vmul.f32 %v2430, %v225
    %v3172 = vmul.f32 %v2476, %v225
    %v3173 = vmul.f32 %v2522, %v225
    %v3174 = vmul.f32 %v2568, %v225
    %v3175 = vmul.f32 %v2614, %v225
    %v3176 = vmul.f32 %v2660, %v225
    %v3177 = vmul.f32 %v2706, %v225
    %v3178 = vmul.f32 %v2752, %v225
    %v3179 = vmul.f32 %v2798, %v225
    %v3180 = vmul.f32 %v2844, %v225
    %v3181 = vmul.f32 %v2890, %v225
    %v3182 = vmul.f32 %v2936, %v225
    %v3183 = vmul.f32 %v2982, %v225
    %v3184 = vmul.f32 %v3028, %v225
    %v3185 = vmul.f32 %v3074, %v225
    %v3186 = vmul.f32 %v3120, %v225
    %v3187 = vmul.f32 %v3166, %v225
    %vm3188 = vcmask 519168
    %v3189 = vsel %vm3188, %v3171, 0.0
    %v3190 = vrot.slane %v3189, 4
    %v3191 = vadd.f32 %v3189, %v3190
    %v3192 = vrot.slane %v3191, 2
    %v3193 = vadd.f32 %v3191, %v3192
    %v3194 = vrot.slane %v3193, 1
    %v3195 = vadd.f32 %v3193, %v3194
    %v3196 = vsel %vm3188, %v3172, 0.0
    %v3197 = vrot.slane %v3196, 4
    %v3198 = vadd.f32 %v3196, %v3197
    %v3199 = vrot.slane %v3198, 2
    %v3200 = vadd.f32 %v3198, %v3199
    %v3201 = vrot.slane %v3200, 1
    %v3202 = vadd.f32 %v3200, %v3201
    %v3203 = vsel %vm3188, %v3173, 0.0
    %v3204 = vrot.slane %v3203, 4
    %v3205 = vadd.f32 %v3203, %v3204
    %v3206 = vrot.slane %v3205, 2
    %v3207 = vadd.f32 %v3205, %v3206
    %v3208 = vrot.slane %v3207, 1
    %v3209 = vadd.f32 %v3207, %v3208
    %v3210 = vsel %vm3188, %v3174, 0.0
    %v3211 = vrot.slane %v3210, 4
    %v3212 = vadd.f32 %v3210, %v3211
    %v3213 = vrot.slane %v3212, 2
    %v3214 = vadd.f32 %v3212, %v3213
    %v3215 = vrot.slane %v3214, 1
    %v3216 = vadd.f32 %v3214, %v3215
    %v3217 = vsel %vm3188, %v3175, 0.0
    %v3218 = vrot.slane %v3217, 4
    %v3219 = vadd.f32 %v3217, %v3218
    %v3220 = vrot.slane %v3219, 2
    %v3221 = vadd.f32 %v3219, %v3220
    %v3222 = vrot.slane %v3221, 1
    %v3223 = vadd.f32 %v3221, %v3222
    %v3224 = vsel %vm3188, %v3176, 0.0
    %v3225 = vrot.slane %v3224, 4
    %v3226 = vadd.f32 %v3224, %v3225
    %v3227 = vrot.slane %v3226, 2
    %v3228 = vadd.f32 %v3226, %v3227
    %v3229 = vrot.slane %v3228, 1
    %v3230 = vadd.f32 %v3228, %v3229
    %v3231 = vsel %vm3188, %v3177, 0.0
    %v3232 = vrot.slane %v3231, 4
    %v3233 = vadd.f32 %v3231, %v3232
    %v3234 = vrot.slane %v3233, 2
    %v3235 = vadd.f32 %v3233, %v3234
    %v3236 = vrot.slane %v3235, 1
    %v3237 = vadd.f32 %v3235, %v3236
    %v3238 = vsel %vm3188, %v3178, 0.0
    %v3239 = vrot.slane %v3238, 4
    %v3240 = vadd.f32 %v3238, %v3239
    %v3241 = vrot.slane %v3240, 2
    %v3242 = vadd.f32 %v3240, %v3241
    %v3243 = vrot.slane %v3242, 1
    %v3244 = vadd.f32 %v3242, %v3243
    %v3245 = vsel %vm3188, %v3179, 0.0
    %v3246 = vrot.slane %v3245, 4
    %v3247 = vadd.f32 %v3245, %v3246
    %v3248 = vrot.slane %v3247, 2
    %v3249 = vadd.f32 %v3247, %v3248
    %v3250 = vrot.slane %v3249, 1
    %v3251 = vadd.f32 %v3249, %v3250
    %v3252 = vsel %vm3188, %v3180, 0.0
    %v3253 = vrot.slane %v3252, 4
    %v3254 = vadd.f32 %v3252, %v3253
    %v3255 = vrot.slane %v3254, 2
    %v3256 = vadd.f32 %v3254, %v3255
    %v3257 = vrot.slane %v3256, 1
    %v3258 = vadd.f32 %v3256, %v3257
    %v3259 = vsel %vm3188, %v3181, 0.0
    %v3260 = vrot.slane %v3259, 4
    %v3261 = vadd.f32 %v3259, %v3260
    %v3262 = vrot.slane %v3261, 2
    %v3263 = vadd.f32 %v3261, %v3262
    %v3264 = vrot.slane %v3263, 1
    %v3265 = vadd.f32 %v3263, %v3264
    %v3266 = vsel %vm3188, %v3182, 0.0
    %v3267 = vrot.slane %v3266, 4
    %v3268 = vadd.f32 %v3266, %v3267
    %v3269 = vrot.slane %v3268, 2
    %v3270 = vadd.f32 %v3268, %v3269
    %v3271 = vrot.slane %v3270, 1
    %v3272 = vadd.f32 %v3270, %v3271
    %v3273 = vsel %vm3188, %v3183, 0.0
    %v3274 = vrot.slane %v3273, 4
    %v3275 = vadd.f32 %v3273, %v3274
    %v3276 = vrot.slane %v3275, 2
    %v3277 = vadd.f32 %v3275, %v3276
    %v3278 = vrot.slane %v3277, 1
    %v3279 = vadd.f32 %v3277, %v3278
    %v3280 = vsel %vm3188, %v3184, 0.0
    %v3281 = vrot.slane %v3280, 4
    %v3282 = vadd.f32 %v3280, %v3281
    %v3283 = vrot.slane %v3282, 2
    %v3284 = vadd.f32 %v3282, %v3283
    %v3285 = vrot.slane %v3284, 1
    %v3286 = vadd.f32 %v3284, %v3285
    %v3287 = vsel %vm3188, %v3185, 0.0
    %v3288 = vrot.slane %v3287, 4
    %v3289 = vadd.f32 %v3287, %v3288
    %v3290 = vrot.slane %v3289, 2
    %v3291 = vadd.f32 %v3289, %v3290
    %v3292 = vrot.slane %v3291, 1
    %v3293 = vadd.f32 %v3291, %v3292
    %v3294 = vsel %vm3188, %v3186, 0.0
    %v3295 = vrot.slane %v3294, 4
    %v3296 = vadd.f32 %v3294, %v3295
    %v3297 = vrot.slane %v3296, 2
    %v3298 = vadd.f32 %v3296, %v3297
    %v3299 = vrot.slane %v3298, 1
    %v3300 = vadd.f32 %v3298, %v3299
    %v3301 = vsel %vm3188, %v3187, 0.0
    %v3302 = vrot.slane %v3301, 4
    %v3303 = vadd.f32 %v3301, %v3302
    %v3304 = vrot.slane %v3303, 2
    %v3305 = vadd.f32 %v3303, %v3304
    %v3306 = vrot.slane %v3305, 1
    %v3307 = vadd.f32 %v3305, %v3306
    %vm3325 = vcmask 1041409
    %v3326 = vsel %vm3325, %v3202, %v3195
    %vm3327 = vcmask 1042434
    %v3328 = vsel %vm3327, %v3209, %v3326
    %vm3329 = vcmask 1043459
    %v3330 = vsel %vm3329, %v3216, %v3328
    %vm3331 = vcmask 1044484
    %v3332 = vsel %vm3331, %v3223, %v3330
    %vm3333 = vcmask 1045509
    %v3334 = vsel %vm3333, %v3230, %v3332
    %vm3335 = vcmask 1046534
    %v3336 = vsel %vm3335, %v3237, %v3334
    %vm3337 = vcmask 1047559
    %v3338 = vsel %vm3337, %v3244, %v3336
    %v3339 = vsel %vm3325, %v3258, %v3251
    %v3340 = vsel %vm3327, %v3265, %v3339
    %v3341 = vsel %vm3329, %v3272, %v3340
    %v3342 = vsel %vm3331, %v3279, %v3341
    %v3343 = vsel %vm3333, %v3286, %v3342
    %v3344 = vsel %vm3335, %v3293, %v3343
    %v3345 = vsel %vm3337, %v3300, %v3344
    %3349 = vst.msk [vmem:[#allocation2] sm:$0xff] %vm228, %v3338
    %3350 = vst.msk [vmem:[#allocation2 + $0x8] sm:$0xff] %vm228, %v3345
    %vm3351 = vcmask 516096
    %3352 = vst.msk [vmem:[#allocation2 + $0x10] sm:$0x1] %vm3351, %v3307
    %v3353 = vpack.c.bf16 %v501, %v498
    %v3354 = vpack.c.bf16 %v506, %v506
    %v3355 = vpack.c.bf16 %v589, %v586
    %v3356 = vpack.c.bf16 %v594, %v594
    %v3359 = vcombine.high %v420, %v420
    %v3361 = vunpack.c.l.s4 1966171168
    %v3362 = vunpack.c.0.s8 %v3361
    %v3363 = vlaneseq
    %v3364 = vshrl.u32 %v3363, 7
    %v3365 = vsub.s32 %v3362, %v3364
    %v3366 = vrot.slane %v3359, %v3365
    %v3367 = vcombine.high %v812, %v812
    %v3368 = vcombine.high %v3366, %v3366
    %v3370 = vunpack.c.l.s4 1966171168
    %v3371 = vunpack.c.0.s8 %v3370
    %v3372 = vlaneseq
    %v3373 = vshrl.u32 %v3372, 7
    %v3374 = vsub.s32 %v3371, %v3373
    %v3375 = vrot.slane %v3366, %v3374
    %v3377 = vunpack.c.l.s4 1966171168
    %v3378 = vunpack.c.0.s8 %v3377
    %v3379 = vlaneseq
    %v3380 = vshrl.u32 %v3379, 7
    %v3381 = vsub.s32 %v3378, %v3380
    %v3382 = vrot.slane %v3367, %v3381
    %v3384 = vunpack.c.l.s4 1966171168
    %v3385 = vunpack.c.0.s8 %v3384
    %v3386 = vlaneseq
    %v3387 = vshrl.u32 %v3386, 7
    %v3388 = vsub.s32 %v3385, %v3387
    %v3389 = vrot.slane %v3368, %v3388
    %v3390 = vcombine.high %v819, %v819
    %v3391 = vcombine.high %v3375, %v3375
    %v3392 = vcombine.high %v3382, %v3382
    %v3393 = vcombine.high %v3389, %v3389
    %v3394 = vcombine.high %v421, %v421
    %v3396 = vunpack.c.l.s4 1966171168
    %v3397 = vunpack.c.0.s8 %v3396
    %v3398 = vlaneseq
    %v3399 = vshrl.u32 %v3398, 7
    %v3400 = vsub.s32 %v3397, %v3399
    %v3401 = vrot.slane %v421, %v3400
    %v3403 = vunpack.c.l.s4 1966171168
    %v3404 = vunpack.c.0.s8 %v3403
    %v3405 = vlaneseq
    %v3406 = vshrl.u32 %v3405, 7
    %v3407 = vsub.s32 %v3404, %v3406
    %v3408 = vrot.slane %v3394, %v3407
    %v3409 = vcombine.high %v3401, %v3401
    %v3410 = vcombine.high %v3408, %v3408
    %v3412 = vunpack.c.l.s4 1966171168
    %v3413 = vunpack.c.0.s8 %v3412
    %v3414 = vlaneseq
    %v3415 = vshrl.u32 %v3414, 7
    %v3416 = vsub.s32 %v3413, %v3415
    %v3417 = vrot.slane %v3401, %v3416
    %v3419 = vunpack.c.l.s4 1966171168
    %v3420 = vunpack.c.0.s8 %v3419
    %v3421 = vlaneseq
    %v3422 = vshrl.u32 %v3421, 7
    %v3423 = vsub.s32 %v3420, %v3422
    %v3424 = vrot.slane %v3408, %v3423
    %v3426 = vunpack.c.l.s4 1966171168
    %v3427 = vunpack.c.0.s8 %v3426
    %v3428 = vlaneseq
    %v3429 = vshrl.u32 %v3428, 7
    %v3430 = vsub.s32 %v3427, %v3429
    %v3431 = vrot.slane %v3409, %v3430
    %v3433 = vunpack.c.l.s4 1966171168
    %v3434 = vunpack.c.0.s8 %v3433
    %v3435 = vlaneseq
    %v3436 = vshrl.u32 %v3435, 7
    %v3437 = vsub.s32 %v3434, %v3436
    %v3438 = vrot.slane %v3410, %v3437
    %v3439 = vcombine.high %v3417, %v3417
    %v3440 = vcombine.high %v3424, %v3424
    %v3441 = vcombine.high %v3431, %v3431
    %v3442 = vcombine.high %v3438, %v3438
    %v3444 = vunpack.c.l.s4 1966171168
    %v3445 = vunpack.c.0.s8 %v3444
    %v3446 = vlaneseq
    %v3447 = vshrl.u32 %v3446, 7
    %v3448 = vsub.s32 %v3445, %v3447
    %v3449 = vrot.slane %v422, %v3448
    %v3450 = vcombine.high %v3449, %v3449
    %v3452 = vunpack.c.l.s4 1966171168
    %v3453 = vunpack.c.0.s8 %v3452
    %v3454 = vlaneseq
    %v3455 = vshrl.u32 %v3454, 7
    %v3456 = vsub.s32 %v3453, %v3455
    %v3457 = vrot.slane %v3449, %v3456
    %v3459 = vunpack.c.l.s4 1966171168
    %v3460 = vunpack.c.0.s8 %v3459
    %v3461 = vlaneseq
    %v3462 = vshrl.u32 %v3461, 7
    %v3463 = vsub.s32 %v3460, %v3462
    %v3464 = vrot.slane %v3450, %v3463
    %v3465 = vlaneseq
    %v3466 = vshrl.u32 %v3465, 7
    %v3467 = vsub.s32 0, %v3466
    %v3468 = vrot.slane %v3382, %v3467
    %v3469 = vlaneseq
    %v3470 = vshrl.u32 %v3469, 7
    %v3471 = vsub.s32 0, %v3470
    %v3472 = vrot.slane %v3390, %v3471
    %v3473 = vlaneseq
    %v3474 = vshrl.u32 %v3473, 7
    %v3475 = vsub.s32 0, %v3474
    %v3476 = vrot.slane %v3392, %v3475
    %v3477 = vlaneseq
    %v3478 = vshrl.u32 %v3477, 7
    %v3479 = vsub.s32 0, %v3478
    %v3480 = vrot.slane %v3375, %v3479
    %v3481 = vlaneseq
    %v3482 = vshrl.u32 %v3481, 7
    %v3483 = vsub.s32 0, %v3482
    %v3484 = vrot.slane %v3389, %v3483
    %v3485 = vlaneseq
    %v3486 = vshrl.u32 %v3485, 7
    %v3487 = vsub.s32 0, %v3486
    %v3488 = vrot.slane %v3391, %v3487
    %v3489 = vlaneseq
    %v3490 = vshrl.u32 %v3489, 7
    %v3491 = vsub.s32 0, %v3490
    %v3492 = vrot.slane %v3393, %v3491
    %v3493 = vlaneseq
    %v3494 = vshrl.u32 %v3493, 7
    %v3495 = vsub.s32 0, %v3494
    %v3496 = vrot.slane %v3417, %v3495
    %v3497 = vlaneseq
    %v3498 = vshrl.u32 %v3497, 7
    %v3499 = vsub.s32 0, %v3498
    %v3500 = vrot.slane %v3431, %v3499
    %v3501 = vlaneseq
    %v3502 = vshrl.u32 %v3501, 7
    %v3503 = vsub.s32 0, %v3502
    %v3504 = vrot.slane %v3439, %v3503
    %v3505 = vlaneseq
    %v3506 = vshrl.u32 %v3505, 7
    %v3507 = vsub.s32 0, %v3506
    %v3508 = vrot.slane %v3441, %v3507
    %v3509 = vlaneseq
    %v3510 = vshrl.u32 %v3509, 7
    %v3511 = vsub.s32 0, %v3510
    %v3512 = vrot.slane %v3424, %v3511
    %v3513 = vlaneseq
    %v3514 = vshrl.u32 %v3513, 7
    %v3515 = vsub.s32 0, %v3514
    %v3516 = vrot.slane %v3438, %v3515
    %v3517 = vlaneseq
    %v3518 = vshrl.u32 %v3517, 7
    %v3519 = vsub.s32 0, %v3518
    %v3520 = vrot.slane %v3440, %v3519
    %v3521 = vlaneseq
    %v3522 = vshrl.u32 %v3521, 7
    %v3523 = vsub.s32 0, %v3522
    %v3524 = vrot.slane %v3442, %v3523
    %v3525 = vlaneseq
    %v3526 = vshrl.u32 %v3525, 7
    %v3527 = vsub.s32 0, %v3526
    %v3528 = vrot.slane %v3457, %v3527
    %v3529 = vlaneseq
    %v3530 = vshrl.u32 %v3529, 7
    %v3531 = vsub.s32 0, %v3530
    %v3532 = vrot.slane %v3464, %v3531
    %v3550 = vmul.f32 %v3468, %v225
    %v3551 = vmul.f32 %v3472, %v225
    %v3552 = vmul.f32 %v3476, %v225
    %v3553 = vmul.f32 %v3480, %v225
    %v3554 = vmul.f32 %v3484, %v225
    %v3555 = vmul.f32 %v3488, %v225
    %v3556 = vmul.f32 %v3492, %v225
    %v3557 = vmul.f32 %v3496, %v225
    %v3558 = vmul.f32 %v3500, %v225
    %v3559 = vmul.f32 %v3504, %v225
    %v3560 = vmul.f32 %v3508, %v225
    %v3561 = vmul.f32 %v3512, %v225
    %v3562 = vmul.f32 %v3516, %v225
    %v3563 = vmul.f32 %v3520, %v225
    %v3564 = vmul.f32 %v3524, %v225
    %v3565 = vmul.f32 %v3528, %v225
    %v3566 = vmul.f32 %v3532, %v225
    %v3567 = vpack.c.bf16 %v3550, %v3550
    %v3568 = vpack.c.bf16 %v3551, %v3551
    %v3569 = vpack.c.bf16 %v3552, %v3552
    %v3570 = vpack.c.bf16 %v3553, %v3553
    %v3571 = vpack.c.bf16 %v3554, %v3554
    %v3572 = vpack.c.bf16 %v3555, %v3555
    %v3573 = vpack.c.bf16 %v3556, %v3556
    %v3574 = vpack.c.bf16 %v3557, %v3557
    %v3575 = vpack.c.bf16 %v3558, %v3558
    %v3576 = vpack.c.bf16 %v3559, %v3559
    %v3577 = vpack.c.bf16 %v3560, %v3560
    %v3578 = vpack.c.bf16 %v3561, %v3561
    %v3579 = vpack.c.bf16 %v3562, %v3562
    %v3580 = vpack.c.bf16 %v3563, %v3563
    %v3581 = vpack.c.bf16 %v3564, %v3564
    %v3582 = vpack.c.bf16 %v3565, %v3565
    %v3583 = vpack.c.bf16 %v3566, %v3566
    %vm3584 = vsmask.f32 256
    %v3586 = vshrl.u32 %v1041, 16
    %v3588 = vrot.slane %v3586, 7
    %v3589 = vshll.u32 %v1041, 16
    %v3591 = vor.u32 %v3588, %v3589
    %v3593 = vshll.u32 %v1042, 16
    %v3595 = vsel %vm3584, %v3588, %v3593
    %v3597 = vshrl.u32 %v1043, 16
    %v3599 = vrot.slane %v3597, 7
    %v3600 = vshll.u32 %v1043, 16
    %v3602 = vor.u32 %v3599, %v3600
    %v3604 = vshll.u32 %v1044, 16
    %v3606 = vsel %vm3584, %v3599, %v3604
    %v3608 = vshrl.u32 %v1045, 16
    %v3610 = vrot.slane %v3608, 7
    %v3611 = vshll.u32 %v1045, 16
    %v3613 = vor.u32 %v3610, %v3611
    %v3615 = vshll.u32 %v1046, 16
    %v3617 = vsel %vm3584, %v3610, %v3615
    %v3619 = vshrl.u32 %v1047, 16
    %v3621 = vrot.slane %v3619, 7
    %v3622 = vshll.u32 %v1047, 16
    %v3624 = vor.u32 %v3621, %v3622
    %v3626 = vshll.u32 %v1048, 16
    %v3628 = vsel %vm3584, %v3621, %v3626
    %v3630 = vshrl.u32 %v1049, 16
    %v3632 = vrot.slane %v3630, 7
    %v3633 = vshll.u32 %v1049, 16
    %v3635 = vor.u32 %v3632, %v3633
    %v3637 = vshll.u32 %v1050, 16
    %v3639 = vsel %vm3584, %v3632, %v3637
    %v3641 = vshrl.u32 %v1051, 16
    %v3643 = vrot.slane %v3641, 7
    %v3644 = vshll.u32 %v1051, 16
    %v3646 = vor.u32 %v3643, %v3644
    %v3648 = vshll.u32 %v1052, 16
    %v3650 = vsel %vm3584, %v3643, %v3648
    %v3652 = vshrl.u32 %v1053, 16
    %v3654 = vrot.slane %v3652, 7
    %v3655 = vshll.u32 %v1053, 16
    %v3657 = vor.u32 %v3654, %v3655
    %v3659 = vshll.u32 %v1054, 16
    %v3661 = vsel %vm3584, %v3654, %v3659
    %v3663 = vshrl.u32 %v1055, 16
    %v3665 = vrot.slane %v3663, 7
    %v3666 = vshll.u32 %v1055, 16
    %v3668 = vor.u32 %v3665, %v3666
    %v3670 = vshll.u32 %v1056, 16
    %v3672 = vsel %vm3584, %v3665, %v3670
    %v3674 = vshrl.u32 %v1057, 16
    %v3676 = vrot.slane %v3674, 7
    %v3677 = vshll.u32 %v1057, 16
    %v3679 = vor.u32 %v3676, %v3677
    %v3681 = vshll.u32 %v1058, 16
    %v3683 = vsel %vm3584, %v3676, %v3681
    %v3685 = vshrl.u32 %v1059, 16
    %v3687 = vrot.slane %v3685, 7
    %v3688 = vshll.u32 %v1059, 16
    %v3690 = vor.u32 %v3687, %v3688
    %v3692 = vshll.u32 %v1060, 16
    %v3694 = vsel %vm3584, %v3687, %v3692
    %v3696 = vshrl.u32 %v1061, 16
    %v3698 = vrot.slane %v3696, 7
    %v3699 = vshll.u32 %v1061, 16
    %v3701 = vor.u32 %v3698, %v3699
    %v3703 = vshll.u32 %v1062, 16
    %v3705 = vsel %vm3584, %v3698, %v3703
    %v3707 = vshrl.u32 %v1063, 16
    %v3709 = vrot.slane %v3707, 7
    %v3710 = vshll.u32 %v1063, 16
    %v3712 = vor.u32 %v3709, %v3710
    %v3714 = vshll.u32 %v1064, 16
    %v3716 = vsel %vm3584, %v3709, %v3714
    %v3718 = vshrl.u32 %v1065, 16
    %v3720 = vrot.slane %v3718, 7
    %v3721 = vshll.u32 %v1065, 16
    %v3723 = vor.u32 %v3720, %v3721
    %v3725 = vshll.u32 %v1066, 16
    %v3727 = vsel %vm3584, %v3720, %v3725
    %v3729 = vshrl.u32 %v1067, 16
    %v3731 = vrot.slane %v3729, 7
    %v3732 = vshll.u32 %v1067, 16
    %v3734 = vor.u32 %v3731, %v3732
    %v3736 = vshll.u32 %v1068, 16
    %v3738 = vsel %vm3584, %v3731, %v3736
    %v3740 = vshrl.u32 %v1069, 16
    %v3742 = vrot.slane %v3740, 7
    %v3743 = vshll.u32 %v1069, 16
    %v3745 = vor.u32 %v3742, %v3743
    %v3747 = vshll.u32 %v1070, 16
    %v3749 = vsel %vm3584, %v3742, %v3747
    %v3751 = vshrl.u32 %v1071, 16
    %v3753 = vrot.slane %v3751, 7
    %v3754 = vshll.u32 %v1071, 16
    %v3756 = vor.u32 %v3753, %v3754
    %v3758 = vshll.u32 %v1072, 16
    %v3760 = vsel %vm3584, %v3753, %v3758
    %v3762 = vshrl.u32 %v1073, 16
    %v3764 = vrot.slane %v3762, 7
    %v3765 = vshll.u32 %v1073, 16
    %v3767 = vor.u32 %v3764, %v3765
    %v3769 = vshll.u32 %v1074, 16
    %v3771 = vsel %vm3584, %v3764, %v3769
    %v3806 = vadd.bf16 %v3353, %v3591
    %v3807 = vadd.bf16 %v3354, %v3595
    %v3808 = vadd.bf16 %v3353, %v3602
    %v3809 = vadd.bf16 %v3354, %v3606
    %v3810 = vadd.bf16 %v3353, %v3613
    %v3811 = vadd.bf16 %v3354, %v3617
    %v3812 = vadd.bf16 %v3353, %v3624
    %v3813 = vadd.bf16 %v3354, %v3628
    %v3814 = vadd.bf16 %v3353, %v3635
    %v3815 = vadd.bf16 %v3354, %v3639
    %v3816 = vadd.bf16 %v3353, %v3646
    %v3817 = vadd.bf16 %v3354, %v3650
    %v3818 = vadd.bf16 %v3353, %v3657
    %v3819 = vadd.bf16 %v3354, %v3661
    %v3820 = vadd.bf16 %v3353, %v3668
    %v3821 = vadd.bf16 %v3354, %v3672
    %v3822 = vadd.bf16 %v3353, %v3679
    %v3823 = vadd.bf16 %v3354, %v3683
    %v3824 = vadd.bf16 %v3353, %v3690
    %v3825 = vadd.bf16 %v3354, %v3694
    %v3826 = vadd.bf16 %v3353, %v3701
    %v3827 = vadd.bf16 %v3354, %v3705
    %v3828 = vadd.bf16 %v3353, %v3712
    %v3829 = vadd.bf16 %v3354, %v3716
    %v3830 = vadd.bf16 %v3353, %v3723
    %v3831 = vadd.bf16 %v3354, %v3727
    %v3832 = vadd.bf16 %v3353, %v3734
    %v3833 = vadd.bf16 %v3354, %v3738
    %v3834 = vadd.bf16 %v3353, %v3745
    %v3835 = vadd.bf16 %v3354, %v3749
    %v3836 = vadd.bf16 %v3353, %v3756
    %v3837 = vadd.bf16 %v3354, %v3760
    %v3838 = vadd.bf16 %v3353, %v3767
    %v3839 = vadd.bf16 %v3354, %v3771
    %vm3840 = vsmask.f32 7424
    %v3842 = vshrl.u32 %v3806, 16
    %v3844 = vshll.u32 %v3806, 16
    %v3846 = vrot.slane %v3844, 1
    %v3847 = vor.u32 %v3842, %v3846
    %v3849 = vshll.u32 %v3807, 16
    %v3851 = vrot.slane %v3849, 1
    %v3852 = vsel %vm3840, %v3847, %v3851
    %v3853 = vshrl.u32 %v3807, 16
    %v3856 = vsel %vm228, %v3567, 0
    %v3859 = vsel %vm228, %v3852, 0
    %v3862 = vsel %vm228, %v3853, 0
    %3864 = vmatprep.subr.bf16.mxu0 0
    %3865 = vmatpush1.bf16.xpose.msra.mxu0 %v3859
    %3866 = vmatprep.subr.bf16.mxu0 0
    %3867 = vmatpush1.bf16.xpose.msra.mxu0 %v3862
    %3868 = vmatprep.subr.bf16.mxu0 0
    %3869 = vmatpush1.bf16.xpose.msra.mxu0 0
    %3870 = vmatprep.subr.bf16.mxu0 0
    %3871 = vmatpush1.bf16.xpose.msra.mxu0 0
    %3872 = vmatprep.subr.bf16.mxu0 0
    %3873 = vmatpush1.bf16.xpose.msra.mxu0 0
    %3874 = vmatprep.subr.bf16.mxu0 0
    %3875 = vmatpush1.bf16.xpose.msra.mxu0 0
    %3876 = vmatprep.subr.bf16.mxu0 0
    %3877 = vmatpush1.bf16.xpose.msra.mxu0 0
    %3878 = vmatprep.subr.bf16.mxu0 0
    %3879 = vmatpush1.bf16.xpose.msra.mxu0 0
    %3880 = vmatprep.subr.bf16.mxu0 0
    %3881 = vmatpush1.bf16.xpose.msra.mxu0 0
    %3882 = vmatprep.subr.bf16.mxu0 0
    %3883 = vmatpush1.bf16.xpose.msra.mxu0 0
    %3884 = vmatprep.subr.bf16.mxu0 0
    %3885 = vmatpush1.bf16.xpose.msra.mxu0 0
    %3886 = vmatprep.subr.bf16.mxu0 0
    %3887 = vmatpush1.bf16.xpose.msra.mxu0 0
    %3888 = vmatprep.subr.bf16.mxu0 0
    %3889 = vmatpush1.bf16.xpose.msra.mxu0 0
    %3890 = vmatprep.subr.bf16.mxu0 0
    %3891 = vmatpush1.bf16.xpose.msra.mxu0 0
    %3892 = vmatprep.subr.bf16.mxu0 0
    %3893 = vmatpush1.bf16.xpose.msra.mxu0 0
    %3894 = vmatprep.subr.bf16.mxu0 0
    %3895 = vmatpush1.bf16.xpose.msra.mxu0 0
    %3896 = vmatprep.mubr.bf16.mxu0 0
    %3897 = vmatmul.mubr.bf16.gmra.mrb[0].mxu0 %v3856
    %v3898 = vpop.f32.mrb[0].mxu0
    %v3899 = vadd.f32 0.0, %v3898
    %v3900 = vpop.f32.mrb[0].mxu0
    %v3901 = vpop.f32.mrb[0].mxu0
    %v3902 = vpop.f32.mrb[0].mxu0
    %3903 = vdwg.mxu0
    %v3905 = vshrl.u32 %v3808, 16
    %v3907 = vshll.u32 %v3808, 16
    %v3909 = vrot.slane %v3907, 1
    %v3910 = vor.u32 %v3905, %v3909
    %v3912 = vshll.u32 %v3809, 16
    %v3914 = vrot.slane %v3912, 1
    %v3915 = vsel %vm3840, %v3910, %v3914
    %v3916 = vshrl.u32 %v3809, 16
    %v3919 = vsel %vm228, %v3568, 0
    %v3922 = vsel %vm228, %v3915, 0
    %v3925 = vsel %vm228, %v3916, 0
    %3927 = vmatprep.subr.bf16.mxu0 0
    %3928 = vmatpush1.bf16.xpose.msra.mxu0 %v3922
    %3929 = vmatprep.subr.bf16.mxu0 0
    %3930 = vmatpush1.bf16.xpose.msra.mxu0 %v3925
    %3931 = vmatprep.subr.bf16.mxu0 0
    %3932 = vmatpush1.bf16.xpose.msra.mxu0 0
    %3933 = vmatprep.subr.bf16.mxu0 0
    %3934 = vmatpush1.bf16.xpose.msra.mxu0 0
    %3935 = vmatprep.subr.bf16.mxu0 0
    %3936 = vmatpush1.bf16.xpose.msra.mxu0 0
    %3937 = vmatprep.subr.bf16.mxu0 0
    %3938 = vmatpush1.bf16.xpose.msra.mxu0 0
    %3939 = vmatprep.subr.bf16.mxu0 0
    %3940 = vmatpush1.bf16.xpose.msra.mxu0 0
    %3941 = vmatprep.subr.bf16.mxu0 0
    %3942 = vmatpush1.bf16.xpose.msra.mxu0 0
    %3943 = vmatprep.subr.bf16.mxu0 0
    %3944 = vmatpush1.bf16.xpose.msra.mxu0 0
    %3945 = vmatprep.subr.bf16.mxu0 0
    %3946 = vmatpush1.bf16.xpose.msra.mxu0 0
    %3947 = vmatprep.subr.bf16.mxu0 0
    %3948 = vmatpush1.bf16.xpose.msra.mxu0 0
    %3949 = vmatprep.subr.bf16.mxu0 0
    %3950 = vmatpush1.bf16.xpose.msra.mxu0 0
    %3951 = vmatprep.subr.bf16.mxu0 0
    %3952 = vmatpush1.bf16.xpose.msra.mxu0 0
    %3953 = vmatprep.subr.bf16.mxu0 0
    %3954 = vmatpush1.bf16.xpose.msra.mxu0 0
    %3955 = vmatprep.subr.bf16.mxu0 0
    %3956 = vmatpush1.bf16.xpose.msra.mxu0 0
    %3957 = vmatprep.subr.bf16.mxu0 0
    %3958 = vmatpush1.bf16.xpose.msra.mxu0 0
    %3959 = vmatprep.mubr.bf16.mxu0 0
    %3960 = vmatmul.mubr.bf16.gmra.mrb[0].mxu0 %v3919
    %v3961 = vpop.f32.mrb[0].mxu0
    %v3962 = vadd.f32 0.0, %v3961
    %v3963 = vpop.f32.mrb[0].mxu0
    %v3964 = vpop.f32.mrb[0].mxu0
    %v3965 = vpop.f32.mrb[0].mxu0
    %3966 = vdwg.mxu0
    %v3968 = vshrl.u32 %v3810, 16
    %v3970 = vshll.u32 %v3810, 16
    %v3972 = vrot.slane %v3970, 1
    %v3973 = vor.u32 %v3968, %v3972
    %v3975 = vshll.u32 %v3811, 16
    %v3977 = vrot.slane %v3975, 1
    %v3978 = vsel %vm3840, %v3973, %v3977
    %v3979 = vshrl.u32 %v3811, 16
    %v3982 = vsel %vm228, %v3569, 0
    %v3985 = vsel %vm228, %v3978, 0
    %v3988 = vsel %vm228, %v3979, 0
    %3990 = vmatprep.subr.bf16.mxu0 0
    %3991 = vmatpush1.bf16.xpose.msra.mxu0 %v3985
    %3992 = vmatprep.subr.bf16.mxu0 0
    %3993 = vmatpush1.bf16.xpose.msra.mxu0 %v3988
    %3994 = vmatprep.subr.bf16.mxu0 0
    %3995 = vmatpush1.bf16.xpose.msra.mxu0 0
    %3996 = vmatprep.subr.bf16.mxu0 0
    %3997 = vmatpush1.bf16.xpose.msra.mxu0 0
    %3998 = vmatprep.subr.bf16.mxu0 0
    %3999 = vmatpush1.bf16.xpose.msra.mxu0 0
    %4000 = vmatprep.subr.bf16.mxu0 0
    %4001 = vmatpush1.bf16.xpose.msra.mxu0 0
    %4002 = vmatprep.subr.bf16.mxu0 0
    %4003 = vmatpush1.bf16.xpose.msra.mxu0 0
    %4004 = vmatprep.subr.bf16.mxu0 0
    %4005 = vmatpush1.bf16.xpose.msra.mxu0 0
    %4006 = vmatprep.subr.bf16.mxu0 0
    %4007 = vmatpush1.bf16.xpose.msra.mxu0 0
    %4008 = vmatprep.subr.bf16.mxu0 0
    %4009 = vmatpush1.bf16.xpose.msra.mxu0 0
    %4010 = vmatprep.subr.bf16.mxu0 0
    %4011 = vmatpush1.bf16.xpose.msra.mxu0 0
    %4012 = vmatprep.subr.bf16.mxu0 0
    %4013 = vmatpush1.bf16.xpose.msra.mxu0 0
    %4014 = vmatprep.subr.bf16.mxu0 0
    %4015 = vmatpush1.bf16.xpose.msra.mxu0 0
    %4016 = vmatprep.subr.bf16.mxu0 0
    %4017 = vmatpush1.bf16.xpose.msra.mxu0 0
    %4018 = vmatprep.subr.bf16.mxu0 0
    %4019 = vmatpush1.bf16.xpose.msra.mxu0 0
    %4020 = vmatprep.subr.bf16.mxu0 0
    %4021 = vmatpush1.bf16.xpose.msra.mxu0 0
    %4022 = vmatprep.mubr.bf16.mxu0 0
    %4023 = vmatmul.mubr.bf16.gmra.mrb[0].mxu0 %v3982
    %v4024 = vpop.f32.mrb[0].mxu0
    %v4025 = vadd.f32 0.0, %v4024
    %v4026 = vpop.f32.mrb[0].mxu0
    %v4027 = vpop.f32.mrb[0].mxu0
    %v4028 = vpop.f32.mrb[0].mxu0
    %4029 = vdwg.mxu0
    %v4031 = vshrl.u32 %v3812, 16
    %v4033 = vshll.u32 %v3812, 16
    %v4035 = vrot.slane %v4033, 1
    %v4036 = vor.u32 %v4031, %v4035
    %v4038 = vshll.u32 %v3813, 16
    %v4040 = vrot.slane %v4038, 1
    %v4041 = vsel %vm3840, %v4036, %v4040
    %v4042 = vshrl.u32 %v3813, 16
    %v4045 = vsel %vm228, %v3570, 0
    %v4048 = vsel %vm228, %v4041, 0
    %v4051 = vsel %vm228, %v4042, 0
    %4053 = vmatprep.subr.bf16.mxu0 0
    %4054 = vmatpush1.bf16.xpose.msra.mxu0 %v4048
    %4055 = vmatprep.subr.bf16.mxu0 0
    %4056 = vmatpush1.bf16.xpose.msra.mxu0 %v4051
    %4057 = vmatprep.subr.bf16.mxu0 0
    %4058 = vmatpush1.bf16.xpose.msra.mxu0 0
    %4059 = vmatprep.subr.bf16.mxu0 0
    %4060 = vmatpush1.bf16.xpose.msra.mxu0 0
    %4061 = vmatprep.subr.bf16.mxu0 0
    %4062 = vmatpush1.bf16.xpose.msra.mxu0 0
    %4063 = vmatprep.subr.bf16.mxu0 0
    %4064 = vmatpush1.bf16.xpose.msra.mxu0 0
    %4065 = vmatprep.subr.bf16.mxu0 0
    %4066 = vmatpush1.bf16.xpose.msra.mxu0 0
    %4067 = vmatprep.subr.bf16.mxu0 0
    %4068 = vmatpush1.bf16.xpose.msra.mxu0 0
    %4069 = vmatprep.subr.bf16.mxu0 0
    %4070 = vmatpush1.bf16.xpose.msra.mxu0 0
    %4071 = vmatprep.subr.bf16.mxu0 0
    %4072 = vmatpush1.bf16.xpose.msra.mxu0 0
    %4073 = vmatprep.subr.bf16.mxu0 0
    %4074 = vmatpush1.bf16.xpose.msra.mxu0 0
    %4075 = vmatprep.subr.bf16.mxu0 0
    %4076 = vmatpush1.bf16.xpose.msra.mxu0 0
    %4077 = vmatprep.subr.bf16.mxu0 0
    %4078 = vmatpush1.bf16.xpose.msra.mxu0 0
    %4079 = vmatprep.subr.bf16.mxu0 0
    %4080 = vmatpush1.bf16.xpose.msra.mxu0 0
    %4081 = vmatprep.subr.bf16.mxu0 0
    %4082 = vmatpush1.bf16.xpose.msra.mxu0 0
    %4083 = vmatprep.subr.bf16.mxu0 0
    %4084 = vmatpush1.bf16.xpose.msra.mxu0 0
    %4085 = vmatprep.mubr.bf16.mxu0 0
    %4086 = vmatmul.mubr.bf16.gmra.mrb[0].mxu0 %v4045
    %v4087 = vpop.f32.mrb[0].mxu0
    %v4088 = vadd.f32 0.0, %v4087
    %v4089 = vpop.f32.mrb[0].mxu0
    %v4090 = vpop.f32.mrb[0].mxu0
    %v4091 = vpop.f32.mrb[0].mxu0
    %4092 = vdwg.mxu0
    %v4094 = vshrl.u32 %v3814, 16
    %v4096 = vshll.u32 %v3814, 16
    %v4098 = vrot.slane %v4096, 1
    %v4099 = vor.u32 %v4094, %v4098
    %v4101 = vshll.u32 %v3815, 16
    %v4103 = vrot.slane %v4101, 1
    %v4104 = vsel %vm3840, %v4099, %v4103
    %v4105 = vshrl.u32 %v3815, 16
    %v4108 = vsel %vm228, %v3571, 0
    %v4111 = vsel %vm228, %v4104, 0
    %v4114 = vsel %vm228, %v4105, 0
    %4116 = vmatprep.subr.bf16.mxu0 0
    %4117 = vmatpush1.bf16.xpose.msra.mxu0 %v4111
    %4118 = vmatprep.subr.bf16.mxu0 0
    %4119 = vmatpush1.bf16.xpose.msra.mxu0 %v4114
    %4120 = vmatprep.subr.bf16.mxu0 0
    %4121 = vmatpush1.bf16.xpose.msra.mxu0 0
    %4122 = vmatprep.subr.bf16.mxu0 0
    %4123 = vmatpush1.bf16.xpose.msra.mxu0 0
    %4124 = vmatprep.subr.bf16.mxu0 0
    %4125 = vmatpush1.bf16.xpose.msra.mxu0 0
    %4126 = vmatprep.subr.bf16.mxu0 0
    %4127 = vmatpush1.bf16.xpose.msra.mxu0 0
    %4128 = vmatprep.subr.bf16.mxu0 0
    %4129 = vmatpush1.bf16.xpose.msra.mxu0 0
    %4130 = vmatprep.subr.bf16.mxu0 0
    %4131 = vmatpush1.bf16.xpose.msra.mxu0 0
    %4132 = vmatprep.subr.bf16.mxu0 0
    %4133 = vmatpush1.bf16.xpose.msra.mxu0 0
    %4134 = vmatprep.subr.bf16.mxu0 0
    %4135 = vmatpush1.bf16.xpose.msra.mxu0 0
    %4136 = vmatprep.subr.bf16.mxu0 0
    %4137 = vmatpush1.bf16.xpose.msra.mxu0 0
    %4138 = vmatprep.subr.bf16.mxu0 0
    %4139 = vmatpush1.bf16.xpose.msra.mxu0 0
    %4140 = vmatprep.subr.bf16.mxu0 0
    %4141 = vmatpush1.bf16.xpose.msra.mxu0 0
    %4142 = vmatprep.subr.bf16.mxu0 0
    %4143 = vmatpush1.bf16.xpose.msra.mxu0 0
    %4144 = vmatprep.subr.bf16.mxu0 0
    %4145 = vmatpush1.bf16.xpose.msra.mxu0 0
    %4146 = vmatprep.subr.bf16.mxu0 0
    %4147 = vmatpush1.bf16.xpose.msra.mxu0 0
    %4148 = vmatprep.mubr.bf16.mxu0 0
    %4149 = vmatmul.mubr.bf16.gmra.mrb[0].mxu0 %v4108
    %v4150 = vpop.f32.mrb[0].mxu0
    %v4151 = vadd.f32 0.0, %v4150
    %v4152 = vpop.f32.mrb[0].mxu0
    %v4153 = vpop.f32.mrb[0].mxu0
    %v4154 = vpop.f32.mrb[0].mxu0
    %4155 = vdwg.mxu0
    %v4157 = vshrl.u32 %v3816, 16
    %v4159 = vshll.u32 %v3816, 16
    %v4161 = vrot.slane %v4159, 1
    %v4162 = vor.u32 %v4157, %v4161
    %v4164 = vshll.u32 %v3817, 16
    %v4166 = vrot.slane %v4164, 1
    %v4167 = vsel %vm3840, %v4162, %v4166
    %v4168 = vshrl.u32 %v3817, 16
    %v4171 = vsel %vm228, %v3572, 0
    %v4174 = vsel %vm228, %v4167, 0
    %v4177 = vsel %vm228, %v4168, 0
    %4179 = vmatprep.subr.bf16.mxu0 0
    %4180 = vmatpush1.bf16.xpose.msra.mxu0 %v4174
    %4181 = vmatprep.subr.bf16.mxu0 0
    %4182 = vmatpush1.bf16.xpose.msra.mxu0 %v4177
    %4183 = vmatprep.subr.bf16.mxu0 0
    %4184 = vmatpush1.bf16.xpose.msra.mxu0 0
    %4185 = vmatprep.subr.bf16.mxu0 0
    %4186 = vmatpush1.bf16.xpose.msra.mxu0 0
    %4187 = vmatprep.subr.bf16.mxu0 0
    %4188 = vmatpush1.bf16.xpose.msra.mxu0 0
    %4189 = vmatprep.subr.bf16.mxu0 0
    %4190 = vmatpush1.bf16.xpose.msra.mxu0 0
    %4191 = vmatprep.subr.bf16.mxu0 0
    %4192 = vmatpush1.bf16.xpose.msra.mxu0 0
    %4193 = vmatprep.subr.bf16.mxu0 0
    %4194 = vmatpush1.bf16.xpose.msra.mxu0 0
    %4195 = vmatprep.subr.bf16.mxu0 0
    %4196 = vmatpush1.bf16.xpose.msra.mxu0 0
    %4197 = vmatprep.subr.bf16.mxu0 0
    %4198 = vmatpush1.bf16.xpose.msra.mxu0 0
    %4199 = vmatprep.subr.bf16.mxu0 0
    %4200 = vmatpush1.bf16.xpose.msra.mxu0 0
    %4201 = vmatprep.subr.bf16.mxu0 0
    %4202 = vmatpush1.bf16.xpose.msra.mxu0 0
    %4203 = vmatprep.subr.bf16.mxu0 0
    %4204 = vmatpush1.bf16.xpose.msra.mxu0 0
    %4205 = vmatprep.subr.bf16.mxu0 0
    %4206 = vmatpush1.bf16.xpose.msra.mxu0 0
    %4207 = vmatprep.subr.bf16.mxu0 0
    %4208 = vmatpush1.bf16.xpose.msra.mxu0 0
    %4209 = vmatprep.subr.bf16.mxu0 0
    %4210 = vmatpush1.bf16.xpose.msra.mxu0 0
    %4211 = vmatprep.mubr.bf16.mxu0 0
    %4212 = vmatmul.mubr.bf16.gmra.mrb[0].mxu0 %v4171
    %v4213 = vpop.f32.mrb[0].mxu0
    %v4214 = vadd.f32 0.0, %v4213
    %v4215 = vpop.f32.mrb[0].mxu0
    %v4216 = vpop.f32.mrb[0].mxu0
    %v4217 = vpop.f32.mrb[0].mxu0
    %4218 = vdwg.mxu0
    %v4220 = vshrl.u32 %v3818, 16
    %v4222 = vshll.u32 %v3818, 16
    %v4224 = vrot.slane %v4222, 1
    %v4225 = vor.u32 %v4220, %v4224
    %v4227 = vshll.u32 %v3819, 16
    %v4229 = vrot.slane %v4227, 1
    %v4230 = vsel %vm3840, %v4225, %v4229
    %v4231 = vshrl.u32 %v3819, 16
    %v4234 = vsel %vm228, %v3573, 0
    %v4237 = vsel %vm228, %v4230, 0
    %v4240 = vsel %vm228, %v4231, 0
    %4242 = vmatprep.subr.bf16.mxu0 0
    %4243 = vmatpush1.bf16.xpose.msra.mxu0 %v4237
    %4244 = vmatprep.subr.bf16.mxu0 0
    %4245 = vmatpush1.bf16.xpose.msra.mxu0 %v4240
    %4246 = vmatprep.subr.bf16.mxu0 0
    %4247 = vmatpush1.bf16.xpose.msra.mxu0 0
    %4248 = vmatprep.subr.bf16.mxu0 0
    %4249 = vmatpush1.bf16.xpose.msra.mxu0 0
    %4250 = vmatprep.subr.bf16.mxu0 0
    %4251 = vmatpush1.bf16.xpose.msra.mxu0 0
    %4252 = vmatprep.subr.bf16.mxu0 0
    %4253 = vmatpush1.bf16.xpose.msra.mxu0 0
    %4254 = vmatprep.subr.bf16.mxu0 0
    %4255 = vmatpush1.bf16.xpose.msra.mxu0 0
    %4256 = vmatprep.subr.bf16.mxu0 0
    %4257 = vmatpush1.bf16.xpose.msra.mxu0 0
    %4258 = vmatprep.subr.bf16.mxu0 0
    %4259 = vmatpush1.bf16.xpose.msra.mxu0 0
    %4260 = vmatprep.subr.bf16.mxu0 0
    %4261 = vmatpush1.bf16.xpose.msra.mxu0 0
    %4262 = vmatprep.subr.bf16.mxu0 0
    %4263 = vmatpush1.bf16.xpose.msra.mxu0 0
    %4264 = vmatprep.subr.bf16.mxu0 0
    %4265 = vmatpush1.bf16.xpose.msra.mxu0 0
    %4266 = vmatprep.subr.bf16.mxu0 0
    %4267 = vmatpush1.bf16.xpose.msra.mxu0 0
    %4268 = vmatprep.subr.bf16.mxu0 0
    %4269 = vmatpush1.bf16.xpose.msra.mxu0 0
    %4270 = vmatprep.subr.bf16.mxu0 0
    %4271 = vmatpush1.bf16.xpose.msra.mxu0 0
    %4272 = vmatprep.subr.bf16.mxu0 0
    %4273 = vmatpush1.bf16.xpose.msra.mxu0 0
    %4274 = vmatprep.mubr.bf16.mxu0 0
    %4275 = vmatmul.mubr.bf16.gmra.mrb[0].mxu0 %v4234
    %v4276 = vpop.f32.mrb[0].mxu0
    %v4277 = vadd.f32 0.0, %v4276
    %v4278 = vpop.f32.mrb[0].mxu0
    %v4279 = vpop.f32.mrb[0].mxu0
    %v4280 = vpop.f32.mrb[0].mxu0
    %4281 = vdwg.mxu0
    %v4283 = vshrl.u32 %v3820, 16
    %v4285 = vshll.u32 %v3820, 16
    %v4287 = vrot.slane %v4285, 1
    %v4288 = vor.u32 %v4283, %v4287
    %v4290 = vshll.u32 %v3821, 16
    %v4292 = vrot.slane %v4290, 1
    %v4293 = vsel %vm3840, %v4288, %v4292
    %v4294 = vshrl.u32 %v3821, 16
    %v4297 = vsel %vm228, %v3574, 0
    %v4300 = vsel %vm228, %v4293, 0
    %v4303 = vsel %vm228, %v4294, 0
    %4305 = vmatprep.subr.bf16.mxu0 0
    %4306 = vmatpush1.bf16.xpose.msra.mxu0 %v4300
    %4307 = vmatprep.subr.bf16.mxu0 0
    %4308 = vmatpush1.bf16.xpose.msra.mxu0 %v4303
    %4309 = vmatprep.subr.bf16.mxu0 0
    %4310 = vmatpush1.bf16.xpose.msra.mxu0 0
    %4311 = vmatprep.subr.bf16.mxu0 0
    %4312 = vmatpush1.bf16.xpose.msra.mxu0 0
    %4313 = vmatprep.subr.bf16.mxu0 0
    %4314 = vmatpush1.bf16.xpose.msra.mxu0 0
    %4315 = vmatprep.subr.bf16.mxu0 0
    %4316 = vmatpush1.bf16.xpose.msra.mxu0 0
    %4317 = vmatprep.subr.bf16.mxu0 0
    %4318 = vmatpush1.bf16.xpose.msra.mxu0 0
    %4319 = vmatprep.subr.bf16.mxu0 0
    %4320 = vmatpush1.bf16.xpose.msra.mxu0 0
    %4321 = vmatprep.subr.bf16.mxu0 0
    %4322 = vmatpush1.bf16.xpose.msra.mxu0 0
    %4323 = vmatprep.subr.bf16.mxu0 0
    %4324 = vmatpush1.bf16.xpose.msra.mxu0 0
    %4325 = vmatprep.subr.bf16.mxu0 0
    %4326 = vmatpush1.bf16.xpose.msra.mxu0 0
    %4327 = vmatprep.subr.bf16.mxu0 0
    %4328 = vmatpush1.bf16.xpose.msra.mxu0 0
    %4329 = vmatprep.subr.bf16.mxu0 0
    %4330 = vmatpush1.bf16.xpose.msra.mxu0 0
    %4331 = vmatprep.subr.bf16.mxu0 0
    %4332 = vmatpush1.bf16.xpose.msra.mxu0 0
    %4333 = vmatprep.subr.bf16.mxu0 0
    %4334 = vmatpush1.bf16.xpose.msra.mxu0 0
    %4335 = vmatprep.subr.bf16.mxu0 0
    %4336 = vmatpush1.bf16.xpose.msra.mxu0 0
    %4337 = vmatprep.mubr.bf16.mxu0 0
    %4338 = vmatmul.mubr.bf16.gmra.mrb[0].mxu0 %v4297
    %v4339 = vpop.f32.mrb[0].mxu0
    %v4340 = vadd.f32 0.0, %v4339
    %v4341 = vpop.f32.mrb[0].mxu0
    %v4342 = vpop.f32.mrb[0].mxu0
    %v4343 = vpop.f32.mrb[0].mxu0
    %4344 = vdwg.mxu0
    %v4346 = vshrl.u32 %v3822, 16
    %v4348 = vshll.u32 %v3822, 16
    %v4350 = vrot.slane %v4348, 1
    %v4351 = vor.u32 %v4346, %v4350
    %v4353 = vshll.u32 %v3823, 16
    %v4355 = vrot.slane %v4353, 1
    %v4356 = vsel %vm3840, %v4351, %v4355
    %v4357 = vshrl.u32 %v3823, 16
    %v4360 = vsel %vm228, %v3575, 0
    %v4363 = vsel %vm228, %v4356, 0
    %v4366 = vsel %vm228, %v4357, 0
    %4368 = vmatprep.subr.bf16.mxu0 0
    %4369 = vmatpush1.bf16.xpose.msra.mxu0 %v4363
    %4370 = vmatprep.subr.bf16.mxu0 0
    %4371 = vmatpush1.bf16.xpose.msra.mxu0 %v4366
    %4372 = vmatprep.subr.bf16.mxu0 0
    %4373 = vmatpush1.bf16.xpose.msra.mxu0 0
    %4374 = vmatprep.subr.bf16.mxu0 0
    %4375 = vmatpush1.bf16.xpose.msra.mxu0 0
    %4376 = vmatprep.subr.bf16.mxu0 0
    %4377 = vmatpush1.bf16.xpose.msra.mxu0 0
    %4378 = vmatprep.subr.bf16.mxu0 0
    %4379 = vmatpush1.bf16.xpose.msra.mxu0 0
    %4380 = vmatprep.subr.bf16.mxu0 0
    %4381 = vmatpush1.bf16.xpose.msra.mxu0 0
    %4382 = vmatprep.subr.bf16.mxu0 0
    %4383 = vmatpush1.bf16.xpose.msra.mxu0 0
    %4384 = vmatprep.subr.bf16.mxu0 0
    %4385 = vmatpush1.bf16.xpose.msra.mxu0 0
    %4386 = vmatprep.subr.bf16.mxu0 0
    %4387 = vmatpush1.bf16.xpose.msra.mxu0 0
    %4388 = vmatprep.subr.bf16.mxu0 0
    %4389 = vmatpush1.bf16.xpose.msra.mxu0 0
    %4390 = vmatprep.subr.bf16.mxu0 0
    %4391 = vmatpush1.bf16.xpose.msra.mxu0 0
    %4392 = vmatprep.subr.bf16.mxu0 0
    %4393 = vmatpush1.bf16.xpose.msra.mxu0 0
    %4394 = vmatprep.subr.bf16.mxu0 0
    %4395 = vmatpush1.bf16.xpose.msra.mxu0 0
    %4396 = vmatprep.subr.bf16.mxu0 0
    %4397 = vmatpush1.bf16.xpose.msra.mxu0 0
    %4398 = vmatprep.subr.bf16.mxu0 0
    %4399 = vmatpush1.bf16.xpose.msra.mxu0 0
    %4400 = vmatprep.mubr.bf16.mxu0 0
    %4401 = vmatmul.mubr.bf16.gmra.mrb[0].mxu0 %v4360
    %v4402 = vpop.f32.mrb[0].mxu0
    %v4403 = vadd.f32 0.0, %v4402
    %v4404 = vpop.f32.mrb[0].mxu0
    %v4405 = vpop.f32.mrb[0].mxu0
    %v4406 = vpop.f32.mrb[0].mxu0
    %4407 = vdwg.mxu0
    %v4409 = vshrl.u32 %v3824, 16
    %v4411 = vshll.u32 %v3824, 16
    %v4413 = vrot.slane %v4411, 1
    %v4414 = vor.u32 %v4409, %v4413
    %v4416 = vshll.u32 %v3825, 16
    %v4418 = vrot.slane %v4416, 1
    %v4419 = vsel %vm3840, %v4414, %v4418
    %v4420 = vshrl.u32 %v3825, 16
    %v4423 = vsel %vm228, %v3576, 0
    %v4426 = vsel %vm228, %v4419, 0
    %v4429 = vsel %vm228, %v4420, 0
    %4431 = vmatprep.subr.bf16.mxu0 0
    %4432 = vmatpush1.bf16.xpose.msra.mxu0 %v4426
    %4433 = vmatprep.subr.bf16.mxu0 0
    %4434 = vmatpush1.bf16.xpose.msra.mxu0 %v4429
    %4435 = vmatprep.subr.bf16.mxu0 0
    %4436 = vmatpush1.bf16.xpose.msra.mxu0 0
    %4437 = vmatprep.subr.bf16.mxu0 0
    %4438 = vmatpush1.bf16.xpose.msra.mxu0 0
    %4439 = vmatprep.subr.bf16.mxu0 0
    %4440 = vmatpush1.bf16.xpose.msra.mxu0 0
    %4441 = vmatprep.subr.bf16.mxu0 0
    %4442 = vmatpush1.bf16.xpose.msra.mxu0 0
    %4443 = vmatprep.subr.bf16.mxu0 0
    %4444 = vmatpush1.bf16.xpose.msra.mxu0 0
    %4445 = vmatprep.subr.bf16.mxu0 0
    %4446 = vmatpush1.bf16.xpose.msra.mxu0 0
    %4447 = vmatprep.subr.bf16.mxu0 0
    %4448 = vmatpush1.bf16.xpose.msra.mxu0 0
    %4449 = vmatprep.subr.bf16.mxu0 0
    %4450 = vmatpush1.bf16.xpose.msra.mxu0 0
    %4451 = vmatprep.subr.bf16.mxu0 0
    %4452 = vmatpush1.bf16.xpose.msra.mxu0 0
    %4453 = vmatprep.subr.bf16.mxu0 0
    %4454 = vmatpush1.bf16.xpose.msra.mxu0 0
    %4455 = vmatprep.subr.bf16.mxu0 0
    %4456 = vmatpush1.bf16.xpose.msra.mxu0 0
    %4457 = vmatprep.subr.bf16.mxu0 0
    %4458 = vmatpush1.bf16.xpose.msra.mxu0 0
    %4459 = vmatprep.subr.bf16.mxu0 0
    %4460 = vmatpush1.bf16.xpose.msra.mxu0 0
    %4461 = vmatprep.subr.bf16.mxu0 0
    %4462 = vmatpush1.bf16.xpose.msra.mxu0 0
    %4463 = vmatprep.mubr.bf16.mxu0 0
    %4464 = vmatmul.mubr.bf16.gmra.mrb[0].mxu0 %v4423
    %v4465 = vpop.f32.mrb[0].mxu0
    %v4466 = vadd.f32 0.0, %v4465
    %v4467 = vpop.f32.mrb[0].mxu0
    %v4468 = vpop.f32.mrb[0].mxu0
    %v4469 = vpop.f32.mrb[0].mxu0
    %4470 = vdwg.mxu0
    %v4472 = vshrl.u32 %v3826, 16
    %v4474 = vshll.u32 %v3826, 16
    %v4476 = vrot.slane %v4474, 1
    %v4477 = vor.u32 %v4472, %v4476
    %v4479 = vshll.u32 %v3827, 16
    %v4481 = vrot.slane %v4479, 1
    %v4482 = vsel %vm3840, %v4477, %v4481
    %v4483 = vshrl.u32 %v3827, 16
    %v4486 = vsel %vm228, %v3577, 0
    %v4489 = vsel %vm228, %v4482, 0
    %v4492 = vsel %vm228, %v4483, 0
    %4494 = vmatprep.subr.bf16.mxu0 0
    %4495 = vmatpush1.bf16.xpose.msra.mxu0 %v4489
    %4496 = vmatprep.subr.bf16.mxu0 0
    %4497 = vmatpush1.bf16.xpose.msra.mxu0 %v4492
    %4498 = vmatprep.subr.bf16.mxu0 0
    %4499 = vmatpush1.bf16.xpose.msra.mxu0 0
    %4500 = vmatprep.subr.bf16.mxu0 0
    %4501 = vmatpush1.bf16.xpose.msra.mxu0 0
    %4502 = vmatprep.subr.bf16.mxu0 0
    %4503 = vmatpush1.bf16.xpose.msra.mxu0 0
    %4504 = vmatprep.subr.bf16.mxu0 0
    %4505 = vmatpush1.bf16.xpose.msra.mxu0 0
    %4506 = vmatprep.subr.bf16.mxu0 0
    %4507 = vmatpush1.bf16.xpose.msra.mxu0 0
    %4508 = vmatprep.subr.bf16.mxu0 0
    %4509 = vmatpush1.bf16.xpose.msra.mxu0 0
    %4510 = vmatprep.subr.bf16.mxu0 0
    %4511 = vmatpush1.bf16.xpose.msra.mxu0 0
    %4512 = vmatprep.subr.bf16.mxu0 0
    %4513 = vmatpush1.bf16.xpose.msra.mxu0 0
    %4514 = vmatprep.subr.bf16.mxu0 0
    %4515 = vmatpush1.bf16.xpose.msra.mxu0 0
    %4516 = vmatprep.subr.bf16.mxu0 0
    %4517 = vmatpush1.bf16.xpose.msra.mxu0 0
    %4518 = vmatprep.subr.bf16.mxu0 0
    %4519 = vmatpush1.bf16.xpose.msra.mxu0 0
    %4520 = vmatprep.subr.bf16.mxu0 0
    %4521 = vmatpush1.bf16.xpose.msra.mxu0 0
    %4522 = vmatprep.subr.bf16.mxu0 0
    %4523 = vmatpush1.bf16.xpose.msra.mxu0 0
    %4524 = vmatprep.subr.bf16.mxu0 0
    %4525 = vmatpush1.bf16.xpose.msra.mxu0 0
    %4526 = vmatprep.mubr.bf16.mxu0 0
    %4527 = vmatmul.mubr.bf16.gmra.mrb[0].mxu0 %v4486
    %v4528 = vpop.f32.mrb[0].mxu0
    %v4529 = vadd.f32 0.0, %v4528
    %v4530 = vpop.f32.mrb[0].mxu0
    %v4531 = vpop.f32.mrb[0].mxu0
    %v4532 = vpop.f32.mrb[0].mxu0
    %4533 = vdwg.mxu0
    %v4535 = vshrl.u32 %v3828, 16
    %v4537 = vshll.u32 %v3828, 16
    %v4539 = vrot.slane %v4537, 1
    %v4540 = vor.u32 %v4535, %v4539
    %v4542 = vshll.u32 %v3829, 16
    %v4544 = vrot.slane %v4542, 1
    %v4545 = vsel %vm3840, %v4540, %v4544
    %v4546 = vshrl.u32 %v3829, 16
    %v4549 = vsel %vm228, %v3578, 0
    %v4552 = vsel %vm228, %v4545, 0
    %v4555 = vsel %vm228, %v4546, 0
    %4557 = vmatprep.subr.bf16.mxu0 0
    %4558 = vmatpush1.bf16.xpose.msra.mxu0 %v4552
    %4559 = vmatprep.subr.bf16.mxu0 0
    %4560 = vmatpush1.bf16.xpose.msra.mxu0 %v4555
    %4561 = vmatprep.subr.bf16.mxu0 0
    %4562 = vmatpush1.bf16.xpose.msra.mxu0 0
    %4563 = vmatprep.subr.bf16.mxu0 0
    %4564 = vmatpush1.bf16.xpose.msra.mxu0 0
    %4565 = vmatprep.subr.bf16.mxu0 0
    %4566 = vmatpush1.bf16.xpose.msra.mxu0 0
    %4567 = vmatprep.subr.bf16.mxu0 0
    %4568 = vmatpush1.bf16.xpose.msra.mxu0 0
    %4569 = vmatprep.subr.bf16.mxu0 0
    %4570 = vmatpush1.bf16.xpose.msra.mxu0 0
    %4571 = vmatprep.subr.bf16.mxu0 0
    %4572 = vmatpush1.bf16.xpose.msra.mxu0 0
    %4573 = vmatprep.subr.bf16.mxu0 0
    %4574 = vmatpush1.bf16.xpose.msra.mxu0 0
    %4575 = vmatprep.subr.bf16.mxu0 0
    %4576 = vmatpush1.bf16.xpose.msra.mxu0 0
    %4577 = vmatprep.subr.bf16.mxu0 0
    %4578 = vmatpush1.bf16.xpose.msra.mxu0 0
    %4579 = vmatprep.subr.bf16.mxu0 0
    %4580 = vmatpush1.bf16.xpose.msra.mxu0 0
    %4581 = vmatprep.subr.bf16.mxu0 0
    %4582 = vmatpush1.bf16.xpose.msra.mxu0 0
    %4583 = vmatprep.subr.bf16.mxu0 0
    %4584 = vmatpush1.bf16.xpose.msra.mxu0 0
    %4585 = vmatprep.subr.bf16.mxu0 0
    %4586 = vmatpush1.bf16.xpose.msra.mxu0 0
    %4587 = vmatprep.subr.bf16.mxu0 0
    %4588 = vmatpush1.bf16.xpose.msra.mxu0 0
    %4589 = vmatprep.mubr.bf16.mxu0 0
    %4590 = vmatmul.mubr.bf16.gmra.mrb[0].mxu0 %v4549
    %v4591 = vpop.f32.mrb[0].mxu0
    %v4592 = vadd.f32 0.0, %v4591
    %v4593 = vpop.f32.mrb[0].mxu0
    %v4594 = vpop.f32.mrb[0].mxu0
    %v4595 = vpop.f32.mrb[0].mxu0
    %4596 = vdwg.mxu0
    %v4598 = vshrl.u32 %v3830, 16
    %v4600 = vshll.u32 %v3830, 16
    %v4602 = vrot.slane %v4600, 1
    %v4603 = vor.u32 %v4598, %v4602
    %v4605 = vshll.u32 %v3831, 16
    %v4607 = vrot.slane %v4605, 1
    %v4608 = vsel %vm3840, %v4603, %v4607
    %v4609 = vshrl.u32 %v3831, 16
    %v4612 = vsel %vm228, %v3579, 0
    %v4615 = vsel %vm228, %v4608, 0
    %v4618 = vsel %vm228, %v4609, 0
    %4620 = vmatprep.subr.bf16.mxu0 0
    %4621 = vmatpush1.bf16.xpose.msra.mxu0 %v4615
    %4622 = vmatprep.subr.bf16.mxu0 0
    %4623 = vmatpush1.bf16.xpose.msra.mxu0 %v4618
    %4624 = vmatprep.subr.bf16.mxu0 0
    %4625 = vmatpush1.bf16.xpose.msra.mxu0 0
    %4626 = vmatprep.subr.bf16.mxu0 0
    %4627 = vmatpush1.bf16.xpose.msra.mxu0 0
    %4628 = vmatprep.subr.bf16.mxu0 0
    %4629 = vmatpush1.bf16.xpose.msra.mxu0 0
    %4630 = vmatprep.subr.bf16.mxu0 0
    %4631 = vmatpush1.bf16.xpose.msra.mxu0 0
    %4632 = vmatprep.subr.bf16.mxu0 0
    %4633 = vmatpush1.bf16.xpose.msra.mxu0 0
    %4634 = vmatprep.subr.bf16.mxu0 0
    %4635 = vmatpush1.bf16.xpose.msra.mxu0 0
    %4636 = vmatprep.subr.bf16.mxu0 0
    %4637 = vmatpush1.bf16.xpose.msra.mxu0 0
    %4638 = vmatprep.subr.bf16.mxu0 0
    %4639 = vmatpush1.bf16.xpose.msra.mxu0 0
    %4640 = vmatprep.subr.bf16.mxu0 0
    %4641 = vmatpush1.bf16.xpose.msra.mxu0 0
    %4642 = vmatprep.subr.bf16.mxu0 0
    %4643 = vmatpush1.bf16.xpose.msra.mxu0 0
    %4644 = vmatprep.subr.bf16.mxu0 0
    %4645 = vmatpush1.bf16.xpose.msra.mxu0 0
    %4646 = vmatprep.subr.bf16.mxu0 0
    %4647 = vmatpush1.bf16.xpose.msra.mxu0 0
    %4648 = vmatprep.subr.bf16.mxu0 0
    %4649 = vmatpush1.bf16.xpose.msra.mxu0 0
    %4650 = vmatprep.subr.bf16.mxu0 0
    %4651 = vmatpush1.bf16.xpose.msra.mxu0 0
    %4652 = vmatprep.mubr.bf16.mxu0 0
    %4653 = vmatmul.mubr.bf16.gmra.mrb[0].mxu0 %v4612
    %v4654 = vpop.f32.mrb[0].mxu0
    %v4655 = vadd.f32 0.0, %v4654
    %v4656 = vpop.f32.mrb[0].mxu0
    %v4657 = vpop.f32.mrb[0].mxu0
    %v4658 = vpop.f32.mrb[0].mxu0
    %4659 = vdwg.mxu0
    %v4661 = vshrl.u32 %v3832, 16
    %v4663 = vshll.u32 %v3832, 16
    %v4665 = vrot.slane %v4663, 1
    %v4666 = vor.u32 %v4661, %v4665
    %v4668 = vshll.u32 %v3833, 16
    %v4670 = vrot.slane %v4668, 1
    %v4671 = vsel %vm3840, %v4666, %v4670
    %v4672 = vshrl.u32 %v3833, 16
    %v4675 = vsel %vm228, %v3580, 0
    %v4678 = vsel %vm228, %v4671, 0
    %v4681 = vsel %vm228, %v4672, 0
    %4683 = vmatprep.subr.bf16.mxu0 0
    %4684 = vmatpush1.bf16.xpose.msra.mxu0 %v4678
    %4685 = vmatprep.subr.bf16.mxu0 0
    %4686 = vmatpush1.bf16.xpose.msra.mxu0 %v4681
    %4687 = vmatprep.subr.bf16.mxu0 0
    %4688 = vmatpush1.bf16.xpose.msra.mxu0 0
    %4689 = vmatprep.subr.bf16.mxu0 0
    %4690 = vmatpush1.bf16.xpose.msra.mxu0 0
    %4691 = vmatprep.subr.bf16.mxu0 0
    %4692 = vmatpush1.bf16.xpose.msra.mxu0 0
    %4693 = vmatprep.subr.bf16.mxu0 0
    %4694 = vmatpush1.bf16.xpose.msra.mxu0 0
    %4695 = vmatprep.subr.bf16.mxu0 0
    %4696 = vmatpush1.bf16.xpose.msra.mxu0 0
    %4697 = vmatprep.subr.bf16.mxu0 0
    %4698 = vmatpush1.bf16.xpose.msra.mxu0 0
    %4699 = vmatprep.subr.bf16.mxu0 0
    %4700 = vmatpush1.bf16.xpose.msra.mxu0 0
    %4701 = vmatprep.subr.bf16.mxu0 0
    %4702 = vmatpush1.bf16.xpose.msra.mxu0 0
    %4703 = vmatprep.subr.bf16.mxu0 0
    %4704 = vmatpush1.bf16.xpose.msra.mxu0 0
    %4705 = vmatprep.subr.bf16.mxu0 0
    %4706 = vmatpush1.bf16.xpose.msra.mxu0 0
    %4707 = vmatprep.subr.bf16.mxu0 0
    %4708 = vmatpush1.bf16.xpose.msra.mxu0 0
    %4709 = vmatprep.subr.bf16.mxu0 0
    %4710 = vmatpush1.bf16.xpose.msra.mxu0 0
    %4711 = vmatprep.subr.bf16.mxu0 0
    %4712 = vmatpush1.bf16.xpose.msra.mxu0 0
    %4713 = vmatprep.subr.bf16.mxu0 0
    %4714 = vmatpush1.bf16.xpose.msra.mxu0 0
    %4715 = vmatprep.mubr.bf16.mxu0 0
    %4716 = vmatmul.mubr.bf16.gmra.mrb[0].mxu0 %v4675
    %v4717 = vpop.f32.mrb[0].mxu0
    %v4718 = vadd.f32 0.0, %v4717
    %v4719 = vpop.f32.mrb[0].mxu0
    %v4720 = vpop.f32.mrb[0].mxu0
    %v4721 = vpop.f32.mrb[0].mxu0
    %4722 = vdwg.mxu0
    %v4724 = vshrl.u32 %v3834, 16
    %v4726 = vshll.u32 %v3834, 16
    %v4728 = vrot.slane %v4726, 1
    %v4729 = vor.u32 %v4724, %v4728
    %v4731 = vshll.u32 %v3835, 16
    %v4733 = vrot.slane %v4731, 1
    %v4734 = vsel %vm3840, %v4729, %v4733
    %v4735 = vshrl.u32 %v3835, 16
    %v4738 = vsel %vm228, %v3581, 0
    %v4741 = vsel %vm228, %v4734, 0
    %v4744 = vsel %vm228, %v4735, 0
    %4746 = vmatprep.subr.bf16.mxu0 0
    %4747 = vmatpush1.bf16.xpose.msra.mxu0 %v4741
    %4748 = vmatprep.subr.bf16.mxu0 0
    %4749 = vmatpush1.bf16.xpose.msra.mxu0 %v4744
    %4750 = vmatprep.subr.bf16.mxu0 0
    %4751 = vmatpush1.bf16.xpose.msra.mxu0 0
    %4752 = vmatprep.subr.bf16.mxu0 0
    %4753 = vmatpush1.bf16.xpose.msra.mxu0 0
    %4754 = vmatprep.subr.bf16.mxu0 0
    %4755 = vmatpush1.bf16.xpose.msra.mxu0 0
    %4756 = vmatprep.subr.bf16.mxu0 0
    %4757 = vmatpush1.bf16.xpose.msra.mxu0 0
    %4758 = vmatprep.subr.bf16.mxu0 0
    %4759 = vmatpush1.bf16.xpose.msra.mxu0 0
    %4760 = vmatprep.subr.bf16.mxu0 0
    %4761 = vmatpush1.bf16.xpose.msra.mxu0 0
    %4762 = vmatprep.subr.bf16.mxu0 0
    %4763 = vmatpush1.bf16.xpose.msra.mxu0 0
    %4764 = vmatprep.subr.bf16.mxu0 0
    %4765 = vmatpush1.bf16.xpose.msra.mxu0 0
    %4766 = vmatprep.subr.bf16.mxu0 0
    %4767 = vmatpush1.bf16.xpose.msra.mxu0 0
    %4768 = vmatprep.subr.bf16.mxu0 0
    %4769 = vmatpush1.bf16.xpose.msra.mxu0 0
    %4770 = vmatprep.subr.bf16.mxu0 0
    %4771 = vmatpush1.bf16.xpose.msra.mxu0 0
    %4772 = vmatprep.subr.bf16.mxu0 0
    %4773 = vmatpush1.bf16.xpose.msra.mxu0 0
    %4774 = vmatprep.subr.bf16.mxu0 0
    %4775 = vmatpush1.bf16.xpose.msra.mxu0 0
    %4776 = vmatprep.subr.bf16.mxu0 0
    %4777 = vmatpush1.bf16.xpose.msra.mxu0 0
    %4778 = vmatprep.mubr.bf16.mxu0 0
    %4779 = vmatmul.mubr.bf16.gmra.mrb[0].mxu0 %v4738
    %v4780 = vpop.f32.mrb[0].mxu0
    %v4781 = vadd.f32 0.0, %v4780
    %v4782 = vpop.f32.mrb[0].mxu0
    %v4783 = vpop.f32.mrb[0].mxu0
    %v4784 = vpop.f32.mrb[0].mxu0
    %4785 = vdwg.mxu0
    %v4787 = vshrl.u32 %v3836, 16
    %v4789 = vshll.u32 %v3836, 16
    %v4791 = vrot.slane %v4789, 1
    %v4792 = vor.u32 %v4787, %v4791
    %v4794 = vshll.u32 %v3837, 16
    %v4796 = vrot.slane %v4794, 1
    %v4797 = vsel %vm3840, %v4792, %v4796
    %v4798 = vshrl.u32 %v3837, 16
    %v4801 = vsel %vm228, %v3582, 0
    %v4804 = vsel %vm228, %v4797, 0
    %v4807 = vsel %vm228, %v4798, 0
    %4809 = vmatprep.subr.bf16.mxu0 0
    %4810 = vmatpush1.bf16.xpose.msra.mxu0 %v4804
    %4811 = vmatprep.subr.bf16.mxu0 0
    %4812 = vmatpush1.bf16.xpose.msra.mxu0 %v4807
    %4813 = vmatprep.subr.bf16.mxu0 0
    %4814 = vmatpush1.bf16.xpose.msra.mxu0 0
    %4815 = vmatprep.subr.bf16.mxu0 0
    %4816 = vmatpush1.bf16.xpose.msra.mxu0 0
    %4817 = vmatprep.subr.bf16.mxu0 0
    %4818 = vmatpush1.bf16.xpose.msra.mxu0 0
    %4819 = vmatprep.subr.bf16.mxu0 0
    %4820 = vmatpush1.bf16.xpose.msra.mxu0 0
    %4821 = vmatprep.subr.bf16.mxu0 0
    %4822 = vmatpush1.bf16.xpose.msra.mxu0 0
    %4823 = vmatprep.subr.bf16.mxu0 0
    %4824 = vmatpush1.bf16.xpose.msra.mxu0 0
    %4825 = vmatprep.subr.bf16.mxu0 0
    %4826 = vmatpush1.bf16.xpose.msra.mxu0 0
    %4827 = vmatprep.subr.bf16.mxu0 0
    %4828 = vmatpush1.bf16.xpose.msra.mxu0 0
    %4829 = vmatprep.subr.bf16.mxu0 0
    %4830 = vmatpush1.bf16.xpose.msra.mxu0 0
    %4831 = vmatprep.subr.bf16.mxu0 0
    %4832 = vmatpush1.bf16.xpose.msra.mxu0 0
    %4833 = vmatprep.subr.bf16.mxu0 0
    %4834 = vmatpush1.bf16.xpose.msra.mxu0 0
    %4835 = vmatprep.subr.bf16.mxu0 0
    %4836 = vmatpush1.bf16.xpose.msra.mxu0 0
    %4837 = vmatprep.subr.bf16.mxu0 0
    %4838 = vmatpush1.bf16.xpose.msra.mxu0 0
    %4839 = vmatprep.subr.bf16.mxu0 0
    %4840 = vmatpush1.bf16.xpose.msra.mxu0 0
    %4841 = vmatprep.mubr.bf16.mxu0 0
    %4842 = vmatmul.mubr.bf16.gmra.mrb[0].mxu0 %v4801
    %v4843 = vpop.f32.mrb[0].mxu0
    %v4844 = vadd.f32 0.0, %v4843
    %v4845 = vpop.f32.mrb[0].mxu0
    %v4846 = vpop.f32.mrb[0].mxu0
    %v4847 = vpop.f32.mrb[0].mxu0
    %4848 = vdwg.mxu0
    %v4850 = vshrl.u32 %v3838, 16
    %v4852 = vshll.u32 %v3838, 16
    %v4854 = vrot.slane %v4852, 1
    %v4855 = vor.u32 %v4850, %v4854
    %v4857 = vshll.u32 %v3839, 16
    %v4859 = vrot.slane %v4857, 1
    %v4860 = vsel %vm3840, %v4855, %v4859
    %v4861 = vshrl.u32 %v3839, 16
    %v4864 = vsel %vm228, %v3583, 0
    %v4867 = vsel %vm228, %v4860, 0
    %v4870 = vsel %vm228, %v4861, 0
    %4872 = vmatprep.subr.bf16.mxu0 0
    %4873 = vmatpush1.bf16.xpose.msra.mxu0 %v4867
    %4874 = vmatprep.subr.bf16.mxu0 0
    %4875 = vmatpush1.bf16.xpose.msra.mxu0 %v4870
    %4876 = vmatprep.subr.bf16.mxu0 0
    %4877 = vmatpush1.bf16.xpose.msra.mxu0 0
    %4878 = vmatprep.subr.bf16.mxu0 0
    %4879 = vmatpush1.bf16.xpose.msra.mxu0 0
    %4880 = vmatprep.subr.bf16.mxu0 0
    %4881 = vmatpush1.bf16.xpose.msra.mxu0 0
    %4882 = vmatprep.subr.bf16.mxu0 0
    %4883 = vmatpush1.bf16.xpose.msra.mxu0 0
    %4884 = vmatprep.subr.bf16.mxu0 0
    %4885 = vmatpush1.bf16.xpose.msra.mxu0 0
    %4886 = vmatprep.subr.bf16.mxu0 0
    %4887 = vmatpush1.bf16.xpose.msra.mxu0 0
    %4888 = vmatprep.subr.bf16.mxu0 0
    %4889 = vmatpush1.bf16.xpose.msra.mxu0 0
    %4890 = vmatprep.subr.bf16.mxu0 0
    %4891 = vmatpush1.bf16.xpose.msra.mxu0 0
    %4892 = vmatprep.subr.bf16.mxu0 0
    %4893 = vmatpush1.bf16.xpose.msra.mxu0 0
    %4894 = vmatprep.subr.bf16.mxu0 0
    %4895 = vmatpush1.bf16.xpose.msra.mxu0 0
    %4896 = vmatprep.subr.bf16.mxu0 0
    %4897 = vmatpush1.bf16.xpose.msra.mxu0 0
    %4898 = vmatprep.subr.bf16.mxu0 0
    %4899 = vmatpush1.bf16.xpose.msra.mxu0 0
    %4900 = vmatprep.subr.bf16.mxu0 0
    %4901 = vmatpush1.bf16.xpose.msra.mxu0 0
    %4902 = vmatprep.subr.bf16.mxu0 0
    %4903 = vmatpush1.bf16.xpose.msra.mxu0 0
    %4904 = vmatprep.mubr.bf16.mxu0 0
    %4905 = vmatmul.mubr.bf16.gmra.mrb[0].mxu0 %v4864
    %v4906 = vpop.f32.mrb[0].mxu0
    %v4907 = vadd.f32 0.0, %v4906
    %v4908 = vpop.f32.mrb[0].mxu0
    %v4909 = vpop.f32.mrb[0].mxu0
    %v4910 = vpop.f32.mrb[0].mxu0
    %4911 = vdwg.mxu0
    %v4912 = vsel %vm1976, %v3899, -inf
    %4913 = vmax.xlane.f32.xlu0 %v4912
    %v4914 = vpop.xlane.xlu0 %4913
    %v4915 = vsel %vm1976, %v3962, -inf
    %4916 = vmax.xlane.f32.xlu0 %v4915
    %v4917 = vpop.xlane.xlu0 %4916
    %v4918 = vsel %vm1976, %v4025, -inf
    %4919 = vmax.xlane.f32.xlu0 %v4918
    %v4920 = vpop.xlane.xlu0 %4919
    %v4921 = vsel %vm1976, %v4088, -inf
    %4922 = vmax.xlane.f32.xlu0 %v4921
    %v4923 = vpop.xlane.xlu0 %4922
    %v4924 = vsel %vm1976, %v4151, -inf
    %4925 = vmax.xlane.f32.xlu0 %v4924
    %v4926 = vpop.xlane.xlu0 %4925
    %v4927 = vsel %vm1976, %v4214, -inf
    %4928 = vmax.xlane.f32.xlu0 %v4927
    %v4929 = vpop.xlane.xlu0 %4928
    %v4930 = vsel %vm1976, %v4277, -inf
    %4931 = vmax.xlane.f32.xlu0 %v4930
    %v4932 = vpop.xlane.xlu0 %4931
    %v4933 = vsel %vm1976, %v4340, -inf
    %4934 = vmax.xlane.f32.xlu0 %v4933
    %v4935 = vpop.xlane.xlu0 %4934
    %v4936 = vsel %vm1976, %v4403, -inf
    %4937 = vmax.xlane.f32.xlu0 %v4936
    %v4938 = vpop.xlane.xlu0 %4937
    %v4939 = vsel %vm1976, %v4466, -inf
    %4940 = vmax.xlane.f32.xlu0 %v4939
    %v4941 = vpop.xlane.xlu0 %4940
    %v4942 = vsel %vm1976, %v4529, -inf
    %4943 = vmax.xlane.f32.xlu0 %v4942
    %v4944 = vpop.xlane.xlu0 %4943
    %v4945 = vsel %vm1976, %v4592, -inf
    %4946 = vmax.xlane.f32.xlu0 %v4945
    %v4947 = vpop.xlane.xlu0 %4946
    %v4948 = vsel %vm1976, %v4655, -inf
    %4949 = vmax.xlane.f32.xlu0 %v4948
    %v4950 = vpop.xlane.xlu0 %4949
    %v4951 = vsel %vm1976, %v4718, -inf
    %4952 = vmax.xlane.f32.xlu0 %v4951
    %v4953 = vpop.xlane.xlu0 %4952
    %v4954 = vsel %vm1976, %v4781, -inf
    %4955 = vmax.xlane.f32.xlu0 %v4954
    %v4956 = vpop.xlane.xlu0 %4955
    %v4957 = vsel %vm1976, %v4844, -inf
    %4958 = vmax.xlane.f32.xlu0 %v4957
    %v4959 = vpop.xlane.xlu0 %4958
    %v4960 = vsel %vm1976, %v4907, -inf
    %4961 = vmax.xlane.f32.xlu0 %v4960
    %v4962 = vpop.xlane.xlu0 %4961
    %v4963 = vsub.f32 %v3899, %v4914
    %v4964 = vsub.f32 %v3962, %v4917
    %v4965 = vsub.f32 %v4025, %v4920
    %v4966 = vsub.f32 %v4088, %v4923
    %v4967 = vsub.f32 %v4151, %v4926
    %v4968 = vsub.f32 %v4214, %v4929
    %v4969 = vsub.f32 %v4277, %v4932
    %v4970 = vsub.f32 %v4340, %v4935
    %v4971 = vsub.f32 %v4403, %v4938
    %v4972 = vsub.f32 %v4466, %v4941
    %v4973 = vsub.f32 %v4529, %v4944
    %v4974 = vsub.f32 %v4592, %v4947
    %v4975 = vsub.f32 %v4655, %v4950
    %v4976 = vsub.f32 %v4718, %v4953
    %v4977 = vsub.f32 %v4781, %v4956
    %v4978 = vsub.f32 %v4844, %v4959
    %v4979 = vsub.f32 %v4907, %v4962
    %v4980 = vmul.f32 %v4963, 1.442695
    %v4981 = vpow.pop %v4980
    %v4982 = vmul.f32 %v4964, 1.442695
    %v4983 = vpow.pop %v4982
    %v4984 = vmul.f32 %v4965, 1.442695
    %v4985 = vpow.pop %v4984
    %v4986 = vmul.f32 %v4966, 1.442695
    %v4987 = vpow.pop %v4986
    %v4988 = vmul.f32 %v4967, 1.442695
    %v4989 = vpow.pop %v4988
    %v4990 = vmul.f32 %v4968, 1.442695
    %v4991 = vpow.pop %v4990
    %v4992 = vmul.f32 %v4969, 1.442695
    %v4993 = vpow.pop %v4992
    %v4994 = vmul.f32 %v4970, 1.442695
    %v4995 = vpow.pop %v4994
    %v4996 = vmul.f32 %v4971, 1.442695
    %v4997 = vpow.pop %v4996
    %v4998 = vmul.f32 %v4972, 1.442695
    %v4999 = vpow.pop %v4998
    %v5000 = vmul.f32 %v4973, 1.442695
    %v5001 = vpow.pop %v5000
    %v5002 = vmul.f32 %v4974, 1.442695
    %v5003 = vpow.pop %v5002
    %v5004 = vmul.f32 %v4975, 1.442695
    %v5005 = vpow.pop %v5004
    %v5006 = vmul.f32 %v4976, 1.442695
    %v5007 = vpow.pop %v5006
    %v5008 = vmul.f32 %v4977, 1.442695
    %v5009 = vpow.pop %v5008
    %v5010 = vmul.f32 %v4978, 1.442695
    %v5011 = vpow.pop %v5010
    %v5012 = vmul.f32 %v4979, 1.442695
    %v5013 = vpow.pop %v5012
    %v5014 = vsel %vm1976, %v4981, 0.0
    %5015 = vadd.xlane.f32.xlu0 %v5014
    %v5016 = vpop.xlane.xlu0 %5015
    %v5017 = vsel %vm1976, %v4983, 0.0
    %5018 = vadd.xlane.f32.xlu0 %v5017
    %v5019 = vpop.xlane.xlu0 %5018
    %v5020 = vsel %vm1976, %v4985, 0.0
    %5021 = vadd.xlane.f32.xlu0 %v5020
    %v5022 = vpop.xlane.xlu0 %5021
    %v5023 = vsel %vm1976, %v4987, 0.0
    %5024 = vadd.xlane.f32.xlu0 %v5023
    %v5025 = vpop.xlane.xlu0 %5024
    %v5026 = vsel %vm1976, %v4989, 0.0
    %5027 = vadd.xlane.f32.xlu0 %v5026
    %v5028 = vpop.xlane.xlu0 %5027
    %v5029 = vsel %vm1976, %v4991, 0.0
    %5030 = vadd.xlane.f32.xlu0 %v5029
    %v5031 = vpop.xlane.xlu0 %5030
    %v5032 = vsel %vm1976, %v4993, 0.0
    %5033 = vadd.xlane.f32.xlu0 %v5032
    %v5034 = vpop.xlane.xlu0 %5033
    %v5035 = vsel %vm1976, %v4995, 0.0
    %5036 = vadd.xlane.f32.xlu0 %v5035
    %v5037 = vpop.xlane.xlu0 %5036
    %v5038 = vsel %vm1976, %v4997, 0.0
    %5039 = vadd.xlane.f32.xlu0 %v5038
    %v5040 = vpop.xlane.xlu0 %5039
    %v5041 = vsel %vm1976, %v4999, 0.0
    %5042 = vadd.xlane.f32.xlu0 %v5041
    %v5043 = vpop.xlane.xlu0 %5042
    %v5044 = vsel %vm1976, %v5001, 0.0
    %5045 = vadd.xlane.f32.xlu0 %v5044
    %v5046 = vpop.xlane.xlu0 %5045
    %v5047 = vsel %vm1976, %v5003, 0.0
    %5048 = vadd.xlane.f32.xlu0 %v5047
    %v5049 = vpop.xlane.xlu0 %5048
    %v5050 = vsel %vm1976, %v5005, 0.0
    %5051 = vadd.xlane.f32.xlu0 %v5050
    %v5052 = vpop.xlane.xlu0 %5051
    %v5053 = vsel %vm1976, %v5007, 0.0
    %5054 = vadd.xlane.f32.xlu0 %v5053
    %v5055 = vpop.xlane.xlu0 %5054
    %v5056 = vsel %vm1976, %v5009, 0.0
    %5057 = vadd.xlane.f32.xlu0 %v5056
    %v5058 = vpop.xlane.xlu0 %5057
    %v5059 = vsel %vm1976, %v5011, 0.0
    %5060 = vadd.xlane.f32.xlu0 %v5059
    %v5061 = vpop.xlane.xlu0 %5060
    %v5062 = vsel %vm1976, %v5013, 0.0
    %5063 = vadd.xlane.f32.xlu0 %v5062
    %v5064 = vpop.xlane.xlu0 %5063
    %v5065 = vrcp.pop %v5016
    %v5066 = vrcp.pop %v5019
    %v5067 = vrcp.pop %v5022
    %v5068 = vrcp.pop %v5025
    %v5069 = vrcp.pop %v5028
    %v5070 = vrcp.pop %v5031
    %v5071 = vrcp.pop %v5034
    %v5072 = vrcp.pop %v5037
    %v5073 = vrcp.pop %v5040
    %v5074 = vrcp.pop %v5043
    %v5075 = vrcp.pop %v5046
    %v5076 = vrcp.pop %v5049
    %v5077 = vrcp.pop %v5052
    %v5078 = vrcp.pop %v5055
    %v5079 = vrcp.pop %v5058
    %v5080 = vrcp.pop %v5061
    %v5081 = vrcp.pop %v5064
    %v5082 = vmul.f32 %v4981, %v5065
    %v5083 = vmul.f32 %v4983, %v5066
    %v5084 = vmul.f32 %v4985, %v5067
    %v5085 = vmul.f32 %v4987, %v5068
    %v5086 = vmul.f32 %v4989, %v5069
    %v5087 = vmul.f32 %v4991, %v5070
    %v5088 = vmul.f32 %v4993, %v5071
    %v5089 = vmul.f32 %v4995, %v5072
    %v5090 = vmul.f32 %v4997, %v5073
    %v5091 = vmul.f32 %v4999, %v5074
    %v5092 = vmul.f32 %v5001, %v5075
    %v5093 = vmul.f32 %v5003, %v5076
    %v5094 = vmul.f32 %v5005, %v5077
    %v5095 = vmul.f32 %v5007, %v5078
    %v5096 = vmul.f32 %v5009, %v5079
    %v5097 = vmul.f32 %v5011, %v5080
    %v5098 = vmul.f32 %v5013, %v5081
    %v5099 = vpack.c.bf16 %v5082, %v5082
    %v5100 = vpack.c.bf16 %v5083, %v5083
    %v5101 = vpack.c.bf16 %v5084, %v5084
    %v5102 = vpack.c.bf16 %v5085, %v5085
    %v5103 = vpack.c.bf16 %v5086, %v5086
    %v5104 = vpack.c.bf16 %v5087, %v5087
    %v5105 = vpack.c.bf16 %v5088, %v5088
    %v5106 = vpack.c.bf16 %v5089, %v5089
    %v5107 = vpack.c.bf16 %v5090, %v5090
    %v5108 = vpack.c.bf16 %v5091, %v5091
    %v5109 = vpack.c.bf16 %v5092, %v5092
    %v5110 = vpack.c.bf16 %v5093, %v5093
    %v5111 = vpack.c.bf16 %v5094, %v5094
    %v5112 = vpack.c.bf16 %v5095, %v5095
    %v5113 = vpack.c.bf16 %v5096, %v5096
    %v5114 = vpack.c.bf16 %v5097, %v5097
    %v5115 = vpack.c.bf16 %v5098, %v5098
    %v5117 = vshrl.u32 %v2283, 16
    %v5119 = vrot.slane %v5117, 7
    %v5120 = vshll.u32 %v2283, 16
    %v5122 = vor.u32 %v5119, %v5120
    %v5124 = vshll.u32 %v2284, 16
    %v5126 = vsel %vm3584, %v5119, %v5124
    %v5128 = vshrl.u32 %v2285, 16
    %v5130 = vrot.slane %v5128, 7
    %v5131 = vshll.u32 %v2285, 16
    %v5133 = vor.u32 %v5130, %v5131
    %v5135 = vshll.u32 %v2286, 16
    %v5137 = vsel %vm3584, %v5130, %v5135
    %v5139 = vshrl.u32 %v2287, 16
    %v5141 = vrot.slane %v5139, 7
    %v5142 = vshll.u32 %v2287, 16
    %v5144 = vor.u32 %v5141, %v5142
    %v5146 = vshll.u32 %v2288, 16
    %v5148 = vsel %vm3584, %v5141, %v5146
    %v5150 = vshrl.u32 %v2289, 16
    %v5152 = vrot.slane %v5150, 7
    %v5153 = vshll.u32 %v2289, 16
    %v5155 = vor.u32 %v5152, %v5153
    %v5157 = vshll.u32 %v2290, 16
    %v5159 = vsel %vm3584, %v5152, %v5157
    %v5161 = vshrl.u32 %v2291, 16
    %v5163 = vrot.slane %v5161, 7
    %v5164 = vshll.u32 %v2291, 16
    %v5166 = vor.u32 %v5163, %v5164
    %v5168 = vshll.u32 %v2292, 16
    %v5170 = vsel %vm3584, %v5163, %v5168
    %v5172 = vshrl.u32 %v2293, 16
    %v5174 = vrot.slane %v5172, 7
    %v5175 = vshll.u32 %v2293, 16
    %v5177 = vor.u32 %v5174, %v5175
    %v5179 = vshll.u32 %v2294, 16
    %v5181 = vsel %vm3584, %v5174, %v5179
    %v5183 = vshrl.u32 %v2295, 16
    %v5185 = vrot.slane %v5183, 7
    %v5186 = vshll.u32 %v2295, 16
    %v5188 = vor.u32 %v5185, %v5186
    %v5190 = vshll.u32 %v2296, 16
    %v5192 = vsel %vm3584, %v5185, %v5190
    %v5194 = vshrl.u32 %v2297, 16
    %v5196 = vrot.slane %v5194, 7
    %v5197 = vshll.u32 %v2297, 16
    %v5199 = vor.u32 %v5196, %v5197
    %v5201 = vshll.u32 %v2298, 16
    %v5203 = vsel %vm3584, %v5196, %v5201
    %v5205 = vshrl.u32 %v2299, 16
    %v5207 = vrot.slane %v5205, 7
    %v5208 = vshll.u32 %v2299, 16
    %v5210 = vor.u32 %v5207, %v5208
    %v5212 = vshll.u32 %v2300, 16
    %v5214 = vsel %vm3584, %v5207, %v5212
    %v5216 = vshrl.u32 %v2301, 16
    %v5218 = vrot.slane %v5216, 7
    %v5219 = vshll.u32 %v2301, 16
    %v5221 = vor.u32 %v5218, %v5219
    %v5223 = vshll.u32 %v2302, 16
    %v5225 = vsel %vm3584, %v5218, %v5223
    %v5227 = vshrl.u32 %v2303, 16
    %v5229 = vrot.slane %v5227, 7
    %v5230 = vshll.u32 %v2303, 16
    %v5232 = vor.u32 %v5229, %v5230
    %v5234 = vshll.u32 %v2304, 16
    %v5236 = vsel %vm3584, %v5229, %v5234
    %v5238 = vshrl.u32 %v2305, 16
    %v5240 = vrot.slane %v5238, 7
    %v5241 = vshll.u32 %v2305, 16
    %v5243 = vor.u32 %v5240, %v5241
    %v5245 = vshll.u32 %v2306, 16
    %v5247 = vsel %vm3584, %v5240, %v5245
    %v5249 = vshrl.u32 %v2307, 16
    %v5251 = vrot.slane %v5249, 7
    %v5252 = vshll.u32 %v2307, 16
    %v5254 = vor.u32 %v5251, %v5252
    %v5256 = vshll.u32 %v2308, 16
    %v5258 = vsel %vm3584, %v5251, %v5256
    %v5260 = vshrl.u32 %v2309, 16
    %v5262 = vrot.slane %v5260, 7
    %v5263 = vshll.u32 %v2309, 16
    %v5265 = vor.u32 %v5262, %v5263
    %v5267 = vshll.u32 %v2310, 16
    %v5269 = vsel %vm3584, %v5262, %v5267
    %v5271 = vshrl.u32 %v2311, 16
    %v5273 = vrot.slane %v5271, 7
    %v5274 = vshll.u32 %v2311, 16
    %v5276 = vor.u32 %v5273, %v5274
    %v5278 = vshll.u32 %v2312, 16
    %v5280 = vsel %vm3584, %v5273, %v5278
    %v5282 = vshrl.u32 %v2313, 16
    %v5284 = vrot.slane %v5282, 7
    %v5285 = vshll.u32 %v2313, 16
    %v5287 = vor.u32 %v5284, %v5285
    %v5289 = vshll.u32 %v2314, 16
    %v5291 = vsel %vm3584, %v5284, %v5289
    %v5293 = vshrl.u32 %v2315, 16
    %v5295 = vrot.slane %v5293, 7
    %v5296 = vshll.u32 %v2315, 16
    %v5298 = vor.u32 %v5295, %v5296
    %v5300 = vshll.u32 %v2316, 16
    %v5302 = vsel %vm3584, %v5295, %v5300
    %v5337 = vadd.bf16 %v3355, %v5122
    %v5338 = vadd.bf16 %v3356, %v5126
    %v5339 = vadd.bf16 %v3355, %v5133
    %v5340 = vadd.bf16 %v3356, %v5137
    %v5341 = vadd.bf16 %v3355, %v5144
    %v5342 = vadd.bf16 %v3356, %v5148
    %v5343 = vadd.bf16 %v3355, %v5155
    %v5344 = vadd.bf16 %v3356, %v5159
    %v5345 = vadd.bf16 %v3355, %v5166
    %v5346 = vadd.bf16 %v3356, %v5170
    %v5347 = vadd.bf16 %v3355, %v5177
    %v5348 = vadd.bf16 %v3356, %v5181
    %v5349 = vadd.bf16 %v3355, %v5188
    %v5350 = vadd.bf16 %v3356, %v5192
    %v5351 = vadd.bf16 %v3355, %v5199
    %v5352 = vadd.bf16 %v3356, %v5203
    %v5353 = vadd.bf16 %v3355, %v5210
    %v5354 = vadd.bf16 %v3356, %v5214
    %v5355 = vadd.bf16 %v3355, %v5221
    %v5356 = vadd.bf16 %v3356, %v5225
    %v5357 = vadd.bf16 %v3355, %v5232
    %v5358 = vadd.bf16 %v3356, %v5236
    %v5359 = vadd.bf16 %v3355, %v5243
    %v5360 = vadd.bf16 %v3356, %v5247
    %v5361 = vadd.bf16 %v3355, %v5254
    %v5362 = vadd.bf16 %v3356, %v5258
    %v5363 = vadd.bf16 %v3355, %v5265
    %v5364 = vadd.bf16 %v3356, %v5269
    %v5365 = vadd.bf16 %v3355, %v5276
    %v5366 = vadd.bf16 %v3356, %v5280
    %v5367 = vadd.bf16 %v3355, %v5287
    %v5368 = vadd.bf16 %v3356, %v5291
    %v5369 = vadd.bf16 %v3355, %v5298
    %v5370 = vadd.bf16 %v3356, %v5302
    %v5372 = vshrl.u32 %v5337, 16
    %v5374 = vshll.u32 %v5337, 16
    %v5376 = vrot.slane %v5374, 1
    %v5377 = vor.u32 %v5372, %v5376
    %v5379 = vshll.u32 %v5338, 16
    %v5381 = vrot.slane %v5379, 1
    %v5382 = vsel %vm3840, %v5377, %v5381
    %v5383 = vshrl.u32 %v5338, 16
    %v5387 = vsel %vm2385, %v5099, 0
    %v5390 = vand.u32 %v5383, %v2391
    %5392 = vmatprep.subr.bf16.mxu0 0
    %5393 = vmatpush1.bf16.msra.mxu0 %v5382
    %5394 = vmatprep.subr.bf16.mxu0 0
    %5395 = vmatpush1.bf16.msra.mxu0 %v5390
    %5396 = vmatprep.subr.bf16.mxu0 0
    %5397 = vmatpush1.bf16.msra.mxu0 0
    %5398 = vmatprep.subr.bf16.mxu0 0
    %5399 = vmatpush1.bf16.msra.mxu0 0
    %5400 = vmatprep.subr.bf16.mxu0 0
    %5401 = vmatpush1.bf16.msra.mxu0 0
    %5402 = vmatprep.subr.bf16.mxu0 0
    %5403 = vmatpush1.bf16.msra.mxu0 0
    %5404 = vmatprep.subr.bf16.mxu0 0
    %5405 = vmatpush1.bf16.msra.mxu0 0
    %5406 = vmatprep.subr.bf16.mxu0 0
    %5407 = vmatpush1.bf16.msra.mxu0 0
    %5408 = vmatprep.subr.bf16.mxu0 0
    %5409 = vmatpush1.bf16.msra.mxu0 0
    %5410 = vmatprep.subr.bf16.mxu0 0
    %5411 = vmatpush1.bf16.msra.mxu0 0
    %5412 = vmatprep.subr.bf16.mxu0 0
    %5413 = vmatpush1.bf16.msra.mxu0 0
    %5414 = vmatprep.subr.bf16.mxu0 0
    %5415 = vmatpush1.bf16.msra.mxu0 0
    %5416 = vmatprep.subr.bf16.mxu0 0
    %5417 = vmatpush1.bf16.msra.mxu0 0
    %5418 = vmatprep.subr.bf16.mxu0 0
    %5419 = vmatpush1.bf16.msra.mxu0 0
    %5420 = vmatprep.subr.bf16.mxu0 0
    %5421 = vmatpush1.bf16.msra.mxu0 0
    %5422 = vmatprep.subr.bf16.mxu0 0
    %5423 = vmatpush1.bf16.msra.mxu0 0
    %5424 = vmatprep.mubr.bf16.mxu0 0
    %5425 = vmatmul.mubr.bf16.gmra.mrb[0].mxu0 %v5387
    %v5426 = vpop.f32.mrb[0].mxu0
    %v5427 = vadd.f32 0.0, %v5426
    %v5428 = vpop.f32.mrb[0].mxu0
    %v5429 = vpop.f32.mrb[0].mxu0
    %v5430 = vpop.f32.mrb[0].mxu0
    %5431 = vdwg.mxu0
    %v5433 = vshrl.u32 %v5339, 16
    %v5435 = vshll.u32 %v5339, 16
    %v5437 = vrot.slane %v5435, 1
    %v5438 = vor.u32 %v5433, %v5437
    %v5440 = vshll.u32 %v5340, 16
    %v5442 = vrot.slane %v5440, 1
    %v5443 = vsel %vm3840, %v5438, %v5442
    %v5444 = vshrl.u32 %v5340, 16
    %v5448 = vsel %vm2385, %v5100, 0
    %v5451 = vand.u32 %v5444, %v2391
    %5453 = vmatprep.subr.bf16.mxu0 0
    %5454 = vmatpush1.bf16.msra.mxu0 %v5443
    %5455 = vmatprep.subr.bf16.mxu0 0
    %5456 = vmatpush1.bf16.msra.mxu0 %v5451
    %5457 = vmatprep.subr.bf16.mxu0 0
    %5458 = vmatpush1.bf16.msra.mxu0 0
    %5459 = vmatprep.subr.bf16.mxu0 0
    %5460 = vmatpush1.bf16.msra.mxu0 0
    %5461 = vmatprep.subr.bf16.mxu0 0
    %5462 = vmatpush1.bf16.msra.mxu0 0
    %5463 = vmatprep.subr.bf16.mxu0 0
    %5464 = vmatpush1.bf16.msra.mxu0 0
    %5465 = vmatprep.subr.bf16.mxu0 0
    %5466 = vmatpush1.bf16.msra.mxu0 0
    %5467 = vmatprep.subr.bf16.mxu0 0
    %5468 = vmatpush1.bf16.msra.mxu0 0
    %5469 = vmatprep.subr.bf16.mxu0 0
    %5470 = vmatpush1.bf16.msra.mxu0 0
    %5471 = vmatprep.subr.bf16.mxu0 0
    %5472 = vmatpush1.bf16.msra.mxu0 0
    %5473 = vmatprep.subr.bf16.mxu0 0
    %5474 = vmatpush1.bf16.msra.mxu0 0
    %5475 = vmatprep.subr.bf16.mxu0 0
    %5476 = vmatpush1.bf16.msra.mxu0 0
    %5477 = vmatprep.subr.bf16.mxu0 0
    %5478 = vmatpush1.bf16.msra.mxu0 0
    %5479 = vmatprep.subr.bf16.mxu0 0
    %5480 = vmatpush1.bf16.msra.mxu0 0
    %5481 = vmatprep.subr.bf16.mxu0 0
    %5482 = vmatpush1.bf16.msra.mxu0 0
    %5483 = vmatprep.subr.bf16.mxu0 0
    %5484 = vmatpush1.bf16.msra.mxu0 0
    %5485 = vmatprep.mubr.bf16.mxu0 0
    %5486 = vmatmul.mubr.bf16.gmra.mrb[0].mxu0 %v5448
    %v5487 = vpop.f32.mrb[0].mxu0
    %v5488 = vadd.f32 0.0, %v5487
    %v5489 = vpop.f32.mrb[0].mxu0
    %v5490 = vpop.f32.mrb[0].mxu0
    %v5491 = vpop.f32.mrb[0].mxu0
    %5492 = vdwg.mxu0
    %v5494 = vshrl.u32 %v5341, 16
    %v5496 = vshll.u32 %v5341, 16
    %v5498 = vrot.slane %v5496, 1
    %v5499 = vor.u32 %v5494, %v5498
    %v5501 = vshll.u32 %v5342, 16
    %v5503 = vrot.slane %v5501, 1
    %v5504 = vsel %vm3840, %v5499, %v5503
    %v5505 = vshrl.u32 %v5342, 16
    %v5509 = vsel %vm2385, %v5101, 0
    %v5512 = vand.u32 %v5505, %v2391
    %5514 = vmatprep.subr.bf16.mxu0 0
    %5515 = vmatpush1.bf16.msra.mxu0 %v5504
    %5516 = vmatprep.subr.bf16.mxu0 0
    %5517 = vmatpush1.bf16.msra.mxu0 %v5512
    %5518 = vmatprep.subr.bf16.mxu0 0
    %5519 = vmatpush1.bf16.msra.mxu0 0
    %5520 = vmatprep.subr.bf16.mxu0 0
    %5521 = vmatpush1.bf16.msra.mxu0 0
    %5522 = vmatprep.subr.bf16.mxu0 0
    %5523 = vmatpush1.bf16.msra.mxu0 0
    %5524 = vmatprep.subr.bf16.mxu0 0
    %5525 = vmatpush1.bf16.msra.mxu0 0
    %5526 = vmatprep.subr.bf16.mxu0 0
    %5527 = vmatpush1.bf16.msra.mxu0 0
    %5528 = vmatprep.subr.bf16.mxu0 0
    %5529 = vmatpush1.bf16.msra.mxu0 0
    %5530 = vmatprep.subr.bf16.mxu0 0
    %5531 = vmatpush1.bf16.msra.mxu0 0
    %5532 = vmatprep.subr.bf16.mxu0 0
    %5533 = vmatpush1.bf16.msra.mxu0 0
    %5534 = vmatprep.subr.bf16.mxu0 0
    %5535 = vmatpush1.bf16.msra.mxu0 0
    %5536 = vmatprep.subr.bf16.mxu0 0
    %5537 = vmatpush1.bf16.msra.mxu0 0
    %5538 = vmatprep.subr.bf16.mxu0 0
    %5539 = vmatpush1.bf16.msra.mxu0 0
    %5540 = vmatprep.subr.bf16.mxu0 0
    %5541 = vmatpush1.bf16.msra.mxu0 0
    %5542 = vmatprep.subr.bf16.mxu0 0
    %5543 = vmatpush1.bf16.msra.mxu0 0
    %5544 = vmatprep.subr.bf16.mxu0 0
    %5545 = vmatpush1.bf16.msra.mxu0 0
    %5546 = vmatprep.mubr.bf16.mxu0 0
    %5547 = vmatmul.mubr.bf16.gmra.mrb[0].mxu0 %v5509
    %v5548 = vpop.f32.mrb[0].mxu0
    %v5549 = vadd.f32 0.0, %v5548
    %v5550 = vpop.f32.mrb[0].mxu0
    %v5551 = vpop.f32.mrb[0].mxu0
    %v5552 = vpop.f32.mrb[0].mxu0
    %5553 = vdwg.mxu0
    %v5555 = vshrl.u32 %v5343, 16
    %v5557 = vshll.u32 %v5343, 16
    %v5559 = vrot.slane %v5557, 1
    %v5560 = vor.u32 %v5555, %v5559
    %v5562 = vshll.u32 %v5344, 16
    %v5564 = vrot.slane %v5562, 1
    %v5565 = vsel %vm3840, %v5560, %v5564
    %v5566 = vshrl.u32 %v5344, 16
    %v5570 = vsel %vm2385, %v5102, 0
    %v5573 = vand.u32 %v5566, %v2391
    %5575 = vmatprep.subr.bf16.mxu0 0
    %5576 = vmatpush1.bf16.msra.mxu0 %v5565
    %5577 = vmatprep.subr.bf16.mxu0 0
    %5578 = vmatpush1.bf16.msra.mxu0 %v5573
    %5579 = vmatprep.subr.bf16.mxu0 0
    %5580 = vmatpush1.bf16.msra.mxu0 0
    %5581 = vmatprep.subr.bf16.mxu0 0
    %5582 = vmatpush1.bf16.msra.mxu0 0
    %5583 = vmatprep.subr.bf16.mxu0 0
    %5584 = vmatpush1.bf16.msra.mxu0 0
    %5585 = vmatprep.subr.bf16.mxu0 0
    %5586 = vmatpush1.bf16.msra.mxu0 0
    %5587 = vmatprep.subr.bf16.mxu0 0
    %5588 = vmatpush1.bf16.msra.mxu0 0
    %5589 = vmatprep.subr.bf16.mxu0 0
    %5590 = vmatpush1.bf16.msra.mxu0 0
    %5591 = vmatprep.subr.bf16.mxu0 0
    %5592 = vmatpush1.bf16.msra.mxu0 0
    %5593 = vmatprep.subr.bf16.mxu0 0
    %5594 = vmatpush1.bf16.msra.mxu0 0
    %5595 = vmatprep.subr.bf16.mxu0 0
    %5596 = vmatpush1.bf16.msra.mxu0 0
    %5597 = vmatprep.subr.bf16.mxu0 0
    %5598 = vmatpush1.bf16.msra.mxu0 0
    %5599 = vmatprep.subr.bf16.mxu0 0
    %5600 = vmatpush1.bf16.msra.mxu0 0
    %5601 = vmatprep.subr.bf16.mxu0 0
    %5602 = vmatpush1.bf16.msra.mxu0 0
    %5603 = vmatprep.subr.bf16.mxu0 0
    %5604 = vmatpush1.bf16.msra.mxu0 0
    %5605 = vmatprep.subr.bf16.mxu0 0
    %5606 = vmatpush1.bf16.msra.mxu0 0
    %5607 = vmatprep.mubr.bf16.mxu0 0
    %5608 = vmatmul.mubr.bf16.gmra.mrb[0].mxu0 %v5570
    %v5609 = vpop.f32.mrb[0].mxu0
    %v5610 = vadd.f32 0.0, %v5609
    %v5611 = vpop.f32.mrb[0].mxu0
    %v5612 = vpop.f32.mrb[0].mxu0
    %v5613 = vpop.f32.mrb[0].mxu0
    %5614 = vdwg.mxu0
    %v5616 = vshrl.u32 %v5345, 16
    %v5618 = vshll.u32 %v5345, 16
    %v5620 = vrot.slane %v5618, 1
    %v5621 = vor.u32 %v5616, %v5620
    %v5623 = vshll.u32 %v5346, 16
    %v5625 = vrot.slane %v5623, 1
    %v5626 = vsel %vm3840, %v5621, %v5625
    %v5627 = vshrl.u32 %v5346, 16
    %v5631 = vsel %vm2385, %v5103, 0
    %v5634 = vand.u32 %v5627, %v2391
    %5636 = vmatprep.subr.bf16.mxu0 0
    %5637 = vmatpush1.bf16.msra.mxu0 %v5626
    %5638 = vmatprep.subr.bf16.mxu0 0
    %5639 = vmatpush1.bf16.msra.mxu0 %v5634
    %5640 = vmatprep.subr.bf16.mxu0 0
    %5641 = vmatpush1.bf16.msra.mxu0 0
    %5642 = vmatprep.subr.bf16.mxu0 0
    %5643 = vmatpush1.bf16.msra.mxu0 0
    %5644 = vmatprep.subr.bf16.mxu0 0
    %5645 = vmatpush1.bf16.msra.mxu0 0
    %5646 = vmatprep.subr.bf16.mxu0 0
    %5647 = vmatpush1.bf16.msra.mxu0 0
    %5648 = vmatprep.subr.bf16.mxu0 0
    %5649 = vmatpush1.bf16.msra.mxu0 0
    %5650 = vmatprep.subr.bf16.mxu0 0
    %5651 = vmatpush1.bf16.msra.mxu0 0
    %5652 = vmatprep.subr.bf16.mxu0 0
    %5653 = vmatpush1.bf16.msra.mxu0 0
    %5654 = vmatprep.subr.bf16.mxu0 0
    %5655 = vmatpush1.bf16.msra.mxu0 0
    %5656 = vmatprep.subr.bf16.mxu0 0
    %5657 = vmatpush1.bf16.msra.mxu0 0
    %5658 = vmatprep.subr.bf16.mxu0 0
    %5659 = vmatpush1.bf16.msra.mxu0 0
    %5660 = vmatprep.subr.bf16.mxu0 0
    %5661 = vmatpush1.bf16.msra.mxu0 0
    %5662 = vmatprep.subr.bf16.mxu0 0
    %5663 = vmatpush1.bf16.msra.mxu0 0
    %5664 = vmatprep.subr.bf16.mxu0 0
    %5665 = vmatpush1.bf16.msra.mxu0 0
    %5666 = vmatprep.subr.bf16.mxu0 0
    %5667 = vmatpush1.bf16.msra.mxu0 0
    %5668 = vmatprep.mubr.bf16.mxu0 0
    %5669 = vmatmul.mubr.bf16.gmra.mrb[0].mxu0 %v5631
    %v5670 = vpop.f32.mrb[0].mxu0
    %v5671 = vadd.f32 0.0, %v5670
    %v5672 = vpop.f32.mrb[0].mxu0
    %v5673 = vpop.f32.mrb[0].mxu0
    %v5674 = vpop.f32.mrb[0].mxu0
    %5675 = vdwg.mxu0
    %v5677 = vshrl.u32 %v5347, 16
    %v5679 = vshll.u32 %v5347, 16
    %v5681 = vrot.slane %v5679, 1
    %v5682 = vor.u32 %v5677, %v5681
    %v5684 = vshll.u32 %v5348, 16
    %v5686 = vrot.slane %v5684, 1
    %v5687 = vsel %vm3840, %v5682, %v5686
    %v5688 = vshrl.u32 %v5348, 16
    %v5692 = vsel %vm2385, %v5104, 0
    %v5695 = vand.u32 %v5688, %v2391
    %5697 = vmatprep.subr.bf16.mxu0 0
    %5698 = vmatpush1.bf16.msra.mxu0 %v5687
    %5699 = vmatprep.subr.bf16.mxu0 0
    %5700 = vmatpush1.bf16.msra.mxu0 %v5695
    %5701 = vmatprep.subr.bf16.mxu0 0
    %5702 = vmatpush1.bf16.msra.mxu0 0
    %5703 = vmatprep.subr.bf16.mxu0 0
    %5704 = vmatpush1.bf16.msra.mxu0 0
    %5705 = vmatprep.subr.bf16.mxu0 0
    %5706 = vmatpush1.bf16.msra.mxu0 0
    %5707 = vmatprep.subr.bf16.mxu0 0
    %5708 = vmatpush1.bf16.msra.mxu0 0
    %5709 = vmatprep.subr.bf16.mxu0 0
    %5710 = vmatpush1.bf16.msra.mxu0 0
    %5711 = vmatprep.subr.bf16.mxu0 0
    %5712 = vmatpush1.bf16.msra.mxu0 0
    %5713 = vmatprep.subr.bf16.mxu0 0
    %5714 = vmatpush1.bf16.msra.mxu0 0
    %5715 = vmatprep.subr.bf16.mxu0 0
    %5716 = vmatpush1.bf16.msra.mxu0 0
    %5717 = vmatprep.subr.bf16.mxu0 0
    %5718 = vmatpush1.bf16.msra.mxu0 0
    %5719 = vmatprep.subr.bf16.mxu0 0
    %5720 = vmatpush1.bf16.msra.mxu0 0
    %5721 = vmatprep.subr.bf16.mxu0 0
    %5722 = vmatpush1.bf16.msra.mxu0 0
    %5723 = vmatprep.subr.bf16.mxu0 0
    %5724 = vmatpush1.bf16.msra.mxu0 0
    %5725 = vmatprep.subr.bf16.mxu0 0
    %5726 = vmatpush1.bf16.msra.mxu0 0
    %5727 = vmatprep.subr.bf16.mxu0 0
    %5728 = vmatpush1.bf16.msra.mxu0 0
    %5729 = vmatprep.mubr.bf16.mxu0 0
    %5730 = vmatmul.mubr.bf16.gmra.mrb[0].mxu0 %v5692
    %v5731 = vpop.f32.mrb[0].mxu0
    %v5732 = vadd.f32 0.0, %v5731
    %v5733 = vpop.f32.mrb[0].mxu0
    %v5734 = vpop.f32.mrb[0].mxu0
    %v5735 = vpop.f32.mrb[0].mxu0
    %5736 = vdwg.mxu0
    %v5738 = vshrl.u32 %v5349, 16
    %v5740 = vshll.u32 %v5349, 16
    %v5742 = vrot.slane %v5740, 1
    %v5743 = vor.u32 %v5738, %v5742
    %v5745 = vshll.u32 %v5350, 16
    %v5747 = vrot.slane %v5745, 1
    %v5748 = vsel %vm3840, %v5743, %v5747
    %v5749 = vshrl.u32 %v5350, 16
    %v5753 = vsel %vm2385, %v5105, 0
    %v5756 = vand.u32 %v5749, %v2391
    %5758 = vmatprep.subr.bf16.mxu0 0
    %5759 = vmatpush1.bf16.msra.mxu0 %v5748
    %5760 = vmatprep.subr.bf16.mxu0 0
    %5761 = vmatpush1.bf16.msra.mxu0 %v5756
    %5762 = vmatprep.subr.bf16.mxu0 0
    %5763 = vmatpush1.bf16.msra.mxu0 0
    %5764 = vmatprep.subr.bf16.mxu0 0
    %5765 = vmatpush1.bf16.msra.mxu0 0
    %5766 = vmatprep.subr.bf16.mxu0 0
    %5767 = vmatpush1.bf16.msra.mxu0 0
    %5768 = vmatprep.subr.bf16.mxu0 0
    %5769 = vmatpush1.bf16.msra.mxu0 0
    %5770 = vmatprep.subr.bf16.mxu0 0
    %5771 = vmatpush1.bf16.msra.mxu0 0
    %5772 = vmatprep.subr.bf16.mxu0 0
    %5773 = vmatpush1.bf16.msra.mxu0 0
    %5774 = vmatprep.subr.bf16.mxu0 0
    %5775 = vmatpush1.bf16.msra.mxu0 0
    %5776 = vmatprep.subr.bf16.mxu0 0
    %5777 = vmatpush1.bf16.msra.mxu0 0
    %5778 = vmatprep.subr.bf16.mxu0 0
    %5779 = vmatpush1.bf16.msra.mxu0 0
    %5780 = vmatprep.subr.bf16.mxu0 0
    %5781 = vmatpush1.bf16.msra.mxu0 0
    %5782 = vmatprep.subr.bf16.mxu0 0
    %5783 = vmatpush1.bf16.msra.mxu0 0
    %5784 = vmatprep.subr.bf16.mxu0 0
    %5785 = vmatpush1.bf16.msra.mxu0 0
    %5786 = vmatprep.subr.bf16.mxu0 0
    %5787 = vmatpush1.bf16.msra.mxu0 0
    %5788 = vmatprep.subr.bf16.mxu0 0
    %5789 = vmatpush1.bf16.msra.mxu0 0
    %5790 = vmatprep.mubr.bf16.mxu0 0
    %5791 = vmatmul.mubr.bf16.gmra.mrb[0].mxu0 %v5753
    %v5792 = vpop.f32.mrb[0].mxu0
    %v5793 = vadd.f32 0.0, %v5792
    %v5794 = vpop.f32.mrb[0].mxu0
    %v5795 = vpop.f32.mrb[0].mxu0
    %v5796 = vpop.f32.mrb[0].mxu0
    %5797 = vdwg.mxu0
    %v5799 = vshrl.u32 %v5351, 16
    %v5801 = vshll.u32 %v5351, 16
    %v5803 = vrot.slane %v5801, 1
    %v5804 = vor.u32 %v5799, %v5803
    %v5806 = vshll.u32 %v5352, 16
    %v5808 = vrot.slane %v5806, 1
    %v5809 = vsel %vm3840, %v5804, %v5808
    %v5810 = vshrl.u32 %v5352, 16
    %v5814 = vsel %vm2385, %v5106, 0
    %v5817 = vand.u32 %v5810, %v2391
    %5819 = vmatprep.subr.bf16.mxu0 0
    %5820 = vmatpush1.bf16.msra.mxu0 %v5809
    %5821 = vmatprep.subr.bf16.mxu0 0
    %5822 = vmatpush1.bf16.msra.mxu0 %v5817
    %5823 = vmatprep.subr.bf16.mxu0 0
    %5824 = vmatpush1.bf16.msra.mxu0 0
    %5825 = vmatprep.subr.bf16.mxu0 0
    %5826 = vmatpush1.bf16.msra.mxu0 0
    %5827 = vmatprep.subr.bf16.mxu0 0
    %5828 = vmatpush1.bf16.msra.mxu0 0
    %5829 = vmatprep.subr.bf16.mxu0 0
    %5830 = vmatpush1.bf16.msra.mxu0 0
    %5831 = vmatprep.subr.bf16.mxu0 0
    %5832 = vmatpush1.bf16.msra.mxu0 0
    %5833 = vmatprep.subr.bf16.mxu0 0
    %5834 = vmatpush1.bf16.msra.mxu0 0
    %5835 = vmatprep.subr.bf16.mxu0 0
    %5836 = vmatpush1.bf16.msra.mxu0 0
    %5837 = vmatprep.subr.bf16.mxu0 0
    %5838 = vmatpush1.bf16.msra.mxu0 0
    %5839 = vmatprep.subr.bf16.mxu0 0
    %5840 = vmatpush1.bf16.msra.mxu0 0
    %5841 = vmatprep.subr.bf16.mxu0 0
    %5842 = vmatpush1.bf16.msra.mxu0 0
    %5843 = vmatprep.subr.bf16.mxu0 0
    %5844 = vmatpush1.bf16.msra.mxu0 0
    %5845 = vmatprep.subr.bf16.mxu0 0
    %5846 = vmatpush1.bf16.msra.mxu0 0
    %5847 = vmatprep.subr.bf16.mxu0 0
    %5848 = vmatpush1.bf16.msra.mxu0 0
    %5849 = vmatprep.subr.bf16.mxu0 0
    %5850 = vmatpush1.bf16.msra.mxu0 0
    %5851 = vmatprep.mubr.bf16.mxu0 0
    %5852 = vmatmul.mubr.bf16.gmra.mrb[0].mxu0 %v5814
    %v5853 = vpop.f32.mrb[0].mxu0
    %v5854 = vadd.f32 0.0, %v5853
    %v5855 = vpop.f32.mrb[0].mxu0
    %v5856 = vpop.f32.mrb[0].mxu0
    %v5857 = vpop.f32.mrb[0].mxu0
    %5858 = vdwg.mxu0
    %v5860 = vshrl.u32 %v5353, 16
    %v5862 = vshll.u32 %v5353, 16
    %v5864 = vrot.slane %v5862, 1
    %v5865 = vor.u32 %v5860, %v5864
    %v5867 = vshll.u32 %v5354, 16
    %v5869 = vrot.slane %v5867, 1
    %v5870 = vsel %vm3840, %v5865, %v5869
    %v5871 = vshrl.u32 %v5354, 16
    %v5875 = vsel %vm2385, %v5107, 0
    %v5878 = vand.u32 %v5871, %v2391
    %5880 = vmatprep.subr.bf16.mxu0 0
    %5881 = vmatpush1.bf16.msra.mxu0 %v5870
    %5882 = vmatprep.subr.bf16.mxu0 0
    %5883 = vmatpush1.bf16.msra.mxu0 %v5878
    %5884 = vmatprep.subr.bf16.mxu0 0
    %5885 = vmatpush1.bf16.msra.mxu0 0
    %5886 = vmatprep.subr.bf16.mxu0 0
    %5887 = vmatpush1.bf16.msra.mxu0 0
    %5888 = vmatprep.subr.bf16.mxu0 0
    %5889 = vmatpush1.bf16.msra.mxu0 0
    %5890 = vmatprep.subr.bf16.mxu0 0
    %5891 = vmatpush1.bf16.msra.mxu0 0
    %5892 = vmatprep.subr.bf16.mxu0 0
    %5893 = vmatpush1.bf16.msra.mxu0 0
    %5894 = vmatprep.subr.bf16.mxu0 0
    %5895 = vmatpush1.bf16.msra.mxu0 0
    %5896 = vmatprep.subr.bf16.mxu0 0
    %5897 = vmatpush1.bf16.msra.mxu0 0
    %5898 = vmatprep.subr.bf16.mxu0 0
    %5899 = vmatpush1.bf16.msra.mxu0 0
    %5900 = vmatprep.subr.bf16.mxu0 0
    %5901 = vmatpush1.bf16.msra.mxu0 0
    %5902 = vmatprep.subr.bf16.mxu0 0
    %5903 = vmatpush1.bf16.msra.mxu0 0
    %5904 = vmatprep.subr.bf16.mxu0 0
    %5905 = vmatpush1.bf16.msra.mxu0 0
    %5906 = vmatprep.subr.bf16.mxu0 0
    %5907 = vmatpush1.bf16.msra.mxu0 0
    %5908 = vmatprep.subr.bf16.mxu0 0
    %5909 = vmatpush1.bf16.msra.mxu0 0
    %5910 = vmatprep.subr.bf16.mxu0 0
    %5911 = vmatpush1.bf16.msra.mxu0 0
    %5912 = vmatprep.mubr.bf16.mxu0 0
    %5913 = vmatmul.mubr.bf16.gmra.mrb[0].mxu0 %v5875
    %v5914 = vpop.f32.mrb[0].mxu0
    %v5915 = vadd.f32 0.0, %v5914
    %v5916 = vpop.f32.mrb[0].mxu0
    %v5917 = vpop.f32.mrb[0].mxu0
    %v5918 = vpop.f32.mrb[0].mxu0
    %5919 = vdwg.mxu0
    %v5921 = vshrl.u32 %v5355, 16
    %v5923 = vshll.u32 %v5355, 16
    %v5925 = vrot.slane %v5923, 1
    %v5926 = vor.u32 %v5921, %v5925
    %v5928 = vshll.u32 %v5356, 16
    %v5930 = vrot.slane %v5928, 1
    %v5931 = vsel %vm3840, %v5926, %v5930
    %v5932 = vshrl.u32 %v5356, 16
    %v5936 = vsel %vm2385, %v5108, 0
    %v5939 = vand.u32 %v5932, %v2391
    %5941 = vmatprep.subr.bf16.mxu0 0
    %5942 = vmatpush1.bf16.msra.mxu0 %v5931
    %5943 = vmatprep.subr.bf16.mxu0 0
    %5944 = vmatpush1.bf16.msra.mxu0 %v5939
    %5945 = vmatprep.subr.bf16.mxu0 0
    %5946 = vmatpush1.bf16.msra.mxu0 0
    %5947 = vmatprep.subr.bf16.mxu0 0
    %5948 = vmatpush1.bf16.msra.mxu0 0
    %5949 = vmatprep.subr.bf16.mxu0 0
    %5950 = vmatpush1.bf16.msra.mxu0 0
    %5951 = vmatprep.subr.bf16.mxu0 0
    %5952 = vmatpush1.bf16.msra.mxu0 0
    %5953 = vmatprep.subr.bf16.mxu0 0
    %5954 = vmatpush1.bf16.msra.mxu0 0
    %5955 = vmatprep.subr.bf16.mxu0 0
    %5956 = vmatpush1.bf16.msra.mxu0 0
    %5957 = vmatprep.subr.bf16.mxu0 0
    %5958 = vmatpush1.bf16.msra.mxu0 0
    %5959 = vmatprep.subr.bf16.mxu0 0
    %5960 = vmatpush1.bf16.msra.mxu0 0
    %5961 = vmatprep.subr.bf16.mxu0 0
    %5962 = vmatpush1.bf16.msra.mxu0 0
    %5963 = vmatprep.subr.bf16.mxu0 0
    %5964 = vmatpush1.bf16.msra.mxu0 0
    %5965 = vmatprep.subr.bf16.mxu0 0
    %5966 = vmatpush1.bf16.msra.mxu0 0
    %5967 = vmatprep.subr.bf16.mxu0 0
    %5968 = vmatpush1.bf16.msra.mxu0 0
    %5969 = vmatprep.subr.bf16.mxu0 0
    %5970 = vmatpush1.bf16.msra.mxu0 0
    %5971 = vmatprep.subr.bf16.mxu0 0
    %5972 = vmatpush1.bf16.msra.mxu0 0
    %5973 = vmatprep.mubr.bf16.mxu0 0
    %5974 = vmatmul.mubr.bf16.gmra.mrb[0].mxu0 %v5936
    %v5975 = vpop.f32.mrb[0].mxu0
    %v5976 = vadd.f32 0.0, %v5975
    %v5977 = vpop.f32.mrb[0].mxu0
    %v5978 = vpop.f32.mrb[0].mxu0
    %v5979 = vpop.f32.mrb[0].mxu0
    %5980 = vdwg.mxu0
    %v5982 = vshrl.u32 %v5357, 16
    %v5984 = vshll.u32 %v5357, 16
    %v5986 = vrot.slane %v5984, 1
    %v5987 = vor.u32 %v5982, %v5986
    %v5989 = vshll.u32 %v5358, 16
    %v5991 = vrot.slane %v5989, 1
    %v5992 = vsel %vm3840, %v5987, %v5991
    %v5993 = vshrl.u32 %v5358, 16
    %v5997 = vsel %vm2385, %v5109, 0
    %v6000 = vand.u32 %v5993, %v2391
    %6002 = vmatprep.subr.bf16.mxu0 0
    %6003 = vmatpush1.bf16.msra.mxu0 %v5992
    %6004 = vmatprep.subr.bf16.mxu0 0
    %6005 = vmatpush1.bf16.msra.mxu0 %v6000
    %6006 = vmatprep.subr.bf16.mxu0 0
    %6007 = vmatpush1.bf16.msra.mxu0 0
    %6008 = vmatprep.subr.bf16.mxu0 0
    %6009 = vmatpush1.bf16.msra.mxu0 0
    %6010 = vmatprep.subr.bf16.mxu0 0
    %6011 = vmatpush1.bf16.msra.mxu0 0
    %6012 = vmatprep.subr.bf16.mxu0 0
    %6013 = vmatpush1.bf16.msra.mxu0 0
    %6014 = vmatprep.subr.bf16.mxu0 0
    %6015 = vmatpush1.bf16.msra.mxu0 0
    %6016 = vmatprep.subr.bf16.mxu0 0
    %6017 = vmatpush1.bf16.msra.mxu0 0
    %6018 = vmatprep.subr.bf16.mxu0 0
    %6019 = vmatpush1.bf16.msra.mxu0 0
    %6020 = vmatprep.subr.bf16.mxu0 0
    %6021 = vmatpush1.bf16.msra.mxu0 0
    %6022 = vmatprep.subr.bf16.mxu0 0
    %6023 = vmatpush1.bf16.msra.mxu0 0
    %6024 = vmatprep.subr.bf16.mxu0 0
    %6025 = vmatpush1.bf16.msra.mxu0 0
    %6026 = vmatprep.subr.bf16.mxu0 0
    %6027 = vmatpush1.bf16.msra.mxu0 0
    %6028 = vmatprep.subr.bf16.mxu0 0
    %6029 = vmatpush1.bf16.msra.mxu0 0
    %6030 = vmatprep.subr.bf16.mxu0 0
    %6031 = vmatpush1.bf16.msra.mxu0 0
    %6032 = vmatprep.subr.bf16.mxu0 0
    %6033 = vmatpush1.bf16.msra.mxu0 0
    %6034 = vmatprep.mubr.bf16.mxu0 0
    %6035 = vmatmul.mubr.bf16.gmra.mrb[0].mxu0 %v5997
    %v6036 = vpop.f32.mrb[0].mxu0
    %v6037 = vadd.f32 0.0, %v6036
    %v6038 = vpop.f32.mrb[0].mxu0
    %v6039 = vpop.f32.mrb[0].mxu0
    %v6040 = vpop.f32.mrb[0].mxu0
    %6041 = vdwg.mxu0
    %v6043 = vshrl.u32 %v5359, 16
    %v6045 = vshll.u32 %v5359, 16
    %v6047 = vrot.slane %v6045, 1
    %v6048 = vor.u32 %v6043, %v6047
    %v6050 = vshll.u32 %v5360, 16
    %v6052 = vrot.slane %v6050, 1
    %v6053 = vsel %vm3840, %v6048, %v6052
    %v6054 = vshrl.u32 %v5360, 16
    %v6058 = vsel %vm2385, %v5110, 0
    %v6061 = vand.u32 %v6054, %v2391
    %6063 = vmatprep.subr.bf16.mxu0 0
    %6064 = vmatpush1.bf16.msra.mxu0 %v6053
    %6065 = vmatprep.subr.bf16.mxu0 0
    %6066 = vmatpush1.bf16.msra.mxu0 %v6061
    %6067 = vmatprep.subr.bf16.mxu0 0
    %6068 = vmatpush1.bf16.msra.mxu0 0
    %6069 = vmatprep.subr.bf16.mxu0 0
    %6070 = vmatpush1.bf16.msra.mxu0 0
    %6071 = vmatprep.subr.bf16.mxu0 0
    %6072 = vmatpush1.bf16.msra.mxu0 0
    %6073 = vmatprep.subr.bf16.mxu0 0
    %6074 = vmatpush1.bf16.msra.mxu0 0
    %6075 = vmatprep.subr.bf16.mxu0 0
    %6076 = vmatpush1.bf16.msra.mxu0 0
    %6077 = vmatprep.subr.bf16.mxu0 0
    %6078 = vmatpush1.bf16.msra.mxu0 0
    %6079 = vmatprep.subr.bf16.mxu0 0
    %6080 = vmatpush1.bf16.msra.mxu0 0
    %6081 = vmatprep.subr.bf16.mxu0 0
    %6082 = vmatpush1.bf16.msra.mxu0 0
    %6083 = vmatprep.subr.bf16.mxu0 0
    %6084 = vmatpush1.bf16.msra.mxu0 0
    %6085 = vmatprep.subr.bf16.mxu0 0
    %6086 = vmatpush1.bf16.msra.mxu0 0
    %6087 = vmatprep.subr.bf16.mxu0 0
    %6088 = vmatpush1.bf16.msra.mxu0 0
    %6089 = vmatprep.subr.bf16.mxu0 0
    %6090 = vmatpush1.bf16.msra.mxu0 0
    %6091 = vmatprep.subr.bf16.mxu0 0
    %6092 = vmatpush1.bf16.msra.mxu0 0
    %6093 = vmatprep.subr.bf16.mxu0 0
    %6094 = vmatpush1.bf16.msra.mxu0 0
    %6095 = vmatprep.mubr.bf16.mxu0 0
    %6096 = vmatmul.mubr.bf16.gmra.mrb[0].mxu0 %v6058
    %v6097 = vpop.f32.mrb[0].mxu0
    %v6098 = vadd.f32 0.0, %v6097
    %v6099 = vpop.f32.mrb[0].mxu0
    %v6100 = vpop.f32.mrb[0].mxu0
    %v6101 = vpop.f32.mrb[0].mxu0
    %6102 = vdwg.mxu0
    %v6104 = vshrl.u32 %v5361, 16
    %v6106 = vshll.u32 %v5361, 16
    %v6108 = vrot.slane %v6106, 1
    %v6109 = vor.u32 %v6104, %v6108
    %v6111 = vshll.u32 %v5362, 16
    %v6113 = vrot.slane %v6111, 1
    %v6114 = vsel %vm3840, %v6109, %v6113
    %v6115 = vshrl.u32 %v5362, 16
    %v6119 = vsel %vm2385, %v5111, 0
    %v6122 = vand.u32 %v6115, %v2391
    %6124 = vmatprep.subr.bf16.mxu0 0
    %6125 = vmatpush1.bf16.msra.mxu0 %v6114
    %6126 = vmatprep.subr.bf16.mxu0 0
    %6127 = vmatpush1.bf16.msra.mxu0 %v6122
    %6128 = vmatprep.subr.bf16.mxu0 0
    %6129 = vmatpush1.bf16.msra.mxu0 0
    %6130 = vmatprep.subr.bf16.mxu0 0
    %6131 = vmatpush1.bf16.msra.mxu0 0
    %6132 = vmatprep.subr.bf16.mxu0 0
    %6133 = vmatpush1.bf16.msra.mxu0 0
    %6134 = vmatprep.subr.bf16.mxu0 0
    %6135 = vmatpush1.bf16.msra.mxu0 0
    %6136 = vmatprep.subr.bf16.mxu0 0
    %6137 = vmatpush1.bf16.msra.mxu0 0
    %6138 = vmatprep.subr.bf16.mxu0 0
    %6139 = vmatpush1.bf16.msra.mxu0 0
    %6140 = vmatprep.subr.bf16.mxu0 0
    %6141 = vmatpush1.bf16.msra.mxu0 0
    %6142 = vmatprep.subr.bf16.mxu0 0
    %6143 = vmatpush1.bf16.msra.mxu0 0
    %6144 = vmatprep.subr.bf16.mxu0 0
    %6145 = vmatpush1.bf16.msra.mxu0 0
    %6146 = vmatprep.subr.bf16.mxu0 0
    %6147 = vmatpush1.bf16.msra.mxu0 0
    %6148 = vmatprep.subr.bf16.mxu0 0
    %6149 = vmatpush1.bf16.msra.mxu0 0
    %6150 = vmatprep.subr.bf16.mxu0 0
    %6151 = vmatpush1.bf16.msra.mxu0 0
    %6152 = vmatprep.subr.bf16.mxu0 0
    %6153 = vmatpush1.bf16.msra.mxu0 0
    %6154 = vmatprep.subr.bf16.mxu0 0
    %6155 = vmatpush1.bf16.msra.mxu0 0
    %6156 = vmatprep.mubr.bf16.mxu0 0
    %6157 = vmatmul.mubr.bf16.gmra.mrb[0].mxu0 %v6119
    %v6158 = vpop.f32.mrb[0].mxu0
    %v6159 = vadd.f32 0.0, %v6158
    %v6160 = vpop.f32.mrb[0].mxu0
    %v6161 = vpop.f32.mrb[0].mxu0
    %v6162 = vpop.f32.mrb[0].mxu0
    %6163 = vdwg.mxu0
    %v6165 = vshrl.u32 %v5363, 16
    %v6167 = vshll.u32 %v5363, 16
    %v6169 = vrot.slane %v6167, 1
    %v6170 = vor.u32 %v6165, %v6169
    %v6172 = vshll.u32 %v5364, 16
    %v6174 = vrot.slane %v6172, 1
    %v6175 = vsel %vm3840, %v6170, %v6174
    %v6176 = vshrl.u32 %v5364, 16
    %v6180 = vsel %vm2385, %v5112, 0
    %v6183 = vand.u32 %v6176, %v2391
    %6185 = vmatprep.subr.bf16.mxu0 0
    %6186 = vmatpush1.bf16.msra.mxu0 %v6175
    %6187 = vmatprep.subr.bf16.mxu0 0
    %6188 = vmatpush1.bf16.msra.mxu0 %v6183
    %6189 = vmatprep.subr.bf16.mxu0 0
    %6190 = vmatpush1.bf16.msra.mxu0 0
    %6191 = vmatprep.subr.bf16.mxu0 0
    %6192 = vmatpush1.bf16.msra.mxu0 0
    %6193 = vmatprep.subr.bf16.mxu0 0
    %6194 = vmatpush1.bf16.msra.mxu0 0
    %6195 = vmatprep.subr.bf16.mxu0 0
    %6196 = vmatpush1.bf16.msra.mxu0 0
    %6197 = vmatprep.subr.bf16.mxu0 0
    %6198 = vmatpush1.bf16.msra.mxu0 0
    %6199 = vmatprep.subr.bf16.mxu0 0
    %6200 = vmatpush1.bf16.msra.mxu0 0
    %6201 = vmatprep.subr.bf16.mxu0 0
    %6202 = vmatpush1.bf16.msra.mxu0 0
    %6203 = vmatprep.subr.bf16.mxu0 0
    %6204 = vmatpush1.bf16.msra.mxu0 0
    %6205 = vmatprep.subr.bf16.mxu0 0
    %6206 = vmatpush1.bf16.msra.mxu0 0
    %6207 = vmatprep.subr.bf16.mxu0 0
    %6208 = vmatpush1.bf16.msra.mxu0 0
    %6209 = vmatprep.subr.bf16.mxu0 0
    %6210 = vmatpush1.bf16.msra.mxu0 0
    %6211 = vmatprep.subr.bf16.mxu0 0
    %6212 = vmatpush1.bf16.msra.mxu0 0
    %6213 = vmatprep.subr.bf16.mxu0 0
    %6214 = vmatpush1.bf16.msra.mxu0 0
    %6215 = vmatprep.subr.bf16.mxu0 0
    %6216 = vmatpush1.bf16.msra.mxu0 0
    %6217 = vmatprep.mubr.bf16.mxu0 0
    %6218 = vmatmul.mubr.bf16.gmra.mrb[0].mxu0 %v6180
    %v6219 = vpop.f32.mrb[0].mxu0
    %v6220 = vadd.f32 0.0, %v6219
    %v6221 = vpop.f32.mrb[0].mxu0
    %v6222 = vpop.f32.mrb[0].mxu0
    %v6223 = vpop.f32.mrb[0].mxu0
    %6224 = vdwg.mxu0
    %v6226 = vshrl.u32 %v5365, 16
    %v6228 = vshll.u32 %v5365, 16
    %v6230 = vrot.slane %v6228, 1
    %v6231 = vor.u32 %v6226, %v6230
    %v6233 = vshll.u32 %v5366, 16
    %v6235 = vrot.slane %v6233, 1
    %v6236 = vsel %vm3840, %v6231, %v6235
    %v6237 = vshrl.u32 %v5366, 16
    %v6241 = vsel %vm2385, %v5113, 0
    %v6244 = vand.u32 %v6237, %v2391
    %6246 = vmatprep.subr.bf16.mxu0 0
    %6247 = vmatpush1.bf16.msra.mxu0 %v6236
    %6248 = vmatprep.subr.bf16.mxu0 0
    %6249 = vmatpush1.bf16.msra.mxu0 %v6244
    %6250 = vmatprep.subr.bf16.mxu0 0
    %6251 = vmatpush1.bf16.msra.mxu0 0
    %6252 = vmatprep.subr.bf16.mxu0 0
    %6253 = vmatpush1.bf16.msra.mxu0 0
    %6254 = vmatprep.subr.bf16.mxu0 0
    %6255 = vmatpush1.bf16.msra.mxu0 0
    %6256 = vmatprep.subr.bf16.mxu0 0
    %6257 = vmatpush1.bf16.msra.mxu0 0
    %6258 = vmatprep.subr.bf16.mxu0 0
    %6259 = vmatpush1.bf16.msra.mxu0 0
    %6260 = vmatprep.subr.bf16.mxu0 0
    %6261 = vmatpush1.bf16.msra.mxu0 0
    %6262 = vmatprep.subr.bf16.mxu0 0
    %6263 = vmatpush1.bf16.msra.mxu0 0
    %6264 = vmatprep.subr.bf16.mxu0 0
    %6265 = vmatpush1.bf16.msra.mxu0 0
    %6266 = vmatprep.subr.bf16.mxu0 0
    %6267 = vmatpush1.bf16.msra.mxu0 0
    %6268 = vmatprep.subr.bf16.mxu0 0
    %6269 = vmatpush1.bf16.msra.mxu0 0
    %6270 = vmatprep.subr.bf16.mxu0 0
    %6271 = vmatpush1.bf16.msra.mxu0 0
    %6272 = vmatprep.subr.bf16.mxu0 0
    %6273 = vmatpush1.bf16.msra.mxu0 0
    %6274 = vmatprep.subr.bf16.mxu0 0
    %6275 = vmatpush1.bf16.msra.mxu0 0
    %6276 = vmatprep.subr.bf16.mxu0 0
    %6277 = vmatpush1.bf16.msra.mxu0 0
    %6278 = vmatprep.mubr.bf16.mxu0 0
    %6279 = vmatmul.mubr.bf16.gmra.mrb[0].mxu0 %v6241
    %v6280 = vpop.f32.mrb[0].mxu0
    %v6281 = vadd.f32 0.0, %v6280
    %v6282 = vpop.f32.mrb[0].mxu0
    %v6283 = vpop.f32.mrb[0].mxu0
    %v6284 = vpop.f32.mrb[0].mxu0
    %6285 = vdwg.mxu0
    %v6287 = vshrl.u32 %v5367, 16
    %v6289 = vshll.u32 %v5367, 16
    %v6291 = vrot.slane %v6289, 1
    %v6292 = vor.u32 %v6287, %v6291
    %v6294 = vshll.u32 %v5368, 16
    %v6296 = vrot.slane %v6294, 1
    %v6297 = vsel %vm3840, %v6292, %v6296
    %v6298 = vshrl.u32 %v5368, 16
    %v6302 = vsel %vm2385, %v5114, 0
    %v6305 = vand.u32 %v6298, %v2391
    %6307 = vmatprep.subr.bf16.mxu0 0
    %6308 = vmatpush1.bf16.msra.mxu0 %v6297
    %6309 = vmatprep.subr.bf16.mxu0 0
    %6310 = vmatpush1.bf16.msra.mxu0 %v6305
    %6311 = vmatprep.subr.bf16.mxu0 0
    %6312 = vmatpush1.bf16.msra.mxu0 0
    %6313 = vmatprep.subr.bf16.mxu0 0
    %6314 = vmatpush1.bf16.msra.mxu0 0
    %6315 = vmatprep.subr.bf16.mxu0 0
    %6316 = vmatpush1.bf16.msra.mxu0 0
    %6317 = vmatprep.subr.bf16.mxu0 0
    %6318 = vmatpush1.bf16.msra.mxu0 0
    %6319 = vmatprep.subr.bf16.mxu0 0
    %6320 = vmatpush1.bf16.msra.mxu0 0
    %6321 = vmatprep.subr.bf16.mxu0 0
    %6322 = vmatpush1.bf16.msra.mxu0 0
    %6323 = vmatprep.subr.bf16.mxu0 0
    %6324 = vmatpush1.bf16.msra.mxu0 0
    %6325 = vmatprep.subr.bf16.mxu0 0
    %6326 = vmatpush1.bf16.msra.mxu0 0
    %6327 = vmatprep.subr.bf16.mxu0 0
    %6328 = vmatpush1.bf16.msra.mxu0 0
    %6329 = vmatprep.subr.bf16.mxu0 0
    %6330 = vmatpush1.bf16.msra.mxu0 0
    %6331 = vmatprep.subr.bf16.mxu0 0
    %6332 = vmatpush1.bf16.msra.mxu0 0
    %6333 = vmatprep.subr.bf16.mxu0 0
    %6334 = vmatpush1.bf16.msra.mxu0 0
    %6335 = vmatprep.subr.bf16.mxu0 0
    %6336 = vmatpush1.bf16.msra.mxu0 0
    %6337 = vmatprep.subr.bf16.mxu0 0
    %6338 = vmatpush1.bf16.msra.mxu0 0
    %6339 = vmatprep.mubr.bf16.mxu0 0
    %6340 = vmatmul.mubr.bf16.gmra.mrb[0].mxu0 %v6302
    %v6341 = vpop.f32.mrb[0].mxu0
    %v6342 = vadd.f32 0.0, %v6341
    %v6343 = vpop.f32.mrb[0].mxu0
    %v6344 = vpop.f32.mrb[0].mxu0
    %v6345 = vpop.f32.mrb[0].mxu0
    %6346 = vdwg.mxu0
    %v6348 = vshrl.u32 %v5369, 16
    %v6350 = vshll.u32 %v5369, 16
    %v6352 = vrot.slane %v6350, 1
    %v6353 = vor.u32 %v6348, %v6352
    %v6355 = vshll.u32 %v5370, 16
    %v6357 = vrot.slane %v6355, 1
    %v6358 = vsel %vm3840, %v6353, %v6357
    %v6359 = vshrl.u32 %v5370, 16
    %v6363 = vsel %vm2385, %v5115, 0
    %v6366 = vand.u32 %v6359, %v2391
    %6368 = vmatprep.subr.bf16.mxu0 0
    %6369 = vmatpush1.bf16.msra.mxu0 %v6358
    %6370 = vmatprep.subr.bf16.mxu0 0
    %6371 = vmatpush1.bf16.msra.mxu0 %v6366
    %6372 = vmatprep.subr.bf16.mxu0 0
    %6373 = vmatpush1.bf16.msra.mxu0 0
    %6374 = vmatprep.subr.bf16.mxu0 0
    %6375 = vmatpush1.bf16.msra.mxu0 0
    %6376 = vmatprep.subr.bf16.mxu0 0
    %6377 = vmatpush1.bf16.msra.mxu0 0
    %6378 = vmatprep.subr.bf16.mxu0 0
    %6379 = vmatpush1.bf16.msra.mxu0 0
    %6380 = vmatprep.subr.bf16.mxu0 0
    %6381 = vmatpush1.bf16.msra.mxu0 0
    %6382 = vmatprep.subr.bf16.mxu0 0
    %6383 = vmatpush1.bf16.msra.mxu0 0
    %6384 = vmatprep.subr.bf16.mxu0 0
    %6385 = vmatpush1.bf16.msra.mxu0 0
    %6386 = vmatprep.subr.bf16.mxu0 0
    %6387 = vmatpush1.bf16.msra.mxu0 0
    %6388 = vmatprep.subr.bf16.mxu0 0
    %6389 = vmatpush1.bf16.msra.mxu0 0
    %6390 = vmatprep.subr.bf16.mxu0 0
    %6391 = vmatpush1.bf16.msra.mxu0 0
    %6392 = vmatprep.subr.bf16.mxu0 0
    %6393 = vmatpush1.bf16.msra.mxu0 0
    %6394 = vmatprep.subr.bf16.mxu0 0
    %6395 = vmatpush1.bf16.msra.mxu0 0
    %6396 = vmatprep.subr.bf16.mxu0 0
    %6397 = vmatpush1.bf16.msra.mxu0 0
    %6398 = vmatprep.subr.bf16.mxu0 0
    %6399 = vmatpush1.bf16.msra.mxu0 0
    %6400 = vmatprep.mubr.bf16.mxu0 0
    %6401 = vmatmul.mubr.bf16.gmra.mrb[0].mxu0 %v6363
    %v6402 = vpop.f32.mrb[0].mxu0
    %v6403 = vadd.f32 0.0, %v6402
    %v6404 = vpop.f32.mrb[0].mxu0
    %v6405 = vpop.f32.mrb[0].mxu0
    %v6406 = vpop.f32.mrb[0].mxu0
    %6407 = vdwg.mxu0
    %v6408 = vmul.f32 %v5427, %v225
    %v6409 = vmul.f32 %v5488, %v225
    %v6410 = vmul.f32 %v5549, %v225
    %v6411 = vmul.f32 %v5610, %v225
    %v6412 = vmul.f32 %v5671, %v225
    %v6413 = vmul.f32 %v5732, %v225
    %v6414 = vmul.f32 %v5793, %v225
    %v6415 = vmul.f32 %v5854, %v225
    %v6416 = vmul.f32 %v5915, %v225
    %v6417 = vmul.f32 %v5976, %v225
    %v6418 = vmul.f32 %v6037, %v225
    %v6419 = vmul.f32 %v6098, %v225
    %v6420 = vmul.f32 %v6159, %v225
    %v6421 = vmul.f32 %v6220, %v225
    %v6422 = vmul.f32 %v6281, %v225
    %v6423 = vmul.f32 %v6342, %v225
    %v6424 = vmul.f32 %v6403, %v225
    %v6425 = vsel %vm3188, %v6408, 0.0
    %v6426 = vrot.slane %v6425, 4
    %v6427 = vadd.f32 %v6425, %v6426
    %v6428 = vrot.slane %v6427, 2
    %v6429 = vadd.f32 %v6427, %v6428
    %v6430 = vrot.slane %v6429, 1
    %v6431 = vadd.f32 %v6429, %v6430
    %v6432 = vsel %vm3188, %v6409, 0.0
    %v6433 = vrot.slane %v6432, 4
    %v6434 = vadd.f32 %v6432, %v6433
    %v6435 = vrot.slane %v6434, 2
    %v6436 = vadd.f32 %v6434, %v6435
    %v6437 = vrot.slane %v6436, 1
    %v6438 = vadd.f32 %v6436, %v6437
    %v6439 = vsel %vm3188, %v6410, 0.0
    %v6440 = vrot.slane %v6439, 4
    %v6441 = vadd.f32 %v6439, %v6440
    %v6442 = vrot.slane %v6441, 2
    %v6443 = vadd.f32 %v6441, %v6442
    %v6444 = vrot.slane %v6443, 1
    %v6445 = vadd.f32 %v6443, %v6444
    %v6446 = vsel %vm3188, %v6411, 0.0
    %v6447 = vrot.slane %v6446, 4
    %v6448 = vadd.f32 %v6446, %v6447
    %v6449 = vrot.slane %v6448, 2
    %v6450 = vadd.f32 %v6448, %v6449
    %v6451 = vrot.slane %v6450, 1
    %v6452 = vadd.f32 %v6450, %v6451
    %v6453 = vsel %vm3188, %v6412, 0.0
    %v6454 = vrot.slane %v6453, 4
    %v6455 = vadd.f32 %v6453, %v6454
    %v6456 = vrot.slane %v6455, 2
    %v6457 = vadd.f32 %v6455, %v6456
    %v6458 = vrot.slane %v6457, 1
    %v6459 = vadd.f32 %v6457, %v6458
    %v6460 = vsel %vm3188, %v6413, 0.0
    %v6461 = vrot.slane %v6460, 4
    %v6462 = vadd.f32 %v6460, %v6461
    %v6463 = vrot.slane %v6462, 2
    %v6464 = vadd.f32 %v6462, %v6463
    %v6465 = vrot.slane %v6464, 1
    %v6466 = vadd.f32 %v6464, %v6465
    %v6467 = vsel %vm3188, %v6414, 0.0
    %v6468 = vrot.slane %v6467, 4
    %v6469 = vadd.f32 %v6467, %v6468
    %v6470 = vrot.slane %v6469, 2
    %v6471 = vadd.f32 %v6469, %v6470
    %v6472 = vrot.slane %v6471, 1
    %v6473 = vadd.f32 %v6471, %v6472
    %v6474 = vsel %vm3188, %v6415, 0.0
    %v6475 = vrot.slane %v6474, 4
    %v6476 = vadd.f32 %v6474, %v6475
    %v6477 = vrot.slane %v6476, 2
    %v6478 = vadd.f32 %v6476, %v6477
    %v6479 = vrot.slane %v6478, 1
    %v6480 = vadd.f32 %v6478, %v6479
    %v6481 = vsel %vm3188, %v6416, 0.0
    %v6482 = vrot.slane %v6481, 4
    %v6483 = vadd.f32 %v6481, %v6482
    %v6484 = vrot.slane %v6483, 2
    %v6485 = vadd.f32 %v6483, %v6484
    %v6486 = vrot.slane %v6485, 1
    %v6487 = vadd.f32 %v6485, %v6486
    %v6488 = vsel %vm3188, %v6417, 0.0
    %v6489 = vrot.slane %v6488, 4
    %v6490 = vadd.f32 %v6488, %v6489
    %v6491 = vrot.slane %v6490, 2
    %v6492 = vadd.f32 %v6490, %v6491
    %v6493 = vrot.slane %v6492, 1
    %v6494 = vadd.f32 %v6492, %v6493
    %v6495 = vsel %vm3188, %v6418, 0.0
    %v6496 = vrot.slane %v6495, 4
    %v6497 = vadd.f32 %v6495, %v6496
    %v6498 = vrot.slane %v6497, 2
    %v6499 = vadd.f32 %v6497, %v6498
    %v6500 = vrot.slane %v6499, 1
    %v6501 = vadd.f32 %v6499, %v6500
    %v6502 = vsel %vm3188, %v6419, 0.0
    %v6503 = vrot.slane %v6502, 4
    %v6504 = vadd.f32 %v6502, %v6503
    %v6505 = vrot.slane %v6504, 2
    %v6506 = vadd.f32 %v6504, %v6505
    %v6507 = vrot.slane %v6506, 1
    %v6508 = vadd.f32 %v6506, %v6507
    %v6509 = vsel %vm3188, %v6420, 0.0
    %v6510 = vrot.slane %v6509, 4
    %v6511 = vadd.f32 %v6509, %v6510
    %v6512 = vrot.slane %v6511, 2
    %v6513 = vadd.f32 %v6511, %v6512
    %v6514 = vrot.slane %v6513, 1
    %v6515 = vadd.f32 %v6513, %v6514
    %v6516 = vsel %vm3188, %v6421, 0.0
    %v6517 = vrot.slane %v6516, 4
    %v6518 = vadd.f32 %v6516, %v6517
    %v6519 = vrot.slane %v6518, 2
    %v6520 = vadd.f32 %v6518, %v6519
    %v6521 = vrot.slane %v6520, 1
    %v6522 = vadd.f32 %v6520, %v6521
    %v6523 = vsel %vm3188, %v6422, 0.0
    %v6524 = vrot.slane %v6523, 4
    %v6525 = vadd.f32 %v6523, %v6524
    %v6526 = vrot.slane %v6525, 2
    %v6527 = vadd.f32 %v6525, %v6526
    %v6528 = vrot.slane %v6527, 1
    %v6529 = vadd.f32 %v6527, %v6528
    %v6530 = vsel %vm3188, %v6423, 0.0
    %v6531 = vrot.slane %v6530, 4
    %v6532 = vadd.f32 %v6530, %v6531
    %v6533 = vrot.slane %v6532, 2
    %v6534 = vadd.f32 %v6532, %v6533
    %v6535 = vrot.slane %v6534, 1
    %v6536 = vadd.f32 %v6534, %v6535
    %v6537 = vsel %vm3188, %v6424, 0.0
    %v6538 = vrot.slane %v6537, 4
    %v6539 = vadd.f32 %v6537, %v6538
    %v6540 = vrot.slane %v6539, 2
    %v6541 = vadd.f32 %v6539, %v6540
    %v6542 = vrot.slane %v6541, 1
    %v6543 = vadd.f32 %v6541, %v6542
    %v6561 = vsel %vm3325, %v6438, %v6431
    %v6562 = vsel %vm3327, %v6445, %v6561
    %v6563 = vsel %vm3329, %v6452, %v6562
    %v6564 = vsel %vm3331, %v6459, %v6563
    %v6565 = vsel %vm3333, %v6466, %v6564
    %v6566 = vsel %vm3335, %v6473, %v6565
    %v6567 = vsel %vm3337, %v6480, %v6566
    %v6568 = vsel %vm3325, %v6494, %v6487
    %v6569 = vsel %vm3327, %v6501, %v6568
    %v6570 = vsel %vm3329, %v6508, %v6569
    %v6571 = vsel %vm3331, %v6515, %v6570
    %v6572 = vsel %vm3333, %v6522, %v6571
    %v6573 = vsel %vm3335, %v6529, %v6572
    %v6574 = vsel %vm3337, %v6536, %v6573
    %6578 = vst.msk [vmem:[#allocation2 + $0x11] sm:$0xff] %vm228, %v6567
    %6579 = vst.msk [vmem:[#allocation2 + $0x19] sm:$0xff] %vm228, %v6574
    %6580 = vst.msk [vmem:[#allocation2 + $0x21] sm:$0x1] %vm3351, %v6543
    %v6581 = vld [vmem:[#allocation2] sm:$0xff]
    %v6582 = vld [vmem:[#allocation2 + $0x8] sm:$0xff]
    %v6583 = vld [vmem:[#allocation2 + $0x10] sm:$0xff]
    %v6584 = vld [vmem:[#allocation2 + $0x18] sm:$0xff]
    %v6585 = vld [vmem:[#allocation2 + $0x20] sm:$0x3]
    %v6586 = vpack.c.bf16 %v6582, %v6581
    %v6587 = vpack.c.bf16 %v6584, %v6583
    %v6588 = vpack.c.bf16 %v6585, %v6585
    %v6589 = vld [vmem:[#allocation9] sm:$0xf]
    %v6590 = vld [vmem:[#allocation9 + $0x4] sm:$0xf]
    %v6591 = vld [vmem:[#allocation9 + $0x8] sm:$0xf]
    %v6592 = vld [vmem:[#allocation9 + $0xc] sm:$0xf]
    %v6593 = vld [vmem:[#allocation9 + $0x10] sm:$0xf]
    %v6594 = vld [vmem:[#allocation9 + $0x14] sm:$0xf]
    %v6595 = vld [vmem:[#allocation9 + $0x18] sm:$0xf]
    %v6596 = vld [vmem:[#allocation9 + $0x1c] sm:$0xf]
    %v6597 = vld [vmem:[#allocation11] sm:$0x1]
    %v6599 = vlaneseq
    %v6600 = vshrl.u32 %v6599, 7
    %v6601 = vsub.s32 0, %v6600
    %v6602 = vrot.slane %v6597, %v6601
    %v6612 = vunpack.c.l.b16 %v6589
    %v6613 = vunpack.c.l.b16 %v6590
    %v6614 = vunpack.c.l.b16 %v6591
    %v6615 = vunpack.c.l.b16 %v6592
    %v6616 = vunpack.c.l.b16 %v6593
    %v6617 = vunpack.c.l.b16 %v6594
    %v6618 = vunpack.c.l.b16 %v6595
    %v6619 = vunpack.c.l.b16 %v6596
    %v6620 = vpack.c.b16 %v6613, %v6612
    %v6621 = vpack.c.b16 %v6615, %v6614
    %v6622 = vpack.c.b16 %v6617, %v6616
    %v6623 = vpack.c.b16 %v6619, %v6618
    %v6629 = vsel %vm228, %v6586, 0
    %v6632 = vsel %vm228, %v6587, 0
    %v6635 = vsel %vm228, %v6588, 0
    %6637 = vmatprep.subr.bf16.mxu0 0
    %6638 = vmatpush1.bf16.msra.mxu0 %v6620
    %6639 = vmatprep.subr.bf16.mxu0 0
    %6640 = vmatpush1.bf16.msra.mxu0 %v6621
    %6641 = vmatprep.subr.bf16.mxu0 0
    %6642 = vmatpush1.bf16.msra.mxu0 %v6622
    %6643 = vmatprep.subr.bf16.mxu0 0
    %6644 = vmatpush1.bf16.msra.mxu0 %v6623
    %6645 = vmatprep.subr.bf16.mxu0 0
    %6646 = vmatpush1.bf16.msra.mxu0 0
    %6647 = vmatprep.subr.bf16.mxu0 0
    %6648 = vmatpush1.bf16.msra.mxu0 0
    %6649 = vmatprep.subr.bf16.mxu0 0
    %6650 = vmatpush1.bf16.msra.mxu0 0
    %6651 = vmatprep.subr.bf16.mxu0 0
    %6652 = vmatpush1.bf16.msra.mxu0 0
    %6653 = vmatprep.subr.bf16.mxu0 0
    %6654 = vmatpush1.bf16.msra.mxu0 0
    %6655 = vmatprep.subr.bf16.mxu0 0
    %6656 = vmatpush1.bf16.msra.mxu0 0
    %6657 = vmatprep.subr.bf16.mxu0 0
    %6658 = vmatpush1.bf16.msra.mxu0 0
    %6659 = vmatprep.subr.bf16.mxu0 0
    %6660 = vmatpush1.bf16.msra.mxu0 0
    %6661 = vmatprep.subr.bf16.mxu0 0
    %6662 = vmatpush1.bf16.msra.mxu0 0
    %6663 = vmatprep.subr.bf16.mxu0 0
    %6664 = vmatpush1.bf16.msra.mxu0 0
    %6665 = vmatprep.subr.bf16.mxu0 0
    %6666 = vmatpush1.bf16.msra.mxu0 0
    %6667 = vmatprep.subr.bf16.mxu0 0
    %6668 = vmatpush1.bf16.msra.mxu0 0
    %6669 = vmatprep.mubr.bf16.mxu0 0
    %6670 = vmatmul.mubr.bf16.gmra.mrb[0].mxu0 %v6629
    %v6671 = vpop.f32.mrb[0].mxu0
    %v6672 = vadd.f32 %v6602, %v6671
    %v6673 = vpop.f32.mrb[0].mxu0
    %v6674 = vpop.f32.mrb[0].mxu0
    %v6675 = vadd.f32 %v6602, %v6674
    %v6676 = vpop.f32.mrb[0].mxu0
    %6677 = vmatprep.mubr.bf16.mxu0 0
    %6678 = vmatmul.mubr.bf16.gmra.mrb[0].mxu0 %v6632
    %v6679 = vpop.f32.mrb[0].mxu0
    %v6680 = vadd.f32 %v6602, %v6679
    %v6681 = vpop.f32.mrb[0].mxu0
    %v6682 = vpop.f32.mrb[0].mxu0
    %v6683 = vadd.f32 %v6602, %v6682
    %v6684 = vpop.f32.mrb[0].mxu0
    %6685 = vmatprep.mubr.bf16.mxu0 0
    %6686 = vmatmul.mubr.bf16.gmra.mrb[0].mxu0 %v6635
    %v6687 = vpop.f32.mrb[0].mxu0
    %v6688 = vadd.f32 %v6602, %v6687
    %v6689 = vpop.f32.mrb[0].mxu0
    %v6690 = vpop.f32.mrb[0].mxu0
    %v6691 = vpop.f32.mrb[0].mxu0
    %6692 = vdwg.mxu0
    %v6693 = vadd.f32 %v220, %v6672
    %v6694 = vadd.f32 %v221, %v6675
    %v6695 = vadd.f32 %v222, %v6680
    %v6696 = vadd.f32 %v223, %v6683
    %v6697 = vadd.f32 %v224, %v6688
    %v6698 = vld [vmem:[#allocation15] sm:$0x1]
    %v6699 = vld [vmem:[#allocation17] sm:$0x1]
    %v6700 = vsel %vm228, %v6693, 0.0
    %6701 = vadd.xlane.f32.xlu0 %v6700
    %v6702 = vpop.xlane.xlu0 %6701
    %v6703 = vsel %vm228, %v6694, 0.0
    %6704 = vadd.xlane.f32.xlu0 %v6703
    %v6705 = vpop.xlane.xlu0 %6704
    %v6706 = vsel %vm228, %v6695, 0.0
    %6707 = vadd.xlane.f32.xlu0 %v6706
    %v6708 = vpop.xlane.xlu0 %6707
    %v6709 = vsel %vm228, %v6696, 0.0
    %6710 = vadd.xlane.f32.xlu0 %v6709
    %v6711 = vpop.xlane.xlu0 %6710
    %v6712 = vsel %vm241, %v6697, 0.0
    %6713 = vadd.xlane.f32.xlu0 %v6712
    %v6714 = vpop.xlane.xlu0 %6713
    %v6715 = vmul.f32 %v6702, %v245
    %v6716 = vmul.f32 %v6705, %v245
    %v6717 = vmul.f32 %v6708, %v245
    %v6718 = vmul.f32 %v6711, %v245
    %v6719 = vmul.f32 %v6714, %v245
    %v6720 = vsub.f32 %v6693, %v6715
    %v6721 = vsub.f32 %v6694, %v6716
    %v6722 = vsub.f32 %v6695, %v6717
    %v6723 = vsub.f32 %v6696, %v6718
    %v6724 = vsub.f32 %v6697, %v6719
    %v6725 = vmul.f32 %v6720, %v6720
    %v6726 = vmul.f32 %v6721, %v6721
    %v6727 = vmul.f32 %v6722, %v6722
    %v6728 = vmul.f32 %v6723, %v6723
    %v6729 = vmul.f32 %v6724, %v6724
    %v6730 = vsel %vm228, %v6725, 0.0
    %6731 = vadd.xlane.f32.xlu0 %v6730
    %v6732 = vpop.xlane.xlu0 %6731
    %v6733 = vsel %vm228, %v6726, 0.0
    %6734 = vadd.xlane.f32.xlu0 %v6733
    %v6735 = vpop.xlane.xlu0 %6734
    %v6736 = vsel %vm228, %v6727, 0.0
    %6737 = vadd.xlane.f32.xlu0 %v6736
    %v6738 = vpop.xlane.xlu0 %6737
    %v6739 = vsel %vm228, %v6728, 0.0
    %6740 = vadd.xlane.f32.xlu0 %v6739
    %v6741 = vpop.xlane.xlu0 %6740
    %v6742 = vsel %vm241, %v6729, 0.0
    %6743 = vadd.xlane.f32.xlu0 %v6742
    %v6744 = vpop.xlane.xlu0 %6743
    %v6745 = vmul.f32 %v6732, %v245
    %v6746 = vmul.f32 %v6735, %v245
    %v6747 = vmul.f32 %v6738, %v245
    %v6748 = vmul.f32 %v6741, %v245
    %v6749 = vmul.f32 %v6744, %v245
    %v6750 = vadd.f32 %v6745, 1e-05
    %v6751 = vadd.f32 %v6746, 1e-05
    %v6752 = vadd.f32 %v6747, 1e-05
    %v6753 = vadd.f32 %v6748, 1e-05
    %v6754 = vadd.f32 %v6749, 1e-05
    %v6755 = vrsqrt.pop %v6750
    %v6756 = vrsqrt.pop %v6751
    %v6757 = vrsqrt.pop %v6752
    %v6758 = vrsqrt.pop %v6753
    %v6759 = vrsqrt.pop %v6754
    %v6760 = vmul.f32 %v6720, %v6755
    %v6761 = vmul.f32 %v6721, %v6756
    %v6762 = vmul.f32 %v6722, %v6757
    %v6763 = vmul.f32 %v6723, %v6758
    %v6764 = vmul.f32 %v6724, %v6759
    %v6766 = vlaneseq
    %v6767 = vshrl.u32 %v6766, 7
    %v6768 = vsub.s32 0, %v6767
    %v6769 = vrot.slane %v6698, %v6768
    %v6771 = vmul.f32 %v6760, %v6769
    %v6772 = vmul.f32 %v6761, %v6769
    %v6773 = vmul.f32 %v6762, %v6769
    %v6774 = vmul.f32 %v6763, %v6769
    %v6775 = vmul.f32 %v6764, %v6769
    %v6777 = vlaneseq
    %v6778 = vshrl.u32 %v6777, 7
    %v6779 = vsub.s32 0, %v6778
    %v6780 = vrot.slane %v6699, %v6779
    %v6782 = vadd.f32 %v6771, %v6780
    %v6783 = vadd.f32 %v6772, %v6780
    %v6784 = vadd.f32 %v6773, %v6780
    %v6785 = vadd.f32 %v6774, %v6780
    %v6786 = vadd.f32 %v6775, %v6780
    %v6787 = vpack.c.bf16 %v6783, %v6782
    %v6788 = vpack.c.bf16 %v6785, %v6784
    %v6789 = vpack.c.bf16 %v6786, %v6786
    %v6790 = vld [vmem:[#allocation18] sm:$0xff]
    %v6791 = vld [vmem:[#allocation18 + $0x8] sm:$0xff]
    %v6792 = vld [vmem:[#allocation18 + $0x10] sm:$0xff]
    %v6793 = vld [vmem:[#allocation18 + $0x18] sm:$0xff]
    %v6794 = vld [vmem:[#allocation18 + $0x20] sm:$0xff]
    %v6795 = vld [vmem:[#allocation18 + $0x28] sm:$0xff]
    %v6796 = vld [vmem:[#allocation18 + $0x30] sm:$0xff]
    %v6797 = vld [vmem:[#allocation18 + $0x38] sm:$0xff]
    %v6798 = vld [vmem:[#allocation20] sm:$0x3]
    %v6800 = vlaneseq
    %v6801 = vshrl.u32 %v6800, 7
    %v6802 = vsub.s32 0, %v6801
    %v6803 = vrot.slane %v6798, %v6802
    %v6804 = vlaneseq
    %v6805 = vshrl.u32 %v6804, 7
    %v6806 = vsub.s32 1, %v6805
    %v6807 = vrot.slane %v6798, %v6806
    %v6818 = vunpack.c.l.b16 %v6790
    %v6819 = vunpack.c.h.b16 %v6790
    %v6820 = vunpack.c.l.b16 %v6791
    %v6821 = vunpack.c.h.b16 %v6791
    %v6822 = vunpack.c.l.b16 %v6792
    %v6823 = vunpack.c.h.b16 %v6792
    %v6824 = vunpack.c.l.b16 %v6793
    %v6825 = vunpack.c.h.b16 %v6793
    %v6826 = vunpack.c.l.b16 %v6794
    %v6827 = vunpack.c.h.b16 %v6794
    %v6828 = vunpack.c.l.b16 %v6795
    %v6829 = vunpack.c.h.b16 %v6795
    %v6830 = vunpack.c.l.b16 %v6796
    %v6831 = vunpack.c.h.b16 %v6796
    %v6832 = vunpack.c.l.b16 %v6797
    %v6833 = vunpack.c.h.b16 %v6797
    %v6834 = vpack.c.b16 %v6820, %v6818
    %v6835 = vpack.c.b16 %v6821, %v6819
    %v6836 = vpack.c.b16 %v6824, %v6822
    %v6837 = vpack.c.b16 %v6825, %v6823
    %v6838 = vpack.c.b16 %v6828, %v6826
    %v6839 = vpack.c.b16 %v6829, %v6827
    %v6840 = vpack.c.b16 %v6832, %v6830
    %v6841 = vpack.c.b16 %v6833, %v6831
    %v6851 = vsel %vm228, %v6787, 0
    %v6854 = vsel %vm228, %v6788, 0
    %v6857 = vsel %vm228, %v6789, 0
    %6859 = vmatprep.subr.bf16.mxu0 %v6835
    %6860 = vmatpush1.bf16.msra.mxu0 %v6834
    %6861 = vmatprep.subr.bf16.mxu0 %v6837
    %6862 = vmatpush1.bf16.msra.mxu0 %v6836
    %6863 = vmatprep.subr.bf16.mxu0 %v6839
    %6864 = vmatpush1.bf16.msra.mxu0 %v6838
    %6865 = vmatprep.subr.bf16.mxu0 %v6841
    %6866 = vmatpush1.bf16.msra.mxu0 %v6840
    %6867 = vmatprep.subr.bf16.mxu0 0
    %6868 = vmatpush1.bf16.msra.mxu0 0
    %6869 = vmatprep.subr.bf16.mxu0 0
    %6870 = vmatpush1.bf16.msra.mxu0 0
    %6871 = vmatprep.subr.bf16.mxu0 0
    %6872 = vmatpush1.bf16.msra.mxu0 0
    %6873 = vmatprep.subr.bf16.mxu0 0
    %6874 = vmatpush1.bf16.msra.mxu0 0
    %6875 = vmatprep.subr.bf16.mxu0 0
    %6876 = vmatpush1.bf16.msra.mxu0 0
    %6877 = vmatprep.subr.bf16.mxu0 0
    %6878 = vmatpush1.bf16.msra.mxu0 0
    %6879 = vmatprep.subr.bf16.mxu0 0
    %6880 = vmatpush1.bf16.msra.mxu0 0
    %6881 = vmatprep.subr.bf16.mxu0 0
    %6882 = vmatpush1.bf16.msra.mxu0 0
    %6883 = vmatprep.subr.bf16.mxu0 0
    %6884 = vmatpush1.bf16.msra.mxu0 0
    %6885 = vmatprep.subr.bf16.mxu0 0
    %6886 = vmatpush1.bf16.msra.mxu0 0
    %6887 = vmatprep.subr.bf16.mxu0 0
    %6888 = vmatpush1.bf16.msra.mxu0 0
    %6889 = vmatprep.subr.bf16.mxu0 0
    %6890 = vmatpush1.bf16.msra.mxu0 0
    %6891 = vmatprep.mubr.bf16.mxu0 0
    %6892 = vmatmul.mubr.bf16.gmra.mrb[0].mxu0 %v6851
    %v6893 = vpop.f32.mrb[0].mxu0
    %v6894 = vadd.f32 %v6803, %v6893
    %v6895 = vpop.f32.mrb[0].mxu0
    %v6896 = vadd.f32 %v6807, %v6895
    %v6897 = vpop.f32.mrb[0].mxu0
    %v6898 = vadd.f32 %v6803, %v6897
    %v6899 = vpop.f32.mrb[0].mxu0
    %v6900 = vadd.f32 %v6807, %v6899
    %6901 = vmatprep.mubr.bf16.mxu0 0
    %6902 = vmatmul.mubr.bf16.gmra.mrb[0].mxu0 %v6854
    %v6903 = vpop.f32.mrb[0].mxu0
    %v6904 = vadd.f32 %v6803, %v6903
    %v6905 = vpop.f32.mrb[0].mxu0
    %v6906 = vadd.f32 %v6807, %v6905
    %v6907 = vpop.f32.mrb[0].mxu0
    %v6908 = vadd.f32 %v6803, %v6907
    %v6909 = vpop.f32.mrb[0].mxu0
    %v6910 = vadd.f32 %v6807, %v6909
    %6911 = vmatprep.mubr.bf16.mxu0 0
    %6912 = vmatmul.mubr.bf16.gmra.mrb[0].mxu0 %v6857
    %v6913 = vpop.f32.mrb[0].mxu0
    %v6914 = vadd.f32 %v6803, %v6913
    %v6915 = vpop.f32.mrb[0].mxu0
    %v6916 = vadd.f32 %v6807, %v6915
    %v6917 = vpop.f32.mrb[0].mxu0
    %v6918 = vpop.f32.mrb[0].mxu0
    %6919 = vdwg.mxu0
    %v6920 = vmul.f32 %v6894, 0.5
    %v6921 = vmul.f32 %v6896, 0.5
    %v6922 = vmul.f32 %v6898, 0.5
    %v6923 = vmul.f32 %v6900, 0.5
    %v6924 = vmul.f32 %v6904, 0.5
    %v6925 = vmul.f32 %v6906, 0.5
    %v6926 = vmul.f32 %v6908, 0.5
    %v6927 = vmul.f32 %v6910, 0.5
    %v6928 = vmul.f32 %v6914, 0.5
    %v6929 = vmul.f32 %v6916, 0.5
    %v6930 = vmul.f32 %v6894, 0.70710677
    %v6931 = vmul.f32 %v6896, 0.70710677
    %v6932 = vmul.f32 %v6898, 0.70710677
    %v6933 = vmul.f32 %v6900, 0.70710677
    %v6934 = vmul.f32 %v6904, 0.70710677
    %v6935 = vmul.f32 %v6906, 0.70710677
    %v6936 = vmul.f32 %v6908, 0.70710677
    %v6937 = vmul.f32 %v6910, 0.70710677
    %v6938 = vmul.f32 %v6914, 0.70710677
    %v6939 = vmul.f32 %v6916, 0.70710677
    %v6940 = verf.f32.pop %v6930
    %v6941 = verf.f32.pop %v6931
    %v6942 = verf.f32.pop %v6932
    %v6943 = verf.f32.pop %v6933
    %v6944 = verf.f32.pop %v6934
    %v6945 = verf.f32.pop %v6935
    %v6946 = verf.f32.pop %v6936
    %v6947 = verf.f32.pop %v6937
    %v6948 = verf.f32.pop %v6938
    %v6949 = verf.f32.pop %v6939
    %v6950 = vadd.f32 %v6940, 1.0
    %v6951 = vadd.f32 %v6941, 1.0
    %v6952 = vadd.f32 %v6942, 1.0
    %v6953 = vadd.f32 %v6943, 1.0
    %v6954 = vadd.f32 %v6944, 1.0
    %v6955 = vadd.f32 %v6945, 1.0
    %v6956 = vadd.f32 %v6946, 1.0
    %v6957 = vadd.f32 %v6947, 1.0
    %v6958 = vadd.f32 %v6948, 1.0
    %v6959 = vadd.f32 %v6949, 1.0
    %v6960 = vmul.f32 %v6920, %v6950
    %v6961 = vmul.f32 %v6921, %v6951
    %v6962 = vmul.f32 %v6922, %v6952
    %v6963 = vmul.f32 %v6923, %v6953
    %v6964 = vmul.f32 %v6924, %v6954
    %v6965 = vmul.f32 %v6925, %v6955
    %v6966 = vmul.f32 %v6926, %v6956
    %v6967 = vmul.f32 %v6927, %v6957
    %v6968 = vmul.f32 %v6928, %v6958
    %v6969 = vmul.f32 %v6929, %v6959
    %v6970 = vpack.c.bf16 %v6962, %v6960
    %v6971 = vpack.c.bf16 %v6963, %v6961
    %v6972 = vpack.c.bf16 %v6966, %v6964
    %v6973 = vpack.c.bf16 %v6967, %v6965
    %v6974 = vpack.c.bf16 %v6968, %v6968
    %v6975 = vpack.c.bf16 %v6969, %v6969
    %v6976 = vld [vmem:[%s12] sm:$0xf]
    %v6977 = vld [vmem:[%s12 + $0x4] sm:$0xf]
    %v6978 = vld [vmem:[%s12 + $0x8] sm:$0xf]
    %v6979 = vld [vmem:[%s12 + $0xc] sm:$0xf]
    %v6980 = vld [vmem:[%s12 + $0x10] sm:$0xf]
    %v6981 = vld [vmem:[%s12 + $0x14] sm:$0xf]
    %v6982 = vld [vmem:[%s12 + $0x18] sm:$0xf]
    %v6983 = vld [vmem:[%s12 + $0x1c] sm:$0xf]
    %v6984 = vld [vmem:[%s12 + $0x20] sm:$0xf]
    %v6985 = vld [vmem:[%s12 + $0x24] sm:$0xf]
    %v6986 = vld [vmem:[%s12 + $0x28] sm:$0xf]
    %v6987 = vld [vmem:[%s12 + $0x2c] sm:$0xf]
    %v6988 = vld [vmem:[%s12 + $0x30] sm:$0xf]
    %v6989 = vld [vmem:[%s12 + $0x34] sm:$0xf]
    %v6990 = vld [vmem:[%s12 + $0x38] sm:$0xf]
    %v6991 = vld [vmem:[%s12 + $0x3c] sm:$0xf]
    %v6992 = vld [vmem:[%s12 + $0x40] sm:$0xf]
    %v6993 = vld [vmem:[%s12 + $0x44] sm:$0xf]
    %v6994 = vld [vmem:[%s12 + $0x48] sm:$0xf]
    %v6995 = vld [vmem:[%s12 + $0x4c] sm:$0xf]
    %v6996 = vld [vmem:[%s12 + $0x50] sm:$0xf]
    %v6997 = vld [vmem:[%s12 + $0x54] sm:$0xf]
    %v6998 = vld [vmem:[%s12 + $0x58] sm:$0xf]
    %v6999 = vld [vmem:[%s12 + $0x5c] sm:$0xf]
    %v7000 = vld [vmem:[%s12 + $0x60] sm:$0xf]
    %v7001 = vld [vmem:[%s12 + $0x64] sm:$0xf]
    %v7002 = vld [vmem:[%s12 + $0x68] sm:$0xf]
    %v7003 = vld [vmem:[%s12 + $0x6c] sm:$0xf]
    %v7004 = vld [vmem:[%s12 + $0x70] sm:$0xf]
    %v7005 = vld [vmem:[%s12 + $0x74] sm:$0xf]
    %v7006 = vld [vmem:[%s12 + $0x78] sm:$0xf]
    %v7007 = vld [vmem:[%s12 + $0x7c] sm:$0xf]
    %v7008 = vld [vmem:[#allocation21] sm:$0x1]
    %v7010 = vlaneseq
    %v7011 = vshrl.u32 %v7010, 7
    %v7012 = vsub.s32 0, %v7011
    %v7013 = vrot.slane %v7008, %v7012
    %v7047 = vunpack.c.l.b16 %v6976
    %v7048 = vunpack.c.l.b16 %v6977
    %v7049 = vunpack.c.l.b16 %v6978
    %v7050 = vunpack.c.l.b16 %v6979
    %v7051 = vunpack.c.l.b16 %v6980
    %v7052 = vunpack.c.l.b16 %v6981
    %v7053 = vunpack.c.l.b16 %v6982
    %v7054 = vunpack.c.l.b16 %v6983
    %v7055 = vunpack.c.l.b16 %v6984
    %v7056 = vunpack.c.l.b16 %v6985
    %v7057 = vunpack.c.l.b16 %v6986
    %v7058 = vunpack.c.l.b16 %v6987
    %v7059 = vunpack.c.l.b16 %v6988
    %v7060 = vunpack.c.l.b16 %v6989
    %v7061 = vunpack.c.l.b16 %v6990
    %v7062 = vunpack.c.l.b16 %v6991
    %v7063 = vunpack.c.l.b16 %v6992
    %v7064 = vunpack.c.l.b16 %v6993
    %v7065 = vunpack.c.l.b16 %v6994
    %v7066 = vunpack.c.l.b16 %v6995
    %v7067 = vunpack.c.l.b16 %v6996
    %v7068 = vunpack.c.l.b16 %v6997
    %v7069 = vunpack.c.l.b16 %v6998
    %v7070 = vunpack.c.l.b16 %v6999
    %v7071 = vunpack.c.l.b16 %v7000
    %v7072 = vunpack.c.l.b16 %v7001
    %v7073 = vunpack.c.l.b16 %v7002
    %v7074 = vunpack.c.l.b16 %v7003
    %v7075 = vunpack.c.l.b16 %v7004
    %v7076 = vunpack.c.l.b16 %v7005
    %v7077 = vunpack.c.l.b16 %v7006
    %v7078 = vunpack.c.l.b16 %v7007
    %v7079 = vpack.c.b16 %v7048, %v7047
    %v7080 = vpack.c.b16 %v7050, %v7049
    %v7081 = vpack.c.b16 %v7052, %v7051
    %v7082 = vpack.c.b16 %v7054, %v7053
    %v7083 = vpack.c.b16 %v7056, %v7055
    %v7084 = vpack.c.b16 %v7058, %v7057
    %v7085 = vpack.c.b16 %v7060, %v7059
    %v7086 = vpack.c.b16 %v7062, %v7061
    %v7087 = vpack.c.b16 %v7064, %v7063
    %v7088 = vpack.c.b16 %v7066, %v7065
    %v7089 = vpack.c.b16 %v7068, %v7067
    %v7090 = vpack.c.b16 %v7070, %v7069
    %v7091 = vpack.c.b16 %v7072, %v7071
    %v7092 = vpack.c.b16 %v7074, %v7073
    %v7093 = vpack.c.b16 %v7076, %v7075
    %v7094 = vpack.c.b16 %v7078, %v7077
    %7111 = vmatprep.subr.bf16.mxu0 0
    %7112 = vmatpush1.bf16.msra.mxu0 %v7079
    %7113 = vmatprep.subr.bf16.mxu0 0
    %7114 = vmatpush1.bf16.msra.mxu0 %v7080
    %7115 = vmatprep.subr.bf16.mxu0 0
    %7116 = vmatpush1.bf16.msra.mxu0 %v7081
    %7117 = vmatprep.subr.bf16.mxu0 0
    %7118 = vmatpush1.bf16.msra.mxu0 %v7082
    %7119 = vmatprep.subr.bf16.mxu0 0
    %7120 = vmatpush1.bf16.msra.mxu0 %v7083
    %7121 = vmatprep.subr.bf16.mxu0 0
    %7122 = vmatpush1.bf16.msra.mxu0 %v7084
    %7123 = vmatprep.subr.bf16.mxu0 0
    %7124 = vmatpush1.bf16.msra.mxu0 %v7085
    %7125 = vmatprep.subr.bf16.mxu0 0
    %7126 = vmatpush1.bf16.msra.mxu0 %v7086
    %7127 = vmatprep.subr.bf16.mxu0 0
    %7128 = vmatpush1.bf16.msra.mxu0 %v7087
    %7129 = vmatprep.subr.bf16.mxu0 0
    %7130 = vmatpush1.bf16.msra.mxu0 %v7088
    %7131 = vmatprep.subr.bf16.mxu0 0
    %7132 = vmatpush1.bf16.msra.mxu0 %v7089
    %7133 = vmatprep.subr.bf16.mxu0 0
    %7134 = vmatpush1.bf16.msra.mxu0 %v7090
    %7135 = vmatprep.subr.bf16.mxu0 0
    %7136 = vmatpush1.bf16.msra.mxu0 %v7091
    %7137 = vmatprep.subr.bf16.mxu0 0
    %7138 = vmatpush1.bf16.msra.mxu0 %v7092
    %7139 = vmatprep.subr.bf16.mxu0 0
    %7140 = vmatpush1.bf16.msra.mxu0 %v7093
    %7141 = vmatprep.subr.bf16.mxu0 0
    %7142 = vmatpush1.bf16.msra.mxu0 %v7094
    %7143 = vmatprep.mubr.bf16.mxu0 %v6971
    %7144 = vmatmul.mubr.bf16.gmra.mrb[0].mxu0 %v6970
    %v7145 = vpop.f32.mrb[0].mxu0
    %v7146 = vadd.f32 %v7013, %v7145
    %v7147 = vpop.f32.mrb[0].mxu0
    %v7148 = vpop.f32.mrb[0].mxu0
    %v7149 = vadd.f32 %v7013, %v7148
    %v7150 = vpop.f32.mrb[0].mxu0
    %7151 = vmatprep.mubr.bf16.mxu0 %v6973
    %7152 = vmatmul.mubr.bf16.gmra.mrb[0].mxu0 %v6972
    %v7153 = vpop.f32.mrb[0].mxu0
    %v7154 = vadd.f32 %v7013, %v7153
    %v7155 = vpop.f32.mrb[0].mxu0
    %v7156 = vpop.f32.mrb[0].mxu0
    %v7157 = vadd.f32 %v7013, %v7156
    %v7158 = vpop.f32.mrb[0].mxu0
    %7159 = vmatprep.mubr.bf16.mxu0 %v6975
    %7160 = vmatmul.mubr.bf16.gmra.mrb[0].mxu0 %v6974
    %v7161 = vpop.f32.mrb[0].mxu0
    %v7162 = vadd.f32 %v7013, %v7161
    %v7163 = vpop.f32.mrb[0].mxu0
    %v7164 = vpop.f32.mrb[0].mxu0
    %v7165 = vpop.f32.mrb[0].mxu0
    %7166 = vdwg.mxu0
    %v7167 = vadd.f32 %v6693, %v7146
    %v7168 = vadd.f32 %v6694, %v7149
    %v7169 = vadd.f32 %v6695, %v7154
    %v7170 = vadd.f32 %v6696, %v7157
    %v7171 = vadd.f32 %v6697, %v7162
    %7172 = vst.msk [vmem:[#allocation24] sm:$0xff] %vm228, %v7167
    %7173 = vst.msk [vmem:[#allocation24 + $0x8] sm:$0xff] %vm228, %v7168
    %7174 = vst.msk [vmem:[#allocation24 + $0x10] sm:$0xff] %vm228, %v7169
    %7175 = vst.msk [vmem:[#allocation24 + $0x18] sm:$0xff] %vm228, %v7170
    %7176 = vst.msk [vmem:[#allocation24 + $0x20] sm:$0x3] %vm241, %v7171
    // Predicated region
    $region122: #{tpu_custom_call.1} parent=1 // pred_check
      _
    $region123: #{tpu_custom_call.1} parent=1 // pred_check_branch
      %7178 = sbr.rel (0) target = $region125
    $region124: #{tpu_custom_call.1} parent=1 // pred_region
      %s7180 = ssub.s32 640, 640
      %7181 = vsyncadd [#allocation5], %s7180
      %s7182 = sshll.u32 [#allocation24], 4
      %s7183 = int_to_ptr.vmem [resolvable:$true] %s7182
      %7188 = dma.vmem_to_hbm [thread:$0]  %s7183, 640, %s17, [#allocation5], 128, 128, 8
    $region125: #{tpu_custom_call.1} parent=1 // pred_fallthru
      _
    // Predicated region
    $region126: #{tpu_custom_call.1} parent=1 // pred_check
      _
    $region127: #{tpu_custom_call.1} parent=1 // pred_check_branch
      %7190 = sbr.rel (0) target = $region129
    $region128: #{tpu_custom_call.1} parent=1 // pred_region
      %7191 = dma.done [#allocation5], 640
    $region129: #{tpu_custom_call.1} parent=1 // pred_fallthru
      _
    %7192 = vsyncpa [#allocation4], 1
    %7193 = vsyncpa [#allocation7], 1
    %7194 = vsyncpa [#allocation10], 1
    %7195 = vsyncpa [#allocation13], 1
    %7196 = vsyncpa [#allocation16], 1
    %7197 = vsyncpa [#allocation19], 1
    %7198 = vsyncpa [#allocation22], 1
    %7199 = vsyncpa [#allocation5], 1

</llo_original>
